<compile_context>
chip_gen: v7x
topology: tpu7x:2x2x1
jax: 0.10.0
libtpu: 0.0.40
codegen_flags: <defaults>
</compile_context>

<pallas_src>
import jax
import jax.numpy as jnp
from jax.experimental import pallas as pl
from jax.experimental.pallas import tpu as pltpu

EPS = 1e-5

# Sub-pixel decomposition tables for ConvTranspose2d(k=4, s=2, p=1):
# output row y = 2u + a pulls input row i = u (kernel row KY[a][0]) and
# i = u -/+ 1 (kernel row KY[a][1]); ROFF is the slice start into the 1-padded
# input.  The same tables apply to columns.
KY = ((1, 3), (2, 0))      # [phase][tap] -> kernel index
ROFF = ((1, 0), (1, 2))    # [phase][tap] -> offset into padded input


# ----------------------------- Pallas kernels ------------------------------

def _vmem_specs(n):
    return [pl.BlockSpec(memory_space=pltpu.MemorySpace.VMEM) for _ in range(n)]


def _deconv1_bn_relu_kernel(x_ref, w_ref, g_ref, b_ref, o_ref):
    """deconv1 (4x4, stride 1, pad 0 on a 1x1 input) + BatchNorm + ReLU.

    x_ref: (Cin, N) bf16         w_ref: (16, Cout, Cin) bf16
    g_ref/b_ref: (Cout, 1) f32   o_ref: (16, Cout, N) bf16
    """
    cout = w_ref.shape[1]
    n = x_ref.shape[1]
    x = x_ref[...]
    ys = []
    s = jnp.zeros((cout, 1), jnp.float32)
    ss = jnp.zeros((cout, 1), jnp.float32)
    for k in range(16):
        y = jnp.dot(w_ref[k], x, preferred_element_type=jnp.float32)     # (Cout, N)
        ys.append(y)
        s = s + jnp.sum(y, axis=1, keepdims=True)
        ss = ss + jnp.sum(y * y, axis=1, keepdims=True)
    cnt = 16.0 * n
    mean = s / cnt
    var = ss / cnt - mean * mean            # biased variance (PyTorch BN normalization)
    a = g_ref[...] * jax.lax.rsqrt(var + EPS)
    c = b_ref[...] - mean * a
    for k in range(16):
        o_ref[k] = jnp.maximum(ys[k] * a + c, 0.0).astype(o_ref.dtype)


def _deconv_bn_relu_kernel(p_ref, w_ref, g_ref, b_ref, o_ref):
    """4-phase transposed conv + BatchNorm + ReLU.

    p_ref: (4, 4*Cin, M) bf16    w_ref: (4, Cout, 4*Cin) bf16
    g_ref/b_ref: (Cout, 1) f32   o_ref: (4, Cout, M) bf16
    """
    cout = w_ref.shape[1]
    m = p_ref.shape[2]
    ys = []
    s = jnp.zeros((cout, 1), jnp.float32)
    ss = jnp.zeros((cout, 1), jnp.float32)
    for ph in range(4):
        y = jnp.dot(w_ref[ph], p_ref[ph], preferred_element_type=jnp.float32)  # (Cout, M)
        ys.append(y)
        s = s + jnp.sum(y, axis=1, keepdims=True)
        ss = ss + jnp.sum(y * y, axis=1, keepdims=True)
    cnt = 4.0 * m
    mean = s / cnt
    var = ss / cnt - mean * mean
    a = g_ref[...] * jax.lax.rsqrt(var + EPS)
    c = b_ref[...] - mean * a
    for ph in range(4):
        o_ref[ph] = jnp.maximum(ys[ph] * a + c, 0.0).astype(o_ref.dtype)


def _deconv_tanh_kernel(p_ref, w_ref, b_ref, o_ref):
    """4-phase transposed conv + bias + tanh (final layer, no BN).

    p_ref: (4, 4*Cin, M) bf16  w_ref: (4, Cout, 4*Cin) bf16
    b_ref: (Cout, 1) f32       o_ref: (4, Cout, M) f32
    """
    for ph in range(4):
        y = jnp.dot(w_ref[ph], p_ref[ph], preferred_element_type=jnp.float32)
        o_ref[ph] = jnp.tanh(y + b_ref[...]).astype(o_ref.dtype)


# ------------------------------- JAX glue -----------------------------------

def _phase_taps(a, h, w):
    """a: (C, N, H, W) activation -> (4, 4*C, N*H*W) per-phase shifted taps."""
    c = a.shape[0]
    ap = jnp.pad(a, ((0, 0), (0, 0), (1, 1), (1, 1)))
    phases = []
    for pa in range(2):
        for pb in range(2):
            taps = []
            for ty in range(2):
                for tx in range(2):
                    r = ROFF[pa][ty]
                    cc = ROFF[pb][tx]
                    taps.append(ap[:, :, r:r + h, cc:cc + w].reshape(c, -1))
            phases.append(jnp.concatenate(taps, axis=0))       # (4*C, M)
    return jnp.stack(phases, axis=0)                           # (4, 4*C, M)


def _phase_weights(w):
    """w: (Cin, Cout, 4, 4) ConvTranspose2d weight -> (4, Cout, 4*Cin)."""
    phases = []
    for pa in range(2):
        for pb in range(2):
            taps = []
            for ty in range(2):
                for tx in range(2):
                    taps.append(w[:, :, KY[pa][ty], KY[pb][tx]].T)   # (Cout, Cin)
            phases.append(jnp.concatenate(taps, axis=1))             # (Cout, 4*Cin)
    return jnp.stack(phases, axis=0)


def _pixel_shuffle(y, cout, n, h, w):
    """y: (4, Cout, N*H*W) phase outputs -> (Cout, N, 2H, 2W)."""
    return (y.reshape(2, 2, cout, n, h, w)
             .transpose(2, 3, 4, 0, 5, 1)
             .reshape(cout, n, 2 * h, 2 * w))


def _deconv1_block(z, w, gamma, beta):
    """z: (N, Cin); w: (Cin, Cout, 4, 4) -> activation (Cout, N, 4, 4) bf16."""
    cin, cout = w.shape[0], w.shape[1]
    n = z.shape[0]
    x_t = z.T.astype(jnp.bfloat16)                                          # (Cin, N)
    wk = jnp.transpose(w, (2, 3, 1, 0)).reshape(16, cout, cin).astype(jnp.bfloat16)
    args = (x_t, wk, gamma.reshape(cout, 1).astype(jnp.float32),
            beta.reshape(cout, 1).astype(jnp.float32))
    out = pl.pallas_call(
        _deconv1_bn_relu_kernel,
        out_shape=jax.ShapeDtypeStruct((16, cout, n), jnp.bfloat16),
        in_specs=_vmem_specs(len(args)),
        out_specs=pl.BlockSpec(memory_space=pltpu.MemorySpace.VMEM),
    )(*args)
    # (ky*4+kx, Cout, N) -> (Cout, N, 4, 4)
    return out.reshape(4, 4, cout, n).transpose(2, 3, 0, 1)


def _deconv_bn_relu_block(a, w, gamma, beta):
    """a: (Cin, N, H, W) bf16; w: (Cin, Cout, 4, 4) -> (Cout, N, 2H, 2W) bf16."""
    _, n, h, wd = a.shape
    cout = w.shape[1]
    p = _phase_taps(a, h, wd)
    wp = _phase_weights(w).astype(jnp.bfloat16)
    m = n * h * wd
    args = (p, wp, gamma.reshape(cout, 1).astype(jnp.float32),
            beta.reshape(cout, 1).astype(jnp.float32))
    y = pl.pallas_call(
        _deconv_bn_relu_kernel,
        out_shape=jax.ShapeDtypeStruct((4, cout, m), jnp.bfloat16),
        in_specs=_vmem_specs(len(args)),
        out_specs=pl.BlockSpec(memory_space=pltpu.MemorySpace.VMEM),
    )(*args)
    return _pixel_shuffle(y, cout, n, h, wd)


def _deconv_tanh_block(a, w, bias):
    """a: (Cin, N, H, W) bf16; w: (Cin, Cout, 4, 4) -> (Cout, N, 2H, 2W) f32."""
    _, n, h, wd = a.shape
    cout = w.shape[1]
    p = _phase_taps(a, h, wd)
    wp = _phase_weights(w).astype(jnp.bfloat16)
    m = n * h * wd
    args = (p, wp, bias.reshape(cout, 1).astype(jnp.float32))
    y = pl.pallas_call(
        _deconv_tanh_kernel,
        out_shape=jax.ShapeDtypeStruct((4, cout, m), jnp.float32),
        in_specs=_vmem_specs(len(args)),
        out_specs=pl.BlockSpec(memory_space=pltpu.MemorySpace.VMEM),
    )(*args)
    return _pixel_shuffle(y, cout, n, h, wd)


# ------------------------------- generator ----------------------------------

def init_params(key, d=8, out_ch=1, std=0.02):
    ks = jax.random.split(key, 5)

    def deconv(k, cin, cout):
        # ConvTranspose2d weight layout: (in_ch, out_ch, kH, kW); bias zeroed
        # (matches normal_init(mean=0.0, std)).
        return (std * jax.random.normal(k, (cin, cout, 4, 4), jnp.float32),
                jnp.zeros((cout,), jnp.float32))

    def bn(c):
        return (jnp.ones((c,), jnp.float32), jnp.zeros((c,), jnp.float32))

    return {
        "deconv1": deconv(ks[0], 100, d * 8), "bn1": bn(d * 8),
        "deconv2": deconv(ks[1], d * 8, d * 4), "bn2": bn(d * 4),
        "deconv3": deconv(ks[2], d * 4, d * 2), "bn3": bn(d * 2),
        "deconv4": deconv(ks[3], d * 2, d), "bn4": bn(d),
        "deconv5": deconv(ks[4], d, out_ch),
    }


def generator_forward(params, z_nchw):
    n = z_nchw.shape[0]
    z = z_nchw.reshape(n, -1)                        # (N, 100)

    # NOTE: the conv bias of layers 1-4 cancels exactly under training-mode
    # BatchNorm (the per-channel mean subtraction removes any constant offset),
    # so it is not added inside the BN kernels.
    w, _ = params["deconv1"]; g, b = params["bn1"]
    a = _deconv1_block(z, w, g, b)                   # (d*8, N, 4, 4)
    w, _ = params["deconv2"]; g, b = params["bn2"]
    a = _deconv_bn_relu_block(a, w, g, b)            # (d*4, N, 8, 8)
    w, _ = params["deconv3"]; g, b = params["bn3"]
    a = _deconv_bn_relu_block(a, w, g, b)            # (d*2, N, 16, 16)
    w, _ = params["deconv4"]; g, b = params["bn4"]
    a = _deconv_bn_relu_block(a, w, g, b)            # (d, N, 32, 32)
    w, bias = params["deconv5"]
    o = _deconv_tanh_block(a, w, bias)               # (out_ch, N, 64, 64)
    return jnp.transpose(o, (1, 0, 2, 3))            # NCHW


if __name__ == "__main__":
    key = jax.random.PRNGKey(0)
    k_z, k_p = jax.random.split(key)
    d = 8                       # small width for the test (reference default is 128)
    n = 2
    z = jax.random.normal(k_z, (n, 100, 1, 1), jnp.float32)
    params = init_params(k_p, d=d, out_ch=1)         # 'mnist' variant -> 1 output channel

    fwd = jax.jit(generator_forward)
    out = jax.block_until_ready(fwd(params, z))
    assert out.shape == (n, 1, 64, 64), out.shape
    assert bool(jnp.all(jnp.isfinite(out)))
    assert bool(jnp.all(jnp.abs(out) <= 1.0))
    print("KERNEL_OK")
</pallas_src>

<mosaic_0001>
module attributes {stable_mosaic.version = 11 : i64} {
  func.func @_deconv1_bn_relu_kernel(%arg0: memref<100x2xbf16, #tpu.memory_space<vmem>>, %arg1: memref<16x64x100xbf16, #tpu.memory_space<vmem>>, %arg2: memref<64x1xf32, #tpu.memory_space<vmem>>, %arg3: memref<64x1xf32, #tpu.memory_space<vmem>>, %arg4: memref<16x64x2xbf16, #tpu.memory_space<vmem>>) attributes {dimension_semantics = [], scalar_prefetch = 0 : i64, scratch_operands = 0 : i64, tpu.core_type = #tpu.core_type<tc>} {
    %c0 = arith.constant 0 : index
    %c0_0 = arith.constant 0 : index
    %0 = vector.load %arg0[%c0, %c0_0] : memref<100x2xbf16, #tpu.memory_space<vmem>>, vector<100x2xbf16>
    %cst = arith.constant 0.000000e+00 : f32
    %1 = vector.broadcast %cst : f32 to vector<64x1xf32>
    %cst_1 = arith.constant 0.000000e+00 : f32
    %2 = vector.broadcast %cst_1 : f32 to vector<64x1xf32>
    %c0_2 = arith.constant 0 : index
    %c0_3 = arith.constant 0 : index
    %c0_4 = arith.constant 0 : index
    %3 = vector.load %arg1[%c0_2, %c0_3, %c0_4] : memref<16x64x100xbf16, #tpu.memory_space<vmem>>, vector<1x64x100xbf16>
    %4 = vector.shape_cast %3 : vector<1x64x100xbf16> to vector<64x100xbf16>
    %cst_5 = arith.constant dense<0.000000e+00> : vector<64x2xf32>
    %5 = tpu.matmul %4, %0, %cst_5 {dimension_numbers = #tpu.dot_dimension_numbers<[1], [0], [0], [1], [0, 0, 1, 1], [], []>} : vector<64x100xbf16>, vector<100x2xbf16>, vector<64x2xf32> -> vector<64x2xf32>
    %cst_6 = arith.constant dense<0.000000e+00> : vector<64xf32>
    %6 = vector.multi_reduction <add>, %5, %cst_6 [1] : vector<64x2xf32> to vector<64xf32>
    %7 = vector.shape_cast %6 : vector<64xf32> to vector<64x1xf32>
    %8 = arith.addf %1, %7 : vector<64x1xf32>
    %9 = arith.mulf %5, %5 : vector<64x2xf32>
    %cst_7 = arith.constant dense<0.000000e+00> : vector<64xf32>
    %10 = vector.multi_reduction <add>, %9, %cst_7 [1] : vector<64x2xf32> to vector<64xf32>
    %11 = vector.shape_cast %10 : vector<64xf32> to vector<64x1xf32>
    %12 = arith.addf %2, %11 : vector<64x1xf32>
    %c1 = arith.constant 1 : index
    %c0_8 = arith.constant 0 : index
    %c0_9 = arith.constant 0 : index
    %13 = vector.load %arg1[%c1, %c0_8, %c0_9] : memref<16x64x100xbf16, #tpu.memory_space<vmem>>, vector<1x64x100xbf16>
    %14 = vector.shape_cast %13 : vector<1x64x100xbf16> to vector<64x100xbf16>
    %cst_10 = arith.constant dense<0.000000e+00> : vector<64x2xf32>
    %15 = tpu.matmul %14, %0, %cst_10 {dimension_numbers = #tpu.dot_dimension_numbers<[1], [0], [0], [1], [0, 0, 1, 1], [], []>} : vector<64x100xbf16>, vector<100x2xbf16>, vector<64x2xf32> -> vector<64x2xf32>
    %cst_11 = arith.constant dense<0.000000e+00> : vector<64xf32>
    %16 = vector.multi_reduction <add>, %15, %cst_11 [1] : vector<64x2xf32> to vector<64xf32>
    %17 = vector.shape_cast %16 : vector<64xf32> to vector<64x1xf32>
    %18 = arith.addf %8, %17 : vector<64x1xf32>
    %19 = arith.mulf %15, %15 : vector<64x2xf32>
    %cst_12 = arith.constant dense<0.000000e+00> : vector<64xf32>
    %20 = vector.multi_reduction <add>, %19, %cst_12 [1] : vector<64x2xf32> to vector<64xf32>
    %21 = vector.shape_cast %20 : vector<64xf32> to vector<64x1xf32>
    %22 = arith.addf %12, %21 : vector<64x1xf32>
    %c2 = arith.constant 2 : index
    %c0_13 = arith.constant 0 : index
    %c0_14 = arith.constant 0 : index
    %23 = vector.load %arg1[%c2, %c0_13, %c0_14] : memref<16x64x100xbf16, #tpu.memory_space<vmem>>, vector<1x64x100xbf16>
    %24 = vector.shape_cast %23 : vector<1x64x100xbf16> to vector<64x100xbf16>
    %cst_15 = arith.constant dense<0.000000e+00> : vector<64x2xf32>
    %25 = tpu.matmul %24, %0, %cst_15 {dimension_numbers = #tpu.dot_dimension_numbers<[1], [0], [0], [1], [0, 0, 1, 1], [], []>} : vector<64x100xbf16>, vector<100x2xbf16>, vector<64x2xf32> -> vector<64x2xf32>
    %cst_16 = arith.constant dense<0.000000e+00> : vector<64xf32>
    %26 = vector.multi_reduction <add>, %25, %cst_16 [1] : vector<64x2xf32> to vector<64xf32>
    %27 = vector.shape_cast %26 : vector<64xf32> to vector<64x1xf32>
    %28 = arith.addf %18, %27 : vector<64x1xf32>
    %29 = arith.mulf %25, %25 : vector<64x2xf32>
    %cst_17 = arith.constant dense<0.000000e+00> : vector<64xf32>
    %30 = vector.multi_reduction <add>, %29, %cst_17 [1] : vector<64x2xf32> to vector<64xf32>
    %31 = vector.shape_cast %30 : vector<64xf32> to vector<64x1xf32>
    %32 = arith.addf %22, %31 : vector<64x1xf32>
    %c3 = arith.constant 3 : index
    %c0_18 = arith.constant 0 : index
    %c0_19 = arith.constant 0 : index
    %33 = vector.load %arg1[%c3, %c0_18, %c0_19] : memref<16x64x100xbf16, #tpu.memory_space<vmem>>, vector<1x64x100xbf16>
    %34 = vector.shape_cast %33 : vector<1x64x100xbf16> to vector<64x100xbf16>
    %cst_20 = arith.constant dense<0.000000e+00> : vector<64x2xf32>
    %35 = tpu.matmul %34, %0, %cst_20 {dimension_numbers = #tpu.dot_dimension_numbers<[1], [0], [0], [1], [0, 0, 1, 1], [], []>} : vector<64x100xbf16>, vector<100x2xbf16>, vector<64x2xf32> -> vector<64x2xf32>
    %cst_21 = arith.constant dense<0.000000e+00> : vector<64xf32>
    %36 = vector.multi_reduction <add>, %35, %cst_21 [1] : vector<64x2xf32> to vector<64xf32>
    %37 = vector.shape_cast %36 : vector<64xf32> to vector<64x1xf32>
    %38 = arith.addf %28, %37 : vector<64x1xf32>
    %39 = arith.mulf %35, %35 : vector<64x2xf32>
    %cst_22 = arith.constant dense<0.000000e+00> : vector<64xf32>
    %40 = vector.multi_reduction <add>, %39, %cst_22 [1] : vector<64x2xf32> to vector<64xf32>
    %41 = vector.shape_cast %40 : vector<64xf32> to vector<64x1xf32>
    %42 = arith.addf %32, %41 : vector<64x1xf32>
    %c4 = arith.constant 4 : index
    %c0_23 = arith.constant 0 : index
    %c0_24 = arith.constant 0 : index
    %43 = vector.load %arg1[%c4, %c0_23, %c0_24] : memref<16x64x100xbf16, #tpu.memory_space<vmem>>, vector<1x64x100xbf16>
    %44 = vector.shape_cast %43 : vector<1x64x100xbf16> to vector<64x100xbf16>
    %cst_25 = arith.constant dense<0.000000e+00> : vector<64x2xf32>
    %45 = tpu.matmul %44, %0, %cst_25 {dimension_numbers = #tpu.dot_dimension_numbers<[1], [0], [0], [1], [0, 0, 1, 1], [], []>} : vector<64x100xbf16>, vector<100x2xbf16>, vector<64x2xf32> -> vector<64x2xf32>
    %cst_26 = arith.constant dense<0.000000e+00> : vector<64xf32>
    %46 = vector.multi_reduction <add>, %45, %cst_26 [1] : vector<64x2xf32> to vector<64xf32>
    %47 = vector.shape_cast %46 : vector<64xf32> to vector<64x1xf32>
    %48 = arith.addf %38, %47 : vector<64x1xf32>
    %49 = arith.mulf %45, %45 : vector<64x2xf32>
    %cst_27 = arith.constant dense<0.000000e+00> : vector<64xf32>
    %50 = vector.multi_reduction <add>, %49, %cst_27 [1] : vector<64x2xf32> to vector<64xf32>
    %51 = vector.shape_cast %50 : vector<64xf32> to vector<64x1xf32>
    %52 = arith.addf %42, %51 : vector<64x1xf32>
    %c5 = arith.constant 5 : index
    %c0_28 = arith.constant 0 : index
    %c0_29 = arith.constant 0 : index
    %53 = vector.load %arg1[%c5, %c0_28, %c0_29] : memref<16x64x100xbf16, #tpu.memory_space<vmem>>, vector<1x64x100xbf16>
    %54 = vector.shape_cast %53 : vector<1x64x100xbf16> to vector<64x100xbf16>
    %cst_30 = arith.constant dense<0.000000e+00> : vector<64x2xf32>
    %55 = tpu.matmul %54, %0, %cst_30 {dimension_numbers = #tpu.dot_dimension_numbers<[1], [0], [0], [1], [0, 0, 1, 1], [], []>} : vector<64x100xbf16>, vector<100x2xbf16>, vector<64x2xf32> -> vector<64x2xf32>
    %cst_31 = arith.constant dense<0.000000e+00> : vector<64xf32>
    %56 = vector.multi_reduction <add>, %55, %cst_31 [1] : vector<64x2xf32> to vector<64xf32>
    %57 = vector.shape_cast %56 : vector<64xf32> to vector<64x1xf32>
    %58 = arith.addf %48, %57 : vector<64x1xf32>
    %59 = arith.mulf %55, %55 : vector<64x2xf32>
    %cst_32 = arith.constant dense<0.000000e+00> : vector<64xf32>
    %60 = vector.multi_reduction <add>, %59, %cst_32 [1] : vector<64x2xf32> to vector<64xf32>
    %61 = vector.shape_cast %60 : vector<64xf32> to vector<64x1xf32>
    %62 = arith.addf %52, %61 : vector<64x1xf32>
    %c6 = arith.constant 6 : index
    %c0_33 = arith.constant 0 : index
    %c0_34 = arith.constant 0 : index
    %63 = vector.load %arg1[%c6, %c0_33, %c0_34] : memref<16x64x100xbf16, #tpu.memory_space<vmem>>, vector<1x64x100xbf16>
    %64 = vector.shape_cast %63 : vector<1x64x100xbf16> to vector<64x100xbf16>
    %cst_35 = arith.constant dense<0.000000e+00> : vector<64x2xf32>
    %65 = tpu.matmul %64, %0, %cst_35 {dimension_numbers = #tpu.dot_dimension_numbers<[1], [0], [0], [1], [0, 0, 1, 1], [], []>} : vector<64x100xbf16>, vector<100x2xbf16>, vector<64x2xf32> -> vector<64x2xf32>
    %cst_36 = arith.constant dense<0.000000e+00> : vector<64xf32>
    %66 = vector.multi_reduction <add>, %65, %cst_36 [1] : vector<64x2xf32> to vector<64xf32>
    %67 = vector.shape_cast %66 : vector<64xf32> to vector<64x1xf32>
    %68 = arith.addf %58, %67 : vector<64x1xf32>
    %69 = arith.mulf %65, %65 : vector<64x2xf32>
    %cst_37 = arith.constant dense<0.000000e+00> : vector<64xf32>
    %70 = vector.multi_reduction <add>, %69, %cst_37 [1] : vector<64x2xf32> to vector<64xf32>
    %71 = vector.shape_cast %70 : vector<64xf32> to vector<64x1xf32>
    %72 = arith.addf %62, %71 : vector<64x1xf32>
    %c7 = arith.constant 7 : index
    %c0_38 = arith.constant 0 : index
    %c0_39 = arith.constant 0 : index
    %73 = vector.load %arg1[%c7, %c0_38, %c0_39] : memref<16x64x100xbf16, #tpu.memory_space<vmem>>, vector<1x64x100xbf16>
    %74 = vector.shape_cast %73 : vector<1x64x100xbf16> to vector<64x100xbf16>
    %cst_40 = arith.constant dense<0.000000e+00> : vector<64x2xf32>
    %75 = tpu.matmul %74, %0, %cst_40 {dimension_numbers = #tpu.dot_dimension_numbers<[1], [0], [0], [1], [0, 0, 1, 1], [], []>} : vector<64x100xbf16>, vector<100x2xbf16>, vector<64x2xf32> -> vector<64x2xf32>
    %cst_41 = arith.constant dense<0.000000e+00> : vector<64xf32>
    %76 = vector.multi_reduction <add>, %75, %cst_41 [1] : vector<64x2xf32> to vector<64xf32>
    %77 = vector.shape_cast %76 : vector<64xf32> to vector<64x1xf32>
    %78 = arith.addf %68, %77 : vector<64x1xf32>
    %79 = arith.mulf %75, %75 : vector<64x2xf32>
    %cst_42 = arith.constant dense<0.000000e+00> : vector<64xf32>
    %80 = vector.multi_reduction <add>, %79, %cst_42 [1] : vector<64x2xf32> to vector<64xf32>
    %81 = vector.shape_cast %80 : vector<64xf32> to vector<64x1xf32>
    %82 = arith.addf %72, %81 : vector<64x1xf32>
    %c8 = arith.constant 8 : index
    %c0_43 = arith.constant 0 : index
    %c0_44 = arith.constant 0 : index
    %83 = vector.load %arg1[%c8, %c0_43, %c0_44] : memref<16x64x100xbf16, #tpu.memory_space<vmem>>, vector<1x64x100xbf16>
    %84 = vector.shape_cast %83 : vector<1x64x100xbf16> to vector<64x100xbf16>
    %cst_45 = arith.constant dense<0.000000e+00> : vector<64x2xf32>
    %85 = tpu.matmul %84, %0, %cst_45 {dimension_numbers = #tpu.dot_dimension_numbers<[1], [0], [0], [1], [0, 0, 1, 1], [], []>} : vector<64x100xbf16>, vector<100x2xbf16>, vector<64x2xf32> -> vector<64x2xf32>
    %cst_46 = arith.constant dense<0.000000e+00> : vector<64xf32>
    %86 = vector.multi_reduction <add>, %85, %cst_46 [1] : vector<64x2xf32> to vector<64xf32>
    %87 = vector.shape_cast %86 : vector<64xf32> to vector<64x1xf32>
    %88 = arith.addf %78, %87 : vector<64x1xf32>
    %89 = arith.mulf %85, %85 : vector<64x2xf32>
    %cst_47 = arith.constant dense<0.000000e+00> : vector<64xf32>
    %90 = vector.multi_reduction <add>, %89, %cst_47 [1] : vector<64x2xf32> to vector<64xf32>
    %91 = vector.shape_cast %90 : vector<64xf32> to vector<64x1xf32>
    %92 = arith.addf %82, %91 : vector<64x1xf32>
    %c9 = arith.constant 9 : index
    %c0_48 = arith.constant 0 : index
    %c0_49 = arith.constant 0 : index
    %93 = vector.load %arg1[%c9, %c0_48, %c0_49] : memref<16x64x100xbf16, #tpu.memory_space<vmem>>, vector<1x64x100xbf16>
    %94 = vector.shape_cast %93 : vector<1x64x100xbf16> to vector<64x100xbf16>
    %cst_50 = arith.constant dense<0.000000e+00> : vector<64x2xf32>
    %95 = tpu.matmul %94, %0, %cst_50 {dimension_numbers = #tpu.dot_dimension_numbers<[1], [0], [0], [1], [0, 0, 1, 1], [], []>} : vector<64x100xbf16>, vector<100x2xbf16>, vector<64x2xf32> -> vector<64x2xf32>
    %cst_51 = arith.constant dense<0.000000e+00> : vector<64xf32>
    %96 = vector.multi_reduction <add>, %95, %cst_51 [1] : vector<64x2xf32> to vector<64xf32>
    %97 = vector.shape_cast %96 : vector<64xf32> to vector<64x1xf32>
    %98 = arith.addf %88, %97 : vector<64x1xf32>
    %99 = arith.mulf %95, %95 : vector<64x2xf32>
    %cst_52 = arith.constant dense<0.000000e+00> : vector<64xf32>
    %100 = vector.multi_reduction <add>, %99, %cst_52 [1] : vector<64x2xf32> to vector<64xf32>
    %101 = vector.shape_cast %100 : vector<64xf32> to vector<64x1xf32>
    %102 = arith.addf %92, %101 : vector<64x1xf32>
    %c10 = arith.constant 10 : index
    %c0_53 = arith.constant 0 : index
    %c0_54 = arith.constant 0 : index
    %103 = vector.load %arg1[%c10, %c0_53, %c0_54] : memref<16x64x100xbf16, #tpu.memory_space<vmem>>, vector<1x64x100xbf16>
    %104 = vector.shape_cast %103 : vector<1x64x100xbf16> to vector<64x100xbf16>
    %cst_55 = arith.constant dense<0.000000e+00> : vector<64x2xf32>
    %105 = tpu.matmul %104, %0, %cst_55 {dimension_numbers = #tpu.dot_dimension_numbers<[1], [0], [0], [1], [0, 0, 1, 1], [], []>} : vector<64x100xbf16>, vector<100x2xbf16>, vector<64x2xf32> -> vector<64x2xf32>
    %cst_56 = arith.constant dense<0.000000e+00> : vector<64xf32>
    %106 = vector.multi_reduction <add>, %105, %cst_56 [1] : vector<64x2xf32> to vector<64xf32>
    %107 = vector.shape_cast %106 : vector<64xf32> to vector<64x1xf32>
    %108 = arith.addf %98, %107 : vector<64x1xf32>
    %109 = arith.mulf %105, %105 : vector<64x2xf32>
    %cst_57 = arith.constant dense<0.000000e+00> : vector<64xf32>
    %110 = vector.multi_reduction <add>, %109, %cst_57 [1] : vector<64x2xf32> to vector<64xf32>
    %111 = vector.shape_cast %110 : vector<64xf32> to vector<64x1xf32>
    %112 = arith.addf %102, %111 : vector<64x1xf32>
    %c11 = arith.constant 11 : index
    %c0_58 = arith.constant 0 : index
    %c0_59 = arith.constant 0 : index
    %113 = vector.load %arg1[%c11, %c0_58, %c0_59] : memref<16x64x100xbf16, #tpu.memory_space<vmem>>, vector<1x64x100xbf16>
    %114 = vector.shape_cast %113 : vector<1x64x100xbf16> to vector<64x100xbf16>
    %cst_60 = arith.constant dense<0.000000e+00> : vector<64x2xf32>
    %115 = tpu.matmul %114, %0, %cst_60 {dimension_numbers = #tpu.dot_dimension_numbers<[1], [0], [0], [1], [0, 0, 1, 1], [], []>} : vector<64x100xbf16>, vector<100x2xbf16>, vector<64x2xf32> -> vector<64x2xf32>
    %cst_61 = arith.constant dense<0.000000e+00> : vector<64xf32>
    %116 = vector.multi_reduction <add>, %115, %cst_61 [1] : vector<64x2xf32> to vector<64xf32>
    %117 = vector.shape_cast %116 : vector<64xf32> to vector<64x1xf32>
    %118 = arith.addf %108, %117 : vector<64x1xf32>
    %119 = arith.mulf %115, %115 : vector<64x2xf32>
    %cst_62 = arith.constant dense<0.000000e+00> : vector<64xf32>
    %120 = vector.multi_reduction <add>, %119, %cst_62 [1] : vector<64x2xf32> to vector<64xf32>
    %121 = vector.shape_cast %120 : vector<64xf32> to vector<64x1xf32>
    %122 = arith.addf %112, %121 : vector<64x1xf32>
    %c12 = arith.constant 12 : index
    %c0_63 = arith.constant 0 : index
    %c0_64 = arith.constant 0 : index
    %123 = vector.load %arg1[%c12, %c0_63, %c0_64] : memref<16x64x100xbf16, #tpu.memory_space<vmem>>, vector<1x64x100xbf16>
    %124 = vector.shape_cast %123 : vector<1x64x100xbf16> to vector<64x100xbf16>
    %cst_65 = arith.constant dense<0.000000e+00> : vector<64x2xf32>
    %125 = tpu.matmul %124, %0, %cst_65 {dimension_numbers = #tpu.dot_dimension_numbers<[1], [0], [0], [1], [0, 0, 1, 1], [], []>} : vector<64x100xbf16>, vector<100x2xbf16>, vector<64x2xf32> -> vector<64x2xf32>
    %cst_66 = arith.constant dense<0.000000e+00> : vector<64xf32>
    %126 = vector.multi_reduction <add>, %125, %cst_66 [1] : vector<64x2xf32> to vector<64xf32>
    %127 = vector.shape_cast %126 : vector<64xf32> to vector<64x1xf32>
    %128 = arith.addf %118, %127 : vector<64x1xf32>
    %129 = arith.mulf %125, %125 : vector<64x2xf32>
    %cst_67 = arith.constant dense<0.000000e+00> : vector<64xf32>
    %130 = vector.multi_reduction <add>, %129, %cst_67 [1] : vector<64x2xf32> to vector<64xf32>
    %131 = vector.shape_cast %130 : vector<64xf32> to vector<64x1xf32>
    %132 = arith.addf %122, %131 : vector<64x1xf32>
    %c13 = arith.constant 13 : index
    %c0_68 = arith.constant 0 : index
    %c0_69 = arith.constant 0 : index
    %133 = vector.load %arg1[%c13, %c0_68, %c0_69] : memref<16x64x100xbf16, #tpu.memory_space<vmem>>, vector<1x64x100xbf16>
    %134 = vector.shape_cast %133 : vector<1x64x100xbf16> to vector<64x100xbf16>
    %cst_70 = arith.constant dense<0.000000e+00> : vector<64x2xf32>
    %135 = tpu.matmul %134, %0, %cst_70 {dimension_numbers = #tpu.dot_dimension_numbers<[1], [0], [0], [1], [0, 0, 1, 1], [], []>} : vector<64x100xbf16>, vector<100x2xbf16>, vector<64x2xf32> -> vector<64x2xf32>
    %cst_71 = arith.constant dense<0.000000e+00> : vector<64xf32>
    %136 = vector.multi_reduction <add>, %135, %cst_71 [1] : vector<64x2xf32> to vector<64xf32>
    %137 = vector.shape_cast %136 : vector<64xf32> to vector<64x1xf32>
    %138 = arith.addf %128, %137 : vector<64x1xf32>
    %139 = arith.mulf %135, %135 : vector<64x2xf32>
    %cst_72 = arith.constant dense<0.000000e+00> : vector<64xf32>
    %140 = vector.multi_reduction <add>, %139, %cst_72 [1] : vector<64x2xf32> to vector<64xf32>
    %141 = vector.shape_cast %140 : vector<64xf32> to vector<64x1xf32>
    %142 = arith.addf %132, %141 : vector<64x1xf32>
    %c14 = arith.constant 14 : index
    %c0_73 = arith.constant 0 : index
    %c0_74 = arith.constant 0 : index
    %143 = vector.load %arg1[%c14, %c0_73, %c0_74] : memref<16x64x100xbf16, #tpu.memory_space<vmem>>, vector<1x64x100xbf16>
    %144 = vector.shape_cast %143 : vector<1x64x100xbf16> to vector<64x100xbf16>
    %cst_75 = arith.constant dense<0.000000e+00> : vector<64x2xf32>
    %145 = tpu.matmul %144, %0, %cst_75 {dimension_numbers = #tpu.dot_dimension_numbers<[1], [0], [0], [1], [0, 0, 1, 1], [], []>} : vector<64x100xbf16>, vector<100x2xbf16>, vector<64x2xf32> -> vector<64x2xf32>
    %cst_76 = arith.constant dense<0.000000e+00> : vector<64xf32>
    %146 = vector.multi_reduction <add>, %145, %cst_76 [1] : vector<64x2xf32> to vector<64xf32>
    %147 = vector.shape_cast %146 : vector<64xf32> to vector<64x1xf32>
    %148 = arith.addf %138, %147 : vector<64x1xf32>
    %149 = arith.mulf %145, %145 : vector<64x2xf32>
    %cst_77 = arith.constant dense<0.000000e+00> : vector<64xf32>
    %150 = vector.multi_reduction <add>, %149, %cst_77 [1] : vector<64x2xf32> to vector<64xf32>
    %151 = vector.shape_cast %150 : vector<64xf32> to vector<64x1xf32>
    %152 = arith.addf %142, %151 : vector<64x1xf32>
    %c15 = arith.constant 15 : index
    %c0_78 = arith.constant 0 : index
    %c0_79 = arith.constant 0 : index
    %153 = vector.load %arg1[%c15, %c0_78, %c0_79] : memref<16x64x100xbf16, #tpu.memory_space<vmem>>, vector<1x64x100xbf16>
    %154 = vector.shape_cast %153 : vector<1x64x100xbf16> to vector<64x100xbf16>
    %cst_80 = arith.constant dense<0.000000e+00> : vector<64x2xf32>
    %155 = tpu.matmul %154, %0, %cst_80 {dimension_numbers = #tpu.dot_dimension_numbers<[1], [0], [0], [1], [0, 0, 1, 1], [], []>} : vector<64x100xbf16>, vector<100x2xbf16>, vector<64x2xf32> -> vector<64x2xf32>
    %cst_81 = arith.constant dense<0.000000e+00> : vector<64xf32>
    %156 = vector.multi_reduction <add>, %155, %cst_81 [1] : vector<64x2xf32> to vector<64xf32>
    %157 = vector.shape_cast %156 : vector<64xf32> to vector<64x1xf32>
    %158 = arith.addf %148, %157 : vector<64x1xf32>
    %159 = arith.mulf %155, %155 : vector<64x2xf32>
    %cst_82 = arith.constant dense<0.000000e+00> : vector<64xf32>
    %160 = vector.multi_reduction <add>, %159, %cst_82 [1] : vector<64x2xf32> to vector<64xf32>
    %161 = vector.shape_cast %160 : vector<64xf32> to vector<64x1xf32>
    %162 = arith.addf %152, %161 : vector<64x1xf32>
    %cst_83 = arith.constant 3.200000e+01 : f32
    %163 = vector.broadcast %cst_83 : f32 to vector<64x1xf32>
    %164 = arith.divf %158, %163 : vector<64x1xf32>
    %cst_84 = arith.constant 3.200000e+01 : f32
    %165 = vector.broadcast %cst_84 : f32 to vector<64x1xf32>
    %166 = arith.divf %162, %165 : vector<64x1xf32>
    %167 = arith.mulf %164, %164 : vector<64x1xf32>
    %168 = arith.subf %166, %167 : vector<64x1xf32>
    %c0_85 = arith.constant 0 : index
    %c0_86 = arith.constant 0 : index
    %169 = vector.load %arg2[%c0_85, %c0_86] : memref<64x1xf32, #tpu.memory_space<vmem>>, vector<64x1xf32>
    %cst_87 = arith.constant 9.99999974E-6 : f32
    %170 = vector.broadcast %cst_87 : f32 to vector<64x1xf32>
    %171 = arith.addf %168, %170 : vector<64x1xf32>
    %172 = math.rsqrt %171 : vector<64x1xf32>
    %173 = arith.mulf %169, %172 : vector<64x1xf32>
    %c0_88 = arith.constant 0 : index
    %c0_89 = arith.constant 0 : index
    %174 = vector.load %arg3[%c0_88, %c0_89] : memref<64x1xf32, #tpu.memory_space<vmem>>, vector<64x1xf32>
    %175 = arith.mulf %164, %173 : vector<64x1xf32>
    %176 = arith.subf %174, %175 : vector<64x1xf32>
    %177 = vector.broadcast %173 : vector<64x1xf32> to vector<64x2xf32>
    %178 = arith.mulf %5, %177 : vector<64x2xf32>
    %179 = vector.broadcast %176 : vector<64x1xf32> to vector<64x2xf32>
    %180 = arith.addf %178, %179 : vector<64x2xf32>
    %cst_90 = arith.constant 0.000000e+00 : f32
    %181 = vector.broadcast %cst_90 : f32 to vector<64x2xf32>
    %182 = arith.maximumf %180, %181 : vector<64x2xf32>
    %183 = arith.truncf %182 : vector<64x2xf32> to vector<64x2xbf16>
    %c0_91 = arith.constant 0 : index
    %c0_92 = arith.constant 0 : index
    %c0_93 = arith.constant 0 : index
    %184 = vector.load %arg4[%c0_91, %c0_92, %c0_93] : memref<16x64x2xbf16, #tpu.memory_space<vmem>>, vector<1x64x2xbf16>
    %185 = vector.shape_cast %184 : vector<1x64x2xbf16> to vector<64x2xbf16>
    %186 = vector.shape_cast %183 : vector<64x2xbf16> to vector<1x64x2xbf16>
    tpu.vector_store %arg4[%c0_91, %c0_92, %c0_93], %186 {strides = array<i32>} : memref<16x64x2xbf16, #tpu.memory_space<vmem>>, vector<1x64x2xbf16>,
    %187 = vector.broadcast %173 : vector<64x1xf32> to vector<64x2xf32>
    %188 = arith.mulf %15, %187 : vector<64x2xf32>
    %189 = vector.broadcast %176 : vector<64x1xf32> to vector<64x2xf32>
    %190 = arith.addf %188, %189 : vector<64x2xf32>
    %cst_94 = arith.constant 0.000000e+00 : f32
    %191 = vector.broadcast %cst_94 : f32 to vector<64x2xf32>
    %192 = arith.maximumf %190, %191 : vector<64x2xf32>
    %193 = arith.truncf %192 : vector<64x2xf32> to vector<64x2xbf16>
    %c1_95 = arith.constant 1 : index
    %c0_96 = arith.constant 0 : index
    %c0_97 = arith.constant 0 : index
    %194 = vector.load %arg4[%c1_95, %c0_96, %c0_97] : memref<16x64x2xbf16, #tpu.memory_space<vmem>>, vector<1x64x2xbf16>
    %195 = vector.shape_cast %194 : vector<1x64x2xbf16> to vector<64x2xbf16>
    %196 = vector.shape_cast %193 : vector<64x2xbf16> to vector<1x64x2xbf16>
    tpu.vector_store %arg4[%c1_95, %c0_96, %c0_97], %196 {strides = array<i32>} : memref<16x64x2xbf16, #tpu.memory_space<vmem>>, vector<1x64x2xbf16>,
    %197 = vector.broadcast %173 : vector<64x1xf32> to vector<64x2xf32>
    %198 = arith.mulf %25, %197 : vector<64x2xf32>
    %199 = vector.broadcast %176 : vector<64x1xf32> to vector<64x2xf32>
    %200 = arith.addf %198, %199 : vector<64x2xf32>
    %cst_98 = arith.constant 0.000000e+00 : f32
    %201 = vector.broadcast %cst_98 : f32 to vector<64x2xf32>
    %202 = arith.maximumf %200, %201 : vector<64x2xf32>
    %203 = arith.truncf %202 : vector<64x2xf32> to vector<64x2xbf16>
    %c2_99 = arith.constant 2 : index
    %c0_100 = arith.constant 0 : index
    %c0_101 = arith.constant 0 : index
    %204 = vector.load %arg4[%c2_99, %c0_100, %c0_101] : memref<16x64x2xbf16, #tpu.memory_space<vmem>>, vector<1x64x2xbf16>
    %205 = vector.shape_cast %204 : vector<1x64x2xbf16> to vector<64x2xbf16>
    %206 = vector.shape_cast %203 : vector<64x2xbf16> to vector<1x64x2xbf16>
    tpu.vector_store %arg4[%c2_99, %c0_100, %c0_101], %206 {strides = array<i32>} : memref<16x64x2xbf16, #tpu.memory_space<vmem>>, vector<1x64x2xbf16>,
    %207 = vector.broadcast %173 : vector<64x1xf32> to vector<64x2xf32>
    %208 = arith.mulf %35, %207 : vector<64x2xf32>
    %209 = vector.broadcast %176 : vector<64x1xf32> to vector<64x2xf32>
    %210 = arith.addf %208, %209 : vector<64x2xf32>
    %cst_102 = arith.constant 0.000000e+00 : f32
    %211 = vector.broadcast %cst_102 : f32 to vector<64x2xf32>
    %212 = arith.maximumf %210, %211 : vector<64x2xf32>
    %213 = arith.truncf %212 : vector<64x2xf32> to vector<64x2xbf16>
    %c3_103 = arith.constant 3 : index
    %c0_104 = arith.constant 0 : index
    %c0_105 = arith.constant 0 : index
    %214 = vector.load %arg4[%c3_103, %c0_104, %c0_105] : memref<16x64x2xbf16, #tpu.memory_space<vmem>>, vector<1x64x2xbf16>
    %215 = vector.shape_cast %214 : vector<1x64x2xbf16> to vector<64x2xbf16>
    %216 = vector.shape_cast %213 : vector<64x2xbf16> to vector<1x64x2xbf16>
    tpu.vector_store %arg4[%c3_103, %c0_104, %c0_105], %216 {strides = array<i32>} : memref<16x64x2xbf16, #tpu.memory_space<vmem>>, vector<1x64x2xbf16>,
    %217 = vector.broadcast %173 : vector<64x1xf32> to vector<64x2xf32>
    %218 = arith.mulf %45, %217 : vector<64x2xf32>
    %219 = vector.broadcast %176 : vector<64x1xf32> to vector<64x2xf32>
    %220 = arith.addf %218, %219 : vector<64x2xf32>
    %cst_106 = arith.constant 0.000000e+00 : f32
    %221 = vector.broadcast %cst_106 : f32 to vector<64x2xf32>
    %222 = arith.maximumf %220, %221 : vector<64x2xf32>
    %223 = arith.truncf %222 : vector<64x2xf32> to vector<64x2xbf16>
    %c4_107 = arith.constant 4 : index
    %c0_108 = arith.constant 0 : index
    %c0_109 = arith.constant 0 : index
    %224 = vector.load %arg4[%c4_107, %c0_108, %c0_109] : memref<16x64x2xbf16, #tpu.memory_space<vmem>>, vector<1x64x2xbf16>
    %225 = vector.shape_cast %224 : vector<1x64x2xbf16> to vector<64x2xbf16>
    %226 = vector.shape_cast %223 : vector<64x2xbf16> to vector<1x64x2xbf16>
    tpu.vector_store %arg4[%c4_107, %c0_108, %c0_109], %226 {strides = array<i32>} : memref<16x64x2xbf16, #tpu.memory_space<vmem>>, vector<1x64x2xbf16>,
    %227 = vector.broadcast %173 : vector<64x1xf32> to vector<64x2xf32>
    %228 = arith.mulf %55, %227 : vector<64x2xf32>
    %229 = vector.broadcast %176 : vector<64x1xf32> to vector<64x2xf32>
    %230 = arith.addf %228, %229 : vector<64x2xf32>
    %cst_110 = arith.constant 0.000000e+00 : f32
    %231 = vector.broadcast %cst_110 : f32 to vector<64x2xf32>
    %232 = arith.maximumf %230, %231 : vector<64x2xf32>
    %233 = arith.truncf %232 : vector<64x2xf32> to vector<64x2xbf16>
    %c5_111 = arith.constant 5 : index
    %c0_112 = arith.constant 0 : index
    %c0_113 = arith.constant 0 : index
    %234 = vector.load %arg4[%c5_111, %c0_112, %c0_113] : memref<16x64x2xbf16, #tpu.memory_space<vmem>>, vector<1x64x2xbf16>
    %235 = vector.shape_cast %234 : vector<1x64x2xbf16> to vector<64x2xbf16>
    %236 = vector.shape_cast %233 : vector<64x2xbf16> to vector<1x64x2xbf16>
    tpu.vector_store %arg4[%c5_111, %c0_112, %c0_113], %236 {strides = array<i32>} : memref<16x64x2xbf16, #tpu.memory_space<vmem>>, vector<1x64x2xbf16>,
    %237 = vector.broadcast %173 : vector<64x1xf32> to vector<64x2xf32>
    %238 = arith.mulf %65, %237 : vector<64x2xf32>
    %239 = vector.broadcast %176 : vector<64x1xf32> to vector<64x2xf32>
    %240 = arith.addf %238, %239 : vector<64x2xf32>
    %cst_114 = arith.constant 0.000000e+00 : f32
    %241 = vector.broadcast %cst_114 : f32 to vector<64x2xf32>
    %242 = arith.maximumf %240, %241 : vector<64x2xf32>
    %243 = arith.truncf %242 : vector<64x2xf32> to vector<64x2xbf16>
    %c6_115 = arith.constant 6 : index
    %c0_116 = arith.constant 0 : index
    %c0_117 = arith.constant 0 : index
    %244 = vector.load %arg4[%c6_115, %c0_116, %c0_117] : memref<16x64x2xbf16, #tpu.memory_space<vmem>>, vector<1x64x2xbf16>
    %245 = vector.shape_cast %244 : vector<1x64x2xbf16> to vector<64x2xbf16>
    %246 = vector.shape_cast %243 : vector<64x2xbf16> to vector<1x64x2xbf16>
    tpu.vector_store %arg4[%c6_115, %c0_116, %c0_117], %246 {strides = array<i32>} : memref<16x64x2xbf16, #tpu.memory_space<vmem>>, vector<1x64x2xbf16>,
    %247 = vector.broadcast %173 : vector<64x1xf32> to vector<64x2xf32>
    %248 = arith.mulf %75, %247 : vector<64x2xf32>
    %249 = vector.broadcast %176 : vector<64x1xf32> to vector<64x2xf32>
    %250 = arith.addf %248, %249 : vector<64x2xf32>
    %cst_118 = arith.constant 0.000000e+00 : f32
    %251 = vector.broadcast %cst_118 : f32 to vector<64x2xf32>
    %252 = arith.maximumf %250, %251 : vector<64x2xf32>
    %253 = arith.truncf %252 : vector<64x2xf32> to vector<64x2xbf16>
    %c7_119 = arith.constant 7 : index
    %c0_120 = arith.constant 0 : index
    %c0_121 = arith.constant 0 : index
    %254 = vector.load %arg4[%c7_119, %c0_120, %c0_121] : memref<16x64x2xbf16, #tpu.memory_space<vmem>>, vector<1x64x2xbf16>
    %255 = vector.shape_cast %254 : vector<1x64x2xbf16> to vector<64x2xbf16>
    %256 = vector.shape_cast %253 : vector<64x2xbf16> to vector<1x64x2xbf16>
    tpu.vector_store %arg4[%c7_119, %c0_120, %c0_121], %256 {strides = array<i32>} : memref<16x64x2xbf16, #tpu.memory_space<vmem>>, vector<1x64x2xbf16>,
    %257 = vector.broadcast %173 : vector<64x1xf32> to vector<64x2xf32>
    %258 = arith.mulf %85, %257 : vector<64x2xf32>
    %259 = vector.broadcast %176 : vector<64x1xf32> to vector<64x2xf32>
    %260 = arith.addf %258, %259 : vector<64x2xf32>
    %cst_122 = arith.constant 0.000000e+00 : f32
    %261 = vector.broadcast %cst_122 : f32 to vector<64x2xf32>
    %262 = arith.maximumf %260, %261 : vector<64x2xf32>
    %263 = arith.truncf %262 : vector<64x2xf32> to vector<64x2xbf16>
    %c8_123 = arith.constant 8 : index
    %c0_124 = arith.constant 0 : index
    %c0_125 = arith.constant 0 : index
    %264 = vector.load %arg4[%c8_123, %c0_124, %c0_125] : memref<16x64x2xbf16, #tpu.memory_space<vmem>>, vector<1x64x2xbf16>
    %265 = vector.shape_cast %264 : vector<1x64x2xbf16> to vector<64x2xbf16>
    %266 = vector.shape_cast %263 : vector<64x2xbf16> to vector<1x64x2xbf16>
    tpu.vector_store %arg4[%c8_123, %c0_124, %c0_125], %266 {strides = array<i32>} : memref<16x64x2xbf16, #tpu.memory_space<vmem>>, vector<1x64x2xbf16>,
    %267 = vector.broadcast %173 : vector<64x1xf32> to vector<64x2xf32>
    %268 = arith.mulf %95, %267 : vector<64x2xf32>
    %269 = vector.broadcast %176 : vector<64x1xf32> to vector<64x2xf32>
    %270 = arith.addf %268, %269 : vector<64x2xf32>
    %cst_126 = arith.constant 0.000000e+00 : f32
    %271 = vector.broadcast %cst_126 : f32 to vector<64x2xf32>
    %272 = arith.maximumf %270, %271 : vector<64x2xf32>
    %273 = arith.truncf %272 : vector<64x2xf32> to vector<64x2xbf16>
    %c9_127 = arith.constant 9 : index
    %c0_128 = arith.constant 0 : index
    %c0_129 = arith.constant 0 : index
    %274 = vector.load %arg4[%c9_127, %c0_128, %c0_129] : memref<16x64x2xbf16, #tpu.memory_space<vmem>>, vector<1x64x2xbf16>
    %275 = vector.shape_cast %274 : vector<1x64x2xbf16> to vector<64x2xbf16>
    %276 = vector.shape_cast %273 : vector<64x2xbf16> to vector<1x64x2xbf16>
    tpu.vector_store %arg4[%c9_127, %c0_128, %c0_129], %276 {strides = array<i32>} : memref<16x64x2xbf16, #tpu.memory_space<vmem>>, vector<1x64x2xbf16>,
    %277 = vector.broadcast %173 : vector<64x1xf32> to vector<64x2xf32>
    %278 = arith.mulf %105, %277 : vector<64x2xf32>
    %279 = vector.broadcast %176 : vector<64x1xf32> to vector<64x2xf32>
    %280 = arith.addf %278, %279 : vector<64x2xf32>
    %cst_130 = arith.constant 0.000000e+00 : f32
    %281 = vector.broadcast %cst_130 : f32 to vector<64x2xf32>
    %282 = arith.maximumf %280, %281 : vector<64x2xf32>
    %283 = arith.truncf %282 : vector<64x2xf32> to vector<64x2xbf16>
    %c10_131 = arith.constant 10 : index
    %c0_132 = arith.constant 0 : index
    %c0_133 = arith.constant 0 : index
    %284 = vector.load %arg4[%c10_131, %c0_132, %c0_133] : memref<16x64x2xbf16, #tpu.memory_space<vmem>>, vector<1x64x2xbf16>
    %285 = vector.shape_cast %284 : vector<1x64x2xbf16> to vector<64x2xbf16>
    %286 = vector.shape_cast %283 : vector<64x2xbf16> to vector<1x64x2xbf16>
    tpu.vector_store %arg4[%c10_131, %c0_132, %c0_133], %286 {strides = array<i32>} : memref<16x64x2xbf16, #tpu.memory_space<vmem>>, vector<1x64x2xbf16>,
    %287 = vector.broadcast %173 : vector<64x1xf32> to vector<64x2xf32>
    %288 = arith.mulf %115, %287 : vector<64x2xf32>
    %289 = vector.broadcast %176 : vector<64x1xf32> to vector<64x2xf32>
    %290 = arith.addf %288, %289 : vector<64x2xf32>
    %cst_134 = arith.constant 0.000000e+00 : f32
    %291 = vector.broadcast %cst_134 : f32 to vector<64x2xf32>
    %292 = arith.maximumf %290, %291 : vector<64x2xf32>
    %293 = arith.truncf %292 : vector<64x2xf32> to vector<64x2xbf16>
    %c11_135 = arith.constant 11 : index
    %c0_136 = arith.constant 0 : index
    %c0_137 = arith.constant 0 : index
    %294 = vector.load %arg4[%c11_135, %c0_136, %c0_137] : memref<16x64x2xbf16, #tpu.memory_space<vmem>>, vector<1x64x2xbf16>
    %295 = vector.shape_cast %294 : vector<1x64x2xbf16> to vector<64x2xbf16>
    %296 = vector.shape_cast %293 : vector<64x2xbf16> to vector<1x64x2xbf16>
    tpu.vector_store %arg4[%c11_135, %c0_136, %c0_137], %296 {strides = array<i32>} : memref<16x64x2xbf16, #tpu.memory_space<vmem>>, vector<1x64x2xbf16>,
    %297 = vector.broadcast %173 : vector<64x1xf32> to vector<64x2xf32>
    %298 = arith.mulf %125, %297 : vector<64x2xf32>
    %299 = vector.broadcast %176 : vector<64x1xf32> to vector<64x2xf32>
    %300 = arith.addf %298, %299 : vector<64x2xf32>
    %cst_138 = arith.constant 0.000000e+00 : f32
    %301 = vector.broadcast %cst_138 : f32 to vector<64x2xf32>
    %302 = arith.maximumf %300, %301 : vector<64x2xf32>
    %303 = arith.truncf %302 : vector<64x2xf32> to vector<64x2xbf16>
    %c12_139 = arith.constant 12 : index
    %c0_140 = arith.constant 0 : index
    %c0_141 = arith.constant 0 : index
    %304 = vector.load %arg4[%c12_139, %c0_140, %c0_141] : memref<16x64x2xbf16, #tpu.memory_space<vmem>>, vector<1x64x2xbf16>
    %305 = vector.shape_cast %304 : vector<1x64x2xbf16> to vector<64x2xbf16>
    %306 = vector.shape_cast %303 : vector<64x2xbf16> to vector<1x64x2xbf16>
    tpu.vector_store %arg4[%c12_139, %c0_140, %c0_141], %306 {strides = array<i32>} : memref<16x64x2xbf16, #tpu.memory_space<vmem>>, vector<1x64x2xbf16>,
    %307 = vector.broadcast %173 : vector<64x1xf32> to vector<64x2xf32>
    %308 = arith.mulf %135, %307 : vector<64x2xf32>
    %309 = vector.broadcast %176 : vector<64x1xf32> to vector<64x2xf32>
    %310 = arith.addf %308, %309 : vector<64x2xf32>
    %cst_142 = arith.constant 0.000000e+00 : f32
    %311 = vector.broadcast %cst_142 : f32 to vector<64x2xf32>
    %312 = arith.maximumf %310, %311 : vector<64x2xf32>
    %313 = arith.truncf %312 : vector<64x2xf32> to vector<64x2xbf16>
    %c13_143 = arith.constant 13 : index
    %c0_144 = arith.constant 0 : index
    %c0_145 = arith.constant 0 : index
    %314 = vector.load %arg4[%c13_143, %c0_144, %c0_145] : memref<16x64x2xbf16, #tpu.memory_space<vmem>>, vector<1x64x2xbf16>
    %315 = vector.shape_cast %314 : vector<1x64x2xbf16> to vector<64x2xbf16>
    %316 = vector.shape_cast %313 : vector<64x2xbf16> to vector<1x64x2xbf16>
    tpu.vector_store %arg4[%c13_143, %c0_144, %c0_145], %316 {strides = array<i32>} : memref<16x64x2xbf16, #tpu.memory_space<vmem>>, vector<1x64x2xbf16>,
    %317 = vector.broadcast %173 : vector<64x1xf32> to vector<64x2xf32>
    %318 = arith.mulf %145, %317 : vector<64x2xf32>
    %319 = vector.broadcast %176 : vector<64x1xf32> to vector<64x2xf32>
    %320 = arith.addf %318, %319 : vector<64x2xf32>
    %cst_146 = arith.constant 0.000000e+00 : f32
    %321 = vector.broadcast %cst_146 : f32 to vector<64x2xf32>
    %322 = arith.maximumf %320, %321 : vector<64x2xf32>
    %323 = arith.truncf %322 : vector<64x2xf32> to vector<64x2xbf16>
    %c14_147 = arith.constant 14 : index
    %c0_148 = arith.constant 0 : index
    %c0_149 = arith.constant 0 : index
    %324 = vector.load %arg4[%c14_147, %c0_148, %c0_149] : memref<16x64x2xbf16, #tpu.memory_space<vmem>>, vector<1x64x2xbf16>
    %325 = vector.shape_cast %324 : vector<1x64x2xbf16> to vector<64x2xbf16>
    %326 = vector.shape_cast %323 : vector<64x2xbf16> to vector<1x64x2xbf16>
    tpu.vector_store %arg4[%c14_147, %c0_148, %c0_149], %326 {strides = array<i32>} : memref<16x64x2xbf16, #tpu.memory_space<vmem>>, vector<1x64x2xbf16>,
    %327 = vector.broadcast %173 : vector<64x1xf32> to vector<64x2xf32>
    %328 = arith.mulf %155, %327 : vector<64x2xf32>
    %329 = vector.broadcast %176 : vector<64x1xf32> to vector<64x2xf32>
    %330 = arith.addf %328, %329 : vector<64x2xf32>
    %cst_150 = arith.constant 0.000000e+00 : f32
    %331 = vector.broadcast %cst_150 : f32 to vector<64x2xf32>
    %332 = arith.maximumf %330, %331 : vector<64x2xf32>
    %333 = arith.truncf %332 : vector<64x2xf32> to vector<64x2xbf16>
    %c15_151 = arith.constant 15 : index
    %c0_152 = arith.constant 0 : index
    %c0_153 = arith.constant 0 : index
    %334 = vector.load %arg4[%c15_151, %c0_152, %c0_153] : memref<16x64x2xbf16, #tpu.memory_space<vmem>>, vector<1x64x2xbf16>
    %335 = vector.shape_cast %334 : vector<1x64x2xbf16> to vector<64x2xbf16>
    %336 = vector.shape_cast %333 : vector<64x2xbf16> to vector<1x64x2xbf16>
    tpu.vector_store %arg4[%c15_151, %c0_152, %c0_153], %336 {strides = array<i32>} : memref<16x64x2xbf16, #tpu.memory_space<vmem>>, vector<1x64x2xbf16>,
    return
  }
}

module attributes {stable_mosaic.version = 11 : i64} {
  func.func @_deconv_bn_relu_kernel(%arg0: memref<4x256x32xbf16, #tpu.memory_space<vmem>>, %arg1: memref<4x32x256xbf16, #tpu.memory_space<vmem>>, %arg2: memref<32x1xf32, #tpu.memory_space<vmem>>, %arg3: memref<32x1xf32, #tpu.memory_space<vmem>>, %arg4: memref<4x32x32xbf16, #tpu.memory_space<vmem>>) attributes {dimension_semantics = [], scalar_prefetch = 0 : i64, scratch_operands = 0 : i64, tpu.core_type = #tpu.core_type<tc>} {
    %cst = arith.constant 0.000000e+00 : f32
    %0 = vector.broadcast %cst : f32 to vector<32x1xf32>
    %cst_0 = arith.constant 0.000000e+00 : f32
    %1 = vector.broadcast %cst_0 : f32 to vector<32x1xf32>
    %c0 = arith.constant 0 : index
    %c0_1 = arith.constant 0 : index
    %c0_2 = arith.constant 0 : index
    %2 = vector.load %arg1[%c0, %c0_1, %c0_2] : memref<4x32x256xbf16, #tpu.memory_space<vmem>>, vector<1x32x256xbf16>
    %3 = vector.shape_cast %2 : vector<1x32x256xbf16> to vector<32x256xbf16>
    %c0_3 = arith.constant 0 : index
    %c0_4 = arith.constant 0 : index
    %c0_5 = arith.constant 0 : index
    %4 = vector.load %arg0[%c0_3, %c0_4, %c0_5] : memref<4x256x32xbf16, #tpu.memory_space<vmem>>, vector<1x256x32xbf16>
    %5 = vector.shape_cast %4 : vector<1x256x32xbf16> to vector<256x32xbf16>
    %cst_6 = arith.constant dense<0.000000e+00> : vector<32x32xf32>
    %6 = tpu.matmul %3, %5, %cst_6 {dimension_numbers = #tpu.dot_dimension_numbers<[1], [0], [0], [1], [0, 0, 1, 1], [], []>} : vector<32x256xbf16>, vector<256x32xbf16>, vector<32x32xf32> -> vector<32x32xf32>
    %cst_7 = arith.constant dense<0.000000e+00> : vector<32xf32>
    %7 = vector.multi_reduction <add>, %6, %cst_7 [1] : vector<32x32xf32> to vector<32xf32>
    %8 = vector.shape_cast %7 : vector<32xf32> to vector<32x1xf32>
    %9 = arith.addf %0, %8 : vector<32x1xf32>
    %10 = arith.mulf %6, %6 : vector<32x32xf32>
    %cst_8 = arith.constant dense<0.000000e+00> : vector<32xf32>
    %11 = vector.multi_reduction <add>, %10, %cst_8 [1] : vector<32x32xf32> to vector<32xf32>
    %12 = vector.shape_cast %11 : vector<32xf32> to vector<32x1xf32>
    %13 = arith.addf %1, %12 : vector<32x1xf32>
    %c1 = arith.constant 1 : index
    %c0_9 = arith.constant 0 : index
    %c0_10 = arith.constant 0 : index
    %14 = vector.load %arg1[%c1, %c0_9, %c0_10] : memref<4x32x256xbf16, #tpu.memory_space<vmem>>, vector<1x32x256xbf16>
    %15 = vector.shape_cast %14 : vector<1x32x256xbf16> to vector<32x256xbf16>
    %c1_11 = arith.constant 1 : index
    %c0_12 = arith.constant 0 : index
    %c0_13 = arith.constant 0 : index
    %16 = vector.load %arg0[%c1_11, %c0_12, %c0_13] : memref<4x256x32xbf16, #tpu.memory_space<vmem>>, vector<1x256x32xbf16>
    %17 = vector.shape_cast %16 : vector<1x256x32xbf16> to vector<256x32xbf16>
    %cst_14 = arith.constant dense<0.000000e+00> : vector<32x32xf32>
    %18 = tpu.matmul %15, %17, %cst_14 {dimension_numbers = #tpu.dot_dimension_numbers<[1], [0], [0], [1], [0, 0, 1, 1], [], []>} : vector<32x256xbf16>, vector<256x32xbf16>, vector<32x32xf32> -> vector<32x32xf32>
    %cst_15 = arith.constant dense<0.000000e+00> : vector<32xf32>
    %19 = vector.multi_reduction <add>, %18, %cst_15 [1] : vector<32x32xf32> to vector<32xf32>
    %20 = vector.shape_cast %19 : vector<32xf32> to vector<32x1xf32>
    %21 = arith.addf %9, %20 : vector<32x1xf32>
    %22 = arith.mulf %18, %18 : vector<32x32xf32>
    %cst_16 = arith.constant dense<0.000000e+00> : vector<32xf32>
    %23 = vector.multi_reduction <add>, %22, %cst_16 [1] : vector<32x32xf32> to vector<32xf32>
    %24 = vector.shape_cast %23 : vector<32xf32> to vector<32x1xf32>
    %25 = arith.addf %13, %24 : vector<32x1xf32>
    %c2 = arith.constant 2 : index
    %c0_17 = arith.constant 0 : index
    %c0_18 = arith.constant 0 : index
    %26 = vector.load %arg1[%c2, %c0_17, %c0_18] : memref<4x32x256xbf16, #tpu.memory_space<vmem>>, vector<1x32x256xbf16>
    %27 = vector.shape_cast %26 : vector<1x32x256xbf16> to vector<32x256xbf16>
    %c2_19 = arith.constant 2 : index
    %c0_20 = arith.constant 0 : index
    %c0_21 = arith.constant 0 : index
    %28 = vector.load %arg0[%c2_19, %c0_20, %c0_21] : memref<4x256x32xbf16, #tpu.memory_space<vmem>>, vector<1x256x32xbf16>
    %29 = vector.shape_cast %28 : vector<1x256x32xbf16> to vector<256x32xbf16>
    %cst_22 = arith.constant dense<0.000000e+00> : vector<32x32xf32>
    %30 = tpu.matmul %27, %29, %cst_22 {dimension_numbers = #tpu.dot_dimension_numbers<[1], [0], [0], [1], [0, 0, 1, 1], [], []>} : vector<32x256xbf16>, vector<256x32xbf16>, vector<32x32xf32> -> vector<32x32xf32>
    %cst_23 = arith.constant dense<0.000000e+00> : vector<32xf32>
    %31 = vector.multi_reduction <add>, %30, %cst_23 [1] : vector<32x32xf32> to vector<32xf32>
    %32 = vector.shape_cast %31 : vector<32xf32> to vector<32x1xf32>
    %33 = arith.addf %21, %32 : vector<32x1xf32>
    %34 = arith.mulf %30, %30 : vector<32x32xf32>
    %cst_24 = arith.constant dense<0.000000e+00> : vector<32xf32>
    %35 = vector.multi_reduction <add>, %34, %cst_24 [1] : vector<32x32xf32> to vector<32xf32>
    %36 = vector.shape_cast %35 : vector<32xf32> to vector<32x1xf32>
    %37 = arith.addf %25, %36 : vector<32x1xf32>
    %c3 = arith.constant 3 : index
    %c0_25 = arith.constant 0 : index
    %c0_26 = arith.constant 0 : index
    %38 = vector.load %arg1[%c3, %c0_25, %c0_26] : memref<4x32x256xbf16, #tpu.memory_space<vmem>>, vector<1x32x256xbf16>
    %39 = vector.shape_cast %38 : vector<1x32x256xbf16> to vector<32x256xbf16>
    %c3_27 = arith.constant 3 : index
    %c0_28 = arith.constant 0 : index
    %c0_29 = arith.constant 0 : index
    %40 = vector.load %arg0[%c3_27, %c0_28, %c0_29] : memref<4x256x32xbf16, #tpu.memory_space<vmem>>, vector<1x256x32xbf16>
    %41 = vector.shape_cast %40 : vector<1x256x32xbf16> to vector<256x32xbf16>
    %cst_30 = arith.constant dense<0.000000e+00> : vector<32x32xf32>
    %42 = tpu.matmul %39, %41, %cst_30 {dimension_numbers = #tpu.dot_dimension_numbers<[1], [0], [0], [1], [0, 0, 1, 1], [], []>} : vector<32x256xbf16>, vector<256x32xbf16>, vector<32x32xf32> -> vector<32x32xf32>
    %cst_31 = arith.constant dense<0.000000e+00> : vector<32xf32>
    %43 = vector.multi_reduction <add>, %42, %cst_31 [1] : vector<32x32xf32> to vector<32xf32>
    %44 = vector.shape_cast %43 : vector<32xf32> to vector<32x1xf32>
    %45 = arith.addf %33, %44 : vector<32x1xf32>
    %46 = arith.mulf %42, %42 : vector<32x32xf32>
    %cst_32 = arith.constant dense<0.000000e+00> : vector<32xf32>
    %47 = vector.multi_reduction <add>, %46, %cst_32 [1] : vector<32x32xf32> to vector<32xf32>
    %48 = vector.shape_cast %47 : vector<32xf32> to vector<32x1xf32>
    %49 = arith.addf %37, %48 : vector<32x1xf32>
    %cst_33 = arith.constant 1.280000e+02 : f32
    %50 = vector.broadcast %cst_33 : f32 to vector<32x1xf32>
    %51 = arith.divf %45, %50 : vector<32x1xf32>
    %cst_34 = arith.constant 1.280000e+02 : f32
    %52 = vector.broadcast %cst_34 : f32 to vector<32x1xf32>
    %53 = arith.divf %49, %52 : vector<32x1xf32>
    %54 = arith.mulf %51, %51 : vector<32x1xf32>
    %55 = arith.subf %53, %54 : vector<32x1xf32>
    %c0_35 = arith.constant 0 : index
    %c0_36 = arith.constant 0 : index
    %56 = vector.load %arg2[%c0_35, %c0_36] : memref<32x1xf32, #tpu.memory_space<vmem>>, vector<32x1xf32>
    %cst_37 = arith.constant 9.99999974E-6 : f32
    %57 = vector.broadcast %cst_37 : f32 to vector<32x1xf32>
    %58 = arith.addf %55, %57 : vector<32x1xf32>
    %59 = math.rsqrt %58 : vector<32x1xf32>
    %60 = arith.mulf %56, %59 : vector<32x1xf32>
    %c0_38 = arith.constant 0 : index
    %c0_39 = arith.constant 0 : index
    %61 = vector.load %arg3[%c0_38, %c0_39] : memref<32x1xf32, #tpu.memory_space<vmem>>, vector<32x1xf32>
    %62 = arith.mulf %51, %60 : vector<32x1xf32>
    %63 = arith.subf %61, %62 : vector<32x1xf32>
    %64 = vector.broadcast %60 : vector<32x1xf32> to vector<32x32xf32>
    %65 = arith.mulf %6, %64 : vector<32x32xf32>
    %66 = vector.broadcast %63 : vector<32x1xf32> to vector<32x32xf32>
    %67 = arith.addf %65, %66 : vector<32x32xf32>
    %cst_40 = arith.constant 0.000000e+00 : f32
    %68 = vector.broadcast %cst_40 : f32 to vector<32x32xf32>
    %69 = arith.maximumf %67, %68 : vector<32x32xf32>
    %70 = arith.truncf %69 : vector<32x32xf32> to vector<32x32xbf16>
    %c0_41 = arith.constant 0 : index
    %c0_42 = arith.constant 0 : index
    %c0_43 = arith.constant 0 : index
    %71 = vector.load %arg4[%c0_41, %c0_42, %c0_43] : memref<4x32x32xbf16, #tpu.memory_space<vmem>>, vector<1x32x32xbf16>
    %72 = vector.shape_cast %71 : vector<1x32x32xbf16> to vector<32x32xbf16>
    %73 = vector.shape_cast %70 : vector<32x32xbf16> to vector<1x32x32xbf16>
    tpu.vector_store %arg4[%c0_41, %c0_42, %c0_43], %73 {strides = array<i32>} : memref<4x32x32xbf16, #tpu.memory_space<vmem>>, vector<1x32x32xbf16>,
    %74 = vector.broadcast %60 : vector<32x1xf32> to vector<32x32xf32>
    %75 = arith.mulf %18, %74 : vector<32x32xf32>
    %76 = vector.broadcast %63 : vector<32x1xf32> to vector<32x32xf32>
    %77 = arith.addf %75, %76 : vector<32x32xf32>
    %cst_44 = arith.constant 0.000000e+00 : f32
    %78 = vector.broadcast %cst_44 : f32 to vector<32x32xf32>
    %79 = arith.maximumf %77, %78 : vector<32x32xf32>
    %80 = arith.truncf %79 : vector<32x32xf32> to vector<32x32xbf16>
    %c1_45 = arith.constant 1 : index
    %c0_46 = arith.constant 0 : index
    %c0_47 = arith.constant 0 : index
    %81 = vector.load %arg4[%c1_45, %c0_46, %c0_47] : memref<4x32x32xbf16, #tpu.memory_space<vmem>>, vector<1x32x32xbf16>
    %82 = vector.shape_cast %81 : vector<1x32x32xbf16> to vector<32x32xbf16>
    %83 = vector.shape_cast %80 : vector<32x32xbf16> to vector<1x32x32xbf16>
    tpu.vector_store %arg4[%c1_45, %c0_46, %c0_47], %83 {strides = array<i32>} : memref<4x32x32xbf16, #tpu.memory_space<vmem>>, vector<1x32x32xbf16>,
    %84 = vector.broadcast %60 : vector<32x1xf32> to vector<32x32xf32>
    %85 = arith.mulf %30, %84 : vector<32x32xf32>
    %86 = vector.broadcast %63 : vector<32x1xf32> to vector<32x32xf32>
    %87 = arith.addf %85, %86 : vector<32x32xf32>
    %cst_48 = arith.constant 0.000000e+00 : f32
    %88 = vector.broadcast %cst_48 : f32 to vector<32x32xf32>
    %89 = arith.maximumf %87, %88 : vector<32x32xf32>
    %90 = arith.truncf %89 : vector<32x32xf32> to vector<32x32xbf16>
    %c2_49 = arith.constant 2 : index
    %c0_50 = arith.constant 0 : index
    %c0_51 = arith.constant 0 : index
    %91 = vector.load %arg4[%c2_49, %c0_50, %c0_51] : memref<4x32x32xbf16, #tpu.memory_space<vmem>>, vector<1x32x32xbf16>
    %92 = vector.shape_cast %91 : vector<1x32x32xbf16> to vector<32x32xbf16>
    %93 = vector.shape_cast %90 : vector<32x32xbf16> to vector<1x32x32xbf16>
    tpu.vector_store %arg4[%c2_49, %c0_50, %c0_51], %93 {strides = array<i32>} : memref<4x32x32xbf16, #tpu.memory_space<vmem>>, vector<1x32x32xbf16>,
    %94 = vector.broadcast %60 : vector<32x1xf32> to vector<32x32xf32>
    %95 = arith.mulf %42, %94 : vector<32x32xf32>
    %96 = vector.broadcast %63 : vector<32x1xf32> to vector<32x32xf32>
    %97 = arith.addf %95, %96 : vector<32x32xf32>
    %cst_52 = arith.constant 0.000000e+00 : f32
    %98 = vector.broadcast %cst_52 : f32 to vector<32x32xf32>
    %99 = arith.maximumf %97, %98 : vector<32x32xf32>
    %100 = arith.truncf %99 : vector<32x32xf32> to vector<32x32xbf16>
    %c3_53 = arith.constant 3 : index
    %c0_54 = arith.constant 0 : index
    %c0_55 = arith.constant 0 : index
    %101 = vector.load %arg4[%c3_53, %c0_54, %c0_55] : memref<4x32x32xbf16, #tpu.memory_space<vmem>>, vector<1x32x32xbf16>
    %102 = vector.shape_cast %101 : vector<1x32x32xbf16> to vector<32x32xbf16>
    %103 = vector.shape_cast %100 : vector<32x32xbf16> to vector<1x32x32xbf16>
    tpu.vector_store %arg4[%c3_53, %c0_54, %c0_55], %103 {strides = array<i32>} : memref<4x32x32xbf16, #tpu.memory_space<vmem>>, vector<1x32x32xbf16>,
    return
  }
}

module attributes {stable_mosaic.version = 11 : i64} {
  func.func @_deconv_bn_relu_kernel(%arg0: memref<4x128x128xbf16, #tpu.memory_space<vmem>>, %arg1: memref<4x16x128xbf16, #tpu.memory_space<vmem>>, %arg2: memref<16x1xf32, #tpu.memory_space<vmem>>, %arg3: memref<16x1xf32, #tpu.memory_space<vmem>>, %arg4: memref<4x16x128xbf16, #tpu.memory_space<vmem>>) attributes {dimension_semantics = [], scalar_prefetch = 0 : i64, scratch_operands = 0 : i64, tpu.core_type = #tpu.core_type<tc>} {
    %cst = arith.constant 0.000000e+00 : f32
    %0 = vector.broadcast %cst : f32 to vector<16x1xf32>
    %cst_0 = arith.constant 0.000000e+00 : f32
    %1 = vector.broadcast %cst_0 : f32 to vector<16x1xf32>
    %c0 = arith.constant 0 : index
    %c0_1 = arith.constant 0 : index
    %c0_2 = arith.constant 0 : index
    %2 = vector.load %arg1[%c0, %c0_1, %c0_2] : memref<4x16x128xbf16, #tpu.memory_space<vmem>>, vector<1x16x128xbf16>
    %3 = vector.shape_cast %2 : vector<1x16x128xbf16> to vector<16x128xbf16>
    %c0_3 = arith.constant 0 : index
    %c0_4 = arith.constant 0 : index
    %c0_5 = arith.constant 0 : index
    %4 = vector.load %arg0[%c0_3, %c0_4, %c0_5] : memref<4x128x128xbf16, #tpu.memory_space<vmem>>, vector<1x128x128xbf16>
    %5 = vector.shape_cast %4 : vector<1x128x128xbf16> to vector<128x128xbf16>
    %cst_6 = arith.constant dense<0.000000e+00> : vector<16x128xf32>
    %6 = tpu.matmul %3, %5, %cst_6 {dimension_numbers = #tpu.dot_dimension_numbers<[1], [0], [0], [1], [0, 0, 1, 1], [], []>} : vector<16x128xbf16>, vector<128x128xbf16>, vector<16x128xf32> -> vector<16x128xf32>
    %cst_7 = arith.constant dense<0.000000e+00> : vector<16xf32>
    %7 = vector.multi_reduction <add>, %6, %cst_7 [1] : vector<16x128xf32> to vector<16xf32>
    %8 = vector.shape_cast %7 : vector<16xf32> to vector<16x1xf32>
    %9 = arith.addf %0, %8 : vector<16x1xf32>
    %10 = arith.mulf %6, %6 : vector<16x128xf32>
    %cst_8 = arith.constant dense<0.000000e+00> : vector<16xf32>
    %11 = vector.multi_reduction <add>, %10, %cst_8 [1] : vector<16x128xf32> to vector<16xf32>
    %12 = vector.shape_cast %11 : vector<16xf32> to vector<16x1xf32>
    %13 = arith.addf %1, %12 : vector<16x1xf32>
    %c1 = arith.constant 1 : index
    %c0_9 = arith.constant 0 : index
    %c0_10 = arith.constant 0 : index
    %14 = vector.load %arg1[%c1, %c0_9, %c0_10] : memref<4x16x128xbf16, #tpu.memory_space<vmem>>, vector<1x16x128xbf16>
    %15 = vector.shape_cast %14 : vector<1x16x128xbf16> to vector<16x128xbf16>
    %c1_11 = arith.constant 1 : index
    %c0_12 = arith.constant 0 : index
    %c0_13 = arith.constant 0 : index
    %16 = vector.load %arg0[%c1_11, %c0_12, %c0_13] : memref<4x128x128xbf16, #tpu.memory_space<vmem>>, vector<1x128x128xbf16>
    %17 = vector.shape_cast %16 : vector<1x128x128xbf16> to vector<128x128xbf16>
    %cst_14 = arith.constant dense<0.000000e+00> : vector<16x128xf32>
    %18 = tpu.matmul %15, %17, %cst_14 {dimension_numbers = #tpu.dot_dimension_numbers<[1], [0], [0], [1], [0, 0, 1, 1], [], []>} : vector<16x128xbf16>, vector<128x128xbf16>, vector<16x128xf32> -> vector<16x128xf32>
    %cst_15 = arith.constant dense<0.000000e+00> : vector<16xf32>
    %19 = vector.multi_reduction <add>, %18, %cst_15 [1] : vector<16x128xf32> to vector<16xf32>
    %20 = vector.shape_cast %19 : vector<16xf32> to vector<16x1xf32>
    %21 = arith.addf %9, %20 : vector<16x1xf32>
    %22 = arith.mulf %18, %18 : vector<16x128xf32>
    %cst_16 = arith.constant dense<0.000000e+00> : vector<16xf32>
    %23 = vector.multi_reduction <add>, %22, %cst_16 [1] : vector<16x128xf32> to vector<16xf32>
    %24 = vector.shape_cast %23 : vector<16xf32> to vector<16x1xf32>
    %25 = arith.addf %13, %24 : vector<16x1xf32>
    %c2 = arith.constant 2 : index
    %c0_17 = arith.constant 0 : index
    %c0_18 = arith.constant 0 : index
    %26 = vector.load %arg1[%c2, %c0_17, %c0_18] : memref<4x16x128xbf16, #tpu.memory_space<vmem>>, vector<1x16x128xbf16>
    %27 = vector.shape_cast %26 : vector<1x16x128xbf16> to vector<16x128xbf16>
    %c2_19 = arith.constant 2 : index
    %c0_20 = arith.constant 0 : index
    %c0_21 = arith.constant 0 : index
    %28 = vector.load %arg0[%c2_19, %c0_20, %c0_21] : memref<4x128x128xbf16, #tpu.memory_space<vmem>>, vector<1x128x128xbf16>
    %29 = vector.shape_cast %28 : vector<1x128x128xbf16> to vector<128x128xbf16>
    %cst_22 = arith.constant dense<0.000000e+00> : vector<16x128xf32>
    %30 = tpu.matmul %27, %29, %cst_22 {dimension_numbers = #tpu.dot_dimension_numbers<[1], [0], [0], [1], [0, 0, 1, 1], [], []>} : vector<16x128xbf16>, vector<128x128xbf16>, vector<16x128xf32> -> vector<16x128xf32>
    %cst_23 = arith.constant dense<0.000000e+00> : vector<16xf32>
    %31 = vector.multi_reduction <add>, %30, %cst_23 [1] : vector<16x128xf32> to vector<16xf32>
    %32 = vector.shape_cast %31 : vector<16xf32> to vector<16x1xf32>
    %33 = arith.addf %21, %32 : vector<16x1xf32>
    %34 = arith.mulf %30, %30 : vector<16x128xf32>
    %cst_24 = arith.constant dense<0.000000e+00> : vector<16xf32>
    %35 = vector.multi_reduction <add>, %34, %cst_24 [1] : vector<16x128xf32> to vector<16xf32>
    %36 = vector.shape_cast %35 : vector<16xf32> to vector<16x1xf32>
    %37 = arith.addf %25, %36 : vector<16x1xf32>
    %c3 = arith.constant 3 : index
    %c0_25 = arith.constant 0 : index
    %c0_26 = arith.constant 0 : index
    %38 = vector.load %arg1[%c3, %c0_25, %c0_26] : memref<4x16x128xbf16, #tpu.memory_space<vmem>>, vector<1x16x128xbf16>
    %39 = vector.shape_cast %38 : vector<1x16x128xbf16> to vector<16x128xbf16>
    %c3_27 = arith.constant 3 : index
    %c0_28 = arith.constant 0 : index
    %c0_29 = arith.constant 0 : index
    %40 = vector.load %arg0[%c3_27, %c0_28, %c0_29] : memref<4x128x128xbf16, #tpu.memory_space<vmem>>, vector<1x128x128xbf16>
    %41 = vector.shape_cast %40 : vector<1x128x128xbf16> to vector<128x128xbf16>
    %cst_30 = arith.constant dense<0.000000e+00> : vector<16x128xf32>
    %42 = tpu.matmul %39, %41, %cst_30 {dimension_numbers = #tpu.dot_dimension_numbers<[1], [0], [0], [1], [0, 0, 1, 1], [], []>} : vector<16x128xbf16>, vector<128x128xbf16>, vector<16x128xf32> -> vector<16x128xf32>
    %cst_31 = arith.constant dense<0.000000e+00> : vector<16xf32>
    %43 = vector.multi_reduction <add>, %42, %cst_31 [1] : vector<16x128xf32> to vector<16xf32>
    %44 = vector.shape_cast %43 : vector<16xf32> to vector<16x1xf32>
    %45 = arith.addf %33, %44 : vector<16x1xf32>
    %46 = arith.mulf %42, %42 : vector<16x128xf32>
    %cst_32 = arith.constant dense<0.000000e+00> : vector<16xf32>
    %47 = vector.multi_reduction <add>, %46, %cst_32 [1] : vector<16x128xf32> to vector<16xf32>
    %48 = vector.shape_cast %47 : vector<16xf32> to vector<16x1xf32>
    %49 = arith.addf %37, %48 : vector<16x1xf32>
    %cst_33 = arith.constant 5.120000e+02 : f32
    %50 = vector.broadcast %cst_33 : f32 to vector<16x1xf32>
    %51 = arith.divf %45, %50 : vector<16x1xf32>
    %cst_34 = arith.constant 5.120000e+02 : f32
    %52 = vector.broadcast %cst_34 : f32 to vector<16x1xf32>
    %53 = arith.divf %49, %52 : vector<16x1xf32>
    %54 = arith.mulf %51, %51 : vector<16x1xf32>
    %55 = arith.subf %53, %54 : vector<16x1xf32>
    %c0_35 = arith.constant 0 : index
    %c0_36 = arith.constant 0 : index
    %56 = vector.load %arg2[%c0_35, %c0_36] : memref<16x1xf32, #tpu.memory_space<vmem>>, vector<16x1xf32>
    %cst_37 = arith.constant 9.99999974E-6 : f32
    %57 = vector.broadcast %cst_37 : f32 to vector<16x1xf32>
    %58 = arith.addf %55, %57 : vector<16x1xf32>
    %59 = math.rsqrt %58 : vector<16x1xf32>
    %60 = arith.mulf %56, %59 : vector<16x1xf32>
    %c0_38 = arith.constant 0 : index
    %c0_39 = arith.constant 0 : index
    %61 = vector.load %arg3[%c0_38, %c0_39] : memref<16x1xf32, #tpu.memory_space<vmem>>, vector<16x1xf32>
    %62 = arith.mulf %51, %60 : vector<16x1xf32>
    %63 = arith.subf %61, %62 : vector<16x1xf32>
    %64 = vector.broadcast %60 : vector<16x1xf32> to vector<16x128xf32>
    %65 = arith.mulf %6, %64 : vector<16x128xf32>
    %66 = vector.broadcast %63 : vector<16x1xf32> to vector<16x128xf32>
    %67 = arith.addf %65, %66 : vector<16x128xf32>
    %cst_40 = arith.constant 0.000000e+00 : f32
    %68 = vector.broadcast %cst_40 : f32 to vector<16x128xf32>
    %69 = arith.maximumf %67, %68 : vector<16x128xf32>
    %70 = arith.truncf %69 : vector<16x128xf32> to vector<16x128xbf16>
    %c0_41 = arith.constant 0 : index
    %c0_42 = arith.constant 0 : index
    %c0_43 = arith.constant 0 : index
    %71 = vector.load %arg4[%c0_41, %c0_42, %c0_43] : memref<4x16x128xbf16, #tpu.memory_space<vmem>>, vector<1x16x128xbf16>
    %72 = vector.shape_cast %71 : vector<1x16x128xbf16> to vector<16x128xbf16>
    %73 = vector.shape_cast %70 : vector<16x128xbf16> to vector<1x16x128xbf16>
    tpu.vector_store %arg4[%c0_41, %c0_42, %c0_43], %73 {strides = array<i32>} : memref<4x16x128xbf16, #tpu.memory_space<vmem>>, vector<1x16x128xbf16>,
    %74 = vector.broadcast %60 : vector<16x1xf32> to vector<16x128xf32>
    %75 = arith.mulf %18, %74 : vector<16x128xf32>
    %76 = vector.broadcast %63 : vector<16x1xf32> to vector<16x128xf32>
    %77 = arith.addf %75, %76 : vector<16x128xf32>
    %cst_44 = arith.constant 0.000000e+00 : f32
    %78 = vector.broadcast %cst_44 : f32 to vector<16x128xf32>
    %79 = arith.maximumf %77, %78 : vector<16x128xf32>
    %80 = arith.truncf %79 : vector<16x128xf32> to vector<16x128xbf16>
    %c1_45 = arith.constant 1 : index
    %c0_46 = arith.constant 0 : index
    %c0_47 = arith.constant 0 : index
    %81 = vector.load %arg4[%c1_45, %c0_46, %c0_47] : memref<4x16x128xbf16, #tpu.memory_space<vmem>>, vector<1x16x128xbf16>
    %82 = vector.shape_cast %81 : vector<1x16x128xbf16> to vector<16x128xbf16>
    %83 = vector.shape_cast %80 : vector<16x128xbf16> to vector<1x16x128xbf16>
    tpu.vector_store %arg4[%c1_45, %c0_46, %c0_47], %83 {strides = array<i32>} : memref<4x16x128xbf16, #tpu.memory_space<vmem>>, vector<1x16x128xbf16>,
    %84 = vector.broadcast %60 : vector<16x1xf32> to vector<16x128xf32>
    %85 = arith.mulf %30, %84 : vector<16x128xf32>
    %86 = vector.broadcast %63 : vector<16x1xf32> to vector<16x128xf32>
    %87 = arith.addf %85, %86 : vector<16x128xf32>
    %cst_48 = arith.constant 0.000000e+00 : f32
    %88 = vector.broadcast %cst_48 : f32 to vector<16x128xf32>
    %89 = arith.maximumf %87, %88 : vector<16x128xf32>
    %90 = arith.truncf %89 : vector<16x128xf32> to vector<16x128xbf16>
    %c2_49 = arith.constant 2 : index
    %c0_50 = arith.constant 0 : index
    %c0_51 = arith.constant 0 : index
    %91 = vector.load %arg4[%c2_49, %c0_50, %c0_51] : memref<4x16x128xbf16, #tpu.memory_space<vmem>>, vector<1x16x128xbf16>
    %92 = vector.shape_cast %91 : vector<1x16x128xbf16> to vector<16x128xbf16>
    %93 = vector.shape_cast %90 : vector<16x128xbf16> to vector<1x16x128xbf16>
    tpu.vector_store %arg4[%c2_49, %c0_50, %c0_51], %93 {strides = array<i32>} : memref<4x16x128xbf16, #tpu.memory_space<vmem>>, vector<1x16x128xbf16>,
    %94 = vector.broadcast %60 : vector<16x1xf32> to vector<16x128xf32>
    %95 = arith.mulf %42, %94 : vector<16x128xf32>
    %96 = vector.broadcast %63 : vector<16x1xf32> to vector<16x128xf32>
    %97 = arith.addf %95, %96 : vector<16x128xf32>
    %cst_52 = arith.constant 0.000000e+00 : f32
    %98 = vector.broadcast %cst_52 : f32 to vector<16x128xf32>
    %99 = arith.maximumf %97, %98 : vector<16x128xf32>
    %100 = arith.truncf %99 : vector<16x128xf32> to vector<16x128xbf16>
    %c3_53 = arith.constant 3 : index
    %c0_54 = arith.constant 0 : index
    %c0_55 = arith.constant 0 : index
    %101 = vector.load %arg4[%c3_53, %c0_54, %c0_55] : memref<4x16x128xbf16, #tpu.memory_space<vmem>>, vector<1x16x128xbf16>
    %102 = vector.shape_cast %101 : vector<1x16x128xbf16> to vector<16x128xbf16>
    %103 = vector.shape_cast %100 : vector<16x128xbf16> to vector<1x16x128xbf16>
    tpu.vector_store %arg4[%c3_53, %c0_54, %c0_55], %103 {strides = array<i32>} : memref<4x16x128xbf16, #tpu.memory_space<vmem>>, vector<1x16x128xbf16>,
    return
  }
}

module attributes {stable_mosaic.version = 11 : i64} {
  func.func @_deconv_bn_relu_kernel(%arg0: memref<4x64x512xbf16, #tpu.memory_space<vmem>>, %arg1: memref<4x8x64xbf16, #tpu.memory_space<vmem>>, %arg2: memref<8x1xf32, #tpu.memory_space<vmem>>, %arg3: memref<8x1xf32, #tpu.memory_space<vmem>>, %arg4: memref<4x8x512xbf16, #tpu.memory_space<vmem>>) attributes {dimension_semantics = [], scalar_prefetch = 0 : i64, scratch_operands = 0 : i64, tpu.core_type = #tpu.core_type<tc>} {
    %cst = arith.constant 0.000000e+00 : f32
    %0 = vector.broadcast %cst : f32 to vector<8x1xf32>
    %cst_0 = arith.constant 0.000000e+00 : f32
    %1 = vector.broadcast %cst_0 : f32 to vector<8x1xf32>
    %c0 = arith.constant 0 : index
    %c0_1 = arith.constant 0 : index
    %c0_2 = arith.constant 0 : index
    %2 = vector.load %arg1[%c0, %c0_1, %c0_2] : memref<4x8x64xbf16, #tpu.memory_space<vmem>>, vector<1x8x64xbf16>
    %3 = vector.shape_cast %2 : vector<1x8x64xbf16> to vector<8x64xbf16>
    %c0_3 = arith.constant 0 : index
    %c0_4 = arith.constant 0 : index
    %c0_5 = arith.constant 0 : index
    %4 = vector.load %arg0[%c0_3, %c0_4, %c0_5] : memref<4x64x512xbf16, #tpu.memory_space<vmem>>, vector<1x64x512xbf16>
    %5 = vector.shape_cast %4 : vector<1x64x512xbf16> to vector<64x512xbf16>
    %cst_6 = arith.constant dense<0.000000e+00> : vector<8x512xf32>
    %6 = tpu.matmul %3, %5, %cst_6 {dimension_numbers = #tpu.dot_dimension_numbers<[1], [0], [0], [1], [0, 0, 1, 1], [], []>} : vector<8x64xbf16>, vector<64x512xbf16>, vector<8x512xf32> -> vector<8x512xf32>
    %cst_7 = arith.constant dense<0.000000e+00> : vector<8xf32>
    %7 = vector.multi_reduction <add>, %6, %cst_7 [1] : vector<8x512xf32> to vector<8xf32>
    %8 = vector.shape_cast %7 : vector<8xf32> to vector<8x1xf32>
    %9 = arith.addf %0, %8 : vector<8x1xf32>
    %10 = arith.mulf %6, %6 : vector<8x512xf32>
    %cst_8 = arith.constant dense<0.000000e+00> : vector<8xf32>
    %11 = vector.multi_reduction <add>, %10, %cst_8 [1] : vector<8x512xf32> to vector<8xf32>
    %12 = vector.shape_cast %11 : vector<8xf32> to vector<8x1xf32>
    %13 = arith.addf %1, %12 : vector<8x1xf32>
    %c1 = arith.constant 1 : index
    %c0_9 = arith.constant 0 : index
    %c0_10 = arith.constant 0 : index
    %14 = vector.load %arg1[%c1, %c0_9, %c0_10] : memref<4x8x64xbf16, #tpu.memory_space<vmem>>, vector<1x8x64xbf16>
    %15 = vector.shape_cast %14 : vector<1x8x64xbf16> to vector<8x64xbf16>
    %c1_11 = arith.constant 1 : index
    %c0_12 = arith.constant 0 : index
    %c0_13 = arith.constant 0 : index
    %16 = vector.load %arg0[%c1_11, %c0_12, %c0_13] : memref<4x64x512xbf16, #tpu.memory_space<vmem>>, vector<1x64x512xbf16>
    %17 = vector.shape_cast %16 : vector<1x64x512xbf16> to vector<64x512xbf16>
    %cst_14 = arith.constant dense<0.000000e+00> : vector<8x512xf32>
    %18 = tpu.matmul %15, %17, %cst_14 {dimension_numbers = #tpu.dot_dimension_numbers<[1], [0], [0], [1], [0, 0, 1, 1], [], []>} : vector<8x64xbf16>, vector<64x512xbf16>, vector<8x512xf32> -> vector<8x512xf32>
    %cst_15 = arith.constant dense<0.000000e+00> : vector<8xf32>
    %19 = vector.multi_reduction <add>, %18, %cst_15 [1] : vector<8x512xf32> to vector<8xf32>
    %20 = vector.shape_cast %19 : vector<8xf32> to vector<8x1xf32>
    %21 = arith.addf %9, %20 : vector<8x1xf32>
    %22 = arith.mulf %18, %18 : vector<8x512xf32>
    %cst_16 = arith.constant dense<0.000000e+00> : vector<8xf32>
    %23 = vector.multi_reduction <add>, %22, %cst_16 [1] : vector<8x512xf32> to vector<8xf32>
    %24 = vector.shape_cast %23 : vector<8xf32> to vector<8x1xf32>
    %25 = arith.addf %13, %24 : vector<8x1xf32>
    %c2 = arith.constant 2 : index
    %c0_17 = arith.constant 0 : index
    %c0_18 = arith.constant 0 : index
    %26 = vector.load %arg1[%c2, %c0_17, %c0_18] : memref<4x8x64xbf16, #tpu.memory_space<vmem>>, vector<1x8x64xbf16>
    %27 = vector.shape_cast %26 : vector<1x8x64xbf16> to vector<8x64xbf16>
    %c2_19 = arith.constant 2 : index
    %c0_20 = arith.constant 0 : index
    %c0_21 = arith.constant 0 : index
    %28 = vector.load %arg0[%c2_19, %c0_20, %c0_21] : memref<4x64x512xbf16, #tpu.memory_space<vmem>>, vector<1x64x512xbf16>
    %29 = vector.shape_cast %28 : vector<1x64x512xbf16> to vector<64x512xbf16>
    %cst_22 = arith.constant dense<0.000000e+00> : vector<8x512xf32>
    %30 = tpu.matmul %27, %29, %cst_22 {dimension_numbers = #tpu.dot_dimension_numbers<[1], [0], [0], [1], [0, 0, 1, 1], [], []>} : vector<8x64xbf16>, vector<64x512xbf16>, vector<8x512xf32> -> vector<8x512xf32>
    %cst_23 = arith.constant dense<0.000000e+00> : vector<8xf32>
    %31 = vector.multi_reduction <add>, %30, %cst_23 [1] : vector<8x512xf32> to vector<8xf32>
    %32 = vector.shape_cast %31 : vector<8xf32> to vector<8x1xf32>
    %33 = arith.addf %21, %32 : vector<8x1xf32>
    %34 = arith.mulf %30, %30 : vector<8x512xf32>
    %cst_24 = arith.constant dense<0.000000e+00> : vector<8xf32>
    %35 = vector.multi_reduction <add>, %34, %cst_24 [1] : vector<8x512xf32> to vector<8xf32>
    %36 = vector.shape_cast %35 : vector<8xf32> to vector<8x1xf32>
    %37 = arith.addf %25, %36 : vector<8x1xf32>
    %c3 = arith.constant 3 : index
    %c0_25 = arith.constant 0 : index
    %c0_26 = arith.constant 0 : index
    %38 = vector.load %arg1[%c3, %c0_25, %c0_26] : memref<4x8x64xbf16, #tpu.memory_space<vmem>>, vector<1x8x64xbf16>
    %39 = vector.shape_cast %38 : vector<1x8x64xbf16> to vector<8x64xbf16>
    %c3_27 = arith.constant 3 : index
    %c0_28 = arith.constant 0 : index
    %c0_29 = arith.constant 0 : index
    %40 = vector.load %arg0[%c3_27, %c0_28, %c0_29] : memref<4x64x512xbf16, #tpu.memory_space<vmem>>, vector<1x64x512xbf16>
    %41 = vector.shape_cast %40 : vector<1x64x512xbf16> to vector<64x512xbf16>
    %cst_30 = arith.constant dense<0.000000e+00> : vector<8x512xf32>
    %42 = tpu.matmul %39, %41, %cst_30 {dimension_numbers = #tpu.dot_dimension_numbers<[1], [0], [0], [1], [0, 0, 1, 1], [], []>} : vector<8x64xbf16>, vector<64x512xbf16>, vector<8x512xf32> -> vector<8x512xf32>
    %cst_31 = arith.constant dense<0.000000e+00> : vector<8xf32>
    %43 = vector.multi_reduction <add>, %42, %cst_31 [1] : vector<8x512xf32> to vector<8xf32>
    %44 = vector.shape_cast %43 : vector<8xf32> to vector<8x1xf32>
    %45 = arith.addf %33, %44 : vector<8x1xf32>
    %46 = arith.mulf %42, %42 : vector<8x512xf32>
    %cst_32 = arith.constant dense<0.000000e+00> : vector<8xf32>
    %47 = vector.multi_reduction <add>, %46, %cst_32 [1] : vector<8x512xf32> to vector<8xf32>
    %48 = vector.shape_cast %47 : vector<8xf32> to vector<8x1xf32>
    %49 = arith.addf %37, %48 : vector<8x1xf32>
    %cst_33 = arith.constant 2.048000e+03 : f32
    %50 = vector.broadcast %cst_33 : f32 to vector<8x1xf32>
    %51 = arith.divf %45, %50 : vector<8x1xf32>
    %cst_34 = arith.constant 2.048000e+03 : f32
    %52 = vector.broadcast %cst_34 : f32 to vector<8x1xf32>
    %53 = arith.divf %49, %52 : vector<8x1xf32>
    %54 = arith.mulf %51, %51 : vector<8x1xf32>
    %55 = arith.subf %53, %54 : vector<8x1xf32>
    %c0_35 = arith.constant 0 : index
    %c0_36 = arith.constant 0 : index
    %56 = vector.load %arg2[%c0_35, %c0_36] : memref<8x1xf32, #tpu.memory_space<vmem>>, vector<8x1xf32>
    %cst_37 = arith.constant 9.99999974E-6 : f32
    %57 = vector.broadcast %cst_37 : f32 to vector<8x1xf32>
    %58 = arith.addf %55, %57 : vector<8x1xf32>
    %59 = math.rsqrt %58 : vector<8x1xf32>
    %60 = arith.mulf %56, %59 : vector<8x1xf32>
    %c0_38 = arith.constant 0 : index
    %c0_39 = arith.constant 0 : index
    %61 = vector.load %arg3[%c0_38, %c0_39] : memref<8x1xf32, #tpu.memory_space<vmem>>, vector<8x1xf32>
    %62 = arith.mulf %51, %60 : vector<8x1xf32>
    %63 = arith.subf %61, %62 : vector<8x1xf32>
    %64 = vector.broadcast %60 : vector<8x1xf32> to vector<8x512xf32>
    %65 = arith.mulf %6, %64 : vector<8x512xf32>
    %66 = vector.broadcast %63 : vector<8x1xf32> to vector<8x512xf32>
    %67 = arith.addf %65, %66 : vector<8x512xf32>
    %cst_40 = arith.constant 0.000000e+00 : f32
    %68 = vector.broadcast %cst_40 : f32 to vector<8x512xf32>
    %69 = arith.maximumf %67, %68 : vector<8x512xf32>
    %70 = arith.truncf %69 : vector<8x512xf32> to vector<8x512xbf16>
    %c0_41 = arith.constant 0 : index
    %c0_42 = arith.constant 0 : index
    %c0_43 = arith.constant 0 : index
    %71 = vector.load %arg4[%c0_41, %c0_42, %c0_43] : memref<4x8x512xbf16, #tpu.memory_space<vmem>>, vector<1x8x512xbf16>
    %72 = vector.shape_cast %71 : vector<1x8x512xbf16> to vector<8x512xbf16>
    %73 = vector.shape_cast %70 : vector<8x512xbf16> to vector<1x8x512xbf16>
    tpu.vector_store %arg4[%c0_41, %c0_42, %c0_43], %73 {strides = array<i32>} : memref<4x8x512xbf16, #tpu.memory_space<vmem>>, vector<1x8x512xbf16>,
    %74 = vector.broadcast %60 : vector<8x1xf32> to vector<8x512xf32>
    %75 = arith.mulf %18, %74 : vector<8x512xf32>
    %76 = vector.broadcast %63 : vector<8x1xf32> to vector<8x512xf32>
    %77 = arith.addf %75, %76 : vector<8x512xf32>
    %cst_44 = arith.constant 0.000000e+00 : f32
    %78 = vector.broadcast %cst_44 : f32 to vector<8x512xf32>
    %79 = arith.maximumf %77, %78 : vector<8x512xf32>
    %80 = arith.truncf %79 : vector<8x512xf32> to vector<8x512xbf16>
    %c1_45 = arith.constant 1 : index
    %c0_46 = arith.constant 0 : index
    %c0_47 = arith.constant 0 : index
    %81 = vector.load %arg4[%c1_45, %c0_46, %c0_47] : memref<4x8x512xbf16, #tpu.memory_space<vmem>>, vector<1x8x512xbf16>
    %82 = vector.shape_cast %81 : vector<1x8x512xbf16> to vector<8x512xbf16>
    %83 = vector.shape_cast %80 : vector<8x512xbf16> to vector<1x8x512xbf16>
    tpu.vector_store %arg4[%c1_45, %c0_46, %c0_47], %83 {strides = array<i32>} : memref<4x8x512xbf16, #tpu.memory_space<vmem>>, vector<1x8x512xbf16>,
    %84 = vector.broadcast %60 : vector<8x1xf32> to vector<8x512xf32>
    %85 = arith.mulf %30, %84 : vector<8x512xf32>
    %86 = vector.broadcast %63 : vector<8x1xf32> to vector<8x512xf32>
    %87 = arith.addf %85, %86 : vector<8x512xf32>
    %cst_48 = arith.constant 0.000000e+00 : f32
    %88 = vector.broadcast %cst_48 : f32 to vector<8x512xf32>
    %89 = arith.maximumf %87, %88 : vector<8x512xf32>
    %90 = arith.truncf %89 : vector<8x512xf32> to vector<8x512xbf16>
    %c2_49 = arith.constant 2 : index
    %c0_50 = arith.constant 0 : index
    %c0_51 = arith.constant 0 : index
    %91 = vector.load %arg4[%c2_49, %c0_50, %c0_51] : memref<4x8x512xbf16, #tpu.memory_space<vmem>>, vector<1x8x512xbf16>
    %92 = vector.shape_cast %91 : vector<1x8x512xbf16> to vector<8x512xbf16>
    %93 = vector.shape_cast %90 : vector<8x512xbf16> to vector<1x8x512xbf16>
    tpu.vector_store %arg4[%c2_49, %c0_50, %c0_51], %93 {strides = array<i32>} : memref<4x8x512xbf16, #tpu.memory_space<vmem>>, vector<1x8x512xbf16>,
    %94 = vector.broadcast %60 : vector<8x1xf32> to vector<8x512xf32>
    %95 = arith.mulf %42, %94 : vector<8x512xf32>
    %96 = vector.broadcast %63 : vector<8x1xf32> to vector<8x512xf32>
    %97 = arith.addf %95, %96 : vector<8x512xf32>
    %cst_52 = arith.constant 0.000000e+00 : f32
    %98 = vector.broadcast %cst_52 : f32 to vector<8x512xf32>
    %99 = arith.maximumf %97, %98 : vector<8x512xf32>
    %100 = arith.truncf %99 : vector<8x512xf32> to vector<8x512xbf16>
    %c3_53 = arith.constant 3 : index
    %c0_54 = arith.constant 0 : index
    %c0_55 = arith.constant 0 : index
    %101 = vector.load %arg4[%c3_53, %c0_54, %c0_55] : memref<4x8x512xbf16, #tpu.memory_space<vmem>>, vector<1x8x512xbf16>
    %102 = vector.shape_cast %101 : vector<1x8x512xbf16> to vector<8x512xbf16>
    %103 = vector.shape_cast %100 : vector<8x512xbf16> to vector<1x8x512xbf16>
    tpu.vector_store %arg4[%c3_53, %c0_54, %c0_55], %103 {strides = array<i32>} : memref<4x8x512xbf16, #tpu.memory_space<vmem>>, vector<1x8x512xbf16>,
    return
  }
}

module attributes {stable_mosaic.version = 11 : i64} {
  func.func @_deconv_tanh_kernel(%arg0: memref<4x32x2048xbf16, #tpu.memory_space<vmem>>, %arg1: memref<4x1x32xbf16, #tpu.memory_space<vmem>>, %arg2: memref<1x1xf32, #tpu.memory_space<vmem>>, %arg3: memref<4x1x2048xf32, #tpu.memory_space<vmem>>) attributes {dimension_semantics = [], scalar_prefetch = 0 : i64, scratch_operands = 0 : i64, tpu.core_type = #tpu.core_type<tc>} {
    %c0 = arith.constant 0 : index
    %c0_0 = arith.constant 0 : index
    %c0_1 = arith.constant 0 : index
    %0 = vector.load %arg1[%c0, %c0_0, %c0_1] : memref<4x1x32xbf16, #tpu.memory_space<vmem>>, vector<1x1x32xbf16>
    %1 = vector.shape_cast %0 : vector<1x1x32xbf16> to vector<1x32xbf16>
    %c0_2 = arith.constant 0 : index
    %c0_3 = arith.constant 0 : index
    %c0_4 = arith.constant 0 : index
    %2 = vector.load %arg0[%c0_2, %c0_3, %c0_4] : memref<4x32x2048xbf16, #tpu.memory_space<vmem>>, vector<1x32x2048xbf16>
    %3 = vector.shape_cast %2 : vector<1x32x2048xbf16> to vector<32x2048xbf16>
    %cst = arith.constant dense<0.000000e+00> : vector<1x2048xf32>
    %4 = tpu.matmul %1, %3, %cst {dimension_numbers = #tpu.dot_dimension_numbers<[1], [0], [0], [1], [0, 0, 1, 1], [], []>} : vector<1x32xbf16>, vector<32x2048xbf16>, vector<1x2048xf32> -> vector<1x2048xf32>
    %c0_5 = arith.constant 0 : index
    %c0_6 = arith.constant 0 : index
    %5 = vector.load %arg2[%c0_5, %c0_6] : memref<1x1xf32, #tpu.memory_space<vmem>>, vector<1x1xf32>
    %6 = vector.broadcast %5 : vector<1x1xf32> to vector<1x2048xf32>
    %7 = arith.addf %4, %6 : vector<1x2048xf32>
    %8 = math.tanh %7 : vector<1x2048xf32>
    %c0_7 = arith.constant 0 : index
    %c0_8 = arith.constant 0 : index
    %c0_9 = arith.constant 0 : index
    %9 = vector.load %arg3[%c0_7, %c0_8, %c0_9] : memref<4x1x2048xf32, #tpu.memory_space<vmem>>, vector<1x1x2048xf32>
    %10 = vector.shape_cast %9 : vector<1x1x2048xf32> to vector<1x2048xf32>
    %11 = vector.shape_cast %8 : vector<1x2048xf32> to vector<1x1x2048xf32>
    tpu.vector_store %arg3[%c0_7, %c0_8, %c0_9], %11 {strides = array<i32>} : memref<4x1x2048xf32, #tpu.memory_space<vmem>>, vector<1x1x2048xf32>,
    %c1 = arith.constant 1 : index
    %c0_10 = arith.constant 0 : index
    %c0_11 = arith.constant 0 : index
    %12 = vector.load %arg1[%c1, %c0_10, %c0_11] : memref<4x1x32xbf16, #tpu.memory_space<vmem>>, vector<1x1x32xbf16>
    %13 = vector.shape_cast %12 : vector<1x1x32xbf16> to vector<1x32xbf16>
    %c1_12 = arith.constant 1 : index
    %c0_13 = arith.constant 0 : index
    %c0_14 = arith.constant 0 : index
    %14 = vector.load %arg0[%c1_12, %c0_13, %c0_14] : memref<4x32x2048xbf16, #tpu.memory_space<vmem>>, vector<1x32x2048xbf16>
    %15 = vector.shape_cast %14 : vector<1x32x2048xbf16> to vector<32x2048xbf16>
    %cst_15 = arith.constant dense<0.000000e+00> : vector<1x2048xf32>
    %16 = tpu.matmul %13, %15, %cst_15 {dimension_numbers = #tpu.dot_dimension_numbers<[1], [0], [0], [1], [0, 0, 1, 1], [], []>} : vector<1x32xbf16>, vector<32x2048xbf16>, vector<1x2048xf32> -> vector<1x2048xf32>
    %c0_16 = arith.constant 0 : index
    %c0_17 = arith.constant 0 : index
    %17 = vector.load %arg2[%c0_16, %c0_17] : memref<1x1xf32, #tpu.memory_space<vmem>>, vector<1x1xf32>
    %18 = vector.broadcast %17 : vector<1x1xf32> to vector<1x2048xf32>
    %19 = arith.addf %16, %18 : vector<1x2048xf32>
    %20 = math.tanh %19 : vector<1x2048xf32>
    %c1_18 = arith.constant 1 : index
    %c0_19 = arith.constant 0 : index
    %c0_20 = arith.constant 0 : index
    %21 = vector.load %arg3[%c1_18, %c0_19, %c0_20] : memref<4x1x2048xf32, #tpu.memory_space<vmem>>, vector<1x1x2048xf32>
    %22 = vector.shape_cast %21 : vector<1x1x2048xf32> to vector<1x2048xf32>
    %23 = vector.shape_cast %20 : vector<1x2048xf32> to vector<1x1x2048xf32>
    tpu.vector_store %arg3[%c1_18, %c0_19, %c0_20], %23 {strides = array<i32>} : memref<4x1x2048xf32, #tpu.memory_space<vmem>>, vector<1x1x2048xf32>,
    %c2 = arith.constant 2 : index
    %c0_21 = arith.constant 0 : index
    %c0_22 = arith.constant 0 : index
    %24 = vector.load %arg1[%c2, %c0_21, %c0_22] : memref<4x1x32xbf16, #tpu.memory_space<vmem>>, vector<1x1x32xbf16>
    %25 = vector.shape_cast %24 : vector<1x1x32xbf16> to vector<1x32xbf16>
    %c2_23 = arith.constant 2 : index
    %c0_24 = arith.constant 0 : index
    %c0_25 = arith.constant 0 : index
    %26 = vector.load %arg0[%c2_23, %c0_24, %c0_25] : memref<4x32x2048xbf16, #tpu.memory_space<vmem>>, vector<1x32x2048xbf16>
    %27 = vector.shape_cast %26 : vector<1x32x2048xbf16> to vector<32x2048xbf16>
    %cst_26 = arith.constant dense<0.000000e+00> : vector<1x2048xf32>
    %28 = tpu.matmul %25, %27, %cst_26 {dimension_numbers = #tpu.dot_dimension_numbers<[1], [0], [0], [1], [0, 0, 1, 1], [], []>} : vector<1x32xbf16>, vector<32x2048xbf16>, vector<1x2048xf32> -> vector<1x2048xf32>
    %c0_27 = arith.constant 0 : index
    %c0_28 = arith.constant 0 : index
    %29 = vector.load %arg2[%c0_27, %c0_28] : memref<1x1xf32, #tpu.memory_space<vmem>>, vector<1x1xf32>
    %30 = vector.broadcast %29 : vector<1x1xf32> to vector<1x2048xf32>
    %31 = arith.addf %28, %30 : vector<1x2048xf32>
    %32 = math.tanh %31 : vector<1x2048xf32>
    %c2_29 = arith.constant 2 : index
    %c0_30 = arith.constant 0 : index
    %c0_31 = arith.constant 0 : index
    %33 = vector.load %arg3[%c2_29, %c0_30, %c0_31] : memref<4x1x2048xf32, #tpu.memory_space<vmem>>, vector<1x1x2048xf32>
    %34 = vector.shape_cast %33 : vector<1x1x2048xf32> to vector<1x2048xf32>
    %35 = vector.shape_cast %32 : vector<1x2048xf32> to vector<1x1x2048xf32>
    tpu.vector_store %arg3[%c2_29, %c0_30, %c0_31], %35 {strides = array<i32>} : memref<4x1x2048xf32, #tpu.memory_space<vmem>>, vector<1x1x2048xf32>,
    %c3 = arith.constant 3 : index
    %c0_32 = arith.constant 0 : index
    %c0_33 = arith.constant 0 : index
    %36 = vector.load %arg1[%c3, %c0_32, %c0_33] : memref<4x1x32xbf16, #tpu.memory_space<vmem>>, vector<1x1x32xbf16>
    %37 = vector.shape_cast %36 : vector<1x1x32xbf16> to vector<1x32xbf16>
    %c3_34 = arith.constant 3 : index
    %c0_35 = arith.constant 0 : index
    %c0_36 = arith.constant 0 : index
    %38 = vector.load %arg0[%c3_34, %c0_35, %c0_36] : memref<4x32x2048xbf16, #tpu.memory_space<vmem>>, vector<1x32x2048xbf16>
    %39 = vector.shape_cast %38 : vector<1x32x2048xbf16> to vector<32x2048xbf16>
    %cst_37 = arith.constant dense<0.000000e+00> : vector<1x2048xf32>
    %40 = tpu.matmul %37, %39, %cst_37 {dimension_numbers = #tpu.dot_dimension_numbers<[1], [0], [0], [1], [0, 0, 1, 1], [], []>} : vector<1x32xbf16>, vector<32x2048xbf16>, vector<1x2048xf32> -> vector<1x2048xf32>
    %c0_38 = arith.constant 0 : index
    %c0_39 = arith.constant 0 : index
    %41 = vector.load %arg2[%c0_38, %c0_39] : memref<1x1xf32, #tpu.memory_space<vmem>>, vector<1x1xf32>
    %42 = vector.broadcast %41 : vector<1x1xf32> to vector<1x2048xf32>
    %43 = arith.addf %40, %42 : vector<1x2048xf32>
    %44 = math.tanh %43 : vector<1x2048xf32>
    %c3_40 = arith.constant 3 : index
    %c0_41 = arith.constant 0 : index
    %c0_42 = arith.constant 0 : index
    %45 = vector.load %arg3[%c3_40, %c0_41, %c0_42] : memref<4x1x2048xf32, #tpu.memory_space<vmem>>, vector<1x1x2048xf32>
    %46 = vector.shape_cast %45 : vector<1x1x2048xf32> to vector<1x2048xf32>
    %47 = vector.shape_cast %44 : vector<1x2048xf32> to vector<1x1x2048xf32>
    tpu.vector_store %arg3[%c3_40, %c0_41, %c0_42], %47 {strides = array<i32>} : memref<4x1x2048xf32, #tpu.memory_space<vmem>>, vector<1x1x2048xf32>,
    return
  }
}

</mosaic_0001>

<llo_original>
// kernel: generator_forward.6
$region0: #{generator_forward.6}
  #allocation0 [shape = 'u32[]', space=smem, size = 0x4, offset = 0x4, fixed_abs, tag = 'smem constant byte address 0x4 - core index']
  #allocation1 [shape = 'u32[144,128]{1,0:T(1,128)}', space=vmem, size = 0x12000, scoped, tag = 'internal scratch']
  %s0 = inlined_call_operand.vmem [shape: bf16[4,256,32], index: 0, kind: input, shape index: {}]
  %s1 = inlined_call_operand.vmem [shape: bf16[4,32,256], index: 1, kind: input, shape index: {}]
  %s2 = inlined_call_operand.vmem [shape: f32[32,1], index: 2, kind: input, shape index: {}]
  %s3 = inlined_call_operand.vmem [shape: f32[32,1], index: 3, kind: input, shape index: {}]
  %s4 = inlined_call_operand.vmem [shape: bf16[4,32,32], index: 4, kind: output, shape index: {}]
  %s5 = sld [smem:[#allocation0]]
  $region26: #{generator_forward.6} parent=0
    _
  %s7 = ssub.s32 1, %s5
  %s8 = scalar_select 0, %s7, %s5
  // Predicated region
  $region2: #{generator_forward.6} parent=0 // pred_check
    _
  $region3: #{generator_forward.6} parent=0 // pred_check_branch
    %10 = sbr.rel (0) target = $region5
  $region4: #{generator_forward.6} parent=0 // pred_region
    _
  $region5: #{generator_forward.6} parent=0 // pred_fallthru
    _
  // Predicated region
  $region6: #{generator_forward.6} parent=0 // pred_check
    _
  $region7: #{generator_forward.6} parent=0 // pred_check_branch
    %12 = sbr.rel (0) target = $region9
  $region8: #{generator_forward.6} parent=0 // pred_region
    _
  $region9: #{generator_forward.6} parent=0 // pred_fallthru
    _
  // Predicated region
  $region10: #{generator_forward.6} parent=0 // pred_check
    _
  $region11: #{generator_forward.6} parent=0 // pred_check_branch
    %14 = sbr.rel (0) target = $region13
  $region12: #{generator_forward.6} parent=0 // pred_region
    _
  $region13: #{generator_forward.6} parent=0 // pred_fallthru
    _
  // Predicated region
  $region14: #{generator_forward.6} parent=0 // pred_check
    _
  $region15: #{generator_forward.6} parent=0 // pred_check_branch
    %16 = sbr.rel (0) target = $region17
  $region16: #{generator_forward.6} parent=0 // pred_region
    _
  $region17: #{generator_forward.6} parent=0 // pred_fallthru
    _
  %v18 = vld [vmem:[%s1] sm:$0xff]
  %v19 = vld [vmem:[%s1 + $0x8] sm:$0xff]
  %v20 = vld [vmem:[%s1 + $0x10] sm:$0xff]
  %v21 = vld [vmem:[%s1 + $0x18] sm:$0xff]
  %v22 = vld [vmem:[%s0] sm:$0xf]
  %v23 = vld [vmem:[%s0 + $0x4] sm:$0xf]
  %v24 = vld [vmem:[%s0 + $0x8] sm:$0xf]
  %v25 = vld [vmem:[%s0 + $0xc] sm:$0xf]
  %v26 = vld [vmem:[%s0 + $0x10] sm:$0xf]
  %v27 = vld [vmem:[%s0 + $0x14] sm:$0xf]
  %v28 = vld [vmem:[%s0 + $0x18] sm:$0xf]
  %v29 = vld [vmem:[%s0 + $0x1c] sm:$0xf]
  %v30 = vld [vmem:[%s0 + $0x20] sm:$0xf]
  %v31 = vld [vmem:[%s0 + $0x24] sm:$0xf]
  %v32 = vld [vmem:[%s0 + $0x28] sm:$0xf]
  %v33 = vld [vmem:[%s0 + $0x2c] sm:$0xf]
  %v34 = vld [vmem:[%s0 + $0x30] sm:$0xf]
  %v35 = vld [vmem:[%s0 + $0x34] sm:$0xf]
  %v36 = vld [vmem:[%s0 + $0x38] sm:$0xf]
  %v37 = vld [vmem:[%s0 + $0x3c] sm:$0xf]
  %v38 = vld [vmem:[%s0 + $0x40] sm:$0xf]
  %v39 = vld [vmem:[%s0 + $0x44] sm:$0xf]
  %v40 = vld [vmem:[%s0 + $0x48] sm:$0xf]
  %v41 = vld [vmem:[%s0 + $0x4c] sm:$0xf]
  %v42 = vld [vmem:[%s0 + $0x50] sm:$0xf]
  %v43 = vld [vmem:[%s0 + $0x54] sm:$0xf]
  %v44 = vld [vmem:[%s0 + $0x58] sm:$0xf]
  %v45 = vld [vmem:[%s0 + $0x5c] sm:$0xf]
  %v46 = vld [vmem:[%s0 + $0x60] sm:$0xf]
  %v47 = vld [vmem:[%s0 + $0x64] sm:$0xf]
  %v48 = vld [vmem:[%s0 + $0x68] sm:$0xf]
  %v49 = vld [vmem:[%s0 + $0x6c] sm:$0xf]
  %v50 = vld [vmem:[%s0 + $0x70] sm:$0xf]
  %v51 = vld [vmem:[%s0 + $0x74] sm:$0xf]
  %v52 = vld [vmem:[%s0 + $0x78] sm:$0xf]
  %v53 = vld [vmem:[%s0 + $0x7c] sm:$0xf]
  %v58 = vunpack.c.l.b16 %v18
  %v59 = vunpack.c.h.b16 %v18
  %v60 = vunpack.c.l.b16 %v19
  %v61 = vunpack.c.h.b16 %v19
  %v62 = vunpack.c.l.b16 %v20
  %v63 = vunpack.c.h.b16 %v20
  %v64 = vunpack.c.l.b16 %v21
  %v65 = vunpack.c.h.b16 %v21
  %v66 = vpack.c.b16 %v60, %v58
  %v67 = vpack.c.b16 %v61, %v59
  %v68 = vpack.c.b16 %v64, %v62
  %v69 = vpack.c.b16 %v65, %v63
  %v106 = vunpack.c.l.b16 %v22
  %v107 = vunpack.c.l.b16 %v23
  %v108 = vunpack.c.l.b16 %v24
  %v109 = vunpack.c.l.b16 %v25
  %v110 = vunpack.c.l.b16 %v26
  %v111 = vunpack.c.l.b16 %v27
  %v112 = vunpack.c.l.b16 %v28
  %v113 = vunpack.c.l.b16 %v29
  %v114 = vunpack.c.l.b16 %v30
  %v115 = vunpack.c.l.b16 %v31
  %v116 = vunpack.c.l.b16 %v32
  %v117 = vunpack.c.l.b16 %v33
  %v118 = vunpack.c.l.b16 %v34
  %v119 = vunpack.c.l.b16 %v35
  %v120 = vunpack.c.l.b16 %v36
  %v121 = vunpack.c.l.b16 %v37
  %v122 = vunpack.c.l.b16 %v38
  %v123 = vunpack.c.l.b16 %v39
  %v124 = vunpack.c.l.b16 %v40
  %v125 = vunpack.c.l.b16 %v41
  %v126 = vunpack.c.l.b16 %v42
  %v127 = vunpack.c.l.b16 %v43
  %v128 = vunpack.c.l.b16 %v44
  %v129 = vunpack.c.l.b16 %v45
  %v130 = vunpack.c.l.b16 %v46
  %v131 = vunpack.c.l.b16 %v47
  %v132 = vunpack.c.l.b16 %v48
  %v133 = vunpack.c.l.b16 %v49
  %v134 = vunpack.c.l.b16 %v50
  %v135 = vunpack.c.l.b16 %v51
  %v136 = vunpack.c.l.b16 %v52
  %v137 = vunpack.c.l.b16 %v53
  %v138 = vpack.c.b16 %v107, %v106
  %v139 = vpack.c.b16 %v109, %v108
  %v140 = vpack.c.b16 %v111, %v110
  %v141 = vpack.c.b16 %v113, %v112
  %v142 = vpack.c.b16 %v115, %v114
  %v143 = vpack.c.b16 %v117, %v116
  %v144 = vpack.c.b16 %v119, %v118
  %v145 = vpack.c.b16 %v121, %v120
  %v146 = vpack.c.b16 %v123, %v122
  %v147 = vpack.c.b16 %v125, %v124
  %v148 = vpack.c.b16 %v127, %v126
  %v149 = vpack.c.b16 %v129, %v128
  %v150 = vpack.c.b16 %v131, %v130
  %v151 = vpack.c.b16 %v133, %v132
  %v152 = vpack.c.b16 %v135, %v134
  %v153 = vpack.c.b16 %v137, %v136
  %170 = vmatprep.subr.bf16.mxu0 0
  %171 = vmatpush1.bf16.msra.mxu0 %v138
  %172 = vmatprep.subr.bf16.mxu0 0
  %173 = vmatpush1.bf16.msra.mxu0 %v139
  %174 = vmatprep.subr.bf16.mxu0 0
  %175 = vmatpush1.bf16.msra.mxu0 %v140
  %176 = vmatprep.subr.bf16.mxu0 0
  %177 = vmatpush1.bf16.msra.mxu0 %v141
  %178 = vmatprep.subr.bf16.mxu0 0
  %179 = vmatpush1.bf16.msra.mxu0 %v142
  %180 = vmatprep.subr.bf16.mxu0 0
  %181 = vmatpush1.bf16.msra.mxu0 %v143
  %182 = vmatprep.subr.bf16.mxu0 0
  %183 = vmatpush1.bf16.msra.mxu0 %v144
  %184 = vmatprep.subr.bf16.mxu0 0
  %185 = vmatpush1.bf16.msra.mxu0 %v145
  %186 = vmatprep.subr.bf16.mxu0 0
  %187 = vmatpush1.bf16.msra.mxu0 %v146
  %188 = vmatprep.subr.bf16.mxu0 0
  %189 = vmatpush1.bf16.msra.mxu0 %v147
  %190 = vmatprep.subr.bf16.mxu0 0
  %191 = vmatpush1.bf16.msra.mxu0 %v148
  %192 = vmatprep.subr.bf16.mxu0 0
  %193 = vmatpush1.bf16.msra.mxu0 %v149
  %194 = vmatprep.subr.bf16.mxu0 0
  %195 = vmatpush1.bf16.msra.mxu0 %v150
  %196 = vmatprep.subr.bf16.mxu0 0
  %197 = vmatpush1.bf16.msra.mxu0 %v151
  %198 = vmatprep.subr.bf16.mxu0 0
  %199 = vmatpush1.bf16.msra.mxu0 %v152
  %200 = vmatprep.subr.bf16.mxu0 0
  %201 = vmatpush1.bf16.msra.mxu0 %v153
  %202 = vmatprep.mubr.bf16.mxu0 %v67
  %203 = vmatmul.mubr.bf16.gmra.mrb[0].mxu0 %v66
  %v204 = vpop.f32.mrb[0].mxu0
  %v205 = vadd.f32 0.0, %v204
  %v206 = vpop.f32.mrb[0].mxu0
  %v207 = vpop.f32.mrb[0].mxu0
  %v208 = vadd.f32 0.0, %v207
  %v209 = vpop.f32.mrb[0].mxu0
  %210 = vmatprep.mubr.bf16.mxu0 %v69
  %211 = vmatmul.mubr.bf16.gmra.mrb[0].mxu0 %v68
  %v212 = vpop.f32.mrb[0].mxu0
  %v213 = vadd.f32 0.0, %v212
  %v214 = vpop.f32.mrb[0].mxu0
  %v215 = vpop.f32.mrb[0].mxu0
  %v216 = vadd.f32 0.0, %v215
  %v217 = vpop.f32.mrb[0].mxu0
  %218 = vdwg.mxu0
  %vm219 = vcmask 261120
  %v220 = vsel %vm219, %v205, 0.0
  %221 = vadd.xlane.f32.xlu0 %v220
  %v222 = vpop.xlane.xlu0 %221
  %v223 = vsel %vm219, %v208, 0.0
  %224 = vadd.xlane.f32.xlu0 %v223
  %v225 = vpop.xlane.xlu0 %224
  %v226 = vsel %vm219, %v213, 0.0
  %227 = vadd.xlane.f32.xlu0 %v226
  %v228 = vpop.xlane.xlu0 %227
  %v229 = vsel %vm219, %v216, 0.0
  %230 = vadd.xlane.f32.xlu0 %v229
  %v231 = vpop.xlane.xlu0 %230
  %v232 = vadd.f32 %v222, 0.0
  %v233 = vadd.f32 %v225, 0.0
  %v234 = vadd.f32 %v228, 0.0
  %v235 = vadd.f32 %v231, 0.0
  %v236 = vmul.f32 %v205, %v205
  %v237 = vmul.f32 %v208, %v208
  %v238 = vmul.f32 %v213, %v213
  %v239 = vmul.f32 %v216, %v216
  %v240 = vsel %vm219, %v236, 0.0
  %241 = vadd.xlane.f32.xlu0 %v240
  %v242 = vpop.xlane.xlu0 %241
  %v243 = vsel %vm219, %v237, 0.0
  %244 = vadd.xlane.f32.xlu0 %v243
  %v245 = vpop.xlane.xlu0 %244
  %v246 = vsel %vm219, %v238, 0.0
  %247 = vadd.xlane.f32.xlu0 %v246
  %v248 = vpop.xlane.xlu0 %247
  %v249 = vsel %vm219, %v239, 0.0
  %250 = vadd.xlane.f32.xlu0 %v249
  %v251 = vpop.xlane.xlu0 %250
  %v252 = vadd.f32 %v242, 0.0
  %v253 = vadd.f32 %v245, 0.0
  %v254 = vadd.f32 %v248, 0.0
  %v255 = vadd.f32 %v251, 0.0
  %s256 = scalar_lea.vmem %s1, 32
  %v257 = vld [vmem:[%s256] sm:$0xff]
  %v258 = vld [vmem:[%s256 + $0x8] sm:$0xff]
  %v259 = vld [vmem:[%s256 + $0x10] sm:$0xff]
  %v260 = vld [vmem:[%s256 + $0x18] sm:$0xff]
  %s261 = scalar_lea.vmem %s0, 128
  %v262 = vld [vmem:[%s261] sm:$0xf]
  %v263 = vld [vmem:[%s261 + $0x4] sm:$0xf]
  %v264 = vld [vmem:[%s261 + $0x8] sm:$0xf]
  %v265 = vld [vmem:[%s261 + $0xc] sm:$0xf]
  %v266 = vld [vmem:[%s261 + $0x10] sm:$0xf]
  %v267 = vld [vmem:[%s261 + $0x14] sm:$0xf]
  %v268 = vld [vmem:[%s261 + $0x18] sm:$0xf]
  %v269 = vld [vmem:[%s261 + $0x1c] sm:$0xf]
  %v270 = vld [vmem:[%s261 + $0x20] sm:$0xf]
  %v271 = vld [vmem:[%s261 + $0x24] sm:$0xf]
  %v272 = vld [vmem:[%s261 + $0x28] sm:$0xf]
  %v273 = vld [vmem:[%s261 + $0x2c] sm:$0xf]
  %v274 = vld [vmem:[%s261 + $0x30] sm:$0xf]
  %v275 = vld [vmem:[%s261 + $0x34] sm:$0xf]
  %v276 = vld [vmem:[%s261 + $0x38] sm:$0xf]
  %v277 = vld [vmem:[%s261 + $0x3c] sm:$0xf]
  %v278 = vld [vmem:[%s261 + $0x40] sm:$0xf]
  %v279 = vld [vmem:[%s261 + $0x44] sm:$0xf]
  %v280 = vld [vmem:[%s261 + $0x48] sm:$0xf]
  %v281 = vld [vmem:[%s261 + $0x4c] sm:$0xf]
  %v282 = vld [vmem:[%s261 + $0x50] sm:$0xf]
  %v283 = vld [vmem:[%s261 + $0x54] sm:$0xf]
  %v284 = vld [vmem:[%s261 + $0x58] sm:$0xf]
  %v285 = vld [vmem:[%s261 + $0x5c] sm:$0xf]
  %v286 = vld [vmem:[%s261 + $0x60] sm:$0xf]
  %v287 = vld [vmem:[%s261 + $0x64] sm:$0xf]
  %v288 = vld [vmem:[%s261 + $0x68] sm:$0xf]
  %v289 = vld [vmem:[%s261 + $0x6c] sm:$0xf]
  %v290 = vld [vmem:[%s261 + $0x70] sm:$0xf]
  %v291 = vld [vmem:[%s261 + $0x74] sm:$0xf]
  %v292 = vld [vmem:[%s261 + $0x78] sm:$0xf]
  %v293 = vld [vmem:[%s261 + $0x7c] sm:$0xf]
  %v298 = vunpack.c.l.b16 %v257
  %v299 = vunpack.c.h.b16 %v257
  %v300 = vunpack.c.l.b16 %v258
  %v301 = vunpack.c.h.b16 %v258
  %v302 = vunpack.c.l.b16 %v259
  %v303 = vunpack.c.h.b16 %v259
  %v304 = vunpack.c.l.b16 %v260
  %v305 = vunpack.c.h.b16 %v260
  %v306 = vpack.c.b16 %v300, %v298
  %v307 = vpack.c.b16 %v301, %v299
  %v308 = vpack.c.b16 %v304, %v302
  %v309 = vpack.c.b16 %v305, %v303
  %v346 = vunpack.c.l.b16 %v262
  %v347 = vunpack.c.l.b16 %v263
  %v348 = vunpack.c.l.b16 %v264
  %v349 = vunpack.c.l.b16 %v265
  %v350 = vunpack.c.l.b16 %v266
  %v351 = vunpack.c.l.b16 %v267
  %v352 = vunpack.c.l.b16 %v268
  %v353 = vunpack.c.l.b16 %v269
  %v354 = vunpack.c.l.b16 %v270
  %v355 = vunpack.c.l.b16 %v271
  %v356 = vunpack.c.l.b16 %v272
  %v357 = vunpack.c.l.b16 %v273
  %v358 = vunpack.c.l.b16 %v274
  %v359 = vunpack.c.l.b16 %v275
  %v360 = vunpack.c.l.b16 %v276
  %v361 = vunpack.c.l.b16 %v277
  %v362 = vunpack.c.l.b16 %v278
  %v363 = vunpack.c.l.b16 %v279
  %v364 = vunpack.c.l.b16 %v280
  %v365 = vunpack.c.l.b16 %v281
  %v366 = vunpack.c.l.b16 %v282
  %v367 = vunpack.c.l.b16 %v283
  %v368 = vunpack.c.l.b16 %v284
  %v369 = vunpack.c.l.b16 %v285
  %v370 = vunpack.c.l.b16 %v286
  %v371 = vunpack.c.l.b16 %v287
  %v372 = vunpack.c.l.b16 %v288
  %v373 = vunpack.c.l.b16 %v289
  %v374 = vunpack.c.l.b16 %v290
  %v375 = vunpack.c.l.b16 %v291
  %v376 = vunpack.c.l.b16 %v292
  %v377 = vunpack.c.l.b16 %v293
  %v378 = vpack.c.b16 %v347, %v346
  %v379 = vpack.c.b16 %v349, %v348
  %v380 = vpack.c.b16 %v351, %v350
  %v381 = vpack.c.b16 %v353, %v352
  %v382 = vpack.c.b16 %v355, %v354
  %v383 = vpack.c.b16 %v357, %v356
  %v384 = vpack.c.b16 %v359, %v358
  %v385 = vpack.c.b16 %v361, %v360
  %v386 = vpack.c.b16 %v363, %v362
  %v387 = vpack.c.b16 %v365, %v364
  %v388 = vpack.c.b16 %v367, %v366
  %v389 = vpack.c.b16 %v369, %v368
  %v390 = vpack.c.b16 %v371, %v370
  %v391 = vpack.c.b16 %v373, %v372
  %v392 = vpack.c.b16 %v375, %v374
  %v393 = vpack.c.b16 %v377, %v376
  %410 = vmatprep.subr.bf16.mxu0 0
  %411 = vmatpush1.bf16.msra.mxu0 %v378
  %412 = vmatprep.subr.bf16.mxu0 0
  %413 = vmatpush1.bf16.msra.mxu0 %v379
  %414 = vmatprep.subr.bf16.mxu0 0
  %415 = vmatpush1.bf16.msra.mxu0 %v380
  %416 = vmatprep.subr.bf16.mxu0 0
  %417 = vmatpush1.bf16.msra.mxu0 %v381
  %418 = vmatprep.subr.bf16.mxu0 0
  %419 = vmatpush1.bf16.msra.mxu0 %v382
  %420 = vmatprep.subr.bf16.mxu0 0
  %421 = vmatpush1.bf16.msra.mxu0 %v383
  %422 = vmatprep.subr.bf16.mxu0 0
  %423 = vmatpush1.bf16.msra.mxu0 %v384
  %424 = vmatprep.subr.bf16.mxu0 0
  %425 = vmatpush1.bf16.msra.mxu0 %v385
  %426 = vmatprep.subr.bf16.mxu0 0
  %427 = vmatpush1.bf16.msra.mxu0 %v386
  %428 = vmatprep.subr.bf16.mxu0 0
  %429 = vmatpush1.bf16.msra.mxu0 %v387
  %430 = vmatprep.subr.bf16.mxu0 0
  %431 = vmatpush1.bf16.msra.mxu0 %v388
  %432 = vmatprep.subr.bf16.mxu0 0
  %433 = vmatpush1.bf16.msra.mxu0 %v389
  %434 = vmatprep.subr.bf16.mxu0 0
  %435 = vmatpush1.bf16.msra.mxu0 %v390
  %436 = vmatprep.subr.bf16.mxu0 0
  %437 = vmatpush1.bf16.msra.mxu0 %v391
  %438 = vmatprep.subr.bf16.mxu0 0
  %439 = vmatpush1.bf16.msra.mxu0 %v392
  %440 = vmatprep.subr.bf16.mxu0 0
  %441 = vmatpush1.bf16.msra.mxu0 %v393
  %442 = vmatprep.mubr.bf16.mxu0 %v307
  %443 = vmatmul.mubr.bf16.gmra.mrb[0].mxu0 %v306
  %v444 = vpop.f32.mrb[0].mxu0
  %v445 = vadd.f32 0.0, %v444
  %v446 = vpop.f32.mrb[0].mxu0
  %v447 = vpop.f32.mrb[0].mxu0
  %v448 = vadd.f32 0.0, %v447
  %v449 = vpop.f32.mrb[0].mxu0
  %450 = vmatprep.mubr.bf16.mxu0 %v309
  %451 = vmatmul.mubr.bf16.gmra.mrb[0].mxu0 %v308
  %v452 = vpop.f32.mrb[0].mxu0
  %v453 = vadd.f32 0.0, %v452
  %v454 = vpop.f32.mrb[0].mxu0
  %v455 = vpop.f32.mrb[0].mxu0
  %v456 = vadd.f32 0.0, %v455
  %v457 = vpop.f32.mrb[0].mxu0
  %458 = vdwg.mxu0
  %v459 = vsel %vm219, %v445, 0.0
  %460 = vadd.xlane.f32.xlu0 %v459
  %v461 = vpop.xlane.xlu0 %460
  %v462 = vsel %vm219, %v448, 0.0
  %463 = vadd.xlane.f32.xlu0 %v462
  %v464 = vpop.xlane.xlu0 %463
  %v465 = vsel %vm219, %v453, 0.0
  %466 = vadd.xlane.f32.xlu0 %v465
  %v467 = vpop.xlane.xlu0 %466
  %v468 = vsel %vm219, %v456, 0.0
  %469 = vadd.xlane.f32.xlu0 %v468
  %v470 = vpop.xlane.xlu0 %469
  %v471 = vadd.f32 %v232, %v461
  %v472 = vadd.f32 %v233, %v464
  %v473 = vadd.f32 %v234, %v467
  %v474 = vadd.f32 %v235, %v470
  %v475 = vmul.f32 %v445, %v445
  %v476 = vmul.f32 %v448, %v448
  %v477 = vmul.f32 %v453, %v453
  %v478 = vmul.f32 %v456, %v456
  %v479 = vsel %vm219, %v475, 0.0
  %480 = vadd.xlane.f32.xlu0 %v479
  %v481 = vpop.xlane.xlu0 %480
  %v482 = vsel %vm219, %v476, 0.0
  %483 = vadd.xlane.f32.xlu0 %v482
  %v484 = vpop.xlane.xlu0 %483
  %v485 = vsel %vm219, %v477, 0.0
  %486 = vadd.xlane.f32.xlu0 %v485
  %v487 = vpop.xlane.xlu0 %486
  %v488 = vsel %vm219, %v478, 0.0
  %489 = vadd.xlane.f32.xlu0 %v488
  %v490 = vpop.xlane.xlu0 %489
  %v491 = vadd.f32 %v252, %v481
  %v492 = vadd.f32 %v253, %v484
  %v493 = vadd.f32 %v254, %v487
  %v494 = vadd.f32 %v255, %v490
  %s495 = scalar_lea.vmem %s1, 64
  %v496 = vld [vmem:[%s495] sm:$0xff]
  %v497 = vld [vmem:[%s495 + $0x8] sm:$0xff]
  %v498 = vld [vmem:[%s495 + $0x10] sm:$0xff]
  %v499 = vld [vmem:[%s495 + $0x18] sm:$0xff]
  %s500 = scalar_lea.vmem %s0, 256
  %v501 = vld [vmem:[%s500] sm:$0xf]
  %v502 = vld [vmem:[%s500 + $0x4] sm:$0xf]
  %v503 = vld [vmem:[%s500 + $0x8] sm:$0xf]
  %v504 = vld [vmem:[%s500 + $0xc] sm:$0xf]
  %v505 = vld [vmem:[%s500 + $0x10] sm:$0xf]
  %v506 = vld [vmem:[%s500 + $0x14] sm:$0xf]
  %v507 = vld [vmem:[%s500 + $0x18] sm:$0xf]
  %v508 = vld [vmem:[%s500 + $0x1c] sm:$0xf]
  %v509 = vld [vmem:[%s500 + $0x20] sm:$0xf]
  %v510 = vld [vmem:[%s500 + $0x24] sm:$0xf]
  %v511 = vld [vmem:[%s500 + $0x28] sm:$0xf]
  %v512 = vld [vmem:[%s500 + $0x2c] sm:$0xf]
  %v513 = vld [vmem:[%s500 + $0x30] sm:$0xf]
  %v514 = vld [vmem:[%s500 + $0x34] sm:$0xf]
  %v515 = vld [vmem:[%s500 + $0x38] sm:$0xf]
  %v516 = vld [vmem:[%s500 + $0x3c] sm:$0xf]
  %v517 = vld [vmem:[%s500 + $0x40] sm:$0xf]
  %v518 = vld [vmem:[%s500 + $0x44] sm:$0xf]
  %v519 = vld [vmem:[%s500 + $0x48] sm:$0xf]
  %v520 = vld [vmem:[%s500 + $0x4c] sm:$0xf]
  %v521 = vld [vmem:[%s500 + $0x50] sm:$0xf]
  %v522 = vld [vmem:[%s500 + $0x54] sm:$0xf]
  %v523 = vld [vmem:[%s500 + $0x58] sm:$0xf]
  %v524 = vld [vmem:[%s500 + $0x5c] sm:$0xf]
  %v525 = vld [vmem:[%s500 + $0x60] sm:$0xf]
  %v526 = vld [vmem:[%s500 + $0x64] sm:$0xf]
  %v527 = vld [vmem:[%s500 + $0x68] sm:$0xf]
  %v528 = vld [vmem:[%s500 + $0x6c] sm:$0xf]
  %v529 = vld [vmem:[%s500 + $0x70] sm:$0xf]
  %v530 = vld [vmem:[%s500 + $0x74] sm:$0xf]
  %v531 = vld [vmem:[%s500 + $0x78] sm:$0xf]
  %v532 = vld [vmem:[%s500 + $0x7c] sm:$0xf]
  %v537 = vunpack.c.l.b16 %v496
  %v538 = vunpack.c.h.b16 %v496
  %v539 = vunpack.c.l.b16 %v497
  %v540 = vunpack.c.h.b16 %v497
  %v541 = vunpack.c.l.b16 %v498
  %v542 = vunpack.c.h.b16 %v498
  %v543 = vunpack.c.l.b16 %v499
  %v544 = vunpack.c.h.b16 %v499
  %v545 = vpack.c.b16 %v539, %v537
  %v546 = vpack.c.b16 %v540, %v538
  %v547 = vpack.c.b16 %v543, %v541
  %v548 = vpack.c.b16 %v544, %v542
  %v585 = vunpack.c.l.b16 %v501
  %v586 = vunpack.c.l.b16 %v502
  %v587 = vunpack.c.l.b16 %v503
  %v588 = vunpack.c.l.b16 %v504
  %v589 = vunpack.c.l.b16 %v505
  %v590 = vunpack.c.l.b16 %v506
  %v591 = vunpack.c.l.b16 %v507
  %v592 = vunpack.c.l.b16 %v508
  %v593 = vunpack.c.l.b16 %v509
  %v594 = vunpack.c.l.b16 %v510
  %v595 = vunpack.c.l.b16 %v511
  %v596 = vunpack.c.l.b16 %v512
  %v597 = vunpack.c.l.b16 %v513
  %v598 = vunpack.c.l.b16 %v514
  %v599 = vunpack.c.l.b16 %v515
  %v600 = vunpack.c.l.b16 %v516
  %v601 = vunpack.c.l.b16 %v517
  %v602 = vunpack.c.l.b16 %v518
  %v603 = vunpack.c.l.b16 %v519
  %v604 = vunpack.c.l.b16 %v520
  %v605 = vunpack.c.l.b16 %v521
  %v606 = vunpack.c.l.b16 %v522
  %v607 = vunpack.c.l.b16 %v523
  %v608 = vunpack.c.l.b16 %v524
  %v609 = vunpack.c.l.b16 %v525
  %v610 = vunpack.c.l.b16 %v526
  %v611 = vunpack.c.l.b16 %v527
  %v612 = vunpack.c.l.b16 %v528
  %v613 = vunpack.c.l.b16 %v529
  %v614 = vunpack.c.l.b16 %v530
  %v615 = vunpack.c.l.b16 %v531
  %v616 = vunpack.c.l.b16 %v532
  %v617 = vpack.c.b16 %v586, %v585
  %v618 = vpack.c.b16 %v588, %v587
  %v619 = vpack.c.b16 %v590, %v589
  %v620 = vpack.c.b16 %v592, %v591
  %v621 = vpack.c.b16 %v594, %v593
  %v622 = vpack.c.b16 %v596, %v595
  %v623 = vpack.c.b16 %v598, %v597
  %v624 = vpack.c.b16 %v600, %v599
  %v625 = vpack.c.b16 %v602, %v601
  %v626 = vpack.c.b16 %v604, %v603
  %v627 = vpack.c.b16 %v606, %v605
  %v628 = vpack.c.b16 %v608, %v607
  %v629 = vpack.c.b16 %v610, %v609
  %v630 = vpack.c.b16 %v612, %v611
  %v631 = vpack.c.b16 %v614, %v613
  %v632 = vpack.c.b16 %v616, %v615
  %649 = vmatprep.subr.bf16.mxu0 0
  %650 = vmatpush1.bf16.msra.mxu0 %v617
  %651 = vmatprep.subr.bf16.mxu0 0
  %652 = vmatpush1.bf16.msra.mxu0 %v618
  %653 = vmatprep.subr.bf16.mxu0 0
  %654 = vmatpush1.bf16.msra.mxu0 %v619
  %655 = vmatprep.subr.bf16.mxu0 0
  %656 = vmatpush1.bf16.msra.mxu0 %v620
  %657 = vmatprep.subr.bf16.mxu0 0
  %658 = vmatpush1.bf16.msra.mxu0 %v621
  %659 = vmatprep.subr.bf16.mxu0 0
  %660 = vmatpush1.bf16.msra.mxu0 %v622
  %661 = vmatprep.subr.bf16.mxu0 0
  %662 = vmatpush1.bf16.msra.mxu0 %v623
  %663 = vmatprep.subr.bf16.mxu0 0
  %664 = vmatpush1.bf16.msra.mxu0 %v624
  %665 = vmatprep.subr.bf16.mxu0 0
  %666 = vmatpush1.bf16.msra.mxu0 %v625
  %667 = vmatprep.subr.bf16.mxu0 0
  %668 = vmatpush1.bf16.msra.mxu0 %v626
  %669 = vmatprep.subr.bf16.mxu0 0
  %670 = vmatpush1.bf16.msra.mxu0 %v627
  %671 = vmatprep.subr.bf16.mxu0 0
  %672 = vmatpush1.bf16.msra.mxu0 %v628
  %673 = vmatprep.subr.bf16.mxu0 0
  %674 = vmatpush1.bf16.msra.mxu0 %v629
  %675 = vmatprep.subr.bf16.mxu0 0
  %676 = vmatpush1.bf16.msra.mxu0 %v630
  %677 = vmatprep.subr.bf16.mxu0 0
  %678 = vmatpush1.bf16.msra.mxu0 %v631
  %679 = vmatprep.subr.bf16.mxu0 0
  %680 = vmatpush1.bf16.msra.mxu0 %v632
  %681 = vmatprep.mubr.bf16.mxu0 %v546
  %682 = vmatmul.mubr.bf16.gmra.mrb[0].mxu0 %v545
  %v683 = vpop.f32.mrb[0].mxu0
  %v684 = vadd.f32 0.0, %v683
  %v685 = vpop.f32.mrb[0].mxu0
  %v686 = vpop.f32.mrb[0].mxu0
  %v687 = vadd.f32 0.0, %v686
  %v688 = vpop.f32.mrb[0].mxu0
  %689 = vmatprep.mubr.bf16.mxu0 %v548
  %690 = vmatmul.mubr.bf16.gmra.mrb[0].mxu0 %v547
  %v691 = vpop.f32.mrb[0].mxu0
  %v692 = vadd.f32 0.0, %v691
  %v693 = vpop.f32.mrb[0].mxu0
  %v694 = vpop.f32.mrb[0].mxu0
  %v695 = vadd.f32 0.0, %v694
  %v696 = vpop.f32.mrb[0].mxu0
  %697 = vdwg.mxu0
  %v698 = vsel %vm219, %v684, 0.0
  %699 = vadd.xlane.f32.xlu0 %v698
  %v700 = vpop.xlane.xlu0 %699
  %v701 = vsel %vm219, %v687, 0.0
  %702 = vadd.xlane.f32.xlu0 %v701
  %v703 = vpop.xlane.xlu0 %702
  %v704 = vsel %vm219, %v692, 0.0
  %705 = vadd.xlane.f32.xlu0 %v704
  %v706 = vpop.xlane.xlu0 %705
  %v707 = vsel %vm219, %v695, 0.0
  %708 = vadd.xlane.f32.xlu0 %v707
  %v709 = vpop.xlane.xlu0 %708
  %v710 = vadd.f32 %v471, %v700
  %v711 = vadd.f32 %v472, %v703
  %v712 = vadd.f32 %v473, %v706
  %v713 = vadd.f32 %v474, %v709
  %v714 = vmul.f32 %v684, %v684
  %v715 = vmul.f32 %v687, %v687
  %v716 = vmul.f32 %v692, %v692
  %v717 = vmul.f32 %v695, %v695
  %v718 = vsel %vm219, %v714, 0.0
  %719 = vadd.xlane.f32.xlu0 %v718
  %v720 = vpop.xlane.xlu0 %719
  %v721 = vsel %vm219, %v715, 0.0
  %722 = vadd.xlane.f32.xlu0 %v721
  %v723 = vpop.xlane.xlu0 %722
  %v724 = vsel %vm219, %v716, 0.0
  %725 = vadd.xlane.f32.xlu0 %v724
  %v726 = vpop.xlane.xlu0 %725
  %v727 = vsel %vm219, %v717, 0.0
  %728 = vadd.xlane.f32.xlu0 %v727
  %v729 = vpop.xlane.xlu0 %728
  %v730 = vadd.f32 %v491, %v720
  %v731 = vadd.f32 %v492, %v723
  %v732 = vadd.f32 %v493, %v726
  %v733 = vadd.f32 %v494, %v729
  %s734 = scalar_lea.vmem %s1, 96
  %v735 = vld [vmem:[%s734] sm:$0xff]
  %v736 = vld [vmem:[%s734 + $0x8] sm:$0xff]
  %v737 = vld [vmem:[%s734 + $0x10] sm:$0xff]
  %v738 = vld [vmem:[%s734 + $0x18] sm:$0xff]
  %s739 = scalar_lea.vmem %s0, 384
  %v740 = vld [vmem:[%s739] sm:$0xf]
  %v741 = vld [vmem:[%s739 + $0x4] sm:$0xf]
  %v742 = vld [vmem:[%s739 + $0x8] sm:$0xf]
  %v743 = vld [vmem:[%s739 + $0xc] sm:$0xf]
  %v744 = vld [vmem:[%s739 + $0x10] sm:$0xf]
  %v745 = vld [vmem:[%s739 + $0x14] sm:$0xf]
  %v746 = vld [vmem:[%s739 + $0x18] sm:$0xf]
  %v747 = vld [vmem:[%s739 + $0x1c] sm:$0xf]
  %v748 = vld [vmem:[%s739 + $0x20] sm:$0xf]
  %v749 = vld [vmem:[%s739 + $0x24] sm:$0xf]
  %v750 = vld [vmem:[%s739 + $0x28] sm:$0xf]
  %v751 = vld [vmem:[%s739 + $0x2c] sm:$0xf]
  %v752 = vld [vmem:[%s739 + $0x30] sm:$0xf]
  %v753 = vld [vmem:[%s739 + $0x34] sm:$0xf]
  %v754 = vld [vmem:[%s739 + $0x38] sm:$0xf]
  %v755 = vld [vmem:[%s739 + $0x3c] sm:$0xf]
  %v756 = vld [vmem:[%s739 + $0x40] sm:$0xf]
  %v757 = vld [vmem:[%s739 + $0x44] sm:$0xf]
  %v758 = vld [vmem:[%s739 + $0x48] sm:$0xf]
  %v759 = vld [vmem:[%s739 + $0x4c] sm:$0xf]
  %v760 = vld [vmem:[%s739 + $0x50] sm:$0xf]
  %v761 = vld [vmem:[%s739 + $0x54] sm:$0xf]
  %v762 = vld [vmem:[%s739 + $0x58] sm:$0xf]
  %v763 = vld [vmem:[%s739 + $0x5c] sm:$0xf]
  %v764 = vld [vmem:[%s739 + $0x60] sm:$0xf]
  %v765 = vld [vmem:[%s739 + $0x64] sm:$0xf]
  %v766 = vld [vmem:[%s739 + $0x68] sm:$0xf]
  %v767 = vld [vmem:[%s739 + $0x6c] sm:$0xf]
  %v768 = vld [vmem:[%s739 + $0x70] sm:$0xf]
  %v769 = vld [vmem:[%s739 + $0x74] sm:$0xf]
  %v770 = vld [vmem:[%s739 + $0x78] sm:$0xf]
  %v771 = vld [vmem:[%s739 + $0x7c] sm:$0xf]
  %v776 = vunpack.c.l.b16 %v735
  %v777 = vunpack.c.h.b16 %v735
  %v778 = vunpack.c.l.b16 %v736
  %v779 = vunpack.c.h.b16 %v736
  %v780 = vunpack.c.l.b16 %v737
  %v781 = vunpack.c.h.b16 %v737
  %v782 = vunpack.c.l.b16 %v738
  %v783 = vunpack.c.h.b16 %v738
  %v784 = vpack.c.b16 %v778, %v776
  %v785 = vpack.c.b16 %v779, %v777
  %v786 = vpack.c.b16 %v782, %v780
  %v787 = vpack.c.b16 %v783, %v781
  %v824 = vunpack.c.l.b16 %v740
  %v825 = vunpack.c.l.b16 %v741
  %v826 = vunpack.c.l.b16 %v742
  %v827 = vunpack.c.l.b16 %v743
  %v828 = vunpack.c.l.b16 %v744
  %v829 = vunpack.c.l.b16 %v745
  %v830 = vunpack.c.l.b16 %v746
  %v831 = vunpack.c.l.b16 %v747
  %v832 = vunpack.c.l.b16 %v748
  %v833 = vunpack.c.l.b16 %v749
  %v834 = vunpack.c.l.b16 %v750
  %v835 = vunpack.c.l.b16 %v751
  %v836 = vunpack.c.l.b16 %v752
  %v837 = vunpack.c.l.b16 %v753
  %v838 = vunpack.c.l.b16 %v754
  %v839 = vunpack.c.l.b16 %v755
  %v840 = vunpack.c.l.b16 %v756
  %v841 = vunpack.c.l.b16 %v757
  %v842 = vunpack.c.l.b16 %v758
  %v843 = vunpack.c.l.b16 %v759
  %v844 = vunpack.c.l.b16 %v760
  %v845 = vunpack.c.l.b16 %v761
  %v846 = vunpack.c.l.b16 %v762
  %v847 = vunpack.c.l.b16 %v763
  %v848 = vunpack.c.l.b16 %v764
  %v849 = vunpack.c.l.b16 %v765
  %v850 = vunpack.c.l.b16 %v766
  %v851 = vunpack.c.l.b16 %v767
  %v852 = vunpack.c.l.b16 %v768
  %v853 = vunpack.c.l.b16 %v769
  %v854 = vunpack.c.l.b16 %v770
  %v855 = vunpack.c.l.b16 %v771
  %v856 = vpack.c.b16 %v825, %v824
  %v857 = vpack.c.b16 %v827, %v826
  %v858 = vpack.c.b16 %v829, %v828
  %v859 = vpack.c.b16 %v831, %v830
  %v860 = vpack.c.b16 %v833, %v832
  %v861 = vpack.c.b16 %v835, %v834
  %v862 = vpack.c.b16 %v837, %v836
  %v863 = vpack.c.b16 %v839, %v838
  %v864 = vpack.c.b16 %v841, %v840
  %v865 = vpack.c.b16 %v843, %v842
  %v866 = vpack.c.b16 %v845, %v844
  %v867 = vpack.c.b16 %v847, %v846
  %v868 = vpack.c.b16 %v849, %v848
  %v869 = vpack.c.b16 %v851, %v850
  %v870 = vpack.c.b16 %v853, %v852
  %v871 = vpack.c.b16 %v855, %v854
  %888 = vmatprep.subr.bf16.mxu0 0
  %889 = vmatpush1.bf16.msra.mxu0 %v856
  %890 = vmatprep.subr.bf16.mxu0 0
  %891 = vmatpush1.bf16.msra.mxu0 %v857
  %892 = vmatprep.subr.bf16.mxu0 0
  %893 = vmatpush1.bf16.msra.mxu0 %v858
  %894 = vmatprep.subr.bf16.mxu0 0
  %895 = vmatpush1.bf16.msra.mxu0 %v859
  %896 = vmatprep.subr.bf16.mxu0 0
  %897 = vmatpush1.bf16.msra.mxu0 %v860
  %898 = vmatprep.subr.bf16.mxu0 0
  %899 = vmatpush1.bf16.msra.mxu0 %v861
  %900 = vmatprep.subr.bf16.mxu0 0
  %901 = vmatpush1.bf16.msra.mxu0 %v862
  %902 = vmatprep.subr.bf16.mxu0 0
  %903 = vmatpush1.bf16.msra.mxu0 %v863
  %904 = vmatprep.subr.bf16.mxu0 0
  %905 = vmatpush1.bf16.msra.mxu0 %v864
  %906 = vmatprep.subr.bf16.mxu0 0
  %907 = vmatpush1.bf16.msra.mxu0 %v865
  %908 = vmatprep.subr.bf16.mxu0 0
  %909 = vmatpush1.bf16.msra.mxu0 %v866
  %910 = vmatprep.subr.bf16.mxu0 0
  %911 = vmatpush1.bf16.msra.mxu0 %v867
  %912 = vmatprep.subr.bf16.mxu0 0
  %913 = vmatpush1.bf16.msra.mxu0 %v868
  %914 = vmatprep.subr.bf16.mxu0 0
  %915 = vmatpush1.bf16.msra.mxu0 %v869
  %916 = vmatprep.subr.bf16.mxu0 0
  %917 = vmatpush1.bf16.msra.mxu0 %v870
  %918 = vmatprep.subr.bf16.mxu0 0
  %919 = vmatpush1.bf16.msra.mxu0 %v871
  %920 = vmatprep.mubr.bf16.mxu0 %v785
  %921 = vmatmul.mubr.bf16.gmra.mrb[0].mxu0 %v784
  %v922 = vpop.f32.mrb[0].mxu0
  %v923 = vadd.f32 0.0, %v922
  %v924 = vpop.f32.mrb[0].mxu0
  %v925 = vpop.f32.mrb[0].mxu0
  %v926 = vadd.f32 0.0, %v925
  %v927 = vpop.f32.mrb[0].mxu0
  %928 = vmatprep.mubr.bf16.mxu0 %v787
  %929 = vmatmul.mubr.bf16.gmra.mrb[0].mxu0 %v786
  %v930 = vpop.f32.mrb[0].mxu0
  %v931 = vadd.f32 0.0, %v930
  %v932 = vpop.f32.mrb[0].mxu0
  %v933 = vpop.f32.mrb[0].mxu0
  %v934 = vadd.f32 0.0, %v933
  %v935 = vpop.f32.mrb[0].mxu0
  %936 = vdwg.mxu0
  %v937 = vsel %vm219, %v923, 0.0
  %938 = vadd.xlane.f32.xlu0 %v937
  %v939 = vpop.xlane.xlu0 %938
  %v940 = vsel %vm219, %v926, 0.0
  %941 = vadd.xlane.f32.xlu0 %v940
  %v942 = vpop.xlane.xlu0 %941
  %v943 = vsel %vm219, %v931, 0.0
  %944 = vadd.xlane.f32.xlu0 %v943
  %v945 = vpop.xlane.xlu0 %944
  %v946 = vsel %vm219, %v934, 0.0
  %947 = vadd.xlane.f32.xlu0 %v946
  %v948 = vpop.xlane.xlu0 %947
  %v949 = vadd.f32 %v710, %v939
  %v950 = vadd.f32 %v711, %v942
  %v951 = vadd.f32 %v712, %v945
  %v952 = vadd.f32 %v713, %v948
  %v953 = vmul.f32 %v923, %v923
  %v954 = vmul.f32 %v926, %v926
  %v955 = vmul.f32 %v931, %v931
  %v956 = vmul.f32 %v934, %v934
  %v957 = vsel %vm219, %v953, 0.0
  %958 = vadd.xlane.f32.xlu0 %v957
  %v959 = vpop.xlane.xlu0 %958
  %v960 = vsel %vm219, %v954, 0.0
  %961 = vadd.xlane.f32.xlu0 %v960
  %v962 = vpop.xlane.xlu0 %961
  %v963 = vsel %vm219, %v955, 0.0
  %964 = vadd.xlane.f32.xlu0 %v963
  %v965 = vpop.xlane.xlu0 %964
  %v966 = vsel %vm219, %v956, 0.0
  %967 = vadd.xlane.f32.xlu0 %v966
  %v968 = vpop.xlane.xlu0 %967
  %v969 = vadd.f32 %v730, %v959
  %v970 = vadd.f32 %v731, %v962
  %v971 = vadd.f32 %v732, %v965
  %v972 = vadd.f32 %v733, %v968
  %v973 = vrcp.pop 128.0
  %v974 = vmul.f32 %v949, %v973
  %v975 = vmul.f32 %v950, %v973
  %v976 = vmul.f32 %v951, %v973
  %v977 = vmul.f32 %v952, %v973
  %v978 = vmul.f32 %v969, %v973
  %v979 = vmul.f32 %v970, %v973
  %v980 = vmul.f32 %v971, %v973
  %v981 = vmul.f32 %v972, %v973
  %v982 = vmul.f32 %v974, %v974
  %v983 = vmul.f32 %v975, %v975
  %v984 = vmul.f32 %v976, %v976
  %v985 = vmul.f32 %v977, %v977
  %v986 = vsub.f32 %v978, %v982
  %v987 = vsub.f32 %v979, %v983
  %v988 = vsub.f32 %v980, %v984
  %v989 = vsub.f32 %v981, %v985
  %v990 = vld [vmem:[%s2] sm:$0xff]
  %v991 = vld [vmem:[%s2 + $0x8] sm:$0xff]
  %v992 = vld [vmem:[%s2 + $0x10] sm:$0xff]
  %v993 = vld [vmem:[%s2 + $0x18] sm:$0xff]
  %v994 = vadd.f32 %v986, 1e-05
  %v995 = vadd.f32 %v987, 1e-05
  %v996 = vadd.f32 %v988, 1e-05
  %v997 = vadd.f32 %v989, 1e-05
  %v998 = vrsqrt.pop %v994
  %v999 = vrsqrt.pop %v995
  %v1000 = vrsqrt.pop %v996
  %v1001 = vrsqrt.pop %v997
  %v1002 = vmul.f32 %v990, %v998
  %v1003 = vmul.f32 %v991, %v999
  %v1004 = vmul.f32 %v992, %v1000
  %v1005 = vmul.f32 %v993, %v1001
  %v1006 = vld [vmem:[%s3] sm:$0xff]
  %v1007 = vld [vmem:[%s3 + $0x8] sm:$0xff]
  %v1008 = vld [vmem:[%s3 + $0x10] sm:$0xff]
  %v1009 = vld [vmem:[%s3 + $0x18] sm:$0xff]
  %v1010 = vmul.f32 %v974, %v1002
  %v1011 = vmul.f32 %v975, %v1003
  %v1012 = vmul.f32 %v976, %v1004
  %v1013 = vmul.f32 %v977, %v1005
  %v1014 = vsub.f32 %v1006, %v1010
  %v1015 = vsub.f32 %v1007, %v1011
  %v1016 = vsub.f32 %v1008, %v1012
  %v1017 = vsub.f32 %v1009, %v1013
  %1019 = vset.pattern.permute.xlu0 0
  %1020 = vperm.xlu0 %1019, %v1002
  %v1021 = vpop.permute.xlu0 %1020
  %1024 = vset.pattern.permute.xlu0 0
  %1025 = vperm.xlu0 %1024, %v1003
  %v1026 = vpop.permute.xlu0 %1025
  %1029 = vset.pattern.permute.xlu0 0
  %1030 = vperm.xlu0 %1029, %v1004
  %v1031 = vpop.permute.xlu0 %1030
  %1034 = vset.pattern.permute.xlu0 0
  %1035 = vperm.xlu0 %1034, %v1005
  %v1036 = vpop.permute.xlu0 %1035
  %v1038 = vmul.f32 %v205, %v1021
  %v1039 = vmul.f32 %v208, %v1026
  %v1040 = vmul.f32 %v213, %v1031
  %v1041 = vmul.f32 %v216, %v1036
  %1043 = vset.pattern.permute.xlu0 0
  %1044 = vperm.xlu0 %1043, %v1014
  %v1045 = vpop.permute.xlu0 %1044
  %1048 = vset.pattern.permute.xlu0 0
  %1049 = vperm.xlu0 %1048, %v1015
  %v1050 = vpop.permute.xlu0 %1049
  %1053 = vset.pattern.permute.xlu0 0
  %1054 = vperm.xlu0 %1053, %v1016
  %v1055 = vpop.permute.xlu0 %1054
  %1058 = vset.pattern.permute.xlu0 0
  %1059 = vperm.xlu0 %1058, %v1017
  %v1060 = vpop.permute.xlu0 %1059
  %v1062 = vadd.f32 %v1038, %v1045
  %v1063 = vadd.f32 %v1039, %v1050
  %v1064 = vadd.f32 %v1040, %v1055
  %v1065 = vadd.f32 %v1041, %v1060
  %v1066 = vmax.f32 %v1062, 0.0
  %v1067 = vmax.f32 %v1063, 0.0
  %v1068 = vmax.f32 %v1064, 0.0
  %v1069 = vmax.f32 %v1065, 0.0
  %v1070 = vpack.c.bf16 %v1067, %v1066
  %v1071 = vpack.c.bf16 %v1069, %v1068
  %v1074 = vunpack.c.l.b16 %v1070
  %v1075 = vunpack.c.h.b16 %v1070
  %v1076 = vunpack.c.l.b16 %v1071
  %v1077 = vunpack.c.h.b16 %v1071
  %v1078 = vpack.c.b16 %v1074, %v1074
  %v1079 = vpack.c.b16 %v1075, %v1075
  %v1080 = vpack.c.b16 %v1076, %v1076
  %v1081 = vpack.c.b16 %v1077, %v1077
  %vm1086 = vcmask 257024
  %1087 = vst.msk [vmem:[%s4] sm:$0xf] %vm1086, %v1078
  %1088 = vst.msk [vmem:[%s4 + $0x4] sm:$0xf] %vm1086, %v1079
  %1089 = vst.msk [vmem:[%s4 + $0x8] sm:$0xf] %vm1086, %v1080
  %1090 = vst.msk [vmem:[%s4 + $0xc] sm:$0xf] %vm1086, %v1081
  %v1091 = vmul.f32 %v445, %v1021
  %v1092 = vmul.f32 %v448, %v1026
  %v1093 = vmul.f32 %v453, %v1031
  %v1094 = vmul.f32 %v456, %v1036
  %v1095 = vadd.f32 %v1091, %v1045
  %v1096 = vadd.f32 %v1092, %v1050
  %v1097 = vadd.f32 %v1093, %v1055
  %v1098 = vadd.f32 %v1094, %v1060
  %v1099 = vmax.f32 %v1095, 0.0
  %v1100 = vmax.f32 %v1096, 0.0
  %v1101 = vmax.f32 %v1097, 0.0
  %v1102 = vmax.f32 %v1098, 0.0
  %v1103 = vpack.c.bf16 %v1100, %v1099
  %v1104 = vpack.c.bf16 %v1102, %v1101
  %v1107 = vunpack.c.l.b16 %v1103
  %v1108 = vunpack.c.h.b16 %v1103
  %v1109 = vunpack.c.l.b16 %v1104
  %v1110 = vunpack.c.h.b16 %v1104
  %v1111 = vpack.c.b16 %v1107, %v1107
  %v1112 = vpack.c.b16 %v1108, %v1108
  %v1113 = vpack.c.b16 %v1109, %v1109
  %v1114 = vpack.c.b16 %v1110, %v1110
  %s1119 = scalar_lea.vmem %s4, 16
  %1120 = vst.msk [vmem:[%s1119] sm:$0xf] %vm1086, %v1111
  %1121 = vst.msk [vmem:[%s1119 + $0x4] sm:$0xf] %vm1086, %v1112
  %1122 = vst.msk [vmem:[%s1119 + $0x8] sm:$0xf] %vm1086, %v1113
  %1123 = vst.msk [vmem:[%s1119 + $0xc] sm:$0xf] %vm1086, %v1114
  %v1124 = vmul.f32 %v684, %v1021
  %v1125 = vmul.f32 %v687, %v1026
  %v1126 = vmul.f32 %v692, %v1031
  %v1127 = vmul.f32 %v695, %v1036
  %v1128 = vadd.f32 %v1124, %v1045
  %v1129 = vadd.f32 %v1125, %v1050
  %v1130 = vadd.f32 %v1126, %v1055
  %v1131 = vadd.f32 %v1127, %v1060
  %v1132 = vmax.f32 %v1128, 0.0
  %v1133 = vmax.f32 %v1129, 0.0
  %v1134 = vmax.f32 %v1130, 0.0
  %v1135 = vmax.f32 %v1131, 0.0
  %v1136 = vpack.c.bf16 %v1133, %v1132
  %v1137 = vpack.c.bf16 %v1135, %v1134
  %v1140 = vunpack.c.l.b16 %v1136
  %v1141 = vunpack.c.h.b16 %v1136
  %v1142 = vunpack.c.l.b16 %v1137
  %v1143 = vunpack.c.h.b16 %v1137
  %v1144 = vpack.c.b16 %v1140, %v1140
  %v1145 = vpack.c.b16 %v1141, %v1141
  %v1146 = vpack.c.b16 %v1142, %v1142
  %v1147 = vpack.c.b16 %v1143, %v1143
  %s1152 = scalar_lea.vmem %s4, 32
  %1153 = vst.msk [vmem:[%s1152] sm:$0xf] %vm1086, %v1144
  %1154 = vst.msk [vmem:[%s1152 + $0x4] sm:$0xf] %vm1086, %v1145
  %1155 = vst.msk [vmem:[%s1152 + $0x8] sm:$0xf] %vm1086, %v1146
  %1156 = vst.msk [vmem:[%s1152 + $0xc] sm:$0xf] %vm1086, %v1147
  %v1157 = vmul.f32 %v923, %v1021
  %v1158 = vmul.f32 %v926, %v1026
  %v1159 = vmul.f32 %v931, %v1031
  %v1160 = vmul.f32 %v934, %v1036
  %v1161 = vadd.f32 %v1157, %v1045
  %v1162 = vadd.f32 %v1158, %v1050
  %v1163 = vadd.f32 %v1159, %v1055
  %v1164 = vadd.f32 %v1160, %v1060
  %v1165 = vmax.f32 %v1161, 0.0
  %v1166 = vmax.f32 %v1162, 0.0
  %v1167 = vmax.f32 %v1163, 0.0
  %v1168 = vmax.f32 %v1164, 0.0
  %v1169 = vpack.c.bf16 %v1166, %v1165
  %v1170 = vpack.c.bf16 %v1168, %v1167
  %v1173 = vunpack.c.l.b16 %v1169
  %v1174 = vunpack.c.h.b16 %v1169
  %v1175 = vunpack.c.l.b16 %v1170
  %v1176 = vunpack.c.h.b16 %v1170
  %v1177 = vpack.c.b16 %v1173, %v1173
  %v1178 = vpack.c.b16 %v1174, %v1174
  %v1179 = vpack.c.b16 %v1175, %v1175
  %v1180 = vpack.c.b16 %v1176, %v1176
  %s1185 = scalar_lea.vmem %s4, 48
  %1186 = vst.msk [vmem:[%s1185] sm:$0xf] %vm1086, %v1177
  %1187 = vst.msk [vmem:[%s1185 + $0x4] sm:$0xf] %vm1086, %v1178
  %1188 = vst.msk [vmem:[%s1185 + $0x8] sm:$0xf] %vm1086, %v1179
  %1189 = vst.msk [vmem:[%s1185 + $0xc] sm:$0xf] %vm1086, %v1180
  // Predicated region
  $region18: #{generator_forward.6} parent=0 // pred_check
    _
  $region19: #{generator_forward.6} parent=0 // pred_check_branch
    %1191 = sbr.rel (0) target = $region21
  $region20: #{generator_forward.6} parent=0 // pred_region
    _
  $region21: #{generator_forward.6} parent=0 // pred_fallthru
    _
  // Predicated region
  $region22: #{generator_forward.6} parent=0 // pred_check
    _
  $region23: #{generator_forward.6} parent=0 // pred_check_branch
    %1193 = sbr.rel (0) target = $region25
  $region24: #{generator_forward.6} parent=0 // pred_region
    _
  $region25: #{generator_forward.6} parent=0 // pred_fallthru
    _

// kernel: generator_forward.7
$region0: #{generator_forward.7}
  #allocation0 [shape = 'u32[]', space=smem, size = 0x4, offset = 0x4, fixed_abs, tag = 'smem constant byte address 0x4 - core index']
  #allocation1 [shape = 'u32[144,128]{1,0:T(1,128)}', space=vmem, size = 0x12000, scoped, tag = 'internal scratch']
  %s0 = inlined_call_operand.vmem [shape: bf16[4,128,128], index: 0, kind: input, shape index: {}]
  %s1 = inlined_call_operand.vmem [shape: bf16[4,16,128], index: 1, kind: input, shape index: {}]
  %s2 = inlined_call_operand.vmem [shape: f32[16,1], index: 2, kind: input, shape index: {}]
  %s3 = inlined_call_operand.vmem [shape: f32[16,1], index: 3, kind: input, shape index: {}]
  %s4 = inlined_call_operand.vmem [shape: bf16[4,16,128], index: 4, kind: output, shape index: {}]
  %s5 = sld [smem:[#allocation0]]
  $region26: #{generator_forward.7} parent=0
    _
  %s7 = ssub.s32 1, %s5
  %s8 = scalar_select 0, %s7, %s5
  // Predicated region
  $region2: #{generator_forward.7} parent=0 // pred_check
    _
  $region3: #{generator_forward.7} parent=0 // pred_check_branch
    %10 = sbr.rel (0) target = $region5
  $region4: #{generator_forward.7} parent=0 // pred_region
    _
  $region5: #{generator_forward.7} parent=0 // pred_fallthru
    _
  // Predicated region
  $region6: #{generator_forward.7} parent=0 // pred_check
    _
  $region7: #{generator_forward.7} parent=0 // pred_check_branch
    %12 = sbr.rel (0) target = $region9
  $region8: #{generator_forward.7} parent=0 // pred_region
    _
  $region9: #{generator_forward.7} parent=0 // pred_fallthru
    _
  // Predicated region
  $region10: #{generator_forward.7} parent=0 // pred_check
    _
  $region11: #{generator_forward.7} parent=0 // pred_check_branch
    %14 = sbr.rel (0) target = $region13
  $region12: #{generator_forward.7} parent=0 // pred_region
    _
  $region13: #{generator_forward.7} parent=0 // pred_fallthru
    _
  // Predicated region
  $region14: #{generator_forward.7} parent=0 // pred_check
    _
  $region15: #{generator_forward.7} parent=0 // pred_check_branch
    %16 = sbr.rel (0) target = $region17
  $region16: #{generator_forward.7} parent=0 // pred_region
    _
  $region17: #{generator_forward.7} parent=0 // pred_fallthru
    _
  %v18 = vld [vmem:[%s1] sm:$0xf]
  %v19 = vld [vmem:[%s1 + $0x4] sm:$0xf]
  %v20 = vld [vmem:[%s0] sm:$0xf]
  %v21 = vld [vmem:[%s0 + $0x4] sm:$0xf]
  %v22 = vld [vmem:[%s0 + $0x8] sm:$0xf]
  %v23 = vld [vmem:[%s0 + $0xc] sm:$0xf]
  %v24 = vld [vmem:[%s0 + $0x10] sm:$0xf]
  %v25 = vld [vmem:[%s0 + $0x14] sm:$0xf]
  %v26 = vld [vmem:[%s0 + $0x18] sm:$0xf]
  %v27 = vld [vmem:[%s0 + $0x1c] sm:$0xf]
  %v28 = vld [vmem:[%s0 + $0x20] sm:$0xf]
  %v29 = vld [vmem:[%s0 + $0x24] sm:$0xf]
  %v30 = vld [vmem:[%s0 + $0x28] sm:$0xf]
  %v31 = vld [vmem:[%s0 + $0x2c] sm:$0xf]
  %v32 = vld [vmem:[%s0 + $0x30] sm:$0xf]
  %v33 = vld [vmem:[%s0 + $0x34] sm:$0xf]
  %v34 = vld [vmem:[%s0 + $0x38] sm:$0xf]
  %v35 = vld [vmem:[%s0 + $0x3c] sm:$0xf]
  %v38 = vunpack.c.l.b16 %v18
  %v39 = vunpack.c.l.b16 %v19
  %v40 = vpack.c.b16 %v39, %v38
  %v58 = vunpack.c.l.b16 %v20
  %v59 = vunpack.c.l.b16 %v21
  %v60 = vunpack.c.l.b16 %v22
  %v61 = vunpack.c.l.b16 %v23
  %v62 = vunpack.c.l.b16 %v24
  %v63 = vunpack.c.l.b16 %v25
  %v64 = vunpack.c.l.b16 %v26
  %v65 = vunpack.c.l.b16 %v27
  %v66 = vunpack.c.l.b16 %v28
  %v67 = vunpack.c.l.b16 %v29
  %v68 = vunpack.c.l.b16 %v30
  %v69 = vunpack.c.l.b16 %v31
  %v70 = vunpack.c.l.b16 %v32
  %v71 = vunpack.c.l.b16 %v33
  %v72 = vunpack.c.l.b16 %v34
  %v73 = vunpack.c.l.b16 %v35
  %v74 = vpack.c.b16 %v59, %v58
  %v75 = vpack.c.b16 %v61, %v60
  %v76 = vpack.c.b16 %v63, %v62
  %v77 = vpack.c.b16 %v65, %v64
  %v78 = vpack.c.b16 %v67, %v66
  %v79 = vpack.c.b16 %v69, %v68
  %v80 = vpack.c.b16 %v71, %v70
  %v81 = vpack.c.b16 %v73, %v72
  %90 = vmatprep.subr.bf16.mxu0 0
  %91 = vmatpush1.bf16.msra.mxu0 %v74
  %92 = vmatprep.subr.bf16.mxu0 0
  %93 = vmatpush1.bf16.msra.mxu0 %v75
  %94 = vmatprep.subr.bf16.mxu0 0
  %95 = vmatpush1.bf16.msra.mxu0 %v76
  %96 = vmatprep.subr.bf16.mxu0 0
  %97 = vmatpush1.bf16.msra.mxu0 %v77
  %98 = vmatprep.subr.bf16.mxu0 0
  %99 = vmatpush1.bf16.msra.mxu0 %v78
  %100 = vmatprep.subr.bf16.mxu0 0
  %101 = vmatpush1.bf16.msra.mxu0 %v79
  %102 = vmatprep.subr.bf16.mxu0 0
  %103 = vmatpush1.bf16.msra.mxu0 %v80
  %104 = vmatprep.subr.bf16.mxu0 0
  %105 = vmatpush1.bf16.msra.mxu0 %v81
  %106 = vmatprep.subr.bf16.mxu0 0
  %107 = vmatpush1.bf16.msra.mxu0 0
  %108 = vmatprep.subr.bf16.mxu0 0
  %109 = vmatpush1.bf16.msra.mxu0 0
  %110 = vmatprep.subr.bf16.mxu0 0
  %111 = vmatpush1.bf16.msra.mxu0 0
  %112 = vmatprep.subr.bf16.mxu0 0
  %113 = vmatpush1.bf16.msra.mxu0 0
  %114 = vmatprep.subr.bf16.mxu0 0
  %115 = vmatpush1.bf16.msra.mxu0 0
  %116 = vmatprep.subr.bf16.mxu0 0
  %117 = vmatpush1.bf16.msra.mxu0 0
  %118 = vmatprep.subr.bf16.mxu0 0
  %119 = vmatpush1.bf16.msra.mxu0 0
  %120 = vmatprep.subr.bf16.mxu0 0
  %121 = vmatpush1.bf16.msra.mxu0 0
  %122 = vmatprep.mubr.bf16.mxu0 0
  %123 = vmatmul.mubr.bf16.gmra.mrb[0].mxu0 %v40
  %v124 = vpop.f32.mrb[0].mxu0
  %v125 = vadd.f32 0.0, %v124
  %v126 = vpop.f32.mrb[0].mxu0
  %v127 = vpop.f32.mrb[0].mxu0
  %v128 = vadd.f32 0.0, %v127
  %v129 = vpop.f32.mrb[0].mxu0
  %130 = vdwg.mxu0
  %131 = vadd.xlane.f32.xlu0 %v125
  %v132 = vpop.xlane.xlu0 %131
  %133 = vadd.xlane.f32.xlu0 %v128
  %v134 = vpop.xlane.xlu0 %133
  %v135 = vadd.f32 %v132, 0.0
  %v136 = vadd.f32 %v134, 0.0
  %v137 = vmul.f32 %v125, %v125
  %v138 = vmul.f32 %v128, %v128
  %139 = vadd.xlane.f32.xlu0 %v137
  %v140 = vpop.xlane.xlu0 %139
  %141 = vadd.xlane.f32.xlu0 %v138
  %v142 = vpop.xlane.xlu0 %141
  %v143 = vadd.f32 %v140, 0.0
  %v144 = vadd.f32 %v142, 0.0
  %s145 = scalar_lea.vmem %s1, 8
  %v146 = vld [vmem:[%s145] sm:$0xf]
  %v147 = vld [vmem:[%s145 + $0x4] sm:$0xf]
  %s148 = scalar_lea.vmem %s0, 64
  %v149 = vld [vmem:[%s148] sm:$0xf]
  %v150 = vld [vmem:[%s148 + $0x4] sm:$0xf]
  %v151 = vld [vmem:[%s148 + $0x8] sm:$0xf]
  %v152 = vld [vmem:[%s148 + $0xc] sm:$0xf]
  %v153 = vld [vmem:[%s148 + $0x10] sm:$0xf]
  %v154 = vld [vmem:[%s148 + $0x14] sm:$0xf]
  %v155 = vld [vmem:[%s148 + $0x18] sm:$0xf]
  %v156 = vld [vmem:[%s148 + $0x1c] sm:$0xf]
  %v157 = vld [vmem:[%s148 + $0x20] sm:$0xf]
  %v158 = vld [vmem:[%s148 + $0x24] sm:$0xf]
  %v159 = vld [vmem:[%s148 + $0x28] sm:$0xf]
  %v160 = vld [vmem:[%s148 + $0x2c] sm:$0xf]
  %v161 = vld [vmem:[%s148 + $0x30] sm:$0xf]
  %v162 = vld [vmem:[%s148 + $0x34] sm:$0xf]
  %v163 = vld [vmem:[%s148 + $0x38] sm:$0xf]
  %v164 = vld [vmem:[%s148 + $0x3c] sm:$0xf]
  %v167 = vunpack.c.l.b16 %v146
  %v168 = vunpack.c.l.b16 %v147
  %v169 = vpack.c.b16 %v168, %v167
  %v187 = vunpack.c.l.b16 %v149
  %v188 = vunpack.c.l.b16 %v150
  %v189 = vunpack.c.l.b16 %v151
  %v190 = vunpack.c.l.b16 %v152
  %v191 = vunpack.c.l.b16 %v153
  %v192 = vunpack.c.l.b16 %v154
  %v193 = vunpack.c.l.b16 %v155
  %v194 = vunpack.c.l.b16 %v156
  %v195 = vunpack.c.l.b16 %v157
  %v196 = vunpack.c.l.b16 %v158
  %v197 = vunpack.c.l.b16 %v159
  %v198 = vunpack.c.l.b16 %v160
  %v199 = vunpack.c.l.b16 %v161
  %v200 = vunpack.c.l.b16 %v162
  %v201 = vunpack.c.l.b16 %v163
  %v202 = vunpack.c.l.b16 %v164
  %v203 = vpack.c.b16 %v188, %v187
  %v204 = vpack.c.b16 %v190, %v189
  %v205 = vpack.c.b16 %v192, %v191
  %v206 = vpack.c.b16 %v194, %v193
  %v207 = vpack.c.b16 %v196, %v195
  %v208 = vpack.c.b16 %v198, %v197
  %v209 = vpack.c.b16 %v200, %v199
  %v210 = vpack.c.b16 %v202, %v201
  %219 = vmatprep.subr.bf16.mxu0 0
  %220 = vmatpush1.bf16.msra.mxu0 %v203
  %221 = vmatprep.subr.bf16.mxu0 0
  %222 = vmatpush1.bf16.msra.mxu0 %v204
  %223 = vmatprep.subr.bf16.mxu0 0
  %224 = vmatpush1.bf16.msra.mxu0 %v205
  %225 = vmatprep.subr.bf16.mxu0 0
  %226 = vmatpush1.bf16.msra.mxu0 %v206
  %227 = vmatprep.subr.bf16.mxu0 0
  %228 = vmatpush1.bf16.msra.mxu0 %v207
  %229 = vmatprep.subr.bf16.mxu0 0
  %230 = vmatpush1.bf16.msra.mxu0 %v208
  %231 = vmatprep.subr.bf16.mxu0 0
  %232 = vmatpush1.bf16.msra.mxu0 %v209
  %233 = vmatprep.subr.bf16.mxu0 0
  %234 = vmatpush1.bf16.msra.mxu0 %v210
  %235 = vmatprep.subr.bf16.mxu0 0
  %236 = vmatpush1.bf16.msra.mxu0 0
  %237 = vmatprep.subr.bf16.mxu0 0
  %238 = vmatpush1.bf16.msra.mxu0 0
  %239 = vmatprep.subr.bf16.mxu0 0
  %240 = vmatpush1.bf16.msra.mxu0 0
  %241 = vmatprep.subr.bf16.mxu0 0
  %242 = vmatpush1.bf16.msra.mxu0 0
  %243 = vmatprep.subr.bf16.mxu0 0
  %244 = vmatpush1.bf16.msra.mxu0 0
  %245 = vmatprep.subr.bf16.mxu0 0
  %246 = vmatpush1.bf16.msra.mxu0 0
  %247 = vmatprep.subr.bf16.mxu0 0
  %248 = vmatpush1.bf16.msra.mxu0 0
  %249 = vmatprep.subr.bf16.mxu0 0
  %250 = vmatpush1.bf16.msra.mxu0 0
  %251 = vmatprep.mubr.bf16.mxu0 0
  %252 = vmatmul.mubr.bf16.gmra.mrb[0].mxu0 %v169
  %v253 = vpop.f32.mrb[0].mxu0
  %v254 = vadd.f32 0.0, %v253
  %v255 = vpop.f32.mrb[0].mxu0
  %v256 = vpop.f32.mrb[0].mxu0
  %v257 = vadd.f32 0.0, %v256
  %v258 = vpop.f32.mrb[0].mxu0
  %259 = vdwg.mxu0
  %260 = vadd.xlane.f32.xlu0 %v254
  %v261 = vpop.xlane.xlu0 %260
  %262 = vadd.xlane.f32.xlu0 %v257
  %v263 = vpop.xlane.xlu0 %262
  %v264 = vadd.f32 %v135, %v261
  %v265 = vadd.f32 %v136, %v263
  %v266 = vmul.f32 %v254, %v254
  %v267 = vmul.f32 %v257, %v257
  %268 = vadd.xlane.f32.xlu0 %v266
  %v269 = vpop.xlane.xlu0 %268
  %270 = vadd.xlane.f32.xlu0 %v267
  %v271 = vpop.xlane.xlu0 %270
  %v272 = vadd.f32 %v143, %v269
  %v273 = vadd.f32 %v144, %v271
  %s274 = scalar_lea.vmem %s1, 16
  %v275 = vld [vmem:[%s274] sm:$0xf]
  %v276 = vld [vmem:[%s274 + $0x4] sm:$0xf]
  %s277 = scalar_lea.vmem %s0, 128
  %v278 = vld [vmem:[%s277] sm:$0xf]
  %v279 = vld [vmem:[%s277 + $0x4] sm:$0xf]
  %v280 = vld [vmem:[%s277 + $0x8] sm:$0xf]
  %v281 = vld [vmem:[%s277 + $0xc] sm:$0xf]
  %v282 = vld [vmem:[%s277 + $0x10] sm:$0xf]
  %v283 = vld [vmem:[%s277 + $0x14] sm:$0xf]
  %v284 = vld [vmem:[%s277 + $0x18] sm:$0xf]
  %v285 = vld [vmem:[%s277 + $0x1c] sm:$0xf]
  %v286 = vld [vmem:[%s277 + $0x20] sm:$0xf]
  %v287 = vld [vmem:[%s277 + $0x24] sm:$0xf]
  %v288 = vld [vmem:[%s277 + $0x28] sm:$0xf]
  %v289 = vld [vmem:[%s277 + $0x2c] sm:$0xf]
  %v290 = vld [vmem:[%s277 + $0x30] sm:$0xf]
  %v291 = vld [vmem:[%s277 + $0x34] sm:$0xf]
  %v292 = vld [vmem:[%s277 + $0x38] sm:$0xf]
  %v293 = vld [vmem:[%s277 + $0x3c] sm:$0xf]
  %v296 = vunpack.c.l.b16 %v275
  %v297 = vunpack.c.l.b16 %v276
  %v298 = vpack.c.b16 %v297, %v296
  %v316 = vunpack.c.l.b16 %v278
  %v317 = vunpack.c.l.b16 %v279
  %v318 = vunpack.c.l.b16 %v280
  %v319 = vunpack.c.l.b16 %v281
  %v320 = vunpack.c.l.b16 %v282
  %v321 = vunpack.c.l.b16 %v283
  %v322 = vunpack.c.l.b16 %v284
  %v323 = vunpack.c.l.b16 %v285
  %v324 = vunpack.c.l.b16 %v286
  %v325 = vunpack.c.l.b16 %v287
  %v326 = vunpack.c.l.b16 %v288
  %v327 = vunpack.c.l.b16 %v289
  %v328 = vunpack.c.l.b16 %v290
  %v329 = vunpack.c.l.b16 %v291
  %v330 = vunpack.c.l.b16 %v292
  %v331 = vunpack.c.l.b16 %v293
  %v332 = vpack.c.b16 %v317, %v316
  %v333 = vpack.c.b16 %v319, %v318
  %v334 = vpack.c.b16 %v321, %v320
  %v335 = vpack.c.b16 %v323, %v322
  %v336 = vpack.c.b16 %v325, %v324
  %v337 = vpack.c.b16 %v327, %v326
  %v338 = vpack.c.b16 %v329, %v328
  %v339 = vpack.c.b16 %v331, %v330
  %348 = vmatprep.subr.bf16.mxu0 0
  %349 = vmatpush1.bf16.msra.mxu0 %v332
  %350 = vmatprep.subr.bf16.mxu0 0
  %351 = vmatpush1.bf16.msra.mxu0 %v333
  %352 = vmatprep.subr.bf16.mxu0 0
  %353 = vmatpush1.bf16.msra.mxu0 %v334
  %354 = vmatprep.subr.bf16.mxu0 0
  %355 = vmatpush1.bf16.msra.mxu0 %v335
  %356 = vmatprep.subr.bf16.mxu0 0
  %357 = vmatpush1.bf16.msra.mxu0 %v336
  %358 = vmatprep.subr.bf16.mxu0 0
  %359 = vmatpush1.bf16.msra.mxu0 %v337
  %360 = vmatprep.subr.bf16.mxu0 0
  %361 = vmatpush1.bf16.msra.mxu0 %v338
  %362 = vmatprep.subr.bf16.mxu0 0
  %363 = vmatpush1.bf16.msra.mxu0 %v339
  %364 = vmatprep.subr.bf16.mxu0 0
  %365 = vmatpush1.bf16.msra.mxu0 0
  %366 = vmatprep.subr.bf16.mxu0 0
  %367 = vmatpush1.bf16.msra.mxu0 0
  %368 = vmatprep.subr.bf16.mxu0 0
  %369 = vmatpush1.bf16.msra.mxu0 0
  %370 = vmatprep.subr.bf16.mxu0 0
  %371 = vmatpush1.bf16.msra.mxu0 0
  %372 = vmatprep.subr.bf16.mxu0 0
  %373 = vmatpush1.bf16.msra.mxu0 0
  %374 = vmatprep.subr.bf16.mxu0 0
  %375 = vmatpush1.bf16.msra.mxu0 0
  %376 = vmatprep.subr.bf16.mxu0 0
  %377 = vmatpush1.bf16.msra.mxu0 0
  %378 = vmatprep.subr.bf16.mxu0 0
  %379 = vmatpush1.bf16.msra.mxu0 0
  %380 = vmatprep.mubr.bf16.mxu0 0
  %381 = vmatmul.mubr.bf16.gmra.mrb[0].mxu0 %v298
  %v382 = vpop.f32.mrb[0].mxu0
  %v383 = vadd.f32 0.0, %v382
  %v384 = vpop.f32.mrb[0].mxu0
  %v385 = vpop.f32.mrb[0].mxu0
  %v386 = vadd.f32 0.0, %v385
  %v387 = vpop.f32.mrb[0].mxu0
  %388 = vdwg.mxu0
  %389 = vadd.xlane.f32.xlu0 %v383
  %v390 = vpop.xlane.xlu0 %389
  %391 = vadd.xlane.f32.xlu0 %v386
  %v392 = vpop.xlane.xlu0 %391
  %v393 = vadd.f32 %v264, %v390
  %v394 = vadd.f32 %v265, %v392
  %v395 = vmul.f32 %v383, %v383
  %v396 = vmul.f32 %v386, %v386
  %397 = vadd.xlane.f32.xlu0 %v395
  %v398 = vpop.xlane.xlu0 %397
  %399 = vadd.xlane.f32.xlu0 %v396
  %v400 = vpop.xlane.xlu0 %399
  %v401 = vadd.f32 %v272, %v398
  %v402 = vadd.f32 %v273, %v400
  %s403 = scalar_lea.vmem %s1, 24
  %v404 = vld [vmem:[%s403] sm:$0xf]
  %v405 = vld [vmem:[%s403 + $0x4] sm:$0xf]
  %s406 = scalar_lea.vmem %s0, 192
  %v407 = vld [vmem:[%s406] sm:$0xf]
  %v408 = vld [vmem:[%s406 + $0x4] sm:$0xf]
  %v409 = vld [vmem:[%s406 + $0x8] sm:$0xf]
  %v410 = vld [vmem:[%s406 + $0xc] sm:$0xf]
  %v411 = vld [vmem:[%s406 + $0x10] sm:$0xf]
  %v412 = vld [vmem:[%s406 + $0x14] sm:$0xf]
  %v413 = vld [vmem:[%s406 + $0x18] sm:$0xf]
  %v414 = vld [vmem:[%s406 + $0x1c] sm:$0xf]
  %v415 = vld [vmem:[%s406 + $0x20] sm:$0xf]
  %v416 = vld [vmem:[%s406 + $0x24] sm:$0xf]
  %v417 = vld [vmem:[%s406 + $0x28] sm:$0xf]
  %v418 = vld [vmem:[%s406 + $0x2c] sm:$0xf]
  %v419 = vld [vmem:[%s406 + $0x30] sm:$0xf]
  %v420 = vld [vmem:[%s406 + $0x34] sm:$0xf]
  %v421 = vld [vmem:[%s406 + $0x38] sm:$0xf]
  %v422 = vld [vmem:[%s406 + $0x3c] sm:$0xf]
  %v425 = vunpack.c.l.b16 %v404
  %v426 = vunpack.c.l.b16 %v405
  %v427 = vpack.c.b16 %v426, %v425
  %v445 = vunpack.c.l.b16 %v407
  %v446 = vunpack.c.l.b16 %v408
  %v447 = vunpack.c.l.b16 %v409
  %v448 = vunpack.c.l.b16 %v410
  %v449 = vunpack.c.l.b16 %v411
  %v450 = vunpack.c.l.b16 %v412
  %v451 = vunpack.c.l.b16 %v413
  %v452 = vunpack.c.l.b16 %v414
  %v453 = vunpack.c.l.b16 %v415
  %v454 = vunpack.c.l.b16 %v416
  %v455 = vunpack.c.l.b16 %v417
  %v456 = vunpack.c.l.b16 %v418
  %v457 = vunpack.c.l.b16 %v419
  %v458 = vunpack.c.l.b16 %v420
  %v459 = vunpack.c.l.b16 %v421
  %v460 = vunpack.c.l.b16 %v422
  %v461 = vpack.c.b16 %v446, %v445
  %v462 = vpack.c.b16 %v448, %v447
  %v463 = vpack.c.b16 %v450, %v449
  %v464 = vpack.c.b16 %v452, %v451
  %v465 = vpack.c.b16 %v454, %v453
  %v466 = vpack.c.b16 %v456, %v455
  %v467 = vpack.c.b16 %v458, %v457
  %v468 = vpack.c.b16 %v460, %v459
  %477 = vmatprep.subr.bf16.mxu0 0
  %478 = vmatpush1.bf16.msra.mxu0 %v461
  %479 = vmatprep.subr.bf16.mxu0 0
  %480 = vmatpush1.bf16.msra.mxu0 %v462
  %481 = vmatprep.subr.bf16.mxu0 0
  %482 = vmatpush1.bf16.msra.mxu0 %v463
  %483 = vmatprep.subr.bf16.mxu0 0
  %484 = vmatpush1.bf16.msra.mxu0 %v464
  %485 = vmatprep.subr.bf16.mxu0 0
  %486 = vmatpush1.bf16.msra.mxu0 %v465
  %487 = vmatprep.subr.bf16.mxu0 0
  %488 = vmatpush1.bf16.msra.mxu0 %v466
  %489 = vmatprep.subr.bf16.mxu0 0
  %490 = vmatpush1.bf16.msra.mxu0 %v467
  %491 = vmatprep.subr.bf16.mxu0 0
  %492 = vmatpush1.bf16.msra.mxu0 %v468
  %493 = vmatprep.subr.bf16.mxu0 0
  %494 = vmatpush1.bf16.msra.mxu0 0
  %495 = vmatprep.subr.bf16.mxu0 0
  %496 = vmatpush1.bf16.msra.mxu0 0
  %497 = vmatprep.subr.bf16.mxu0 0
  %498 = vmatpush1.bf16.msra.mxu0 0
  %499 = vmatprep.subr.bf16.mxu0 0
  %500 = vmatpush1.bf16.msra.mxu0 0
  %501 = vmatprep.subr.bf16.mxu0 0
  %502 = vmatpush1.bf16.msra.mxu0 0
  %503 = vmatprep.subr.bf16.mxu0 0
  %504 = vmatpush1.bf16.msra.mxu0 0
  %505 = vmatprep.subr.bf16.mxu0 0
  %506 = vmatpush1.bf16.msra.mxu0 0
  %507 = vmatprep.subr.bf16.mxu0 0
  %508 = vmatpush1.bf16.msra.mxu0 0
  %509 = vmatprep.mubr.bf16.mxu0 0
  %510 = vmatmul.mubr.bf16.gmra.mrb[0].mxu0 %v427
  %v511 = vpop.f32.mrb[0].mxu0
  %v512 = vadd.f32 0.0, %v511
  %v513 = vpop.f32.mrb[0].mxu0
  %v514 = vpop.f32.mrb[0].mxu0
  %v515 = vadd.f32 0.0, %v514
  %v516 = vpop.f32.mrb[0].mxu0
  %517 = vdwg.mxu0
  %518 = vadd.xlane.f32.xlu0 %v512
  %v519 = vpop.xlane.xlu0 %518
  %520 = vadd.xlane.f32.xlu0 %v515
  %v521 = vpop.xlane.xlu0 %520
  %v522 = vadd.f32 %v393, %v519
  %v523 = vadd.f32 %v394, %v521
  %v524 = vmul.f32 %v512, %v512
  %v525 = vmul.f32 %v515, %v515
  %526 = vadd.xlane.f32.xlu0 %v524
  %v527 = vpop.xlane.xlu0 %526
  %528 = vadd.xlane.f32.xlu0 %v525
  %v529 = vpop.xlane.xlu0 %528
  %v530 = vadd.f32 %v401, %v527
  %v531 = vadd.f32 %v402, %v529
  %v532 = vrcp.pop 512.0
  %v533 = vmul.f32 %v522, %v532
  %v534 = vmul.f32 %v523, %v532
  %v535 = vmul.f32 %v530, %v532
  %v536 = vmul.f32 %v531, %v532
  %v537 = vmul.f32 %v533, %v533
  %v538 = vmul.f32 %v534, %v534
  %v539 = vsub.f32 %v535, %v537
  %v540 = vsub.f32 %v536, %v538
  %v541 = vld [vmem:[%s2] sm:$0xff]
  %v542 = vld [vmem:[%s2 + $0x8] sm:$0xff]
  %v543 = vadd.f32 %v539, 1e-05
  %v544 = vadd.f32 %v540, 1e-05
  %v545 = vrsqrt.pop %v543
  %v546 = vrsqrt.pop %v544
  %v547 = vmul.f32 %v541, %v545
  %v548 = vmul.f32 %v542, %v546
  %v549 = vld [vmem:[%s3] sm:$0xff]
  %v550 = vld [vmem:[%s3 + $0x8] sm:$0xff]
  %v551 = vmul.f32 %v533, %v547
  %v552 = vmul.f32 %v534, %v548
  %v553 = vsub.f32 %v549, %v551
  %v554 = vsub.f32 %v550, %v552
  %556 = vset.pattern.permute.xlu0 0
  %557 = vperm.xlu0 %556, %v547
  %v558 = vpop.permute.xlu0 %557
  %561 = vset.pattern.permute.xlu0 0
  %562 = vperm.xlu0 %561, %v548
  %v563 = vpop.permute.xlu0 %562
  %v565 = vmul.f32 %v125, %v558
  %v566 = vmul.f32 %v128, %v563
  %568 = vset.pattern.permute.xlu0 0
  %569 = vperm.xlu0 %568, %v553
  %v570 = vpop.permute.xlu0 %569
  %573 = vset.pattern.permute.xlu0 0
  %574 = vperm.xlu0 %573, %v554
  %v575 = vpop.permute.xlu0 %574
  %v577 = vadd.f32 %v565, %v570
  %v578 = vadd.f32 %v566, %v575
  %v579 = vmax.f32 %v577, 0.0
  %v580 = vmax.f32 %v578, 0.0
  %v581 = vpack.c.bf16 %v580, %v579
  %v583 = vunpack.c.l.b16 %v581
  %v584 = vunpack.c.h.b16 %v581
  %v585 = vpack.c.b16 %v583, %v583
  %v586 = vpack.c.b16 %v584, %v584
  %589 = vst [vmem:[%s4] sm:$0xf] %v585
  %590 = vst [vmem:[%s4 + $0x4] sm:$0xf] %v586
  %v591 = vmul.f32 %v254, %v558
  %v592 = vmul.f32 %v257, %v563
  %v593 = vadd.f32 %v591, %v570
  %v594 = vadd.f32 %v592, %v575
  %v595 = vmax.f32 %v593, 0.0
  %v596 = vmax.f32 %v594, 0.0
  %v597 = vpack.c.bf16 %v596, %v595
  %v599 = vunpack.c.l.b16 %v597
  %v600 = vunpack.c.h.b16 %v597
  %v601 = vpack.c.b16 %v599, %v599
  %v602 = vpack.c.b16 %v600, %v600
  %s605 = scalar_lea.vmem %s4, 8
  %606 = vst [vmem:[%s605] sm:$0xf] %v601
  %607 = vst [vmem:[%s605 + $0x4] sm:$0xf] %v602
  %v608 = vmul.f32 %v383, %v558
  %v609 = vmul.f32 %v386, %v563
  %v610 = vadd.f32 %v608, %v570
  %v611 = vadd.f32 %v609, %v575
  %v612 = vmax.f32 %v610, 0.0
  %v613 = vmax.f32 %v611, 0.0
  %v614 = vpack.c.bf16 %v613, %v612
  %v616 = vunpack.c.l.b16 %v614
  %v617 = vunpack.c.h.b16 %v614
  %v618 = vpack.c.b16 %v616, %v616
  %v619 = vpack.c.b16 %v617, %v617
  %s622 = scalar_lea.vmem %s4, 16
  %623 = vst [vmem:[%s622] sm:$0xf] %v618
  %624 = vst [vmem:[%s622 + $0x4] sm:$0xf] %v619
  %v625 = vmul.f32 %v512, %v558
  %v626 = vmul.f32 %v515, %v563
  %v627 = vadd.f32 %v625, %v570
  %v628 = vadd.f32 %v626, %v575
  %v629 = vmax.f32 %v627, 0.0
  %v630 = vmax.f32 %v628, 0.0
  %v631 = vpack.c.bf16 %v630, %v629
  %v633 = vunpack.c.l.b16 %v631
  %v634 = vunpack.c.h.b16 %v631
  %v635 = vpack.c.b16 %v633, %v633
  %v636 = vpack.c.b16 %v634, %v634
  %s639 = scalar_lea.vmem %s4, 24
  %640 = vst [vmem:[%s639] sm:$0xf] %v635
  %641 = vst [vmem:[%s639 + $0x4] sm:$0xf] %v636
  // Predicated region
  $region18: #{generator_forward.7} parent=0 // pred_check
    _
  $region19: #{generator_forward.7} parent=0 // pred_check_branch
    %643 = sbr.rel (0) target = $region21
  $region20: #{generator_forward.7} parent=0 // pred_region
    _
  $region21: #{generator_forward.7} parent=0 // pred_fallthru
    _
  // Predicated region
  $region22: #{generator_forward.7} parent=0 // pred_check
    _
  $region23: #{generator_forward.7} parent=0 // pred_check_branch
    %645 = sbr.rel (0) target = $region25
  $region24: #{generator_forward.7} parent=0 // pred_region
    _
  $region25: #{generator_forward.7} parent=0 // pred_fallthru
    _

// kernel: generator_forward.5
$region0: #{generator_forward.5}
  #allocation0 [shape = 'u32[]', space=smem, size = 0x4, offset = 0x4, fixed_abs, tag = 'smem constant byte address 0x4 - core index']
  #allocation1 [shape = 'u32[144,128]{1,0:T(1,128)}', space=vmem, size = 0x12000, scoped, tag = 'internal scratch']
  %s0 = inlined_call_operand.vmem [shape: bf16[100,2], index: 0, kind: input, shape index: {}]
  %s1 = inlined_call_operand.vmem [shape: bf16[16,64,100], index: 1, kind: input, shape index: {}]
  %s2 = inlined_call_operand.vmem [shape: f32[64,1], index: 2, kind: input, shape index: {}]
  %s3 = inlined_call_operand.vmem [shape: f32[64,1], index: 3, kind: input, shape index: {}]
  %s4 = inlined_call_operand.vmem [shape: bf16[16,64,2], index: 4, kind: output, shape index: {}]
  %s5 = sld [smem:[#allocation0]]
  $region26: #{generator_forward.5} parent=0
    _
  %s7 = ssub.s32 1, %s5
  %s8 = scalar_select 0, %s7, %s5
  // Predicated region
  $region2: #{generator_forward.5} parent=0 // pred_check
    _
  $region3: #{generator_forward.5} parent=0 // pred_check_branch
    %10 = sbr.rel (0) target = $region5
  $region4: #{generator_forward.5} parent=0 // pred_region
    _
  $region5: #{generator_forward.5} parent=0 // pred_fallthru
    _
  // Predicated region
  $region6: #{generator_forward.5} parent=0 // pred_check
    _
  $region7: #{generator_forward.5} parent=0 // pred_check_branch
    %12 = sbr.rel (0) target = $region9
  $region8: #{generator_forward.5} parent=0 // pred_region
    _
  $region9: #{generator_forward.5} parent=0 // pred_fallthru
    _
  // Predicated region
  $region10: #{generator_forward.5} parent=0 // pred_check
    _
  $region11: #{generator_forward.5} parent=0 // pred_check_branch
    %14 = sbr.rel (0) target = $region13
  $region12: #{generator_forward.5} parent=0 // pred_region
    _
  $region13: #{generator_forward.5} parent=0 // pred_fallthru
    _
  // Predicated region
  $region14: #{generator_forward.5} parent=0 // pred_check
    _
  $region15: #{generator_forward.5} parent=0 // pred_check_branch
    %16 = sbr.rel (0) target = $region17
  $region16: #{generator_forward.5} parent=0 // pred_region
    _
  $region17: #{generator_forward.5} parent=0 // pred_fallthru
    _
  %v18 = vld [vmem:[%s0] sm:$0xf]
  %v19 = vld [vmem:[%s0 + $0x4] sm:$0xf]
  %v20 = vld [vmem:[%s0 + $0x8] sm:$0xf]
  %v21 = vld [vmem:[%s0 + $0xc] sm:$0xf]
  %v22 = vld [vmem:[%s0 + $0x10] sm:$0xf]
  %v23 = vld [vmem:[%s0 + $0x14] sm:$0xf]
  %v24 = vld [vmem:[%s0 + $0x18] sm:$0xf]
  %v25 = vld [vmem:[%s0 + $0x1c] sm:$0xf]
  %v26 = vld [vmem:[%s0 + $0x20] sm:$0xf]
  %v27 = vld [vmem:[%s0 + $0x24] sm:$0xf]
  %v28 = vld [vmem:[%s0 + $0x28] sm:$0xf]
  %v29 = vld [vmem:[%s0 + $0x2c] sm:$0xf]
  %v30 = vld [vmem:[%s0 + $0x30] sm:$0x3]
  %v31 = vld [vmem:[%s1] sm:$0xf]
  %v32 = vld [vmem:[%s1 + $0x4] sm:$0xf]
  %v33 = vld [vmem:[%s1 + $0x8] sm:$0xf]
  %v34 = vld [vmem:[%s1 + $0xc] sm:$0xf]
  %v35 = vld [vmem:[%s1 + $0x10] sm:$0xf]
  %v36 = vld [vmem:[%s1 + $0x14] sm:$0xf]
  %v37 = vld [vmem:[%s1 + $0x18] sm:$0xf]
  %v38 = vld [vmem:[%s1 + $0x1c] sm:$0xf]
  %v47 = vunpack.c.l.b16 %v31
  %v48 = vunpack.c.l.b16 %v32
  %v49 = vunpack.c.l.b16 %v33
  %v50 = vunpack.c.l.b16 %v34
  %v51 = vunpack.c.l.b16 %v35
  %v52 = vunpack.c.l.b16 %v36
  %v53 = vunpack.c.l.b16 %v37
  %v54 = vunpack.c.l.b16 %v38
  %v55 = vpack.c.b16 %v48, %v47
  %v56 = vpack.c.b16 %v50, %v49
  %v57 = vpack.c.b16 %v52, %v51
  %v58 = vpack.c.b16 %v54, %v53
  %v72 = vunpack.c.l.b16 %v18
  %v73 = vunpack.c.l.b16 %v19
  %v74 = vunpack.c.l.b16 %v20
  %v75 = vunpack.c.l.b16 %v21
  %v76 = vunpack.c.l.b16 %v22
  %v77 = vunpack.c.l.b16 %v23
  %v78 = vunpack.c.l.b16 %v24
  %v79 = vunpack.c.l.b16 %v25
  %v80 = vunpack.c.l.b16 %v26
  %v81 = vunpack.c.l.b16 %v27
  %v82 = vunpack.c.l.b16 %v28
  %v83 = vunpack.c.l.b16 %v29
  %v84 = vunpack.c.l.b16 %v30
  %v85 = vpack.c.b16 %v73, %v72
  %v86 = vpack.c.b16 %v75, %v74
  %v87 = vpack.c.b16 %v77, %v76
  %v88 = vpack.c.b16 %v79, %v78
  %v89 = vpack.c.b16 %v81, %v80
  %v90 = vpack.c.b16 %v83, %v82
  %v91 = vpack.c.b16 %v84, %v84
  %vm98 = vcmask 818176
  %v100 = vsel %vm98, %v55, 0
  %v103 = vsel %vm98, %v56, 0
  %v106 = vsel %vm98, %v57, 0
  %v109 = vsel %vm98, %v58, 0
  %vm111 = vcmask 1041408
  %v113 = vsel %vm111, %v91, 0
  %115 = vmatprep.subr.bf16.mxu0 0
  %116 = vmatpush1.bf16.msra.mxu0 %v85
  %117 = vmatprep.subr.bf16.mxu0 0
  %118 = vmatpush1.bf16.msra.mxu0 %v86
  %119 = vmatprep.subr.bf16.mxu0 0
  %120 = vmatpush1.bf16.msra.mxu0 %v87
  %121 = vmatprep.subr.bf16.mxu0 0
  %122 = vmatpush1.bf16.msra.mxu0 %v88
  %123 = vmatprep.subr.bf16.mxu0 0
  %124 = vmatpush1.bf16.msra.mxu0 %v89
  %125 = vmatprep.subr.bf16.mxu0 0
  %126 = vmatpush1.bf16.msra.mxu0 %v90
  %127 = vmatprep.subr.bf16.mxu0 0
  %128 = vmatpush1.bf16.msra.mxu0 %v113
  %129 = vmatprep.subr.bf16.mxu0 0
  %130 = vmatpush1.bf16.msra.mxu0 0
  %131 = vmatprep.subr.bf16.mxu0 0
  %132 = vmatpush1.bf16.msra.mxu0 0
  %133 = vmatprep.subr.bf16.mxu0 0
  %134 = vmatpush1.bf16.msra.mxu0 0
  %135 = vmatprep.subr.bf16.mxu0 0
  %136 = vmatpush1.bf16.msra.mxu0 0
  %137 = vmatprep.subr.bf16.mxu0 0
  %138 = vmatpush1.bf16.msra.mxu0 0
  %139 = vmatprep.subr.bf16.mxu0 0
  %140 = vmatpush1.bf16.msra.mxu0 0
  %141 = vmatprep.subr.bf16.mxu0 0
  %142 = vmatpush1.bf16.msra.mxu0 0
  %143 = vmatprep.subr.bf16.mxu0 0
  %144 = vmatpush1.bf16.msra.mxu0 0
  %145 = vmatprep.subr.bf16.mxu0 0
  %146 = vmatpush1.bf16.msra.mxu0 0
  %147 = vmatprep.mubr.bf16.mxu0 0
  %148 = vmatmul.mubr.bf16.gmra.mrb[0].mxu0 %v100
  %v149 = vpop.f32.mrb[0].mxu0
  %v150 = vadd.f32 0.0, %v149
  %v151 = vpop.f32.mrb[0].mxu0
  %v152 = vpop.f32.mrb[0].mxu0
  %v153 = vadd.f32 0.0, %v152
  %v154 = vpop.f32.mrb[0].mxu0
  %155 = vmatprep.mubr.bf16.mxu0 0
  %156 = vmatmul.mubr.bf16.gmra.mrb[0].mxu0 %v103
  %v157 = vpop.f32.mrb[0].mxu0
  %v158 = vadd.f32 0.0, %v157
  %v159 = vpop.f32.mrb[0].mxu0
  %v160 = vpop.f32.mrb[0].mxu0
  %v161 = vadd.f32 0.0, %v160
  %v162 = vpop.f32.mrb[0].mxu0
  %163 = vmatprep.mubr.bf16.mxu0 0
  %164 = vmatmul.mubr.bf16.gmra.mrb[0].mxu0 %v106
  %v165 = vpop.f32.mrb[0].mxu0
  %v166 = vadd.f32 0.0, %v165
  %v167 = vpop.f32.mrb[0].mxu0
  %v168 = vpop.f32.mrb[0].mxu0
  %v169 = vadd.f32 0.0, %v168
  %v170 = vpop.f32.mrb[0].mxu0
  %171 = vmatprep.mubr.bf16.mxu0 0
  %172 = vmatmul.mubr.bf16.gmra.mrb[0].mxu0 %v109
  %v173 = vpop.f32.mrb[0].mxu0
  %v174 = vadd.f32 0.0, %v173
  %v175 = vpop.f32.mrb[0].mxu0
  %v176 = vpop.f32.mrb[0].mxu0
  %v177 = vadd.f32 0.0, %v176
  %v178 = vpop.f32.mrb[0].mxu0
  %179 = vdwg.mxu0
  %vm180 = vcmask 15360
  %v181 = vsel %vm180, %v150, 0.0
  %182 = vadd.xlane.f32.xlu0 %v181
  %v183 = vpop.xlane.xlu0 %182
  %v184 = vsel %vm180, %v153, 0.0
  %185 = vadd.xlane.f32.xlu0 %v184
  %v186 = vpop.xlane.xlu0 %185
  %v187 = vsel %vm180, %v158, 0.0
  %188 = vadd.xlane.f32.xlu0 %v187
  %v189 = vpop.xlane.xlu0 %188
  %v190 = vsel %vm180, %v161, 0.0
  %191 = vadd.xlane.f32.xlu0 %v190
  %v192 = vpop.xlane.xlu0 %191
  %v193 = vsel %vm180, %v166, 0.0
  %194 = vadd.xlane.f32.xlu0 %v193
  %v195 = vpop.xlane.xlu0 %194
  %v196 = vsel %vm180, %v169, 0.0
  %197 = vadd.xlane.f32.xlu0 %v196
  %v198 = vpop.xlane.xlu0 %197
  %v199 = vsel %vm180, %v174, 0.0
  %200 = vadd.xlane.f32.xlu0 %v199
  %v201 = vpop.xlane.xlu0 %200
  %v202 = vsel %vm180, %v177, 0.0
  %203 = vadd.xlane.f32.xlu0 %v202
  %v204 = vpop.xlane.xlu0 %203
  %v205 = vadd.f32 %v183, 0.0
  %v206 = vadd.f32 %v186, 0.0
  %v207 = vadd.f32 %v189, 0.0
  %v208 = vadd.f32 %v192, 0.0
  %v209 = vadd.f32 %v195, 0.0
  %v210 = vadd.f32 %v198, 0.0
  %v211 = vadd.f32 %v201, 0.0
  %v212 = vadd.f32 %v204, 0.0
  %v213 = vmul.f32 %v150, %v150
  %v214 = vmul.f32 %v153, %v153
  %v215 = vmul.f32 %v158, %v158
  %v216 = vmul.f32 %v161, %v161
  %v217 = vmul.f32 %v166, %v166
  %v218 = vmul.f32 %v169, %v169
  %v219 = vmul.f32 %v174, %v174
  %v220 = vmul.f32 %v177, %v177
  %v221 = vsel %vm180, %v213, 0.0
  %222 = vadd.xlane.f32.xlu0 %v221
  %v223 = vpop.xlane.xlu0 %222
  %v224 = vsel %vm180, %v214, 0.0
  %225 = vadd.xlane.f32.xlu0 %v224
  %v226 = vpop.xlane.xlu0 %225
  %v227 = vsel %vm180, %v215, 0.0
  %228 = vadd.xlane.f32.xlu0 %v227
  %v229 = vpop.xlane.xlu0 %228
  %v230 = vsel %vm180, %v216, 0.0
  %231 = vadd.xlane.f32.xlu0 %v230
  %v232 = vpop.xlane.xlu0 %231
  %v233 = vsel %vm180, %v217, 0.0
  %234 = vadd.xlane.f32.xlu0 %v233
  %v235 = vpop.xlane.xlu0 %234
  %v236 = vsel %vm180, %v218, 0.0
  %237 = vadd.xlane.f32.xlu0 %v236
  %v238 = vpop.xlane.xlu0 %237
  %v239 = vsel %vm180, %v219, 0.0
  %240 = vadd.xlane.f32.xlu0 %v239
  %v241 = vpop.xlane.xlu0 %240
  %v242 = vsel %vm180, %v220, 0.0
  %243 = vadd.xlane.f32.xlu0 %v242
  %v244 = vpop.xlane.xlu0 %243
  %v245 = vadd.f32 %v223, 0.0
  %v246 = vadd.f32 %v226, 0.0
  %v247 = vadd.f32 %v229, 0.0
  %v248 = vadd.f32 %v232, 0.0
  %v249 = vadd.f32 %v235, 0.0
  %v250 = vadd.f32 %v238, 0.0
  %v251 = vadd.f32 %v241, 0.0
  %v252 = vadd.f32 %v244, 0.0
  %s253 = scalar_lea.vmem %s1, 32
  %v254 = vld [vmem:[%s253] sm:$0xf]
  %v255 = vld [vmem:[%s253 + $0x4] sm:$0xf]
  %v256 = vld [vmem:[%s253 + $0x8] sm:$0xf]
  %v257 = vld [vmem:[%s253 + $0xc] sm:$0xf]
  %v258 = vld [vmem:[%s253 + $0x10] sm:$0xf]
  %v259 = vld [vmem:[%s253 + $0x14] sm:$0xf]
  %v260 = vld [vmem:[%s253 + $0x18] sm:$0xf]
  %v261 = vld [vmem:[%s253 + $0x1c] sm:$0xf]
  %v270 = vunpack.c.l.b16 %v254
  %v271 = vunpack.c.l.b16 %v255
  %v272 = vunpack.c.l.b16 %v256
  %v273 = vunpack.c.l.b16 %v257
  %v274 = vunpack.c.l.b16 %v258
  %v275 = vunpack.c.l.b16 %v259
  %v276 = vunpack.c.l.b16 %v260
  %v277 = vunpack.c.l.b16 %v261
  %v278 = vpack.c.b16 %v271, %v270
  %v279 = vpack.c.b16 %v273, %v272
  %v280 = vpack.c.b16 %v275, %v274
  %v281 = vpack.c.b16 %v277, %v276
  %v283 = vsel %vm98, %v278, 0
  %v286 = vsel %vm98, %v279, 0
  %v289 = vsel %vm98, %v280, 0
  %v292 = vsel %vm98, %v281, 0
  %294 = vmatprep.subr.bf16.mxu0 0
  %295 = vmatpush1.bf16.msra.mxu0 %v85
  %296 = vmatprep.subr.bf16.mxu0 0
  %297 = vmatpush1.bf16.msra.mxu0 %v86
  %298 = vmatprep.subr.bf16.mxu0 0
  %299 = vmatpush1.bf16.msra.mxu0 %v87
  %300 = vmatprep.subr.bf16.mxu0 0
  %301 = vmatpush1.bf16.msra.mxu0 %v88
  %302 = vmatprep.subr.bf16.mxu0 0
  %303 = vmatpush1.bf16.msra.mxu0 %v89
  %304 = vmatprep.subr.bf16.mxu0 0
  %305 = vmatpush1.bf16.msra.mxu0 %v90
  %306 = vmatprep.subr.bf16.mxu0 0
  %307 = vmatpush1.bf16.msra.mxu0 %v113
  %308 = vmatprep.subr.bf16.mxu0 0
  %309 = vmatpush1.bf16.msra.mxu0 0
  %310 = vmatprep.subr.bf16.mxu0 0
  %311 = vmatpush1.bf16.msra.mxu0 0
  %312 = vmatprep.subr.bf16.mxu0 0
  %313 = vmatpush1.bf16.msra.mxu0 0
  %314 = vmatprep.subr.bf16.mxu0 0
  %315 = vmatpush1.bf16.msra.mxu0 0
  %316 = vmatprep.subr.bf16.mxu0 0
  %317 = vmatpush1.bf16.msra.mxu0 0
  %318 = vmatprep.subr.bf16.mxu0 0
  %319 = vmatpush1.bf16.msra.mxu0 0
  %320 = vmatprep.subr.bf16.mxu0 0
  %321 = vmatpush1.bf16.msra.mxu0 0
  %322 = vmatprep.subr.bf16.mxu0 0
  %323 = vmatpush1.bf16.msra.mxu0 0
  %324 = vmatprep.subr.bf16.mxu0 0
  %325 = vmatpush1.bf16.msra.mxu0 0
  %326 = vmatprep.mubr.bf16.mxu0 0
  %327 = vmatmul.mubr.bf16.gmra.mrb[0].mxu0 %v283
  %v328 = vpop.f32.mrb[0].mxu0
  %v329 = vadd.f32 0.0, %v328
  %v330 = vpop.f32.mrb[0].mxu0
  %v331 = vpop.f32.mrb[0].mxu0
  %v332 = vadd.f32 0.0, %v331
  %v333 = vpop.f32.mrb[0].mxu0
  %334 = vmatprep.mubr.bf16.mxu0 0
  %335 = vmatmul.mubr.bf16.gmra.mrb[0].mxu0 %v286
  %v336 = vpop.f32.mrb[0].mxu0
  %v337 = vadd.f32 0.0, %v336
  %v338 = vpop.f32.mrb[0].mxu0
  %v339 = vpop.f32.mrb[0].mxu0
  %v340 = vadd.f32 0.0, %v339
  %v341 = vpop.f32.mrb[0].mxu0
  %342 = vmatprep.mubr.bf16.mxu0 0
  %343 = vmatmul.mubr.bf16.gmra.mrb[0].mxu0 %v289
  %v344 = vpop.f32.mrb[0].mxu0
  %v345 = vadd.f32 0.0, %v344
  %v346 = vpop.f32.mrb[0].mxu0
  %v347 = vpop.f32.mrb[0].mxu0
  %v348 = vadd.f32 0.0, %v347
  %v349 = vpop.f32.mrb[0].mxu0
  %350 = vmatprep.mubr.bf16.mxu0 0
  %351 = vmatmul.mubr.bf16.gmra.mrb[0].mxu0 %v292
  %v352 = vpop.f32.mrb[0].mxu0
  %v353 = vadd.f32 0.0, %v352
  %v354 = vpop.f32.mrb[0].mxu0
  %v355 = vpop.f32.mrb[0].mxu0
  %v356 = vadd.f32 0.0, %v355
  %v357 = vpop.f32.mrb[0].mxu0
  %358 = vdwg.mxu0
  %v359 = vsel %vm180, %v329, 0.0
  %360 = vadd.xlane.f32.xlu0 %v359
  %v361 = vpop.xlane.xlu0 %360
  %v362 = vsel %vm180, %v332, 0.0
  %363 = vadd.xlane.f32.xlu0 %v362
  %v364 = vpop.xlane.xlu0 %363
  %v365 = vsel %vm180, %v337, 0.0
  %366 = vadd.xlane.f32.xlu0 %v365
  %v367 = vpop.xlane.xlu0 %366
  %v368 = vsel %vm180, %v340, 0.0
  %369 = vadd.xlane.f32.xlu0 %v368
  %v370 = vpop.xlane.xlu0 %369
  %v371 = vsel %vm180, %v345, 0.0
  %372 = vadd.xlane.f32.xlu0 %v371
  %v373 = vpop.xlane.xlu0 %372
  %v374 = vsel %vm180, %v348, 0.0
  %375 = vadd.xlane.f32.xlu0 %v374
  %v376 = vpop.xlane.xlu0 %375
  %v377 = vsel %vm180, %v353, 0.0
  %378 = vadd.xlane.f32.xlu0 %v377
  %v379 = vpop.xlane.xlu0 %378
  %v380 = vsel %vm180, %v356, 0.0
  %381 = vadd.xlane.f32.xlu0 %v380
  %v382 = vpop.xlane.xlu0 %381
  %v383 = vadd.f32 %v205, %v361
  %v384 = vadd.f32 %v206, %v364
  %v385 = vadd.f32 %v207, %v367
  %v386 = vadd.f32 %v208, %v370
  %v387 = vadd.f32 %v209, %v373
  %v388 = vadd.f32 %v210, %v376
  %v389 = vadd.f32 %v211, %v379
  %v390 = vadd.f32 %v212, %v382
  %v391 = vmul.f32 %v329, %v329
  %v392 = vmul.f32 %v332, %v332
  %v393 = vmul.f32 %v337, %v337
  %v394 = vmul.f32 %v340, %v340
  %v395 = vmul.f32 %v345, %v345
  %v396 = vmul.f32 %v348, %v348
  %v397 = vmul.f32 %v353, %v353
  %v398 = vmul.f32 %v356, %v356
  %v399 = vsel %vm180, %v391, 0.0
  %400 = vadd.xlane.f32.xlu0 %v399
  %v401 = vpop.xlane.xlu0 %400
  %v402 = vsel %vm180, %v392, 0.0
  %403 = vadd.xlane.f32.xlu0 %v402
  %v404 = vpop.xlane.xlu0 %403
  %v405 = vsel %vm180, %v393, 0.0
  %406 = vadd.xlane.f32.xlu0 %v405
  %v407 = vpop.xlane.xlu0 %406
  %v408 = vsel %vm180, %v394, 0.0
  %409 = vadd.xlane.f32.xlu0 %v408
  %v410 = vpop.xlane.xlu0 %409
  %v411 = vsel %vm180, %v395, 0.0
  %412 = vadd.xlane.f32.xlu0 %v411
  %v413 = vpop.xlane.xlu0 %412
  %v414 = vsel %vm180, %v396, 0.0
  %415 = vadd.xlane.f32.xlu0 %v414
  %v416 = vpop.xlane.xlu0 %415
  %v417 = vsel %vm180, %v397, 0.0
  %418 = vadd.xlane.f32.xlu0 %v417
  %v419 = vpop.xlane.xlu0 %418
  %v420 = vsel %vm180, %v398, 0.0
  %421 = vadd.xlane.f32.xlu0 %v420
  %v422 = vpop.xlane.xlu0 %421
  %v423 = vadd.f32 %v245, %v401
  %v424 = vadd.f32 %v246, %v404
  %v425 = vadd.f32 %v247, %v407
  %v426 = vadd.f32 %v248, %v410
  %v427 = vadd.f32 %v249, %v413
  %v428 = vadd.f32 %v250, %v416
  %v429 = vadd.f32 %v251, %v419
  %v430 = vadd.f32 %v252, %v422
  %s431 = scalar_lea.vmem %s1, 64
  %v432 = vld [vmem:[%s431] sm:$0xf]
  %v433 = vld [vmem:[%s431 + $0x4] sm:$0xf]
  %v434 = vld [vmem:[%s431 + $0x8] sm:$0xf]
  %v435 = vld [vmem:[%s431 + $0xc] sm:$0xf]
  %v436 = vld [vmem:[%s431 + $0x10] sm:$0xf]
  %v437 = vld [vmem:[%s431 + $0x14] sm:$0xf]
  %v438 = vld [vmem:[%s431 + $0x18] sm:$0xf]
  %v439 = vld [vmem:[%s431 + $0x1c] sm:$0xf]
  %v448 = vunpack.c.l.b16 %v432
  %v449 = vunpack.c.l.b16 %v433
  %v450 = vunpack.c.l.b16 %v434
  %v451 = vunpack.c.l.b16 %v435
  %v452 = vunpack.c.l.b16 %v436
  %v453 = vunpack.c.l.b16 %v437
  %v454 = vunpack.c.l.b16 %v438
  %v455 = vunpack.c.l.b16 %v439
  %v456 = vpack.c.b16 %v449, %v448
  %v457 = vpack.c.b16 %v451, %v450
  %v458 = vpack.c.b16 %v453, %v452
  %v459 = vpack.c.b16 %v455, %v454
  %v461 = vsel %vm98, %v456, 0
  %v464 = vsel %vm98, %v457, 0
  %v467 = vsel %vm98, %v458, 0
  %v470 = vsel %vm98, %v459, 0
  %472 = vmatprep.subr.bf16.mxu0 0
  %473 = vmatpush1.bf16.msra.mxu0 %v85
  %474 = vmatprep.subr.bf16.mxu0 0
  %475 = vmatpush1.bf16.msra.mxu0 %v86
  %476 = vmatprep.subr.bf16.mxu0 0
  %477 = vmatpush1.bf16.msra.mxu0 %v87
  %478 = vmatprep.subr.bf16.mxu0 0
  %479 = vmatpush1.bf16.msra.mxu0 %v88
  %480 = vmatprep.subr.bf16.mxu0 0
  %481 = vmatpush1.bf16.msra.mxu0 %v89
  %482 = vmatprep.subr.bf16.mxu0 0
  %483 = vmatpush1.bf16.msra.mxu0 %v90
  %484 = vmatprep.subr.bf16.mxu0 0
  %485 = vmatpush1.bf16.msra.mxu0 %v113
  %486 = vmatprep.subr.bf16.mxu0 0
  %487 = vmatpush1.bf16.msra.mxu0 0
  %488 = vmatprep.subr.bf16.mxu0 0
  %489 = vmatpush1.bf16.msra.mxu0 0
  %490 = vmatprep.subr.bf16.mxu0 0
  %491 = vmatpush1.bf16.msra.mxu0 0
  %492 = vmatprep.subr.bf16.mxu0 0
  %493 = vmatpush1.bf16.msra.mxu0 0
  %494 = vmatprep.subr.bf16.mxu0 0
  %495 = vmatpush1.bf16.msra.mxu0 0
  %496 = vmatprep.subr.bf16.mxu0 0
  %497 = vmatpush1.bf16.msra.mxu0 0
  %498 = vmatprep.subr.bf16.mxu0 0
  %499 = vmatpush1.bf16.msra.mxu0 0
  %500 = vmatprep.subr.bf16.mxu0 0
  %501 = vmatpush1.bf16.msra.mxu0 0
  %502 = vmatprep.subr.bf16.mxu0 0
  %503 = vmatpush1.bf16.msra.mxu0 0
  %504 = vmatprep.mubr.bf16.mxu0 0
  %505 = vmatmul.mubr.bf16.gmra.mrb[0].mxu0 %v461
  %v506 = vpop.f32.mrb[0].mxu0
  %v507 = vadd.f32 0.0, %v506
  %v508 = vpop.f32.mrb[0].mxu0
  %v509 = vpop.f32.mrb[0].mxu0
  %v510 = vadd.f32 0.0, %v509
  %v511 = vpop.f32.mrb[0].mxu0
  %512 = vmatprep.mubr.bf16.mxu0 0
  %513 = vmatmul.mubr.bf16.gmra.mrb[0].mxu0 %v464
  %v514 = vpop.f32.mrb[0].mxu0
  %v515 = vadd.f32 0.0, %v514
  %v516 = vpop.f32.mrb[0].mxu0
  %v517 = vpop.f32.mrb[0].mxu0
  %v518 = vadd.f32 0.0, %v517
  %v519 = vpop.f32.mrb[0].mxu0
  %520 = vmatprep.mubr.bf16.mxu0 0
  %521 = vmatmul.mubr.bf16.gmra.mrb[0].mxu0 %v467
  %v522 = vpop.f32.mrb[0].mxu0
  %v523 = vadd.f32 0.0, %v522
  %v524 = vpop.f32.mrb[0].mxu0
  %v525 = vpop.f32.mrb[0].mxu0
  %v526 = vadd.f32 0.0, %v525
  %v527 = vpop.f32.mrb[0].mxu0
  %528 = vmatprep.mubr.bf16.mxu0 0
  %529 = vmatmul.mubr.bf16.gmra.mrb[0].mxu0 %v470
  %v530 = vpop.f32.mrb[0].mxu0
  %v531 = vadd.f32 0.0, %v530
  %v532 = vpop.f32.mrb[0].mxu0
  %v533 = vpop.f32.mrb[0].mxu0
  %v534 = vadd.f32 0.0, %v533
  %v535 = vpop.f32.mrb[0].mxu0
  %536 = vdwg.mxu0
  %v537 = vsel %vm180, %v507, 0.0
  %538 = vadd.xlane.f32.xlu0 %v537
  %v539 = vpop.xlane.xlu0 %538
  %v540 = vsel %vm180, %v510, 0.0
  %541 = vadd.xlane.f32.xlu0 %v540
  %v542 = vpop.xlane.xlu0 %541
  %v543 = vsel %vm180, %v515, 0.0
  %544 = vadd.xlane.f32.xlu0 %v543
  %v545 = vpop.xlane.xlu0 %544
  %v546 = vsel %vm180, %v518, 0.0
  %547 = vadd.xlane.f32.xlu0 %v546
  %v548 = vpop.xlane.xlu0 %547
  %v549 = vsel %vm180, %v523, 0.0
  %550 = vadd.xlane.f32.xlu0 %v549
  %v551 = vpop.xlane.xlu0 %550
  %v552 = vsel %vm180, %v526, 0.0
  %553 = vadd.xlane.f32.xlu0 %v552
  %v554 = vpop.xlane.xlu0 %553
  %v555 = vsel %vm180, %v531, 0.0
  %556 = vadd.xlane.f32.xlu0 %v555
  %v557 = vpop.xlane.xlu0 %556
  %v558 = vsel %vm180, %v534, 0.0
  %559 = vadd.xlane.f32.xlu0 %v558
  %v560 = vpop.xlane.xlu0 %559
  %v561 = vadd.f32 %v383, %v539
  %v562 = vadd.f32 %v384, %v542
  %v563 = vadd.f32 %v385, %v545
  %v564 = vadd.f32 %v386, %v548
  %v565 = vadd.f32 %v387, %v551
  %v566 = vadd.f32 %v388, %v554
  %v567 = vadd.f32 %v389, %v557
  %v568 = vadd.f32 %v390, %v560
  %v569 = vmul.f32 %v507, %v507
  %v570 = vmul.f32 %v510, %v510
  %v571 = vmul.f32 %v515, %v515
  %v572 = vmul.f32 %v518, %v518
  %v573 = vmul.f32 %v523, %v523
  %v574 = vmul.f32 %v526, %v526
  %v575 = vmul.f32 %v531, %v531
  %v576 = vmul.f32 %v534, %v534
  %v577 = vsel %vm180, %v569, 0.0
  %578 = vadd.xlane.f32.xlu0 %v577
  %v579 = vpop.xlane.xlu0 %578
  %v580 = vsel %vm180, %v570, 0.0
  %581 = vadd.xlane.f32.xlu0 %v580
  %v582 = vpop.xlane.xlu0 %581
  %v583 = vsel %vm180, %v571, 0.0
  %584 = vadd.xlane.f32.xlu0 %v583
  %v585 = vpop.xlane.xlu0 %584
  %v586 = vsel %vm180, %v572, 0.0
  %587 = vadd.xlane.f32.xlu0 %v586
  %v588 = vpop.xlane.xlu0 %587
  %v589 = vsel %vm180, %v573, 0.0
  %590 = vadd.xlane.f32.xlu0 %v589
  %v591 = vpop.xlane.xlu0 %590
  %v592 = vsel %vm180, %v574, 0.0
  %593 = vadd.xlane.f32.xlu0 %v592
  %v594 = vpop.xlane.xlu0 %593
  %v595 = vsel %vm180, %v575, 0.0
  %596 = vadd.xlane.f32.xlu0 %v595
  %v597 = vpop.xlane.xlu0 %596
  %v598 = vsel %vm180, %v576, 0.0
  %599 = vadd.xlane.f32.xlu0 %v598
  %v600 = vpop.xlane.xlu0 %599
  %v601 = vadd.f32 %v423, %v579
  %v602 = vadd.f32 %v424, %v582
  %v603 = vadd.f32 %v425, %v585
  %v604 = vadd.f32 %v426, %v588
  %v605 = vadd.f32 %v427, %v591
  %v606 = vadd.f32 %v428, %v594
  %v607 = vadd.f32 %v429, %v597
  %v608 = vadd.f32 %v430, %v600
  %s609 = scalar_lea.vmem %s1, 96
  %v610 = vld [vmem:[%s609] sm:$0xf]
  %v611 = vld [vmem:[%s609 + $0x4] sm:$0xf]
  %v612 = vld [vmem:[%s609 + $0x8] sm:$0xf]
  %v613 = vld [vmem:[%s609 + $0xc] sm:$0xf]
  %v614 = vld [vmem:[%s609 + $0x10] sm:$0xf]
  %v615 = vld [vmem:[%s609 + $0x14] sm:$0xf]
  %v616 = vld [vmem:[%s609 + $0x18] sm:$0xf]
  %v617 = vld [vmem:[%s609 + $0x1c] sm:$0xf]
  %v626 = vunpack.c.l.b16 %v610
  %v627 = vunpack.c.l.b16 %v611
  %v628 = vunpack.c.l.b16 %v612
  %v629 = vunpack.c.l.b16 %v613
  %v630 = vunpack.c.l.b16 %v614
  %v631 = vunpack.c.l.b16 %v615
  %v632 = vunpack.c.l.b16 %v616
  %v633 = vunpack.c.l.b16 %v617
  %v634 = vpack.c.b16 %v627, %v626
  %v635 = vpack.c.b16 %v629, %v628
  %v636 = vpack.c.b16 %v631, %v630
  %v637 = vpack.c.b16 %v633, %v632
  %v639 = vsel %vm98, %v634, 0
  %v642 = vsel %vm98, %v635, 0
  %v645 = vsel %vm98, %v636, 0
  %v648 = vsel %vm98, %v637, 0
  %650 = vmatprep.subr.bf16.mxu0 0
  %651 = vmatpush1.bf16.msra.mxu0 %v85
  %652 = vmatprep.subr.bf16.mxu0 0
  %653 = vmatpush1.bf16.msra.mxu0 %v86
  %654 = vmatprep.subr.bf16.mxu0 0
  %655 = vmatpush1.bf16.msra.mxu0 %v87
  %656 = vmatprep.subr.bf16.mxu0 0
  %657 = vmatpush1.bf16.msra.mxu0 %v88
  %658 = vmatprep.subr.bf16.mxu0 0
  %659 = vmatpush1.bf16.msra.mxu0 %v89
  %660 = vmatprep.subr.bf16.mxu0 0
  %661 = vmatpush1.bf16.msra.mxu0 %v90
  %662 = vmatprep.subr.bf16.mxu0 0
  %663 = vmatpush1.bf16.msra.mxu0 %v113
  %664 = vmatprep.subr.bf16.mxu0 0
  %665 = vmatpush1.bf16.msra.mxu0 0
  %666 = vmatprep.subr.bf16.mxu0 0
  %667 = vmatpush1.bf16.msra.mxu0 0
  %668 = vmatprep.subr.bf16.mxu0 0
  %669 = vmatpush1.bf16.msra.mxu0 0
  %670 = vmatprep.subr.bf16.mxu0 0
  %671 = vmatpush1.bf16.msra.mxu0 0
  %672 = vmatprep.subr.bf16.mxu0 0
  %673 = vmatpush1.bf16.msra.mxu0 0
  %674 = vmatprep.subr.bf16.mxu0 0
  %675 = vmatpush1.bf16.msra.mxu0 0
  %676 = vmatprep.subr.bf16.mxu0 0
  %677 = vmatpush1.bf16.msra.mxu0 0
  %678 = vmatprep.subr.bf16.mxu0 0
  %679 = vmatpush1.bf16.msra.mxu0 0
  %680 = vmatprep.subr.bf16.mxu0 0
  %681 = vmatpush1.bf16.msra.mxu0 0
  %682 = vmatprep.mubr.bf16.mxu0 0
  %683 = vmatmul.mubr.bf16.gmra.mrb[0].mxu0 %v639
  %v684 = vpop.f32.mrb[0].mxu0
  %v685 = vadd.f32 0.0, %v684
  %v686 = vpop.f32.mrb[0].mxu0
  %v687 = vpop.f32.mrb[0].mxu0
  %v688 = vadd.f32 0.0, %v687
  %v689 = vpop.f32.mrb[0].mxu0
  %690 = vmatprep.mubr.bf16.mxu0 0
  %691 = vmatmul.mubr.bf16.gmra.mrb[0].mxu0 %v642
  %v692 = vpop.f32.mrb[0].mxu0
  %v693 = vadd.f32 0.0, %v692
  %v694 = vpop.f32.mrb[0].mxu0
  %v695 = vpop.f32.mrb[0].mxu0
  %v696 = vadd.f32 0.0, %v695
  %v697 = vpop.f32.mrb[0].mxu0
  %698 = vmatprep.mubr.bf16.mxu0 0
  %699 = vmatmul.mubr.bf16.gmra.mrb[0].mxu0 %v645
  %v700 = vpop.f32.mrb[0].mxu0
  %v701 = vadd.f32 0.0, %v700
  %v702 = vpop.f32.mrb[0].mxu0
  %v703 = vpop.f32.mrb[0].mxu0
  %v704 = vadd.f32 0.0, %v703
  %v705 = vpop.f32.mrb[0].mxu0
  %706 = vmatprep.mubr.bf16.mxu0 0
  %707 = vmatmul.mubr.bf16.gmra.mrb[0].mxu0 %v648
  %v708 = vpop.f32.mrb[0].mxu0
  %v709 = vadd.f32 0.0, %v708
  %v710 = vpop.f32.mrb[0].mxu0
  %v711 = vpop.f32.mrb[0].mxu0
  %v712 = vadd.f32 0.0, %v711
  %v713 = vpop.f32.mrb[0].mxu0
  %714 = vdwg.mxu0
  %v715 = vsel %vm180, %v685, 0.0
  %716 = vadd.xlane.f32.xlu0 %v715
  %v717 = vpop.xlane.xlu0 %716
  %v718 = vsel %vm180, %v688, 0.0
  %719 = vadd.xlane.f32.xlu0 %v718
  %v720 = vpop.xlane.xlu0 %719
  %v721 = vsel %vm180, %v693, 0.0
  %722 = vadd.xlane.f32.xlu0 %v721
  %v723 = vpop.xlane.xlu0 %722
  %v724 = vsel %vm180, %v696, 0.0
  %725 = vadd.xlane.f32.xlu0 %v724
  %v726 = vpop.xlane.xlu0 %725
  %v727 = vsel %vm180, %v701, 0.0
  %728 = vadd.xlane.f32.xlu0 %v727
  %v729 = vpop.xlane.xlu0 %728
  %v730 = vsel %vm180, %v704, 0.0
  %731 = vadd.xlane.f32.xlu0 %v730
  %v732 = vpop.xlane.xlu0 %731
  %v733 = vsel %vm180, %v709, 0.0
  %734 = vadd.xlane.f32.xlu0 %v733
  %v735 = vpop.xlane.xlu0 %734
  %v736 = vsel %vm180, %v712, 0.0
  %737 = vadd.xlane.f32.xlu0 %v736
  %v738 = vpop.xlane.xlu0 %737
  %v739 = vadd.f32 %v561, %v717
  %v740 = vadd.f32 %v562, %v720
  %v741 = vadd.f32 %v563, %v723
  %v742 = vadd.f32 %v564, %v726
  %v743 = vadd.f32 %v565, %v729
  %v744 = vadd.f32 %v566, %v732
  %v745 = vadd.f32 %v567, %v735
  %v746 = vadd.f32 %v568, %v738
  %v747 = vmul.f32 %v685, %v685
  %v748 = vmul.f32 %v688, %v688
  %v749 = vmul.f32 %v693, %v693
  %v750 = vmul.f32 %v696, %v696
  %v751 = vmul.f32 %v701, %v701
  %v752 = vmul.f32 %v704, %v704
  %v753 = vmul.f32 %v709, %v709
  %v754 = vmul.f32 %v712, %v712
  %v755 = vsel %vm180, %v747, 0.0
  %756 = vadd.xlane.f32.xlu0 %v755
  %v757 = vpop.xlane.xlu0 %756
  %v758 = vsel %vm180, %v748, 0.0
  %759 = vadd.xlane.f32.xlu0 %v758
  %v760 = vpop.xlane.xlu0 %759
  %v761 = vsel %vm180, %v749, 0.0
  %762 = vadd.xlane.f32.xlu0 %v761
  %v763 = vpop.xlane.xlu0 %762
  %v764 = vsel %vm180, %v750, 0.0
  %765 = vadd.xlane.f32.xlu0 %v764
  %v766 = vpop.xlane.xlu0 %765
  %v767 = vsel %vm180, %v751, 0.0
  %768 = vadd.xlane.f32.xlu0 %v767
  %v769 = vpop.xlane.xlu0 %768
  %v770 = vsel %vm180, %v752, 0.0
  %771 = vadd.xlane.f32.xlu0 %v770
  %v772 = vpop.xlane.xlu0 %771
  %v773 = vsel %vm180, %v753, 0.0
  %774 = vadd.xlane.f32.xlu0 %v773
  %v775 = vpop.xlane.xlu0 %774
  %v776 = vsel %vm180, %v754, 0.0
  %777 = vadd.xlane.f32.xlu0 %v776
  %v778 = vpop.xlane.xlu0 %777
  %v779 = vadd.f32 %v601, %v757
  %v780 = vadd.f32 %v602, %v760
  %v781 = vadd.f32 %v603, %v763
  %v782 = vadd.f32 %v604, %v766
  %v783 = vadd.f32 %v605, %v769
  %v784 = vadd.f32 %v606, %v772
  %v785 = vadd.f32 %v607, %v775
  %v786 = vadd.f32 %v608, %v778
  %s787 = scalar_lea.vmem %s1, 128
  %v788 = vld [vmem:[%s787] sm:$0xf]
  %v789 = vld [vmem:[%s787 + $0x4] sm:$0xf]
  %v790 = vld [vmem:[%s787 + $0x8] sm:$0xf]
  %v791 = vld [vmem:[%s787 + $0xc] sm:$0xf]
  %v792 = vld [vmem:[%s787 + $0x10] sm:$0xf]
  %v793 = vld [vmem:[%s787 + $0x14] sm:$0xf]
  %v794 = vld [vmem:[%s787 + $0x18] sm:$0xf]
  %v795 = vld [vmem:[%s787 + $0x1c] sm:$0xf]
  %v804 = vunpack.c.l.b16 %v788
  %v805 = vunpack.c.l.b16 %v789
  %v806 = vunpack.c.l.b16 %v790
  %v807 = vunpack.c.l.b16 %v791
  %v808 = vunpack.c.l.b16 %v792
  %v809 = vunpack.c.l.b16 %v793
  %v810 = vunpack.c.l.b16 %v794
  %v811 = vunpack.c.l.b16 %v795
  %v812 = vpack.c.b16 %v805, %v804
  %v813 = vpack.c.b16 %v807, %v806
  %v814 = vpack.c.b16 %v809, %v808
  %v815 = vpack.c.b16 %v811, %v810
  %v817 = vsel %vm98, %v812, 0
  %v820 = vsel %vm98, %v813, 0
  %v823 = vsel %vm98, %v814, 0
  %v826 = vsel %vm98, %v815, 0
  %828 = vmatprep.subr.bf16.mxu0 0
  %829 = vmatpush1.bf16.msra.mxu0 %v85
  %830 = vmatprep.subr.bf16.mxu0 0
  %831 = vmatpush1.bf16.msra.mxu0 %v86
  %832 = vmatprep.subr.bf16.mxu0 0
  %833 = vmatpush1.bf16.msra.mxu0 %v87
  %834 = vmatprep.subr.bf16.mxu0 0
  %835 = vmatpush1.bf16.msra.mxu0 %v88
  %836 = vmatprep.subr.bf16.mxu0 0
  %837 = vmatpush1.bf16.msra.mxu0 %v89
  %838 = vmatprep.subr.bf16.mxu0 0
  %839 = vmatpush1.bf16.msra.mxu0 %v90
  %840 = vmatprep.subr.bf16.mxu0 0
  %841 = vmatpush1.bf16.msra.mxu0 %v113
  %842 = vmatprep.subr.bf16.mxu0 0
  %843 = vmatpush1.bf16.msra.mxu0 0
  %844 = vmatprep.subr.bf16.mxu0 0
  %845 = vmatpush1.bf16.msra.mxu0 0
  %846 = vmatprep.subr.bf16.mxu0 0
  %847 = vmatpush1.bf16.msra.mxu0 0
  %848 = vmatprep.subr.bf16.mxu0 0
  %849 = vmatpush1.bf16.msra.mxu0 0
  %850 = vmatprep.subr.bf16.mxu0 0
  %851 = vmatpush1.bf16.msra.mxu0 0
  %852 = vmatprep.subr.bf16.mxu0 0
  %853 = vmatpush1.bf16.msra.mxu0 0
  %854 = vmatprep.subr.bf16.mxu0 0
  %855 = vmatpush1.bf16.msra.mxu0 0
  %856 = vmatprep.subr.bf16.mxu0 0
  %857 = vmatpush1.bf16.msra.mxu0 0
  %858 = vmatprep.subr.bf16.mxu0 0
  %859 = vmatpush1.bf16.msra.mxu0 0
  %860 = vmatprep.mubr.bf16.mxu0 0
  %861 = vmatmul.mubr.bf16.gmra.mrb[0].mxu0 %v817
  %v862 = vpop.f32.mrb[0].mxu0
  %v863 = vadd.f32 0.0, %v862
  %v864 = vpop.f32.mrb[0].mxu0
  %v865 = vpop.f32.mrb[0].mxu0
  %v866 = vadd.f32 0.0, %v865
  %v867 = vpop.f32.mrb[0].mxu0
  %868 = vmatprep.mubr.bf16.mxu0 0
  %869 = vmatmul.mubr.bf16.gmra.mrb[0].mxu0 %v820
  %v870 = vpop.f32.mrb[0].mxu0
  %v871 = vadd.f32 0.0, %v870
  %v872 = vpop.f32.mrb[0].mxu0
  %v873 = vpop.f32.mrb[0].mxu0
  %v874 = vadd.f32 0.0, %v873
  %v875 = vpop.f32.mrb[0].mxu0
  %876 = vmatprep.mubr.bf16.mxu0 0
  %877 = vmatmul.mubr.bf16.gmra.mrb[0].mxu0 %v823
  %v878 = vpop.f32.mrb[0].mxu0
  %v879 = vadd.f32 0.0, %v878
  %v880 = vpop.f32.mrb[0].mxu0
  %v881 = vpop.f32.mrb[0].mxu0
  %v882 = vadd.f32 0.0, %v881
  %v883 = vpop.f32.mrb[0].mxu0
  %884 = vmatprep.mubr.bf16.mxu0 0
  %885 = vmatmul.mubr.bf16.gmra.mrb[0].mxu0 %v826
  %v886 = vpop.f32.mrb[0].mxu0
  %v887 = vadd.f32 0.0, %v886
  %v888 = vpop.f32.mrb[0].mxu0
  %v889 = vpop.f32.mrb[0].mxu0
  %v890 = vadd.f32 0.0, %v889
  %v891 = vpop.f32.mrb[0].mxu0
  %892 = vdwg.mxu0
  %v893 = vsel %vm180, %v863, 0.0
  %894 = vadd.xlane.f32.xlu0 %v893
  %v895 = vpop.xlane.xlu0 %894
  %v896 = vsel %vm180, %v866, 0.0
  %897 = vadd.xlane.f32.xlu0 %v896
  %v898 = vpop.xlane.xlu0 %897
  %v899 = vsel %vm180, %v871, 0.0
  %900 = vadd.xlane.f32.xlu0 %v899
  %v901 = vpop.xlane.xlu0 %900
  %v902 = vsel %vm180, %v874, 0.0
  %903 = vadd.xlane.f32.xlu0 %v902
  %v904 = vpop.xlane.xlu0 %903
  %v905 = vsel %vm180, %v879, 0.0
  %906 = vadd.xlane.f32.xlu0 %v905
  %v907 = vpop.xlane.xlu0 %906
  %v908 = vsel %vm180, %v882, 0.0
  %909 = vadd.xlane.f32.xlu0 %v908
  %v910 = vpop.xlane.xlu0 %909
  %v911 = vsel %vm180, %v887, 0.0
  %912 = vadd.xlane.f32.xlu0 %v911
  %v913 = vpop.xlane.xlu0 %912
  %v914 = vsel %vm180, %v890, 0.0
  %915 = vadd.xlane.f32.xlu0 %v914
  %v916 = vpop.xlane.xlu0 %915
  %v917 = vadd.f32 %v739, %v895
  %v918 = vadd.f32 %v740, %v898
  %v919 = vadd.f32 %v741, %v901
  %v920 = vadd.f32 %v742, %v904
  %v921 = vadd.f32 %v743, %v907
  %v922 = vadd.f32 %v744, %v910
  %v923 = vadd.f32 %v745, %v913
  %v924 = vadd.f32 %v746, %v916
  %v925 = vmul.f32 %v863, %v863
  %v926 = vmul.f32 %v866, %v866
  %v927 = vmul.f32 %v871, %v871
  %v928 = vmul.f32 %v874, %v874
  %v929 = vmul.f32 %v879, %v879
  %v930 = vmul.f32 %v882, %v882
  %v931 = vmul.f32 %v887, %v887
  %v932 = vmul.f32 %v890, %v890
  %v933 = vsel %vm180, %v925, 0.0
  %934 = vadd.xlane.f32.xlu0 %v933
  %v935 = vpop.xlane.xlu0 %934
  %v936 = vsel %vm180, %v926, 0.0
  %937 = vadd.xlane.f32.xlu0 %v936
  %v938 = vpop.xlane.xlu0 %937
  %v939 = vsel %vm180, %v927, 0.0
  %940 = vadd.xlane.f32.xlu0 %v939
  %v941 = vpop.xlane.xlu0 %940
  %v942 = vsel %vm180, %v928, 0.0
  %943 = vadd.xlane.f32.xlu0 %v942
  %v944 = vpop.xlane.xlu0 %943
  %v945 = vsel %vm180, %v929, 0.0
  %946 = vadd.xlane.f32.xlu0 %v945
  %v947 = vpop.xlane.xlu0 %946
  %v948 = vsel %vm180, %v930, 0.0
  %949 = vadd.xlane.f32.xlu0 %v948
  %v950 = vpop.xlane.xlu0 %949
  %v951 = vsel %vm180, %v931, 0.0
  %952 = vadd.xlane.f32.xlu0 %v951
  %v953 = vpop.xlane.xlu0 %952
  %v954 = vsel %vm180, %v932, 0.0
  %955 = vadd.xlane.f32.xlu0 %v954
  %v956 = vpop.xlane.xlu0 %955
  %v957 = vadd.f32 %v779, %v935
  %v958 = vadd.f32 %v780, %v938
  %v959 = vadd.f32 %v781, %v941
  %v960 = vadd.f32 %v782, %v944
  %v961 = vadd.f32 %v783, %v947
  %v962 = vadd.f32 %v784, %v950
  %v963 = vadd.f32 %v785, %v953
  %v964 = vadd.f32 %v786, %v956
  %s965 = scalar_lea.vmem %s1, 160
  %v966 = vld [vmem:[%s965] sm:$0xf]
  %v967 = vld [vmem:[%s965 + $0x4] sm:$0xf]
  %v968 = vld [vmem:[%s965 + $0x8] sm:$0xf]
  %v969 = vld [vmem:[%s965 + $0xc] sm:$0xf]
  %v970 = vld [vmem:[%s965 + $0x10] sm:$0xf]
  %v971 = vld [vmem:[%s965 + $0x14] sm:$0xf]
  %v972 = vld [vmem:[%s965 + $0x18] sm:$0xf]
  %v973 = vld [vmem:[%s965 + $0x1c] sm:$0xf]
  %v982 = vunpack.c.l.b16 %v966
  %v983 = vunpack.c.l.b16 %v967
  %v984 = vunpack.c.l.b16 %v968
  %v985 = vunpack.c.l.b16 %v969
  %v986 = vunpack.c.l.b16 %v970
  %v987 = vunpack.c.l.b16 %v971
  %v988 = vunpack.c.l.b16 %v972
  %v989 = vunpack.c.l.b16 %v973
  %v990 = vpack.c.b16 %v983, %v982
  %v991 = vpack.c.b16 %v985, %v984
  %v992 = vpack.c.b16 %v987, %v986
  %v993 = vpack.c.b16 %v989, %v988
  %v995 = vsel %vm98, %v990, 0
  %v998 = vsel %vm98, %v991, 0
  %v1001 = vsel %vm98, %v992, 0
  %v1004 = vsel %vm98, %v993, 0
  %1006 = vmatprep.subr.bf16.mxu0 0
  %1007 = vmatpush1.bf16.msra.mxu0 %v85
  %1008 = vmatprep.subr.bf16.mxu0 0
  %1009 = vmatpush1.bf16.msra.mxu0 %v86
  %1010 = vmatprep.subr.bf16.mxu0 0
  %1011 = vmatpush1.bf16.msra.mxu0 %v87
  %1012 = vmatprep.subr.bf16.mxu0 0
  %1013 = vmatpush1.bf16.msra.mxu0 %v88
  %1014 = vmatprep.subr.bf16.mxu0 0
  %1015 = vmatpush1.bf16.msra.mxu0 %v89
  %1016 = vmatprep.subr.bf16.mxu0 0
  %1017 = vmatpush1.bf16.msra.mxu0 %v90
  %1018 = vmatprep.subr.bf16.mxu0 0
  %1019 = vmatpush1.bf16.msra.mxu0 %v113
  %1020 = vmatprep.subr.bf16.mxu0 0
  %1021 = vmatpush1.bf16.msra.mxu0 0
  %1022 = vmatprep.subr.bf16.mxu0 0
  %1023 = vmatpush1.bf16.msra.mxu0 0
  %1024 = vmatprep.subr.bf16.mxu0 0
  %1025 = vmatpush1.bf16.msra.mxu0 0
  %1026 = vmatprep.subr.bf16.mxu0 0
  %1027 = vmatpush1.bf16.msra.mxu0 0
  %1028 = vmatprep.subr.bf16.mxu0 0
  %1029 = vmatpush1.bf16.msra.mxu0 0
  %1030 = vmatprep.subr.bf16.mxu0 0
  %1031 = vmatpush1.bf16.msra.mxu0 0
  %1032 = vmatprep.subr.bf16.mxu0 0
  %1033 = vmatpush1.bf16.msra.mxu0 0
  %1034 = vmatprep.subr.bf16.mxu0 0
  %1035 = vmatpush1.bf16.msra.mxu0 0
  %1036 = vmatprep.subr.bf16.mxu0 0
  %1037 = vmatpush1.bf16.msra.mxu0 0
  %1038 = vmatprep.mubr.bf16.mxu0 0
  %1039 = vmatmul.mubr.bf16.gmra.mrb[0].mxu0 %v995
  %v1040 = vpop.f32.mrb[0].mxu0
  %v1041 = vadd.f32 0.0, %v1040
  %v1042 = vpop.f32.mrb[0].mxu0
  %v1043 = vpop.f32.mrb[0].mxu0
  %v1044 = vadd.f32 0.0, %v1043
  %v1045 = vpop.f32.mrb[0].mxu0
  %1046 = vmatprep.mubr.bf16.mxu0 0
  %1047 = vmatmul.mubr.bf16.gmra.mrb[0].mxu0 %v998
  %v1048 = vpop.f32.mrb[0].mxu0
  %v1049 = vadd.f32 0.0, %v1048
  %v1050 = vpop.f32.mrb[0].mxu0
  %v1051 = vpop.f32.mrb[0].mxu0
  %v1052 = vadd.f32 0.0, %v1051
  %v1053 = vpop.f32.mrb[0].mxu0
  %1054 = vmatprep.mubr.bf16.mxu0 0
  %1055 = vmatmul.mubr.bf16.gmra.mrb[0].mxu0 %v1001
  %v1056 = vpop.f32.mrb[0].mxu0
  %v1057 = vadd.f32 0.0, %v1056
  %v1058 = vpop.f32.mrb[0].mxu0
  %v1059 = vpop.f32.mrb[0].mxu0
  %v1060 = vadd.f32 0.0, %v1059
  %v1061 = vpop.f32.mrb[0].mxu0
  %1062 = vmatprep.mubr.bf16.mxu0 0
  %1063 = vmatmul.mubr.bf16.gmra.mrb[0].mxu0 %v1004
  %v1064 = vpop.f32.mrb[0].mxu0
  %v1065 = vadd.f32 0.0, %v1064
  %v1066 = vpop.f32.mrb[0].mxu0
  %v1067 = vpop.f32.mrb[0].mxu0
  %v1068 = vadd.f32 0.0, %v1067
  %v1069 = vpop.f32.mrb[0].mxu0
  %1070 = vdwg.mxu0
  %v1071 = vsel %vm180, %v1041, 0.0
  %1072 = vadd.xlane.f32.xlu0 %v1071
  %v1073 = vpop.xlane.xlu0 %1072
  %v1074 = vsel %vm180, %v1044, 0.0
  %1075 = vadd.xlane.f32.xlu0 %v1074
  %v1076 = vpop.xlane.xlu0 %1075
  %v1077 = vsel %vm180, %v1049, 0.0
  %1078 = vadd.xlane.f32.xlu0 %v1077
  %v1079 = vpop.xlane.xlu0 %1078
  %v1080 = vsel %vm180, %v1052, 0.0
  %1081 = vadd.xlane.f32.xlu0 %v1080
  %v1082 = vpop.xlane.xlu0 %1081
  %v1083 = vsel %vm180, %v1057, 0.0
  %1084 = vadd.xlane.f32.xlu0 %v1083
  %v1085 = vpop.xlane.xlu0 %1084
  %v1086 = vsel %vm180, %v1060, 0.0
  %1087 = vadd.xlane.f32.xlu0 %v1086
  %v1088 = vpop.xlane.xlu0 %1087
  %v1089 = vsel %vm180, %v1065, 0.0
  %1090 = vadd.xlane.f32.xlu0 %v1089
  %v1091 = vpop.xlane.xlu0 %1090
  %v1092 = vsel %vm180, %v1068, 0.0
  %1093 = vadd.xlane.f32.xlu0 %v1092
  %v1094 = vpop.xlane.xlu0 %1093
  %v1095 = vadd.f32 %v917, %v1073
  %v1096 = vadd.f32 %v918, %v1076
  %v1097 = vadd.f32 %v919, %v1079
  %v1098 = vadd.f32 %v920, %v1082
  %v1099 = vadd.f32 %v921, %v1085
  %v1100 = vadd.f32 %v922, %v1088
  %v1101 = vadd.f32 %v923, %v1091
  %v1102 = vadd.f32 %v924, %v1094
  %v1103 = vmul.f32 %v1041, %v1041
  %v1104 = vmul.f32 %v1044, %v1044
  %v1105 = vmul.f32 %v1049, %v1049
  %v1106 = vmul.f32 %v1052, %v1052
  %v1107 = vmul.f32 %v1057, %v1057
  %v1108 = vmul.f32 %v1060, %v1060
  %v1109 = vmul.f32 %v1065, %v1065
  %v1110 = vmul.f32 %v1068, %v1068
  %v1111 = vsel %vm180, %v1103, 0.0
  %1112 = vadd.xlane.f32.xlu0 %v1111
  %v1113 = vpop.xlane.xlu0 %1112
  %v1114 = vsel %vm180, %v1104, 0.0
  %1115 = vadd.xlane.f32.xlu0 %v1114
  %v1116 = vpop.xlane.xlu0 %1115
  %v1117 = vsel %vm180, %v1105, 0.0
  %1118 = vadd.xlane.f32.xlu0 %v1117
  %v1119 = vpop.xlane.xlu0 %1118
  %v1120 = vsel %vm180, %v1106, 0.0
  %1121 = vadd.xlane.f32.xlu0 %v1120
  %v1122 = vpop.xlane.xlu0 %1121
  %v1123 = vsel %vm180, %v1107, 0.0
  %1124 = vadd.xlane.f32.xlu0 %v1123
  %v1125 = vpop.xlane.xlu0 %1124
  %v1126 = vsel %vm180, %v1108, 0.0
  %1127 = vadd.xlane.f32.xlu0 %v1126
  %v1128 = vpop.xlane.xlu0 %1127
  %v1129 = vsel %vm180, %v1109, 0.0
  %1130 = vadd.xlane.f32.xlu0 %v1129
  %v1131 = vpop.xlane.xlu0 %1130
  %v1132 = vsel %vm180, %v1110, 0.0
  %1133 = vadd.xlane.f32.xlu0 %v1132
  %v1134 = vpop.xlane.xlu0 %1133
  %v1135 = vadd.f32 %v957, %v1113
  %v1136 = vadd.f32 %v958, %v1116
  %v1137 = vadd.f32 %v959, %v1119
  %v1138 = vadd.f32 %v960, %v1122
  %v1139 = vadd.f32 %v961, %v1125
  %v1140 = vadd.f32 %v962, %v1128
  %v1141 = vadd.f32 %v963, %v1131
  %v1142 = vadd.f32 %v964, %v1134
  %s1143 = scalar_lea.vmem %s1, 192
  %v1144 = vld [vmem:[%s1143] sm:$0xf]
  %v1145 = vld [vmem:[%s1143 + $0x4] sm:$0xf]
  %v1146 = vld [vmem:[%s1143 + $0x8] sm:$0xf]
  %v1147 = vld [vmem:[%s1143 + $0xc] sm:$0xf]
  %v1148 = vld [vmem:[%s1143 + $0x10] sm:$0xf]
  %v1149 = vld [vmem:[%s1143 + $0x14] sm:$0xf]
  %v1150 = vld [vmem:[%s1143 + $0x18] sm:$0xf]
  %v1151 = vld [vmem:[%s1143 + $0x1c] sm:$0xf]
  %v1160 = vunpack.c.l.b16 %v1144
  %v1161 = vunpack.c.l.b16 %v1145
  %v1162 = vunpack.c.l.b16 %v1146
  %v1163 = vunpack.c.l.b16 %v1147
  %v1164 = vunpack.c.l.b16 %v1148
  %v1165 = vunpack.c.l.b16 %v1149
  %v1166 = vunpack.c.l.b16 %v1150
  %v1167 = vunpack.c.l.b16 %v1151
  %v1168 = vpack.c.b16 %v1161, %v1160
  %v1169 = vpack.c.b16 %v1163, %v1162
  %v1170 = vpack.c.b16 %v1165, %v1164
  %v1171 = vpack.c.b16 %v1167, %v1166
  %v1173 = vsel %vm98, %v1168, 0
  %v1176 = vsel %vm98, %v1169, 0
  %v1179 = vsel %vm98, %v1170, 0
  %v1182 = vsel %vm98, %v1171, 0
  %1184 = vmatprep.subr.bf16.mxu0 0
  %1185 = vmatpush1.bf16.msra.mxu0 %v85
  %1186 = vmatprep.subr.bf16.mxu0 0
  %1187 = vmatpush1.bf16.msra.mxu0 %v86
  %1188 = vmatprep.subr.bf16.mxu0 0
  %1189 = vmatpush1.bf16.msra.mxu0 %v87
  %1190 = vmatprep.subr.bf16.mxu0 0
  %1191 = vmatpush1.bf16.msra.mxu0 %v88
  %1192 = vmatprep.subr.bf16.mxu0 0
  %1193 = vmatpush1.bf16.msra.mxu0 %v89
  %1194 = vmatprep.subr.bf16.mxu0 0
  %1195 = vmatpush1.bf16.msra.mxu0 %v90
  %1196 = vmatprep.subr.bf16.mxu0 0
  %1197 = vmatpush1.bf16.msra.mxu0 %v113
  %1198 = vmatprep.subr.bf16.mxu0 0
  %1199 = vmatpush1.bf16.msra.mxu0 0
  %1200 = vmatprep.subr.bf16.mxu0 0
  %1201 = vmatpush1.bf16.msra.mxu0 0
  %1202 = vmatprep.subr.bf16.mxu0 0
  %1203 = vmatpush1.bf16.msra.mxu0 0
  %1204 = vmatprep.subr.bf16.mxu0 0
  %1205 = vmatpush1.bf16.msra.mxu0 0
  %1206 = vmatprep.subr.bf16.mxu0 0
  %1207 = vmatpush1.bf16.msra.mxu0 0
  %1208 = vmatprep.subr.bf16.mxu0 0
  %1209 = vmatpush1.bf16.msra.mxu0 0
  %1210 = vmatprep.subr.bf16.mxu0 0
  %1211 = vmatpush1.bf16.msra.mxu0 0
  %1212 = vmatprep.subr.bf16.mxu0 0
  %1213 = vmatpush1.bf16.msra.mxu0 0
  %1214 = vmatprep.subr.bf16.mxu0 0
  %1215 = vmatpush1.bf16.msra.mxu0 0
  %1216 = vmatprep.mubr.bf16.mxu0 0
  %1217 = vmatmul.mubr.bf16.gmra.mrb[0].mxu0 %v1173
  %v1218 = vpop.f32.mrb[0].mxu0
  %v1219 = vadd.f32 0.0, %v1218
  %v1220 = vpop.f32.mrb[0].mxu0
  %v1221 = vpop.f32.mrb[0].mxu0
  %v1222 = vadd.f32 0.0, %v1221
  %v1223 = vpop.f32.mrb[0].mxu0
  %1224 = vmatprep.mubr.bf16.mxu0 0
  %1225 = vmatmul.mubr.bf16.gmra.mrb[0].mxu0 %v1176
  %v1226 = vpop.f32.mrb[0].mxu0
  %v1227 = vadd.f32 0.0, %v1226
  %v1228 = vpop.f32.mrb[0].mxu0
  %v1229 = vpop.f32.mrb[0].mxu0
  %v1230 = vadd.f32 0.0, %v1229
  %v1231 = vpop.f32.mrb[0].mxu0
  %1232 = vmatprep.mubr.bf16.mxu0 0
  %1233 = vmatmul.mubr.bf16.gmra.mrb[0].mxu0 %v1179
  %v1234 = vpop.f32.mrb[0].mxu0
  %v1235 = vadd.f32 0.0, %v1234
  %v1236 = vpop.f32.mrb[0].mxu0
  %v1237 = vpop.f32.mrb[0].mxu0
  %v1238 = vadd.f32 0.0, %v1237
  %v1239 = vpop.f32.mrb[0].mxu0
  %1240 = vmatprep.mubr.bf16.mxu0 0
  %1241 = vmatmul.mubr.bf16.gmra.mrb[0].mxu0 %v1182
  %v1242 = vpop.f32.mrb[0].mxu0
  %v1243 = vadd.f32 0.0, %v1242
  %v1244 = vpop.f32.mrb[0].mxu0
  %v1245 = vpop.f32.mrb[0].mxu0
  %v1246 = vadd.f32 0.0, %v1245
  %v1247 = vpop.f32.mrb[0].mxu0
  %1248 = vdwg.mxu0
  %v1249 = vsel %vm180, %v1219, 0.0
  %1250 = vadd.xlane.f32.xlu0 %v1249
  %v1251 = vpop.xlane.xlu0 %1250
  %v1252 = vsel %vm180, %v1222, 0.0
  %1253 = vadd.xlane.f32.xlu0 %v1252
  %v1254 = vpop.xlane.xlu0 %1253
  %v1255 = vsel %vm180, %v1227, 0.0
  %1256 = vadd.xlane.f32.xlu0 %v1255
  %v1257 = vpop.xlane.xlu0 %1256
  %v1258 = vsel %vm180, %v1230, 0.0
  %1259 = vadd.xlane.f32.xlu0 %v1258
  %v1260 = vpop.xlane.xlu0 %1259
  %v1261 = vsel %vm180, %v1235, 0.0
  %1262 = vadd.xlane.f32.xlu0 %v1261
  %v1263 = vpop.xlane.xlu0 %1262
  %v1264 = vsel %vm180, %v1238, 0.0
  %1265 = vadd.xlane.f32.xlu0 %v1264
  %v1266 = vpop.xlane.xlu0 %1265
  %v1267 = vsel %vm180, %v1243, 0.0
  %1268 = vadd.xlane.f32.xlu0 %v1267
  %v1269 = vpop.xlane.xlu0 %1268
  %v1270 = vsel %vm180, %v1246, 0.0
  %1271 = vadd.xlane.f32.xlu0 %v1270
  %v1272 = vpop.xlane.xlu0 %1271
  %v1273 = vadd.f32 %v1095, %v1251
  %v1274 = vadd.f32 %v1096, %v1254
  %v1275 = vadd.f32 %v1097, %v1257
  %v1276 = vadd.f32 %v1098, %v1260
  %v1277 = vadd.f32 %v1099, %v1263
  %v1278 = vadd.f32 %v1100, %v1266
  %v1279 = vadd.f32 %v1101, %v1269
  %v1280 = vadd.f32 %v1102, %v1272
  %v1281 = vmul.f32 %v1219, %v1219
  %v1282 = vmul.f32 %v1222, %v1222
  %v1283 = vmul.f32 %v1227, %v1227
  %v1284 = vmul.f32 %v1230, %v1230
  %v1285 = vmul.f32 %v1235, %v1235
  %v1286 = vmul.f32 %v1238, %v1238
  %v1287 = vmul.f32 %v1243, %v1243
  %v1288 = vmul.f32 %v1246, %v1246
  %v1289 = vsel %vm180, %v1281, 0.0
  %1290 = vadd.xlane.f32.xlu0 %v1289
  %v1291 = vpop.xlane.xlu0 %1290
  %v1292 = vsel %vm180, %v1282, 0.0
  %1293 = vadd.xlane.f32.xlu0 %v1292
  %v1294 = vpop.xlane.xlu0 %1293
  %v1295 = vsel %vm180, %v1283, 0.0
  %1296 = vadd.xlane.f32.xlu0 %v1295
  %v1297 = vpop.xlane.xlu0 %1296
  %v1298 = vsel %vm180, %v1284, 0.0
  %1299 = vadd.xlane.f32.xlu0 %v1298
  %v1300 = vpop.xlane.xlu0 %1299
  %v1301 = vsel %vm180, %v1285, 0.0
  %1302 = vadd.xlane.f32.xlu0 %v1301
  %v1303 = vpop.xlane.xlu0 %1302
  %v1304 = vsel %vm180, %v1286, 0.0
  %1305 = vadd.xlane.f32.xlu0 %v1304
  %v1306 = vpop.xlane.xlu0 %1305
  %v1307 = vsel %vm180, %v1287, 0.0
  %1308 = vadd.xlane.f32.xlu0 %v1307
  %v1309 = vpop.xlane.xlu0 %1308
  %v1310 = vsel %vm180, %v1288, 0.0
  %1311 = vadd.xlane.f32.xlu0 %v1310
  %v1312 = vpop.xlane.xlu0 %1311
  %v1313 = vadd.f32 %v1135, %v1291
  %v1314 = vadd.f32 %v1136, %v1294
  %v1315 = vadd.f32 %v1137, %v1297
  %v1316 = vadd.f32 %v1138, %v1300
  %v1317 = vadd.f32 %v1139, %v1303
  %v1318 = vadd.f32 %v1140, %v1306
  %v1319 = vadd.f32 %v1141, %v1309
  %v1320 = vadd.f32 %v1142, %v1312
  %s1321 = scalar_lea.vmem %s1, 224
  %v1322 = vld [vmem:[%s1321] sm:$0xf]
  %v1323 = vld [vmem:[%s1321 + $0x4] sm:$0xf]
  %v1324 = vld [vmem:[%s1321 + $0x8] sm:$0xf]
  %v1325 = vld [vmem:[%s1321 + $0xc] sm:$0xf]
  %v1326 = vld [vmem:[%s1321 + $0x10] sm:$0xf]
  %v1327 = vld [vmem:[%s1321 + $0x14] sm:$0xf]
  %v1328 = vld [vmem:[%s1321 + $0x18] sm:$0xf]
  %v1329 = vld [vmem:[%s1321 + $0x1c] sm:$0xf]
  %v1338 = vunpack.c.l.b16 %v1322
  %v1339 = vunpack.c.l.b16 %v1323
  %v1340 = vunpack.c.l.b16 %v1324
  %v1341 = vunpack.c.l.b16 %v1325
  %v1342 = vunpack.c.l.b16 %v1326
  %v1343 = vunpack.c.l.b16 %v1327
  %v1344 = vunpack.c.l.b16 %v1328
  %v1345 = vunpack.c.l.b16 %v1329
  %v1346 = vpack.c.b16 %v1339, %v1338
  %v1347 = vpack.c.b16 %v1341, %v1340
  %v1348 = vpack.c.b16 %v1343, %v1342
  %v1349 = vpack.c.b16 %v1345, %v1344
  %v1351 = vsel %vm98, %v1346, 0
  %v1354 = vsel %vm98, %v1347, 0
  %v1357 = vsel %vm98, %v1348, 0
  %v1360 = vsel %vm98, %v1349, 0
  %1362 = vmatprep.subr.bf16.mxu0 0
  %1363 = vmatpush1.bf16.msra.mxu0 %v85
  %1364 = vmatprep.subr.bf16.mxu0 0
  %1365 = vmatpush1.bf16.msra.mxu0 %v86
  %1366 = vmatprep.subr.bf16.mxu0 0
  %1367 = vmatpush1.bf16.msra.mxu0 %v87
  %1368 = vmatprep.subr.bf16.mxu0 0
  %1369 = vmatpush1.bf16.msra.mxu0 %v88
  %1370 = vmatprep.subr.bf16.mxu0 0
  %1371 = vmatpush1.bf16.msra.mxu0 %v89
  %1372 = vmatprep.subr.bf16.mxu0 0
  %1373 = vmatpush1.bf16.msra.mxu0 %v90
  %1374 = vmatprep.subr.bf16.mxu0 0
  %1375 = vmatpush1.bf16.msra.mxu0 %v113
  %1376 = vmatprep.subr.bf16.mxu0 0
  %1377 = vmatpush1.bf16.msra.mxu0 0
  %1378 = vmatprep.subr.bf16.mxu0 0
  %1379 = vmatpush1.bf16.msra.mxu0 0
  %1380 = vmatprep.subr.bf16.mxu0 0
  %1381 = vmatpush1.bf16.msra.mxu0 0
  %1382 = vmatprep.subr.bf16.mxu0 0
  %1383 = vmatpush1.bf16.msra.mxu0 0
  %1384 = vmatprep.subr.bf16.mxu0 0
  %1385 = vmatpush1.bf16.msra.mxu0 0
  %1386 = vmatprep.subr.bf16.mxu0 0
  %1387 = vmatpush1.bf16.msra.mxu0 0
  %1388 = vmatprep.subr.bf16.mxu0 0
  %1389 = vmatpush1.bf16.msra.mxu0 0
  %1390 = vmatprep.subr.bf16.mxu0 0
  %1391 = vmatpush1.bf16.msra.mxu0 0
  %1392 = vmatprep.subr.bf16.mxu0 0
  %1393 = vmatpush1.bf16.msra.mxu0 0
  %1394 = vmatprep.mubr.bf16.mxu0 0
  %1395 = vmatmul.mubr.bf16.gmra.mrb[0].mxu0 %v1351
  %v1396 = vpop.f32.mrb[0].mxu0
  %v1397 = vadd.f32 0.0, %v1396
  %v1398 = vpop.f32.mrb[0].mxu0
  %v1399 = vpop.f32.mrb[0].mxu0
  %v1400 = vadd.f32 0.0, %v1399
  %v1401 = vpop.f32.mrb[0].mxu0
  %1402 = vmatprep.mubr.bf16.mxu0 0
  %1403 = vmatmul.mubr.bf16.gmra.mrb[0].mxu0 %v1354
  %v1404 = vpop.f32.mrb[0].mxu0
  %v1405 = vadd.f32 0.0, %v1404
  %v1406 = vpop.f32.mrb[0].mxu0
  %v1407 = vpop.f32.mrb[0].mxu0
  %v1408 = vadd.f32 0.0, %v1407
  %v1409 = vpop.f32.mrb[0].mxu0
  %1410 = vmatprep.mubr.bf16.mxu0 0
  %1411 = vmatmul.mubr.bf16.gmra.mrb[0].mxu0 %v1357
  %v1412 = vpop.f32.mrb[0].mxu0
  %v1413 = vadd.f32 0.0, %v1412
  %v1414 = vpop.f32.mrb[0].mxu0
  %v1415 = vpop.f32.mrb[0].mxu0
  %v1416 = vadd.f32 0.0, %v1415
  %v1417 = vpop.f32.mrb[0].mxu0
  %1418 = vmatprep.mubr.bf16.mxu0 0
  %1419 = vmatmul.mubr.bf16.gmra.mrb[0].mxu0 %v1360
  %v1420 = vpop.f32.mrb[0].mxu0
  %v1421 = vadd.f32 0.0, %v1420
  %v1422 = vpop.f32.mrb[0].mxu0
  %v1423 = vpop.f32.mrb[0].mxu0
  %v1424 = vadd.f32 0.0, %v1423
  %v1425 = vpop.f32.mrb[0].mxu0
  %1426 = vdwg.mxu0
  %v1427 = vsel %vm180, %v1397, 0.0
  %1428 = vadd.xlane.f32.xlu0 %v1427
  %v1429 = vpop.xlane.xlu0 %1428
  %v1430 = vsel %vm180, %v1400, 0.0
  %1431 = vadd.xlane.f32.xlu0 %v1430
  %v1432 = vpop.xlane.xlu0 %1431
  %v1433 = vsel %vm180, %v1405, 0.0
  %1434 = vadd.xlane.f32.xlu0 %v1433
  %v1435 = vpop.xlane.xlu0 %1434
  %v1436 = vsel %vm180, %v1408, 0.0
  %1437 = vadd.xlane.f32.xlu0 %v1436
  %v1438 = vpop.xlane.xlu0 %1437
  %v1439 = vsel %vm180, %v1413, 0.0
  %1440 = vadd.xlane.f32.xlu0 %v1439
  %v1441 = vpop.xlane.xlu0 %1440
  %v1442 = vsel %vm180, %v1416, 0.0
  %1443 = vadd.xlane.f32.xlu0 %v1442
  %v1444 = vpop.xlane.xlu0 %1443
  %v1445 = vsel %vm180, %v1421, 0.0
  %1446 = vadd.xlane.f32.xlu0 %v1445
  %v1447 = vpop.xlane.xlu0 %1446
  %v1448 = vsel %vm180, %v1424, 0.0
  %1449 = vadd.xlane.f32.xlu0 %v1448
  %v1450 = vpop.xlane.xlu0 %1449
  %v1451 = vadd.f32 %v1273, %v1429
  %v1452 = vadd.f32 %v1274, %v1432
  %v1453 = vadd.f32 %v1275, %v1435
  %v1454 = vadd.f32 %v1276, %v1438
  %v1455 = vadd.f32 %v1277, %v1441
  %v1456 = vadd.f32 %v1278, %v1444
  %v1457 = vadd.f32 %v1279, %v1447
  %v1458 = vadd.f32 %v1280, %v1450
  %v1459 = vmul.f32 %v1397, %v1397
  %v1460 = vmul.f32 %v1400, %v1400
  %v1461 = vmul.f32 %v1405, %v1405
  %v1462 = vmul.f32 %v1408, %v1408
  %v1463 = vmul.f32 %v1413, %v1413
  %v1464 = vmul.f32 %v1416, %v1416
  %v1465 = vmul.f32 %v1421, %v1421
  %v1466 = vmul.f32 %v1424, %v1424
  %v1467 = vsel %vm180, %v1459, 0.0
  %1468 = vadd.xlane.f32.xlu0 %v1467
  %v1469 = vpop.xlane.xlu0 %1468
  %v1470 = vsel %vm180, %v1460, 0.0
  %1471 = vadd.xlane.f32.xlu0 %v1470
  %v1472 = vpop.xlane.xlu0 %1471
  %v1473 = vsel %vm180, %v1461, 0.0
  %1474 = vadd.xlane.f32.xlu0 %v1473
  %v1475 = vpop.xlane.xlu0 %1474
  %v1476 = vsel %vm180, %v1462, 0.0
  %1477 = vadd.xlane.f32.xlu0 %v1476
  %v1478 = vpop.xlane.xlu0 %1477
  %v1479 = vsel %vm180, %v1463, 0.0
  %1480 = vadd.xlane.f32.xlu0 %v1479
  %v1481 = vpop.xlane.xlu0 %1480
  %v1482 = vsel %vm180, %v1464, 0.0
  %1483 = vadd.xlane.f32.xlu0 %v1482
  %v1484 = vpop.xlane.xlu0 %1483
  %v1485 = vsel %vm180, %v1465, 0.0
  %1486 = vadd.xlane.f32.xlu0 %v1485
  %v1487 = vpop.xlane.xlu0 %1486
  %v1488 = vsel %vm180, %v1466, 0.0
  %1489 = vadd.xlane.f32.xlu0 %v1488
  %v1490 = vpop.xlane.xlu0 %1489
  %v1491 = vadd.f32 %v1313, %v1469
  %v1492 = vadd.f32 %v1314, %v1472
  %v1493 = vadd.f32 %v1315, %v1475
  %v1494 = vadd.f32 %v1316, %v1478
  %v1495 = vadd.f32 %v1317, %v1481
  %v1496 = vadd.f32 %v1318, %v1484
  %v1497 = vadd.f32 %v1319, %v1487
  %v1498 = vadd.f32 %v1320, %v1490
  %s1499 = scalar_lea.vmem %s1, 256
  %v1500 = vld [vmem:[%s1499] sm:$0xf]
  %v1501 = vld [vmem:[%s1499 + $0x4] sm:$0xf]
  %v1502 = vld [vmem:[%s1499 + $0x8] sm:$0xf]
  %v1503 = vld [vmem:[%s1499 + $0xc] sm:$0xf]
  %v1504 = vld [vmem:[%s1499 + $0x10] sm:$0xf]
  %v1505 = vld [vmem:[%s1499 + $0x14] sm:$0xf]
  %v1506 = vld [vmem:[%s1499 + $0x18] sm:$0xf]
  %v1507 = vld [vmem:[%s1499 + $0x1c] sm:$0xf]
  %v1516 = vunpack.c.l.b16 %v1500
  %v1517 = vunpack.c.l.b16 %v1501
  %v1518 = vunpack.c.l.b16 %v1502
  %v1519 = vunpack.c.l.b16 %v1503
  %v1520 = vunpack.c.l.b16 %v1504
  %v1521 = vunpack.c.l.b16 %v1505
  %v1522 = vunpack.c.l.b16 %v1506
  %v1523 = vunpack.c.l.b16 %v1507
  %v1524 = vpack.c.b16 %v1517, %v1516
  %v1525 = vpack.c.b16 %v1519, %v1518
  %v1526 = vpack.c.b16 %v1521, %v1520
  %v1527 = vpack.c.b16 %v1523, %v1522
  %v1529 = vsel %vm98, %v1524, 0
  %v1532 = vsel %vm98, %v1525, 0
  %v1535 = vsel %vm98, %v1526, 0
  %v1538 = vsel %vm98, %v1527, 0
  %1540 = vmatprep.subr.bf16.mxu0 0
  %1541 = vmatpush1.bf16.msra.mxu0 %v85
  %1542 = vmatprep.subr.bf16.mxu0 0
  %1543 = vmatpush1.bf16.msra.mxu0 %v86
  %1544 = vmatprep.subr.bf16.mxu0 0
  %1545 = vmatpush1.bf16.msra.mxu0 %v87
  %1546 = vmatprep.subr.bf16.mxu0 0
  %1547 = vmatpush1.bf16.msra.mxu0 %v88
  %1548 = vmatprep.subr.bf16.mxu0 0
  %1549 = vmatpush1.bf16.msra.mxu0 %v89
  %1550 = vmatprep.subr.bf16.mxu0 0
  %1551 = vmatpush1.bf16.msra.mxu0 %v90
  %1552 = vmatprep.subr.bf16.mxu0 0
  %1553 = vmatpush1.bf16.msra.mxu0 %v113
  %1554 = vmatprep.subr.bf16.mxu0 0
  %1555 = vmatpush1.bf16.msra.mxu0 0
  %1556 = vmatprep.subr.bf16.mxu0 0
  %1557 = vmatpush1.bf16.msra.mxu0 0
  %1558 = vmatprep.subr.bf16.mxu0 0
  %1559 = vmatpush1.bf16.msra.mxu0 0
  %1560 = vmatprep.subr.bf16.mxu0 0
  %1561 = vmatpush1.bf16.msra.mxu0 0
  %1562 = vmatprep.subr.bf16.mxu0 0
  %1563 = vmatpush1.bf16.msra.mxu0 0
  %1564 = vmatprep.subr.bf16.mxu0 0
  %1565 = vmatpush1.bf16.msra.mxu0 0
  %1566 = vmatprep.subr.bf16.mxu0 0
  %1567 = vmatpush1.bf16.msra.mxu0 0
  %1568 = vmatprep.subr.bf16.mxu0 0
  %1569 = vmatpush1.bf16.msra.mxu0 0
  %1570 = vmatprep.subr.bf16.mxu0 0
  %1571 = vmatpush1.bf16.msra.mxu0 0
  %1572 = vmatprep.mubr.bf16.mxu0 0
  %1573 = vmatmul.mubr.bf16.gmra.mrb[0].mxu0 %v1529
  %v1574 = vpop.f32.mrb[0].mxu0
  %v1575 = vadd.f32 0.0, %v1574
  %v1576 = vpop.f32.mrb[0].mxu0
  %v1577 = vpop.f32.mrb[0].mxu0
  %v1578 = vadd.f32 0.0, %v1577
  %v1579 = vpop.f32.mrb[0].mxu0
  %1580 = vmatprep.mubr.bf16.mxu0 0
  %1581 = vmatmul.mubr.bf16.gmra.mrb[0].mxu0 %v1532
  %v1582 = vpop.f32.mrb[0].mxu0
  %v1583 = vadd.f32 0.0, %v1582
  %v1584 = vpop.f32.mrb[0].mxu0
  %v1585 = vpop.f32.mrb[0].mxu0
  %v1586 = vadd.f32 0.0, %v1585
  %v1587 = vpop.f32.mrb[0].mxu0
  %1588 = vmatprep.mubr.bf16.mxu0 0
  %1589 = vmatmul.mubr.bf16.gmra.mrb[0].mxu0 %v1535
  %v1590 = vpop.f32.mrb[0].mxu0
  %v1591 = vadd.f32 0.0, %v1590
  %v1592 = vpop.f32.mrb[0].mxu0
  %v1593 = vpop.f32.mrb[0].mxu0
  %v1594 = vadd.f32 0.0, %v1593
  %v1595 = vpop.f32.mrb[0].mxu0
  %1596 = vmatprep.mubr.bf16.mxu0 0
  %1597 = vmatmul.mubr.bf16.gmra.mrb[0].mxu0 %v1538
  %v1598 = vpop.f32.mrb[0].mxu0
  %v1599 = vadd.f32 0.0, %v1598
  %v1600 = vpop.f32.mrb[0].mxu0
  %v1601 = vpop.f32.mrb[0].mxu0
  %v1602 = vadd.f32 0.0, %v1601
  %v1603 = vpop.f32.mrb[0].mxu0
  %1604 = vdwg.mxu0
  %v1605 = vsel %vm180, %v1575, 0.0
  %1606 = vadd.xlane.f32.xlu0 %v1605
  %v1607 = vpop.xlane.xlu0 %1606
  %v1608 = vsel %vm180, %v1578, 0.0
  %1609 = vadd.xlane.f32.xlu0 %v1608
  %v1610 = vpop.xlane.xlu0 %1609
  %v1611 = vsel %vm180, %v1583, 0.0
  %1612 = vadd.xlane.f32.xlu0 %v1611
  %v1613 = vpop.xlane.xlu0 %1612
  %v1614 = vsel %vm180, %v1586, 0.0
  %1615 = vadd.xlane.f32.xlu0 %v1614
  %v1616 = vpop.xlane.xlu0 %1615
  %v1617 = vsel %vm180, %v1591, 0.0
  %1618 = vadd.xlane.f32.xlu0 %v1617
  %v1619 = vpop.xlane.xlu0 %1618
  %v1620 = vsel %vm180, %v1594, 0.0
  %1621 = vadd.xlane.f32.xlu0 %v1620
  %v1622 = vpop.xlane.xlu0 %1621
  %v1623 = vsel %vm180, %v1599, 0.0
  %1624 = vadd.xlane.f32.xlu0 %v1623
  %v1625 = vpop.xlane.xlu0 %1624
  %v1626 = vsel %vm180, %v1602, 0.0
  %1627 = vadd.xlane.f32.xlu0 %v1626
  %v1628 = vpop.xlane.xlu0 %1627
  %v1629 = vadd.f32 %v1451, %v1607
  %v1630 = vadd.f32 %v1452, %v1610
  %v1631 = vadd.f32 %v1453, %v1613
  %v1632 = vadd.f32 %v1454, %v1616
  %v1633 = vadd.f32 %v1455, %v1619
  %v1634 = vadd.f32 %v1456, %v1622
  %v1635 = vadd.f32 %v1457, %v1625
  %v1636 = vadd.f32 %v1458, %v1628
  %v1637 = vmul.f32 %v1575, %v1575
  %v1638 = vmul.f32 %v1578, %v1578
  %v1639 = vmul.f32 %v1583, %v1583
  %v1640 = vmul.f32 %v1586, %v1586
  %v1641 = vmul.f32 %v1591, %v1591
  %v1642 = vmul.f32 %v1594, %v1594
  %v1643 = vmul.f32 %v1599, %v1599
  %v1644 = vmul.f32 %v1602, %v1602
  %v1645 = vsel %vm180, %v1637, 0.0
  %1646 = vadd.xlane.f32.xlu0 %v1645
  %v1647 = vpop.xlane.xlu0 %1646
  %v1648 = vsel %vm180, %v1638, 0.0
  %1649 = vadd.xlane.f32.xlu0 %v1648
  %v1650 = vpop.xlane.xlu0 %1649
  %v1651 = vsel %vm180, %v1639, 0.0
  %1652 = vadd.xlane.f32.xlu0 %v1651
  %v1653 = vpop.xlane.xlu0 %1652
  %v1654 = vsel %vm180, %v1640, 0.0
  %1655 = vadd.xlane.f32.xlu0 %v1654
  %v1656 = vpop.xlane.xlu0 %1655
  %v1657 = vsel %vm180, %v1641, 0.0
  %1658 = vadd.xlane.f32.xlu0 %v1657
  %v1659 = vpop.xlane.xlu0 %1658
  %v1660 = vsel %vm180, %v1642, 0.0
  %1661 = vadd.xlane.f32.xlu0 %v1660
  %v1662 = vpop.xlane.xlu0 %1661
  %v1663 = vsel %vm180, %v1643, 0.0
  %1664 = vadd.xlane.f32.xlu0 %v1663
  %v1665 = vpop.xlane.xlu0 %1664
  %v1666 = vsel %vm180, %v1644, 0.0
  %1667 = vadd.xlane.f32.xlu0 %v1666
  %v1668 = vpop.xlane.xlu0 %1667
  %v1669 = vadd.f32 %v1491, %v1647
  %v1670 = vadd.f32 %v1492, %v1650
  %v1671 = vadd.f32 %v1493, %v1653
  %v1672 = vadd.f32 %v1494, %v1656
  %v1673 = vadd.f32 %v1495, %v1659
  %v1674 = vadd.f32 %v1496, %v1662
  %v1675 = vadd.f32 %v1497, %v1665
  %v1676 = vadd.f32 %v1498, %v1668
  %s1677 = scalar_lea.vmem %s1, 288
  %v1678 = vld [vmem:[%s1677] sm:$0xf]
  %v1679 = vld [vmem:[%s1677 + $0x4] sm:$0xf]
  %v1680 = vld [vmem:[%s1677 + $0x8] sm:$0xf]
  %v1681 = vld [vmem:[%s1677 + $0xc] sm:$0xf]
  %v1682 = vld [vmem:[%s1677 + $0x10] sm:$0xf]
  %v1683 = vld [vmem:[%s1677 + $0x14] sm:$0xf]
  %v1684 = vld [vmem:[%s1677 + $0x18] sm:$0xf]
  %v1685 = vld [vmem:[%s1677 + $0x1c] sm:$0xf]
  %v1694 = vunpack.c.l.b16 %v1678
  %v1695 = vunpack.c.l.b16 %v1679
  %v1696 = vunpack.c.l.b16 %v1680
  %v1697 = vunpack.c.l.b16 %v1681
  %v1698 = vunpack.c.l.b16 %v1682
  %v1699 = vunpack.c.l.b16 %v1683
  %v1700 = vunpack.c.l.b16 %v1684
  %v1701 = vunpack.c.l.b16 %v1685
  %v1702 = vpack.c.b16 %v1695, %v1694
  %v1703 = vpack.c.b16 %v1697, %v1696
  %v1704 = vpack.c.b16 %v1699, %v1698
  %v1705 = vpack.c.b16 %v1701, %v1700
  %v1707 = vsel %vm98, %v1702, 0
  %v1710 = vsel %vm98, %v1703, 0
  %v1713 = vsel %vm98, %v1704, 0
  %v1716 = vsel %vm98, %v1705, 0
  %1718 = vmatprep.subr.bf16.mxu0 0
  %1719 = vmatpush1.bf16.msra.mxu0 %v85
  %1720 = vmatprep.subr.bf16.mxu0 0
  %1721 = vmatpush1.bf16.msra.mxu0 %v86
  %1722 = vmatprep.subr.bf16.mxu0 0
  %1723 = vmatpush1.bf16.msra.mxu0 %v87
  %1724 = vmatprep.subr.bf16.mxu0 0
  %1725 = vmatpush1.bf16.msra.mxu0 %v88
  %1726 = vmatprep.subr.bf16.mxu0 0
  %1727 = vmatpush1.bf16.msra.mxu0 %v89
  %1728 = vmatprep.subr.bf16.mxu0 0
  %1729 = vmatpush1.bf16.msra.mxu0 %v90
  %1730 = vmatprep.subr.bf16.mxu0 0
  %1731 = vmatpush1.bf16.msra.mxu0 %v113
  %1732 = vmatprep.subr.bf16.mxu0 0
  %1733 = vmatpush1.bf16.msra.mxu0 0
  %1734 = vmatprep.subr.bf16.mxu0 0
  %1735 = vmatpush1.bf16.msra.mxu0 0
  %1736 = vmatprep.subr.bf16.mxu0 0
  %1737 = vmatpush1.bf16.msra.mxu0 0
  %1738 = vmatprep.subr.bf16.mxu0 0
  %1739 = vmatpush1.bf16.msra.mxu0 0
  %1740 = vmatprep.subr.bf16.mxu0 0
  %1741 = vmatpush1.bf16.msra.mxu0 0
  %1742 = vmatprep.subr.bf16.mxu0 0
  %1743 = vmatpush1.bf16.msra.mxu0 0
  %1744 = vmatprep.subr.bf16.mxu0 0
  %1745 = vmatpush1.bf16.msra.mxu0 0
  %1746 = vmatprep.subr.bf16.mxu0 0
  %1747 = vmatpush1.bf16.msra.mxu0 0
  %1748 = vmatprep.subr.bf16.mxu0 0
  %1749 = vmatpush1.bf16.msra.mxu0 0
  %1750 = vmatprep.mubr.bf16.mxu0 0
  %1751 = vmatmul.mubr.bf16.gmra.mrb[0].mxu0 %v1707
  %v1752 = vpop.f32.mrb[0].mxu0
  %v1753 = vadd.f32 0.0, %v1752
  %v1754 = vpop.f32.mrb[0].mxu0
  %v1755 = vpop.f32.mrb[0].mxu0
  %v1756 = vadd.f32 0.0, %v1755
  %v1757 = vpop.f32.mrb[0].mxu0
  %1758 = vmatprep.mubr.bf16.mxu0 0
  %1759 = vmatmul.mubr.bf16.gmra.mrb[0].mxu0 %v1710
  %v1760 = vpop.f32.mrb[0].mxu0
  %v1761 = vadd.f32 0.0, %v1760
  %v1762 = vpop.f32.mrb[0].mxu0
  %v1763 = vpop.f32.mrb[0].mxu0
  %v1764 = vadd.f32 0.0, %v1763
  %v1765 = vpop.f32.mrb[0].mxu0
  %1766 = vmatprep.mubr.bf16.mxu0 0
  %1767 = vmatmul.mubr.bf16.gmra.mrb[0].mxu0 %v1713
  %v1768 = vpop.f32.mrb[0].mxu0
  %v1769 = vadd.f32 0.0, %v1768
  %v1770 = vpop.f32.mrb[0].mxu0
  %v1771 = vpop.f32.mrb[0].mxu0
  %v1772 = vadd.f32 0.0, %v1771
  %v1773 = vpop.f32.mrb[0].mxu0
  %1774 = vmatprep.mubr.bf16.mxu0 0
  %1775 = vmatmul.mubr.bf16.gmra.mrb[0].mxu0 %v1716
  %v1776 = vpop.f32.mrb[0].mxu0
  %v1777 = vadd.f32 0.0, %v1776
  %v1778 = vpop.f32.mrb[0].mxu0
  %v1779 = vpop.f32.mrb[0].mxu0
  %v1780 = vadd.f32 0.0, %v1779
  %v1781 = vpop.f32.mrb[0].mxu0
  %1782 = vdwg.mxu0
  %v1783 = vsel %vm180, %v1753, 0.0
  %1784 = vadd.xlane.f32.xlu0 %v1783
  %v1785 = vpop.xlane.xlu0 %1784
  %v1786 = vsel %vm180, %v1756, 0.0
  %1787 = vadd.xlane.f32.xlu0 %v1786
  %v1788 = vpop.xlane.xlu0 %1787
  %v1789 = vsel %vm180, %v1761, 0.0
  %1790 = vadd.xlane.f32.xlu0 %v1789
  %v1791 = vpop.xlane.xlu0 %1790
  %v1792 = vsel %vm180, %v1764, 0.0
  %1793 = vadd.xlane.f32.xlu0 %v1792
  %v1794 = vpop.xlane.xlu0 %1793
  %v1795 = vsel %vm180, %v1769, 0.0
  %1796 = vadd.xlane.f32.xlu0 %v1795
  %v1797 = vpop.xlane.xlu0 %1796
  %v1798 = vsel %vm180, %v1772, 0.0
  %1799 = vadd.xlane.f32.xlu0 %v1798
  %v1800 = vpop.xlane.xlu0 %1799
  %v1801 = vsel %vm180, %v1777, 0.0
  %1802 = vadd.xlane.f32.xlu0 %v1801
  %v1803 = vpop.xlane.xlu0 %1802
  %v1804 = vsel %vm180, %v1780, 0.0
  %1805 = vadd.xlane.f32.xlu0 %v1804
  %v1806 = vpop.xlane.xlu0 %1805
  %v1807 = vadd.f32 %v1629, %v1785
  %v1808 = vadd.f32 %v1630, %v1788
  %v1809 = vadd.f32 %v1631, %v1791
  %v1810 = vadd.f32 %v1632, %v1794
  %v1811 = vadd.f32 %v1633, %v1797
  %v1812 = vadd.f32 %v1634, %v1800
  %v1813 = vadd.f32 %v1635, %v1803
  %v1814 = vadd.f32 %v1636, %v1806
  %v1815 = vmul.f32 %v1753, %v1753
  %v1816 = vmul.f32 %v1756, %v1756
  %v1817 = vmul.f32 %v1761, %v1761
  %v1818 = vmul.f32 %v1764, %v1764
  %v1819 = vmul.f32 %v1769, %v1769
  %v1820 = vmul.f32 %v1772, %v1772
  %v1821 = vmul.f32 %v1777, %v1777
  %v1822 = vmul.f32 %v1780, %v1780
  %v1823 = vsel %vm180, %v1815, 0.0
  %1824 = vadd.xlane.f32.xlu0 %v1823
  %v1825 = vpop.xlane.xlu0 %1824
  %v1826 = vsel %vm180, %v1816, 0.0
  %1827 = vadd.xlane.f32.xlu0 %v1826
  %v1828 = vpop.xlane.xlu0 %1827
  %v1829 = vsel %vm180, %v1817, 0.0
  %1830 = vadd.xlane.f32.xlu0 %v1829
  %v1831 = vpop.xlane.xlu0 %1830
  %v1832 = vsel %vm180, %v1818, 0.0
  %1833 = vadd.xlane.f32.xlu0 %v1832
  %v1834 = vpop.xlane.xlu0 %1833
  %v1835 = vsel %vm180, %v1819, 0.0
  %1836 = vadd.xlane.f32.xlu0 %v1835
  %v1837 = vpop.xlane.xlu0 %1836
  %v1838 = vsel %vm180, %v1820, 0.0
  %1839 = vadd.xlane.f32.xlu0 %v1838
  %v1840 = vpop.xlane.xlu0 %1839
  %v1841 = vsel %vm180, %v1821, 0.0
  %1842 = vadd.xlane.f32.xlu0 %v1841
  %v1843 = vpop.xlane.xlu0 %1842
  %v1844 = vsel %vm180, %v1822, 0.0
  %1845 = vadd.xlane.f32.xlu0 %v1844
  %v1846 = vpop.xlane.xlu0 %1845
  %v1847 = vadd.f32 %v1669, %v1825
  %v1848 = vadd.f32 %v1670, %v1828
  %v1849 = vadd.f32 %v1671, %v1831
  %v1850 = vadd.f32 %v1672, %v1834
  %v1851 = vadd.f32 %v1673, %v1837
  %v1852 = vadd.f32 %v1674, %v1840
  %v1853 = vadd.f32 %v1675, %v1843
  %v1854 = vadd.f32 %v1676, %v1846
  %s1855 = scalar_lea.vmem %s1, 320
  %v1856 = vld [vmem:[%s1855] sm:$0xf]
  %v1857 = vld [vmem:[%s1855 + $0x4] sm:$0xf]
  %v1858 = vld [vmem:[%s1855 + $0x8] sm:$0xf]
  %v1859 = vld [vmem:[%s1855 + $0xc] sm:$0xf]
  %v1860 = vld [vmem:[%s1855 + $0x10] sm:$0xf]
  %v1861 = vld [vmem:[%s1855 + $0x14] sm:$0xf]
  %v1862 = vld [vmem:[%s1855 + $0x18] sm:$0xf]
  %v1863 = vld [vmem:[%s1855 + $0x1c] sm:$0xf]
  %v1872 = vunpack.c.l.b16 %v1856
  %v1873 = vunpack.c.l.b16 %v1857
  %v1874 = vunpack.c.l.b16 %v1858
  %v1875 = vunpack.c.l.b16 %v1859
  %v1876 = vunpack.c.l.b16 %v1860
  %v1877 = vunpack.c.l.b16 %v1861
  %v1878 = vunpack.c.l.b16 %v1862
  %v1879 = vunpack.c.l.b16 %v1863
  %v1880 = vpack.c.b16 %v1873, %v1872
  %v1881 = vpack.c.b16 %v1875, %v1874
  %v1882 = vpack.c.b16 %v1877, %v1876
  %v1883 = vpack.c.b16 %v1879, %v1878
  %v1885 = vsel %vm98, %v1880, 0
  %v1888 = vsel %vm98, %v1881, 0
  %v1891 = vsel %vm98, %v1882, 0
  %v1894 = vsel %vm98, %v1883, 0
  %1896 = vmatprep.subr.bf16.mxu0 0
  %1897 = vmatpush1.bf16.msra.mxu0 %v85
  %1898 = vmatprep.subr.bf16.mxu0 0
  %1899 = vmatpush1.bf16.msra.mxu0 %v86
  %1900 = vmatprep.subr.bf16.mxu0 0
  %1901 = vmatpush1.bf16.msra.mxu0 %v87
  %1902 = vmatprep.subr.bf16.mxu0 0
  %1903 = vmatpush1.bf16.msra.mxu0 %v88
  %1904 = vmatprep.subr.bf16.mxu0 0
  %1905 = vmatpush1.bf16.msra.mxu0 %v89
  %1906 = vmatprep.subr.bf16.mxu0 0
  %1907 = vmatpush1.bf16.msra.mxu0 %v90
  %1908 = vmatprep.subr.bf16.mxu0 0
  %1909 = vmatpush1.bf16.msra.mxu0 %v113
  %1910 = vmatprep.subr.bf16.mxu0 0
  %1911 = vmatpush1.bf16.msra.mxu0 0
  %1912 = vmatprep.subr.bf16.mxu0 0
  %1913 = vmatpush1.bf16.msra.mxu0 0
  %1914 = vmatprep.subr.bf16.mxu0 0
  %1915 = vmatpush1.bf16.msra.mxu0 0
  %1916 = vmatprep.subr.bf16.mxu0 0
  %1917 = vmatpush1.bf16.msra.mxu0 0
  %1918 = vmatprep.subr.bf16.mxu0 0
  %1919 = vmatpush1.bf16.msra.mxu0 0
  %1920 = vmatprep.subr.bf16.mxu0 0
  %1921 = vmatpush1.bf16.msra.mxu0 0
  %1922 = vmatprep.subr.bf16.mxu0 0
  %1923 = vmatpush1.bf16.msra.mxu0 0
  %1924 = vmatprep.subr.bf16.mxu0 0
  %1925 = vmatpush1.bf16.msra.mxu0 0
  %1926 = vmatprep.subr.bf16.mxu0 0
  %1927 = vmatpush1.bf16.msra.mxu0 0
  %1928 = vmatprep.mubr.bf16.mxu0 0
  %1929 = vmatmul.mubr.bf16.gmra.mrb[0].mxu0 %v1885
  %v1930 = vpop.f32.mrb[0].mxu0
  %v1931 = vadd.f32 0.0, %v1930
  %v1932 = vpop.f32.mrb[0].mxu0
  %v1933 = vpop.f32.mrb[0].mxu0
  %v1934 = vadd.f32 0.0, %v1933
  %v1935 = vpop.f32.mrb[0].mxu0
  %1936 = vmatprep.mubr.bf16.mxu0 0
  %1937 = vmatmul.mubr.bf16.gmra.mrb[0].mxu0 %v1888
  %v1938 = vpop.f32.mrb[0].mxu0
  %v1939 = vadd.f32 0.0, %v1938
  %v1940 = vpop.f32.mrb[0].mxu0
  %v1941 = vpop.f32.mrb[0].mxu0
  %v1942 = vadd.f32 0.0, %v1941
  %v1943 = vpop.f32.mrb[0].mxu0
  %1944 = vmatprep.mubr.bf16.mxu0 0
  %1945 = vmatmul.mubr.bf16.gmra.mrb[0].mxu0 %v1891
  %v1946 = vpop.f32.mrb[0].mxu0
  %v1947 = vadd.f32 0.0, %v1946
  %v1948 = vpop.f32.mrb[0].mxu0
  %v1949 = vpop.f32.mrb[0].mxu0
  %v1950 = vadd.f32 0.0, %v1949
  %v1951 = vpop.f32.mrb[0].mxu0
  %1952 = vmatprep.mubr.bf16.mxu0 0
  %1953 = vmatmul.mubr.bf16.gmra.mrb[0].mxu0 %v1894
  %v1954 = vpop.f32.mrb[0].mxu0
  %v1955 = vadd.f32 0.0, %v1954
  %v1956 = vpop.f32.mrb[0].mxu0
  %v1957 = vpop.f32.mrb[0].mxu0
  %v1958 = vadd.f32 0.0, %v1957
  %v1959 = vpop.f32.mrb[0].mxu0
  %1960 = vdwg.mxu0
  %v1961 = vsel %vm180, %v1931, 0.0
  %1962 = vadd.xlane.f32.xlu0 %v1961
  %v1963 = vpop.xlane.xlu0 %1962
  %v1964 = vsel %vm180, %v1934, 0.0
  %1965 = vadd.xlane.f32.xlu0 %v1964
  %v1966 = vpop.xlane.xlu0 %1965
  %v1967 = vsel %vm180, %v1939, 0.0
  %1968 = vadd.xlane.f32.xlu0 %v1967
  %v1969 = vpop.xlane.xlu0 %1968
  %v1970 = vsel %vm180, %v1942, 0.0
  %1971 = vadd.xlane.f32.xlu0 %v1970
  %v1972 = vpop.xlane.xlu0 %1971
  %v1973 = vsel %vm180, %v1947, 0.0
  %1974 = vadd.xlane.f32.xlu0 %v1973
  %v1975 = vpop.xlane.xlu0 %1974
  %v1976 = vsel %vm180, %v1950, 0.0
  %1977 = vadd.xlane.f32.xlu0 %v1976
  %v1978 = vpop.xlane.xlu0 %1977
  %v1979 = vsel %vm180, %v1955, 0.0
  %1980 = vadd.xlane.f32.xlu0 %v1979
  %v1981 = vpop.xlane.xlu0 %1980
  %v1982 = vsel %vm180, %v1958, 0.0
  %1983 = vadd.xlane.f32.xlu0 %v1982
  %v1984 = vpop.xlane.xlu0 %1983
  %v1985 = vadd.f32 %v1807, %v1963
  %v1986 = vadd.f32 %v1808, %v1966
  %v1987 = vadd.f32 %v1809, %v1969
  %v1988 = vadd.f32 %v1810, %v1972
  %v1989 = vadd.f32 %v1811, %v1975
  %v1990 = vadd.f32 %v1812, %v1978
  %v1991 = vadd.f32 %v1813, %v1981
  %v1992 = vadd.f32 %v1814, %v1984
  %v1993 = vmul.f32 %v1931, %v1931
  %v1994 = vmul.f32 %v1934, %v1934
  %v1995 = vmul.f32 %v1939, %v1939
  %v1996 = vmul.f32 %v1942, %v1942
  %v1997 = vmul.f32 %v1947, %v1947
  %v1998 = vmul.f32 %v1950, %v1950
  %v1999 = vmul.f32 %v1955, %v1955
  %v2000 = vmul.f32 %v1958, %v1958
  %v2001 = vsel %vm180, %v1993, 0.0
  %2002 = vadd.xlane.f32.xlu0 %v2001
  %v2003 = vpop.xlane.xlu0 %2002
  %v2004 = vsel %vm180, %v1994, 0.0
  %2005 = vadd.xlane.f32.xlu0 %v2004
  %v2006 = vpop.xlane.xlu0 %2005
  %v2007 = vsel %vm180, %v1995, 0.0
  %2008 = vadd.xlane.f32.xlu0 %v2007
  %v2009 = vpop.xlane.xlu0 %2008
  %v2010 = vsel %vm180, %v1996, 0.0
  %2011 = vadd.xlane.f32.xlu0 %v2010
  %v2012 = vpop.xlane.xlu0 %2011
  %v2013 = vsel %vm180, %v1997, 0.0
  %2014 = vadd.xlane.f32.xlu0 %v2013
  %v2015 = vpop.xlane.xlu0 %2014
  %v2016 = vsel %vm180, %v1998, 0.0
  %2017 = vadd.xlane.f32.xlu0 %v2016
  %v2018 = vpop.xlane.xlu0 %2017
  %v2019 = vsel %vm180, %v1999, 0.0
  %2020 = vadd.xlane.f32.xlu0 %v2019
  %v2021 = vpop.xlane.xlu0 %2020
  %v2022 = vsel %vm180, %v2000, 0.0
  %2023 = vadd.xlane.f32.xlu0 %v2022
  %v2024 = vpop.xlane.xlu0 %2023
  %v2025 = vadd.f32 %v1847, %v2003
  %v2026 = vadd.f32 %v1848, %v2006
  %v2027 = vadd.f32 %v1849, %v2009
  %v2028 = vadd.f32 %v1850, %v2012
  %v2029 = vadd.f32 %v1851, %v2015
  %v2030 = vadd.f32 %v1852, %v2018
  %v2031 = vadd.f32 %v1853, %v2021
  %v2032 = vadd.f32 %v1854, %v2024
  %s2033 = scalar_lea.vmem %s1, 352
  %v2034 = vld [vmem:[%s2033] sm:$0xf]
  %v2035 = vld [vmem:[%s2033 + $0x4] sm:$0xf]
  %v2036 = vld [vmem:[%s2033 + $0x8] sm:$0xf]
  %v2037 = vld [vmem:[%s2033 + $0xc] sm:$0xf]
  %v2038 = vld [vmem:[%s2033 + $0x10] sm:$0xf]
  %v2039 = vld [vmem:[%s2033 + $0x14] sm:$0xf]
  %v2040 = vld [vmem:[%s2033 + $0x18] sm:$0xf]
  %v2041 = vld [vmem:[%s2033 + $0x1c] sm:$0xf]
  %v2050 = vunpack.c.l.b16 %v2034
  %v2051 = vunpack.c.l.b16 %v2035
  %v2052 = vunpack.c.l.b16 %v2036
  %v2053 = vunpack.c.l.b16 %v2037
  %v2054 = vunpack.c.l.b16 %v2038
  %v2055 = vunpack.c.l.b16 %v2039
  %v2056 = vunpack.c.l.b16 %v2040
  %v2057 = vunpack.c.l.b16 %v2041
  %v2058 = vpack.c.b16 %v2051, %v2050
  %v2059 = vpack.c.b16 %v2053, %v2052
  %v2060 = vpack.c.b16 %v2055, %v2054
  %v2061 = vpack.c.b16 %v2057, %v2056
  %v2063 = vsel %vm98, %v2058, 0
  %v2066 = vsel %vm98, %v2059, 0
  %v2069 = vsel %vm98, %v2060, 0
  %v2072 = vsel %vm98, %v2061, 0
  %2074 = vmatprep.subr.bf16.mxu0 0
  %2075 = vmatpush1.bf16.msra.mxu0 %v85
  %2076 = vmatprep.subr.bf16.mxu0 0
  %2077 = vmatpush1.bf16.msra.mxu0 %v86
  %2078 = vmatprep.subr.bf16.mxu0 0
  %2079 = vmatpush1.bf16.msra.mxu0 %v87
  %2080 = vmatprep.subr.bf16.mxu0 0
  %2081 = vmatpush1.bf16.msra.mxu0 %v88
  %2082 = vmatprep.subr.bf16.mxu0 0
  %2083 = vmatpush1.bf16.msra.mxu0 %v89
  %2084 = vmatprep.subr.bf16.mxu0 0
  %2085 = vmatpush1.bf16.msra.mxu0 %v90
  %2086 = vmatprep.subr.bf16.mxu0 0
  %2087 = vmatpush1.bf16.msra.mxu0 %v113
  %2088 = vmatprep.subr.bf16.mxu0 0
  %2089 = vmatpush1.bf16.msra.mxu0 0
  %2090 = vmatprep.subr.bf16.mxu0 0
  %2091 = vmatpush1.bf16.msra.mxu0 0
  %2092 = vmatprep.subr.bf16.mxu0 0
  %2093 = vmatpush1.bf16.msra.mxu0 0
  %2094 = vmatprep.subr.bf16.mxu0 0
  %2095 = vmatpush1.bf16.msra.mxu0 0
  %2096 = vmatprep.subr.bf16.mxu0 0
  %2097 = vmatpush1.bf16.msra.mxu0 0
  %2098 = vmatprep.subr.bf16.mxu0 0
  %2099 = vmatpush1.bf16.msra.mxu0 0
  %2100 = vmatprep.subr.bf16.mxu0 0
  %2101 = vmatpush1.bf16.msra.mxu0 0
  %2102 = vmatprep.subr.bf16.mxu0 0
  %2103 = vmatpush1.bf16.msra.mxu0 0
  %2104 = vmatprep.subr.bf16.mxu0 0
  %2105 = vmatpush1.bf16.msra.mxu0 0
  %2106 = vmatprep.mubr.bf16.mxu0 0
  %2107 = vmatmul.mubr.bf16.gmra.mrb[0].mxu0 %v2063
  %v2108 = vpop.f32.mrb[0].mxu0
  %v2109 = vadd.f32 0.0, %v2108
  %v2110 = vpop.f32.mrb[0].mxu0
  %v2111 = vpop.f32.mrb[0].mxu0
  %v2112 = vadd.f32 0.0, %v2111
  %v2113 = vpop.f32.mrb[0].mxu0
  %2114 = vmatprep.mubr.bf16.mxu0 0
  %2115 = vmatmul.mubr.bf16.gmra.mrb[0].mxu0 %v2066
  %v2116 = vpop.f32.mrb[0].mxu0
  %v2117 = vadd.f32 0.0, %v2116
  %v2118 = vpop.f32.mrb[0].mxu0
  %v2119 = vpop.f32.mrb[0].mxu0
  %v2120 = vadd.f32 0.0, %v2119
  %v2121 = vpop.f32.mrb[0].mxu0
  %2122 = vmatprep.mubr.bf16.mxu0 0
  %2123 = vmatmul.mubr.bf16.gmra.mrb[0].mxu0 %v2069
  %v2124 = vpop.f32.mrb[0].mxu0
  %v2125 = vadd.f32 0.0, %v2124
  %v2126 = vpop.f32.mrb[0].mxu0
  %v2127 = vpop.f32.mrb[0].mxu0
  %v2128 = vadd.f32 0.0, %v2127
  %v2129 = vpop.f32.mrb[0].mxu0
  %2130 = vmatprep.mubr.bf16.mxu0 0
  %2131 = vmatmul.mubr.bf16.gmra.mrb[0].mxu0 %v2072
  %v2132 = vpop.f32.mrb[0].mxu0
  %v2133 = vadd.f32 0.0, %v2132
  %v2134 = vpop.f32.mrb[0].mxu0
  %v2135 = vpop.f32.mrb[0].mxu0
  %v2136 = vadd.f32 0.0, %v2135
  %v2137 = vpop.f32.mrb[0].mxu0
  %2138 = vdwg.mxu0
  %v2139 = vsel %vm180, %v2109, 0.0
  %2140 = vadd.xlane.f32.xlu0 %v2139
  %v2141 = vpop.xlane.xlu0 %2140
  %v2142 = vsel %vm180, %v2112, 0.0
  %2143 = vadd.xlane.f32.xlu0 %v2142
  %v2144 = vpop.xlane.xlu0 %2143
  %v2145 = vsel %vm180, %v2117, 0.0
  %2146 = vadd.xlane.f32.xlu0 %v2145
  %v2147 = vpop.xlane.xlu0 %2146
  %v2148 = vsel %vm180, %v2120, 0.0
  %2149 = vadd.xlane.f32.xlu0 %v2148
  %v2150 = vpop.xlane.xlu0 %2149
  %v2151 = vsel %vm180, %v2125, 0.0
  %2152 = vadd.xlane.f32.xlu0 %v2151
  %v2153 = vpop.xlane.xlu0 %2152
  %v2154 = vsel %vm180, %v2128, 0.0
  %2155 = vadd.xlane.f32.xlu0 %v2154
  %v2156 = vpop.xlane.xlu0 %2155
  %v2157 = vsel %vm180, %v2133, 0.0
  %2158 = vadd.xlane.f32.xlu0 %v2157
  %v2159 = vpop.xlane.xlu0 %2158
  %v2160 = vsel %vm180, %v2136, 0.0
  %2161 = vadd.xlane.f32.xlu0 %v2160
  %v2162 = vpop.xlane.xlu0 %2161
  %v2163 = vadd.f32 %v1985, %v2141
  %v2164 = vadd.f32 %v1986, %v2144
  %v2165 = vadd.f32 %v1987, %v2147
  %v2166 = vadd.f32 %v1988, %v2150
  %v2167 = vadd.f32 %v1989, %v2153
  %v2168 = vadd.f32 %v1990, %v2156
  %v2169 = vadd.f32 %v1991, %v2159
  %v2170 = vadd.f32 %v1992, %v2162
  %v2171 = vmul.f32 %v2109, %v2109
  %v2172 = vmul.f32 %v2112, %v2112
  %v2173 = vmul.f32 %v2117, %v2117
  %v2174 = vmul.f32 %v2120, %v2120
  %v2175 = vmul.f32 %v2125, %v2125
  %v2176 = vmul.f32 %v2128, %v2128
  %v2177 = vmul.f32 %v2133, %v2133
  %v2178 = vmul.f32 %v2136, %v2136
  %v2179 = vsel %vm180, %v2171, 0.0
  %2180 = vadd.xlane.f32.xlu0 %v2179
  %v2181 = vpop.xlane.xlu0 %2180
  %v2182 = vsel %vm180, %v2172, 0.0
  %2183 = vadd.xlane.f32.xlu0 %v2182
  %v2184 = vpop.xlane.xlu0 %2183
  %v2185 = vsel %vm180, %v2173, 0.0
  %2186 = vadd.xlane.f32.xlu0 %v2185
  %v2187 = vpop.xlane.xlu0 %2186
  %v2188 = vsel %vm180, %v2174, 0.0
  %2189 = vadd.xlane.f32.xlu0 %v2188
  %v2190 = vpop.xlane.xlu0 %2189
  %v2191 = vsel %vm180, %v2175, 0.0
  %2192 = vadd.xlane.f32.xlu0 %v2191
  %v2193 = vpop.xlane.xlu0 %2192
  %v2194 = vsel %vm180, %v2176, 0.0
  %2195 = vadd.xlane.f32.xlu0 %v2194
  %v2196 = vpop.xlane.xlu0 %2195
  %v2197 = vsel %vm180, %v2177, 0.0
  %2198 = vadd.xlane.f32.xlu0 %v2197
  %v2199 = vpop.xlane.xlu0 %2198
  %v2200 = vsel %vm180, %v2178, 0.0
  %2201 = vadd.xlane.f32.xlu0 %v2200
  %v2202 = vpop.xlane.xlu0 %2201
  %v2203 = vadd.f32 %v2025, %v2181
  %v2204 = vadd.f32 %v2026, %v2184
  %v2205 = vadd.f32 %v2027, %v2187
  %v2206 = vadd.f32 %v2028, %v2190
  %v2207 = vadd.f32 %v2029, %v2193
  %v2208 = vadd.f32 %v2030, %v2196
  %v2209 = vadd.f32 %v2031, %v2199
  %v2210 = vadd.f32 %v2032, %v2202
  %s2211 = scalar_lea.vmem %s1, 384
  %v2212 = vld [vmem:[%s2211] sm:$0xf]
  %v2213 = vld [vmem:[%s2211 + $0x4] sm:$0xf]
  %v2214 = vld [vmem:[%s2211 + $0x8] sm:$0xf]
  %v2215 = vld [vmem:[%s2211 + $0xc] sm:$0xf]
  %v2216 = vld [vmem:[%s2211 + $0x10] sm:$0xf]
  %v2217 = vld [vmem:[%s2211 + $0x14] sm:$0xf]
  %v2218 = vld [vmem:[%s2211 + $0x18] sm:$0xf]
  %v2219 = vld [vmem:[%s2211 + $0x1c] sm:$0xf]
  %v2228 = vunpack.c.l.b16 %v2212
  %v2229 = vunpack.c.l.b16 %v2213
  %v2230 = vunpack.c.l.b16 %v2214
  %v2231 = vunpack.c.l.b16 %v2215
  %v2232 = vunpack.c.l.b16 %v2216
  %v2233 = vunpack.c.l.b16 %v2217
  %v2234 = vunpack.c.l.b16 %v2218
  %v2235 = vunpack.c.l.b16 %v2219
  %v2236 = vpack.c.b16 %v2229, %v2228
  %v2237 = vpack.c.b16 %v2231, %v2230
  %v2238 = vpack.c.b16 %v2233, %v2232
  %v2239 = vpack.c.b16 %v2235, %v2234
  %v2241 = vsel %vm98, %v2236, 0
  %v2244 = vsel %vm98, %v2237, 0
  %v2247 = vsel %vm98, %v2238, 0
  %v2250 = vsel %vm98, %v2239, 0
  %2252 = vmatprep.subr.bf16.mxu0 0
  %2253 = vmatpush1.bf16.msra.mxu0 %v85
  %2254 = vmatprep.subr.bf16.mxu0 0
  %2255 = vmatpush1.bf16.msra.mxu0 %v86
  %2256 = vmatprep.subr.bf16.mxu0 0
  %2257 = vmatpush1.bf16.msra.mxu0 %v87
  %2258 = vmatprep.subr.bf16.mxu0 0
  %2259 = vmatpush1.bf16.msra.mxu0 %v88
  %2260 = vmatprep.subr.bf16.mxu0 0
  %2261 = vmatpush1.bf16.msra.mxu0 %v89
  %2262 = vmatprep.subr.bf16.mxu0 0
  %2263 = vmatpush1.bf16.msra.mxu0 %v90
  %2264 = vmatprep.subr.bf16.mxu0 0
  %2265 = vmatpush1.bf16.msra.mxu0 %v113
  %2266 = vmatprep.subr.bf16.mxu0 0
  %2267 = vmatpush1.bf16.msra.mxu0 0
  %2268 = vmatprep.subr.bf16.mxu0 0
  %2269 = vmatpush1.bf16.msra.mxu0 0
  %2270 = vmatprep.subr.bf16.mxu0 0
  %2271 = vmatpush1.bf16.msra.mxu0 0
  %2272 = vmatprep.subr.bf16.mxu0 0
  %2273 = vmatpush1.bf16.msra.mxu0 0
  %2274 = vmatprep.subr.bf16.mxu0 0
  %2275 = vmatpush1.bf16.msra.mxu0 0
  %2276 = vmatprep.subr.bf16.mxu0 0
  %2277 = vmatpush1.bf16.msra.mxu0 0
  %2278 = vmatprep.subr.bf16.mxu0 0
  %2279 = vmatpush1.bf16.msra.mxu0 0
  %2280 = vmatprep.subr.bf16.mxu0 0
  %2281 = vmatpush1.bf16.msra.mxu0 0
  %2282 = vmatprep.subr.bf16.mxu0 0
  %2283 = vmatpush1.bf16.msra.mxu0 0
  %2284 = vmatprep.mubr.bf16.mxu0 0
  %2285 = vmatmul.mubr.bf16.gmra.mrb[0].mxu0 %v2241
  %v2286 = vpop.f32.mrb[0].mxu0
  %v2287 = vadd.f32 0.0, %v2286
  %v2288 = vpop.f32.mrb[0].mxu0
  %v2289 = vpop.f32.mrb[0].mxu0
  %v2290 = vadd.f32 0.0, %v2289
  %v2291 = vpop.f32.mrb[0].mxu0
  %2292 = vmatprep.mubr.bf16.mxu0 0
  %2293 = vmatmul.mubr.bf16.gmra.mrb[0].mxu0 %v2244
  %v2294 = vpop.f32.mrb[0].mxu0
  %v2295 = vadd.f32 0.0, %v2294
  %v2296 = vpop.f32.mrb[0].mxu0
  %v2297 = vpop.f32.mrb[0].mxu0
  %v2298 = vadd.f32 0.0, %v2297
  %v2299 = vpop.f32.mrb[0].mxu0
  %2300 = vmatprep.mubr.bf16.mxu0 0
  %2301 = vmatmul.mubr.bf16.gmra.mrb[0].mxu0 %v2247
  %v2302 = vpop.f32.mrb[0].mxu0
  %v2303 = vadd.f32 0.0, %v2302
  %v2304 = vpop.f32.mrb[0].mxu0
  %v2305 = vpop.f32.mrb[0].mxu0
  %v2306 = vadd.f32 0.0, %v2305
  %v2307 = vpop.f32.mrb[0].mxu0
  %2308 = vmatprep.mubr.bf16.mxu0 0
  %2309 = vmatmul.mubr.bf16.gmra.mrb[0].mxu0 %v2250
  %v2310 = vpop.f32.mrb[0].mxu0
  %v2311 = vadd.f32 0.0, %v2310
  %v2312 = vpop.f32.mrb[0].mxu0
  %v2313 = vpop.f32.mrb[0].mxu0
  %v2314 = vadd.f32 0.0, %v2313
  %v2315 = vpop.f32.mrb[0].mxu0
  %2316 = vdwg.mxu0
  %v2317 = vsel %vm180, %v2287, 0.0
  %2318 = vadd.xlane.f32.xlu0 %v2317
  %v2319 = vpop.xlane.xlu0 %2318
  %v2320 = vsel %vm180, %v2290, 0.0
  %2321 = vadd.xlane.f32.xlu0 %v2320
  %v2322 = vpop.xlane.xlu0 %2321
  %v2323 = vsel %vm180, %v2295, 0.0
  %2324 = vadd.xlane.f32.xlu0 %v2323
  %v2325 = vpop.xlane.xlu0 %2324
  %v2326 = vsel %vm180, %v2298, 0.0
  %2327 = vadd.xlane.f32.xlu0 %v2326
  %v2328 = vpop.xlane.xlu0 %2327
  %v2329 = vsel %vm180, %v2303, 0.0
  %2330 = vadd.xlane.f32.xlu0 %v2329
  %v2331 = vpop.xlane.xlu0 %2330
  %v2332 = vsel %vm180, %v2306, 0.0
  %2333 = vadd.xlane.f32.xlu0 %v2332
  %v2334 = vpop.xlane.xlu0 %2333
  %v2335 = vsel %vm180, %v2311, 0.0
  %2336 = vadd.xlane.f32.xlu0 %v2335
  %v2337 = vpop.xlane.xlu0 %2336
  %v2338 = vsel %vm180, %v2314, 0.0
  %2339 = vadd.xlane.f32.xlu0 %v2338
  %v2340 = vpop.xlane.xlu0 %2339
  %v2341 = vadd.f32 %v2163, %v2319
  %v2342 = vadd.f32 %v2164, %v2322
  %v2343 = vadd.f32 %v2165, %v2325
  %v2344 = vadd.f32 %v2166, %v2328
  %v2345 = vadd.f32 %v2167, %v2331
  %v2346 = vadd.f32 %v2168, %v2334
  %v2347 = vadd.f32 %v2169, %v2337
  %v2348 = vadd.f32 %v2170, %v2340
  %v2349 = vmul.f32 %v2287, %v2287
  %v2350 = vmul.f32 %v2290, %v2290
  %v2351 = vmul.f32 %v2295, %v2295
  %v2352 = vmul.f32 %v2298, %v2298
  %v2353 = vmul.f32 %v2303, %v2303
  %v2354 = vmul.f32 %v2306, %v2306
  %v2355 = vmul.f32 %v2311, %v2311
  %v2356 = vmul.f32 %v2314, %v2314
  %v2357 = vsel %vm180, %v2349, 0.0
  %2358 = vadd.xlane.f32.xlu0 %v2357
  %v2359 = vpop.xlane.xlu0 %2358
  %v2360 = vsel %vm180, %v2350, 0.0
  %2361 = vadd.xlane.f32.xlu0 %v2360
  %v2362 = vpop.xlane.xlu0 %2361
  %v2363 = vsel %vm180, %v2351, 0.0
  %2364 = vadd.xlane.f32.xlu0 %v2363
  %v2365 = vpop.xlane.xlu0 %2364
  %v2366 = vsel %vm180, %v2352, 0.0
  %2367 = vadd.xlane.f32.xlu0 %v2366
  %v2368 = vpop.xlane.xlu0 %2367
  %v2369 = vsel %vm180, %v2353, 0.0
  %2370 = vadd.xlane.f32.xlu0 %v2369
  %v2371 = vpop.xlane.xlu0 %2370
  %v2372 = vsel %vm180, %v2354, 0.0
  %2373 = vadd.xlane.f32.xlu0 %v2372
  %v2374 = vpop.xlane.xlu0 %2373
  %v2375 = vsel %vm180, %v2355, 0.0
  %2376 = vadd.xlane.f32.xlu0 %v2375
  %v2377 = vpop.xlane.xlu0 %2376
  %v2378 = vsel %vm180, %v2356, 0.0
  %2379 = vadd.xlane.f32.xlu0 %v2378
  %v2380 = vpop.xlane.xlu0 %2379
  %v2381 = vadd.f32 %v2203, %v2359
  %v2382 = vadd.f32 %v2204, %v2362
  %v2383 = vadd.f32 %v2205, %v2365
  %v2384 = vadd.f32 %v2206, %v2368
  %v2385 = vadd.f32 %v2207, %v2371
  %v2386 = vadd.f32 %v2208, %v2374
  %v2387 = vadd.f32 %v2209, %v2377
  %v2388 = vadd.f32 %v2210, %v2380
  %s2389 = scalar_lea.vmem %s1, 416
  %v2390 = vld [vmem:[%s2389] sm:$0xf]
  %v2391 = vld [vmem:[%s2389 + $0x4] sm:$0xf]
  %v2392 = vld [vmem:[%s2389 + $0x8] sm:$0xf]
  %v2393 = vld [vmem:[%s2389 + $0xc] sm:$0xf]
  %v2394 = vld [vmem:[%s2389 + $0x10] sm:$0xf]
  %v2395 = vld [vmem:[%s2389 + $0x14] sm:$0xf]
  %v2396 = vld [vmem:[%s2389 + $0x18] sm:$0xf]
  %v2397 = vld [vmem:[%s2389 + $0x1c] sm:$0xf]
  %v2406 = vunpack.c.l.b16 %v2390
  %v2407 = vunpack.c.l.b16 %v2391
  %v2408 = vunpack.c.l.b16 %v2392
  %v2409 = vunpack.c.l.b16 %v2393
  %v2410 = vunpack.c.l.b16 %v2394
  %v2411 = vunpack.c.l.b16 %v2395
  %v2412 = vunpack.c.l.b16 %v2396
  %v2413 = vunpack.c.l.b16 %v2397
  %v2414 = vpack.c.b16 %v2407, %v2406
  %v2415 = vpack.c.b16 %v2409, %v2408
  %v2416 = vpack.c.b16 %v2411, %v2410
  %v2417 = vpack.c.b16 %v2413, %v2412
  %v2419 = vsel %vm98, %v2414, 0
  %v2422 = vsel %vm98, %v2415, 0
  %v2425 = vsel %vm98, %v2416, 0
  %v2428 = vsel %vm98, %v2417, 0
  %2430 = vmatprep.subr.bf16.mxu0 0
  %2431 = vmatpush1.bf16.msra.mxu0 %v85
  %2432 = vmatprep.subr.bf16.mxu0 0
  %2433 = vmatpush1.bf16.msra.mxu0 %v86
  %2434 = vmatprep.subr.bf16.mxu0 0
  %2435 = vmatpush1.bf16.msra.mxu0 %v87
  %2436 = vmatprep.subr.bf16.mxu0 0
  %2437 = vmatpush1.bf16.msra.mxu0 %v88
  %2438 = vmatprep.subr.bf16.mxu0 0
  %2439 = vmatpush1.bf16.msra.mxu0 %v89
  %2440 = vmatprep.subr.bf16.mxu0 0
  %2441 = vmatpush1.bf16.msra.mxu0 %v90
  %2442 = vmatprep.subr.bf16.mxu0 0
  %2443 = vmatpush1.bf16.msra.mxu0 %v113
  %2444 = vmatprep.subr.bf16.mxu0 0
  %2445 = vmatpush1.bf16.msra.mxu0 0
  %2446 = vmatprep.subr.bf16.mxu0 0
  %2447 = vmatpush1.bf16.msra.mxu0 0
  %2448 = vmatprep.subr.bf16.mxu0 0
  %2449 = vmatpush1.bf16.msra.mxu0 0
  %2450 = vmatprep.subr.bf16.mxu0 0
  %2451 = vmatpush1.bf16.msra.mxu0 0
  %2452 = vmatprep.subr.bf16.mxu0 0
  %2453 = vmatpush1.bf16.msra.mxu0 0
  %2454 = vmatprep.subr.bf16.mxu0 0
  %2455 = vmatpush1.bf16.msra.mxu0 0
  %2456 = vmatprep.subr.bf16.mxu0 0
  %2457 = vmatpush1.bf16.msra.mxu0 0
  %2458 = vmatprep.subr.bf16.mxu0 0
  %2459 = vmatpush1.bf16.msra.mxu0 0
  %2460 = vmatprep.subr.bf16.mxu0 0
  %2461 = vmatpush1.bf16.msra.mxu0 0
  %2462 = vmatprep.mubr.bf16.mxu0 0
  %2463 = vmatmul.mubr.bf16.gmra.mrb[0].mxu0 %v2419
  %v2464 = vpop.f32.mrb[0].mxu0
  %v2465 = vadd.f32 0.0, %v2464
  %v2466 = vpop.f32.mrb[0].mxu0
  %v2467 = vpop.f32.mrb[0].mxu0
  %v2468 = vadd.f32 0.0, %v2467
  %v2469 = vpop.f32.mrb[0].mxu0
  %2470 = vmatprep.mubr.bf16.mxu0 0
  %2471 = vmatmul.mubr.bf16.gmra.mrb[0].mxu0 %v2422
  %v2472 = vpop.f32.mrb[0].mxu0
  %v2473 = vadd.f32 0.0, %v2472
  %v2474 = vpop.f32.mrb[0].mxu0
  %v2475 = vpop.f32.mrb[0].mxu0
  %v2476 = vadd.f32 0.0, %v2475
  %v2477 = vpop.f32.mrb[0].mxu0
  %2478 = vmatprep.mubr.bf16.mxu0 0
  %2479 = vmatmul.mubr.bf16.gmra.mrb[0].mxu0 %v2425
  %v2480 = vpop.f32.mrb[0].mxu0
  %v2481 = vadd.f32 0.0, %v2480
  %v2482 = vpop.f32.mrb[0].mxu0
  %v2483 = vpop.f32.mrb[0].mxu0
  %v2484 = vadd.f32 0.0, %v2483
  %v2485 = vpop.f32.mrb[0].mxu0
  %2486 = vmatprep.mubr.bf16.mxu0 0
  %2487 = vmatmul.mubr.bf16.gmra.mrb[0].mxu0 %v2428
  %v2488 = vpop.f32.mrb[0].mxu0
  %v2489 = vadd.f32 0.0, %v2488
  %v2490 = vpop.f32.mrb[0].mxu0
  %v2491 = vpop.f32.mrb[0].mxu0
  %v2492 = vadd.f32 0.0, %v2491
  %v2493 = vpop.f32.mrb[0].mxu0
  %2494 = vdwg.mxu0
  %v2495 = vsel %vm180, %v2465, 0.0
  %2496 = vadd.xlane.f32.xlu0 %v2495
  %v2497 = vpop.xlane.xlu0 %2496
  %v2498 = vsel %vm180, %v2468, 0.0
  %2499 = vadd.xlane.f32.xlu0 %v2498
  %v2500 = vpop.xlane.xlu0 %2499
  %v2501 = vsel %vm180, %v2473, 0.0
  %2502 = vadd.xlane.f32.xlu0 %v2501
  %v2503 = vpop.xlane.xlu0 %2502
  %v2504 = vsel %vm180, %v2476, 0.0
  %2505 = vadd.xlane.f32.xlu0 %v2504
  %v2506 = vpop.xlane.xlu0 %2505
  %v2507 = vsel %vm180, %v2481, 0.0
  %2508 = vadd.xlane.f32.xlu0 %v2507
  %v2509 = vpop.xlane.xlu0 %2508
  %v2510 = vsel %vm180, %v2484, 0.0
  %2511 = vadd.xlane.f32.xlu0 %v2510
  %v2512 = vpop.xlane.xlu0 %2511
  %v2513 = vsel %vm180, %v2489, 0.0
  %2514 = vadd.xlane.f32.xlu0 %v2513
  %v2515 = vpop.xlane.xlu0 %2514
  %v2516 = vsel %vm180, %v2492, 0.0
  %2517 = vadd.xlane.f32.xlu0 %v2516
  %v2518 = vpop.xlane.xlu0 %2517
  %v2519 = vadd.f32 %v2341, %v2497
  %v2520 = vadd.f32 %v2342, %v2500
  %v2521 = vadd.f32 %v2343, %v2503
  %v2522 = vadd.f32 %v2344, %v2506
  %v2523 = vadd.f32 %v2345, %v2509
  %v2524 = vadd.f32 %v2346, %v2512
  %v2525 = vadd.f32 %v2347, %v2515
  %v2526 = vadd.f32 %v2348, %v2518
  %v2527 = vmul.f32 %v2465, %v2465
  %v2528 = vmul.f32 %v2468, %v2468
  %v2529 = vmul.f32 %v2473, %v2473
  %v2530 = vmul.f32 %v2476, %v2476
  %v2531 = vmul.f32 %v2481, %v2481
  %v2532 = vmul.f32 %v2484, %v2484
  %v2533 = vmul.f32 %v2489, %v2489
  %v2534 = vmul.f32 %v2492, %v2492
  %v2535 = vsel %vm180, %v2527, 0.0
  %2536 = vadd.xlane.f32.xlu0 %v2535
  %v2537 = vpop.xlane.xlu0 %2536
  %v2538 = vsel %vm180, %v2528, 0.0
  %2539 = vadd.xlane.f32.xlu0 %v2538
  %v2540 = vpop.xlane.xlu0 %2539
  %v2541 = vsel %vm180, %v2529, 0.0
  %2542 = vadd.xlane.f32.xlu0 %v2541
  %v2543 = vpop.xlane.xlu0 %2542
  %v2544 = vsel %vm180, %v2530, 0.0
  %2545 = vadd.xlane.f32.xlu0 %v2544
  %v2546 = vpop.xlane.xlu0 %2545
  %v2547 = vsel %vm180, %v2531, 0.0
  %2548 = vadd.xlane.f32.xlu0 %v2547
  %v2549 = vpop.xlane.xlu0 %2548
  %v2550 = vsel %vm180, %v2532, 0.0
  %2551 = vadd.xlane.f32.xlu0 %v2550
  %v2552 = vpop.xlane.xlu0 %2551
  %v2553 = vsel %vm180, %v2533, 0.0
  %2554 = vadd.xlane.f32.xlu0 %v2553
  %v2555 = vpop.xlane.xlu0 %2554
  %v2556 = vsel %vm180, %v2534, 0.0
  %2557 = vadd.xlane.f32.xlu0 %v2556
  %v2558 = vpop.xlane.xlu0 %2557
  %v2559 = vadd.f32 %v2381, %v2537
  %v2560 = vadd.f32 %v2382, %v2540
  %v2561 = vadd.f32 %v2383, %v2543
  %v2562 = vadd.f32 %v2384, %v2546
  %v2563 = vadd.f32 %v2385, %v2549
  %v2564 = vadd.f32 %v2386, %v2552
  %v2565 = vadd.f32 %v2387, %v2555
  %v2566 = vadd.f32 %v2388, %v2558
  %s2567 = scalar_lea.vmem %s1, 448
  %v2568 = vld [vmem:[%s2567] sm:$0xf]
  %v2569 = vld [vmem:[%s2567 + $0x4] sm:$0xf]
  %v2570 = vld [vmem:[%s2567 + $0x8] sm:$0xf]
  %v2571 = vld [vmem:[%s2567 + $0xc] sm:$0xf]
  %v2572 = vld [vmem:[%s2567 + $0x10] sm:$0xf]
  %v2573 = vld [vmem:[%s2567 + $0x14] sm:$0xf]
  %v2574 = vld [vmem:[%s2567 + $0x18] sm:$0xf]
  %v2575 = vld [vmem:[%s2567 + $0x1c] sm:$0xf]
  %v2584 = vunpack.c.l.b16 %v2568
  %v2585 = vunpack.c.l.b16 %v2569
  %v2586 = vunpack.c.l.b16 %v2570
  %v2587 = vunpack.c.l.b16 %v2571
  %v2588 = vunpack.c.l.b16 %v2572
  %v2589 = vunpack.c.l.b16 %v2573
  %v2590 = vunpack.c.l.b16 %v2574
  %v2591 = vunpack.c.l.b16 %v2575
  %v2592 = vpack.c.b16 %v2585, %v2584
  %v2593 = vpack.c.b16 %v2587, %v2586
  %v2594 = vpack.c.b16 %v2589, %v2588
  %v2595 = vpack.c.b16 %v2591, %v2590
  %v2597 = vsel %vm98, %v2592, 0
  %v2600 = vsel %vm98, %v2593, 0
  %v2603 = vsel %vm98, %v2594, 0
  %v2606 = vsel %vm98, %v2595, 0
  %2608 = vmatprep.subr.bf16.mxu0 0
  %2609 = vmatpush1.bf16.msra.mxu0 %v85
  %2610 = vmatprep.subr.bf16.mxu0 0
  %2611 = vmatpush1.bf16.msra.mxu0 %v86
  %2612 = vmatprep.subr.bf16.mxu0 0
  %2613 = vmatpush1.bf16.msra.mxu0 %v87
  %2614 = vmatprep.subr.bf16.mxu0 0
  %2615 = vmatpush1.bf16.msra.mxu0 %v88
  %2616 = vmatprep.subr.bf16.mxu0 0
  %2617 = vmatpush1.bf16.msra.mxu0 %v89
  %2618 = vmatprep.subr.bf16.mxu0 0
  %2619 = vmatpush1.bf16.msra.mxu0 %v90
  %2620 = vmatprep.subr.bf16.mxu0 0
  %2621 = vmatpush1.bf16.msra.mxu0 %v113
  %2622 = vmatprep.subr.bf16.mxu0 0
  %2623 = vmatpush1.bf16.msra.mxu0 0
  %2624 = vmatprep.subr.bf16.mxu0 0
  %2625 = vmatpush1.bf16.msra.mxu0 0
  %2626 = vmatprep.subr.bf16.mxu0 0
  %2627 = vmatpush1.bf16.msra.mxu0 0
  %2628 = vmatprep.subr.bf16.mxu0 0
  %2629 = vmatpush1.bf16.msra.mxu0 0
  %2630 = vmatprep.subr.bf16.mxu0 0
  %2631 = vmatpush1.bf16.msra.mxu0 0
  %2632 = vmatprep.subr.bf16.mxu0 0
  %2633 = vmatpush1.bf16.msra.mxu0 0
  %2634 = vmatprep.subr.bf16.mxu0 0
  %2635 = vmatpush1.bf16.msra.mxu0 0
  %2636 = vmatprep.subr.bf16.mxu0 0
  %2637 = vmatpush1.bf16.msra.mxu0 0
  %2638 = vmatprep.subr.bf16.mxu0 0
  %2639 = vmatpush1.bf16.msra.mxu0 0
  %2640 = vmatprep.mubr.bf16.mxu0 0
  %2641 = vmatmul.mubr.bf16.gmra.mrb[0].mxu0 %v2597
  %v2642 = vpop.f32.mrb[0].mxu0
  %v2643 = vadd.f32 0.0, %v2642
  %v2644 = vpop.f32.mrb[0].mxu0
  %v2645 = vpop.f32.mrb[0].mxu0
  %v2646 = vadd.f32 0.0, %v2645
  %v2647 = vpop.f32.mrb[0].mxu0
  %2648 = vmatprep.mubr.bf16.mxu0 0
  %2649 = vmatmul.mubr.bf16.gmra.mrb[0].mxu0 %v2600
  %v2650 = vpop.f32.mrb[0].mxu0
  %v2651 = vadd.f32 0.0, %v2650
  %v2652 = vpop.f32.mrb[0].mxu0
  %v2653 = vpop.f32.mrb[0].mxu0
  %v2654 = vadd.f32 0.0, %v2653
  %v2655 = vpop.f32.mrb[0].mxu0
  %2656 = vmatprep.mubr.bf16.mxu0 0
  %2657 = vmatmul.mubr.bf16.gmra.mrb[0].mxu0 %v2603
  %v2658 = vpop.f32.mrb[0].mxu0
  %v2659 = vadd.f32 0.0, %v2658
  %v2660 = vpop.f32.mrb[0].mxu0
  %v2661 = vpop.f32.mrb[0].mxu0
  %v2662 = vadd.f32 0.0, %v2661
  %v2663 = vpop.f32.mrb[0].mxu0
  %2664 = vmatprep.mubr.bf16.mxu0 0
  %2665 = vmatmul.mubr.bf16.gmra.mrb[0].mxu0 %v2606
  %v2666 = vpop.f32.mrb[0].mxu0
  %v2667 = vadd.f32 0.0, %v2666
  %v2668 = vpop.f32.mrb[0].mxu0
  %v2669 = vpop.f32.mrb[0].mxu0
  %v2670 = vadd.f32 0.0, %v2669
  %v2671 = vpop.f32.mrb[0].mxu0
  %2672 = vdwg.mxu0
  %v2673 = vsel %vm180, %v2643, 0.0
  %2674 = vadd.xlane.f32.xlu0 %v2673
  %v2675 = vpop.xlane.xlu0 %2674
  %v2676 = vsel %vm180, %v2646, 0.0
  %2677 = vadd.xlane.f32.xlu0 %v2676
  %v2678 = vpop.xlane.xlu0 %2677
  %v2679 = vsel %vm180, %v2651, 0.0
  %2680 = vadd.xlane.f32.xlu0 %v2679
  %v2681 = vpop.xlane.xlu0 %2680
  %v2682 = vsel %vm180, %v2654, 0.0
  %2683 = vadd.xlane.f32.xlu0 %v2682
  %v2684 = vpop.xlane.xlu0 %2683
  %v2685 = vsel %vm180, %v2659, 0.0
  %2686 = vadd.xlane.f32.xlu0 %v2685
  %v2687 = vpop.xlane.xlu0 %2686
  %v2688 = vsel %vm180, %v2662, 0.0
  %2689 = vadd.xlane.f32.xlu0 %v2688
  %v2690 = vpop.xlane.xlu0 %2689
  %v2691 = vsel %vm180, %v2667, 0.0
  %2692 = vadd.xlane.f32.xlu0 %v2691
  %v2693 = vpop.xlane.xlu0 %2692
  %v2694 = vsel %vm180, %v2670, 0.0
  %2695 = vadd.xlane.f32.xlu0 %v2694
  %v2696 = vpop.xlane.xlu0 %2695
  %v2697 = vadd.f32 %v2519, %v2675
  %v2698 = vadd.f32 %v2520, %v2678
  %v2699 = vadd.f32 %v2521, %v2681
  %v2700 = vadd.f32 %v2522, %v2684
  %v2701 = vadd.f32 %v2523, %v2687
  %v2702 = vadd.f32 %v2524, %v2690
  %v2703 = vadd.f32 %v2525, %v2693
  %v2704 = vadd.f32 %v2526, %v2696
  %v2705 = vmul.f32 %v2643, %v2643
  %v2706 = vmul.f32 %v2646, %v2646
  %v2707 = vmul.f32 %v2651, %v2651
  %v2708 = vmul.f32 %v2654, %v2654
  %v2709 = vmul.f32 %v2659, %v2659
  %v2710 = vmul.f32 %v2662, %v2662
  %v2711 = vmul.f32 %v2667, %v2667
  %v2712 = vmul.f32 %v2670, %v2670
  %v2713 = vsel %vm180, %v2705, 0.0
  %2714 = vadd.xlane.f32.xlu0 %v2713
  %v2715 = vpop.xlane.xlu0 %2714
  %v2716 = vsel %vm180, %v2706, 0.0
  %2717 = vadd.xlane.f32.xlu0 %v2716
  %v2718 = vpop.xlane.xlu0 %2717
  %v2719 = vsel %vm180, %v2707, 0.0
  %2720 = vadd.xlane.f32.xlu0 %v2719
  %v2721 = vpop.xlane.xlu0 %2720
  %v2722 = vsel %vm180, %v2708, 0.0
  %2723 = vadd.xlane.f32.xlu0 %v2722
  %v2724 = vpop.xlane.xlu0 %2723
  %v2725 = vsel %vm180, %v2709, 0.0
  %2726 = vadd.xlane.f32.xlu0 %v2725
  %v2727 = vpop.xlane.xlu0 %2726
  %v2728 = vsel %vm180, %v2710, 0.0
  %2729 = vadd.xlane.f32.xlu0 %v2728
  %v2730 = vpop.xlane.xlu0 %2729
  %v2731 = vsel %vm180, %v2711, 0.0
  %2732 = vadd.xlane.f32.xlu0 %v2731
  %v2733 = vpop.xlane.xlu0 %2732
  %v2734 = vsel %vm180, %v2712, 0.0
  %2735 = vadd.xlane.f32.xlu0 %v2734
  %v2736 = vpop.xlane.xlu0 %2735
  %v2737 = vadd.f32 %v2559, %v2715
  %v2738 = vadd.f32 %v2560, %v2718
  %v2739 = vadd.f32 %v2561, %v2721
  %v2740 = vadd.f32 %v2562, %v2724
  %v2741 = vadd.f32 %v2563, %v2727
  %v2742 = vadd.f32 %v2564, %v2730
  %v2743 = vadd.f32 %v2565, %v2733
  %v2744 = vadd.f32 %v2566, %v2736
  %s2745 = scalar_lea.vmem %s1, 480
  %v2746 = vld [vmem:[%s2745] sm:$0xf]
  %v2747 = vld [vmem:[%s2745 + $0x4] sm:$0xf]
  %v2748 = vld [vmem:[%s2745 + $0x8] sm:$0xf]
  %v2749 = vld [vmem:[%s2745 + $0xc] sm:$0xf]
  %v2750 = vld [vmem:[%s2745 + $0x10] sm:$0xf]
  %v2751 = vld [vmem:[%s2745 + $0x14] sm:$0xf]
  %v2752 = vld [vmem:[%s2745 + $0x18] sm:$0xf]
  %v2753 = vld [vmem:[%s2745 + $0x1c] sm:$0xf]
  %v2762 = vunpack.c.l.b16 %v2746
  %v2763 = vunpack.c.l.b16 %v2747
  %v2764 = vunpack.c.l.b16 %v2748
  %v2765 = vunpack.c.l.b16 %v2749
  %v2766 = vunpack.c.l.b16 %v2750
  %v2767 = vunpack.c.l.b16 %v2751
  %v2768 = vunpack.c.l.b16 %v2752
  %v2769 = vunpack.c.l.b16 %v2753
  %v2770 = vpack.c.b16 %v2763, %v2762
  %v2771 = vpack.c.b16 %v2765, %v2764
  %v2772 = vpack.c.b16 %v2767, %v2766
  %v2773 = vpack.c.b16 %v2769, %v2768
  %v2775 = vsel %vm98, %v2770, 0
  %v2778 = vsel %vm98, %v2771, 0
  %v2781 = vsel %vm98, %v2772, 0
  %v2784 = vsel %vm98, %v2773, 0
  %2786 = vmatprep.subr.bf16.mxu0 0
  %2787 = vmatpush1.bf16.msra.mxu0 %v85
  %2788 = vmatprep.subr.bf16.mxu0 0
  %2789 = vmatpush1.bf16.msra.mxu0 %v86
  %2790 = vmatprep.subr.bf16.mxu0 0
  %2791 = vmatpush1.bf16.msra.mxu0 %v87
  %2792 = vmatprep.subr.bf16.mxu0 0
  %2793 = vmatpush1.bf16.msra.mxu0 %v88
  %2794 = vmatprep.subr.bf16.mxu0 0
  %2795 = vmatpush1.bf16.msra.mxu0 %v89
  %2796 = vmatprep.subr.bf16.mxu0 0
  %2797 = vmatpush1.bf16.msra.mxu0 %v90
  %2798 = vmatprep.subr.bf16.mxu0 0
  %2799 = vmatpush1.bf16.msra.mxu0 %v113
  %2800 = vmatprep.subr.bf16.mxu0 0
  %2801 = vmatpush1.bf16.msra.mxu0 0
  %2802 = vmatprep.subr.bf16.mxu0 0
  %2803 = vmatpush1.bf16.msra.mxu0 0
  %2804 = vmatprep.subr.bf16.mxu0 0
  %2805 = vmatpush1.bf16.msra.mxu0 0
  %2806 = vmatprep.subr.bf16.mxu0 0
  %2807 = vmatpush1.bf16.msra.mxu0 0
  %2808 = vmatprep.subr.bf16.mxu0 0
  %2809 = vmatpush1.bf16.msra.mxu0 0
  %2810 = vmatprep.subr.bf16.mxu0 0
  %2811 = vmatpush1.bf16.msra.mxu0 0
  %2812 = vmatprep.subr.bf16.mxu0 0
  %2813 = vmatpush1.bf16.msra.mxu0 0
  %2814 = vmatprep.subr.bf16.mxu0 0
  %2815 = vmatpush1.bf16.msra.mxu0 0
  %2816 = vmatprep.subr.bf16.mxu0 0
  %2817 = vmatpush1.bf16.msra.mxu0 0
  %2818 = vmatprep.mubr.bf16.mxu0 0
  %2819 = vmatmul.mubr.bf16.gmra.mrb[0].mxu0 %v2775
  %v2820 = vpop.f32.mrb[0].mxu0
  %v2821 = vadd.f32 0.0, %v2820
  %v2822 = vpop.f32.mrb[0].mxu0
  %v2823 = vpop.f32.mrb[0].mxu0
  %v2824 = vadd.f32 0.0, %v2823
  %v2825 = vpop.f32.mrb[0].mxu0
  %2826 = vmatprep.mubr.bf16.mxu0 0
  %2827 = vmatmul.mubr.bf16.gmra.mrb[0].mxu0 %v2778
  %v2828 = vpop.f32.mrb[0].mxu0
  %v2829 = vadd.f32 0.0, %v2828
  %v2830 = vpop.f32.mrb[0].mxu0
  %v2831 = vpop.f32.mrb[0].mxu0
  %v2832 = vadd.f32 0.0, %v2831
  %v2833 = vpop.f32.mrb[0].mxu0
  %2834 = vmatprep.mubr.bf16.mxu0 0
  %2835 = vmatmul.mubr.bf16.gmra.mrb[0].mxu0 %v2781
  %v2836 = vpop.f32.mrb[0].mxu0
  %v2837 = vadd.f32 0.0, %v2836
  %v2838 = vpop.f32.mrb[0].mxu0
  %v2839 = vpop.f32.mrb[0].mxu0
  %v2840 = vadd.f32 0.0, %v2839
  %v2841 = vpop.f32.mrb[0].mxu0
  %2842 = vmatprep.mubr.bf16.mxu0 0
  %2843 = vmatmul.mubr.bf16.gmra.mrb[0].mxu0 %v2784
  %v2844 = vpop.f32.mrb[0].mxu0
  %v2845 = vadd.f32 0.0, %v2844
  %v2846 = vpop.f32.mrb[0].mxu0
  %v2847 = vpop.f32.mrb[0].mxu0
  %v2848 = vadd.f32 0.0, %v2847
  %v2849 = vpop.f32.mrb[0].mxu0
  %2850 = vdwg.mxu0
  %v2851 = vsel %vm180, %v2821, 0.0
  %2852 = vadd.xlane.f32.xlu0 %v2851
  %v2853 = vpop.xlane.xlu0 %2852
  %v2854 = vsel %vm180, %v2824, 0.0
  %2855 = vadd.xlane.f32.xlu0 %v2854
  %v2856 = vpop.xlane.xlu0 %2855
  %v2857 = vsel %vm180, %v2829, 0.0
  %2858 = vadd.xlane.f32.xlu0 %v2857
  %v2859 = vpop.xlane.xlu0 %2858
  %v2860 = vsel %vm180, %v2832, 0.0
  %2861 = vadd.xlane.f32.xlu0 %v2860
  %v2862 = vpop.xlane.xlu0 %2861
  %v2863 = vsel %vm180, %v2837, 0.0
  %2864 = vadd.xlane.f32.xlu0 %v2863
  %v2865 = vpop.xlane.xlu0 %2864
  %v2866 = vsel %vm180, %v2840, 0.0
  %2867 = vadd.xlane.f32.xlu0 %v2866
  %v2868 = vpop.xlane.xlu0 %2867
  %v2869 = vsel %vm180, %v2845, 0.0
  %2870 = vadd.xlane.f32.xlu0 %v2869
  %v2871 = vpop.xlane.xlu0 %2870
  %v2872 = vsel %vm180, %v2848, 0.0
  %2873 = vadd.xlane.f32.xlu0 %v2872
  %v2874 = vpop.xlane.xlu0 %2873
  %v2875 = vadd.f32 %v2697, %v2853
  %v2876 = vadd.f32 %v2698, %v2856
  %v2877 = vadd.f32 %v2699, %v2859
  %v2878 = vadd.f32 %v2700, %v2862
  %v2879 = vadd.f32 %v2701, %v2865
  %v2880 = vadd.f32 %v2702, %v2868
  %v2881 = vadd.f32 %v2703, %v2871
  %v2882 = vadd.f32 %v2704, %v2874
  %v2883 = vmul.f32 %v2821, %v2821
  %v2884 = vmul.f32 %v2824, %v2824
  %v2885 = vmul.f32 %v2829, %v2829
  %v2886 = vmul.f32 %v2832, %v2832
  %v2887 = vmul.f32 %v2837, %v2837
  %v2888 = vmul.f32 %v2840, %v2840
  %v2889 = vmul.f32 %v2845, %v2845
  %v2890 = vmul.f32 %v2848, %v2848
  %v2891 = vsel %vm180, %v2883, 0.0
  %2892 = vadd.xlane.f32.xlu0 %v2891
  %v2893 = vpop.xlane.xlu0 %2892
  %v2894 = vsel %vm180, %v2884, 0.0
  %2895 = vadd.xlane.f32.xlu0 %v2894
  %v2896 = vpop.xlane.xlu0 %2895
  %v2897 = vsel %vm180, %v2885, 0.0
  %2898 = vadd.xlane.f32.xlu0 %v2897
  %v2899 = vpop.xlane.xlu0 %2898
  %v2900 = vsel %vm180, %v2886, 0.0
  %2901 = vadd.xlane.f32.xlu0 %v2900
  %v2902 = vpop.xlane.xlu0 %2901
  %v2903 = vsel %vm180, %v2887, 0.0
  %2904 = vadd.xlane.f32.xlu0 %v2903
  %v2905 = vpop.xlane.xlu0 %2904
  %v2906 = vsel %vm180, %v2888, 0.0
  %2907 = vadd.xlane.f32.xlu0 %v2906
  %v2908 = vpop.xlane.xlu0 %2907
  %v2909 = vsel %vm180, %v2889, 0.0
  %2910 = vadd.xlane.f32.xlu0 %v2909
  %v2911 = vpop.xlane.xlu0 %2910
  %v2912 = vsel %vm180, %v2890, 0.0
  %2913 = vadd.xlane.f32.xlu0 %v2912
  %v2914 = vpop.xlane.xlu0 %2913
  %v2915 = vadd.f32 %v2737, %v2893
  %v2916 = vadd.f32 %v2738, %v2896
  %v2917 = vadd.f32 %v2739, %v2899
  %v2918 = vadd.f32 %v2740, %v2902
  %v2919 = vadd.f32 %v2741, %v2905
  %v2920 = vadd.f32 %v2742, %v2908
  %v2921 = vadd.f32 %v2743, %v2911
  %v2922 = vadd.f32 %v2744, %v2914
  %v2923 = vrcp.pop 32.0
  %v2924 = vmul.f32 %v2875, %v2923
  %v2925 = vmul.f32 %v2876, %v2923
  %v2926 = vmul.f32 %v2877, %v2923
  %v2927 = vmul.f32 %v2878, %v2923
  %v2928 = vmul.f32 %v2879, %v2923
  %v2929 = vmul.f32 %v2880, %v2923
  %v2930 = vmul.f32 %v2881, %v2923
  %v2931 = vmul.f32 %v2882, %v2923
  %v2932 = vmul.f32 %v2915, %v2923
  %v2933 = vmul.f32 %v2916, %v2923
  %v2934 = vmul.f32 %v2917, %v2923
  %v2935 = vmul.f32 %v2918, %v2923
  %v2936 = vmul.f32 %v2919, %v2923
  %v2937 = vmul.f32 %v2920, %v2923
  %v2938 = vmul.f32 %v2921, %v2923
  %v2939 = vmul.f32 %v2922, %v2923
  %v2940 = vmul.f32 %v2924, %v2924
  %v2941 = vmul.f32 %v2925, %v2925
  %v2942 = vmul.f32 %v2926, %v2926
  %v2943 = vmul.f32 %v2927, %v2927
  %v2944 = vmul.f32 %v2928, %v2928
  %v2945 = vmul.f32 %v2929, %v2929
  %v2946 = vmul.f32 %v2930, %v2930
  %v2947 = vmul.f32 %v2931, %v2931
  %v2948 = vsub.f32 %v2932, %v2940
  %v2949 = vsub.f32 %v2933, %v2941
  %v2950 = vsub.f32 %v2934, %v2942
  %v2951 = vsub.f32 %v2935, %v2943
  %v2952 = vsub.f32 %v2936, %v2944
  %v2953 = vsub.f32 %v2937, %v2945
  %v2954 = vsub.f32 %v2938, %v2946
  %v2955 = vsub.f32 %v2939, %v2947
  %v2956 = vld [vmem:[%s2] sm:$0xff]
  %v2957 = vld [vmem:[%s2 + $0x8] sm:$0xff]
  %v2958 = vld [vmem:[%s2 + $0x10] sm:$0xff]
  %v2959 = vld [vmem:[%s2 + $0x18] sm:$0xff]
  %v2960 = vld [vmem:[%s2 + $0x20] sm:$0xff]
  %v2961 = vld [vmem:[%s2 + $0x28] sm:$0xff]
  %v2962 = vld [vmem:[%s2 + $0x30] sm:$0xff]
  %v2963 = vld [vmem:[%s2 + $0x38] sm:$0xff]
  %v2964 = vadd.f32 %v2948, 1e-05
  %v2965 = vadd.f32 %v2949, 1e-05
  %v2966 = vadd.f32 %v2950, 1e-05
  %v2967 = vadd.f32 %v2951, 1e-05
  %v2968 = vadd.f32 %v2952, 1e-05
  %v2969 = vadd.f32 %v2953, 1e-05
  %v2970 = vadd.f32 %v2954, 1e-05
  %v2971 = vadd.f32 %v2955, 1e-05
  %v2972 = vrsqrt.pop %v2964
  %v2973 = vrsqrt.pop %v2965
  %v2974 = vrsqrt.pop %v2966
  %v2975 = vrsqrt.pop %v2967
  %v2976 = vrsqrt.pop %v2968
  %v2977 = vrsqrt.pop %v2969
  %v2978 = vrsqrt.pop %v2970
  %v2979 = vrsqrt.pop %v2971
  %v2980 = vmul.f32 %v2956, %v2972
  %v2981 = vmul.f32 %v2957, %v2973
  %v2982 = vmul.f32 %v2958, %v2974
  %v2983 = vmul.f32 %v2959, %v2975
  %v2984 = vmul.f32 %v2960, %v2976
  %v2985 = vmul.f32 %v2961, %v2977
  %v2986 = vmul.f32 %v2962, %v2978
  %v2987 = vmul.f32 %v2963, %v2979
  %v2988 = vld [vmem:[%s3] sm:$0xff]
  %v2989 = vld [vmem:[%s3 + $0x8] sm:$0xff]
  %v2990 = vld [vmem:[%s3 + $0x10] sm:$0xff]
  %v2991 = vld [vmem:[%s3 + $0x18] sm:$0xff]
  %v2992 = vld [vmem:[%s3 + $0x20] sm:$0xff]
  %v2993 = vld [vmem:[%s3 + $0x28] sm:$0xff]
  %v2994 = vld [vmem:[%s3 + $0x30] sm:$0xff]
  %v2995 = vld [vmem:[%s3 + $0x38] sm:$0xff]
  %v2996 = vmul.f32 %v2924, %v2980
  %v2997 = vmul.f32 %v2925, %v2981
  %v2998 = vmul.f32 %v2926, %v2982
  %v2999 = vmul.f32 %v2927, %v2983
  %v3000 = vmul.f32 %v2928, %v2984
  %v3001 = vmul.f32 %v2929, %v2985
  %v3002 = vmul.f32 %v2930, %v2986
  %v3003 = vmul.f32 %v2931, %v2987
  %v3004 = vsub.f32 %v2988, %v2996
  %v3005 = vsub.f32 %v2989, %v2997
  %v3006 = vsub.f32 %v2990, %v2998
  %v3007 = vsub.f32 %v2991, %v2999
  %v3008 = vsub.f32 %v2992, %v3000
  %v3009 = vsub.f32 %v2993, %v3001
  %v3010 = vsub.f32 %v2994, %v3002
  %v3011 = vsub.f32 %v2995, %v3003
  %3013 = vset.pattern.permute.xlu0 0
  %3014 = vperm.xlu0 %3013, %v2980
  %v3015 = vpop.permute.xlu0 %3014
  %3018 = vset.pattern.permute.xlu0 0
  %3019 = vperm.xlu0 %3018, %v2981
  %v3020 = vpop.permute.xlu0 %3019
  %3023 = vset.pattern.permute.xlu0 0
  %3024 = vperm.xlu0 %3023, %v2982
  %v3025 = vpop.permute.xlu0 %3024
  %3028 = vset.pattern.permute.xlu0 0
  %3029 = vperm.xlu0 %3028, %v2983
  %v3030 = vpop.permute.xlu0 %3029
  %3033 = vset.pattern.permute.xlu0 0
  %3034 = vperm.xlu0 %3033, %v2984
  %v3035 = vpop.permute.xlu0 %3034
  %3038 = vset.pattern.permute.xlu0 0
  %3039 = vperm.xlu0 %3038, %v2985
  %v3040 = vpop.permute.xlu0 %3039
  %3043 = vset.pattern.permute.xlu0 0
  %3044 = vperm.xlu0 %3043, %v2986
  %v3045 = vpop.permute.xlu0 %3044
  %3048 = vset.pattern.permute.xlu0 0
  %3049 = vperm.xlu0 %3048, %v2987
  %v3050 = vpop.permute.xlu0 %3049
  %v3052 = vmul.f32 %v150, %v3015
  %v3053 = vmul.f32 %v153, %v3020
  %v3054 = vmul.f32 %v158, %v3025
  %v3055 = vmul.f32 %v161, %v3030
  %v3056 = vmul.f32 %v166, %v3035
  %v3057 = vmul.f32 %v169, %v3040
  %v3058 = vmul.f32 %v174, %v3045
  %v3059 = vmul.f32 %v177, %v3050
  %3061 = vset.pattern.permute.xlu0 0
  %3062 = vperm.xlu0 %3061, %v3004
  %v3063 = vpop.permute.xlu0 %3062
  %3066 = vset.pattern.permute.xlu0 0
  %3067 = vperm.xlu0 %3066, %v3005
  %v3068 = vpop.permute.xlu0 %3067
  %3071 = vset.pattern.permute.xlu0 0
  %3072 = vperm.xlu0 %3071, %v3006
  %v3073 = vpop.permute.xlu0 %3072
  %3076 = vset.pattern.permute.xlu0 0
  %3077 = vperm.xlu0 %3076, %v3007
  %v3078 = vpop.permute.xlu0 %3077
  %3081 = vset.pattern.permute.xlu0 0
  %3082 = vperm.xlu0 %3081, %v3008
  %v3083 = vpop.permute.xlu0 %3082
  %3086 = vset.pattern.permute.xlu0 0
  %3087 = vperm.xlu0 %3086, %v3009
  %v3088 = vpop.permute.xlu0 %3087
  %3091 = vset.pattern.permute.xlu0 0
  %3092 = vperm.xlu0 %3091, %v3010
  %v3093 = vpop.permute.xlu0 %3092
  %3096 = vset.pattern.permute.xlu0 0
  %3097 = vperm.xlu0 %3096, %v3011
  %v3098 = vpop.permute.xlu0 %3097
  %v3100 = vadd.f32 %v3052, %v3063
  %v3101 = vadd.f32 %v3053, %v3068
  %v3102 = vadd.f32 %v3054, %v3073
  %v3103 = vadd.f32 %v3055, %v3078
  %v3104 = vadd.f32 %v3056, %v3083
  %v3105 = vadd.f32 %v3057, %v3088
  %v3106 = vadd.f32 %v3058, %v3093
  %v3107 = vadd.f32 %v3059, %v3098
  %v3108 = vmax.f32 %v3100, 0.0
  %v3109 = vmax.f32 %v3101, 0.0
  %v3110 = vmax.f32 %v3102, 0.0
  %v3111 = vmax.f32 %v3103, 0.0
  %v3112 = vmax.f32 %v3104, 0.0
  %v3113 = vmax.f32 %v3105, 0.0
  %v3114 = vmax.f32 %v3106, 0.0
  %v3115 = vmax.f32 %v3107, 0.0
  %v3116 = vpack.c.bf16 %v3109, %v3108
  %v3117 = vpack.c.bf16 %v3111, %v3110
  %v3118 = vpack.c.bf16 %v3113, %v3112
  %v3119 = vpack.c.bf16 %v3115, %v3114
  %v3124 = vunpack.c.l.b16 %v3116
  %v3125 = vunpack.c.h.b16 %v3116
  %v3126 = vunpack.c.l.b16 %v3117
  %v3127 = vunpack.c.h.b16 %v3117
  %v3128 = vunpack.c.l.b16 %v3118
  %v3129 = vunpack.c.h.b16 %v3118
  %v3130 = vunpack.c.l.b16 %v3119
  %v3131 = vunpack.c.h.b16 %v3119
  %v3132 = vpack.c.b16 %v3124, %v3124
  %v3133 = vpack.c.b16 %v3125, %v3125
  %v3134 = vpack.c.b16 %v3126, %v3126
  %v3135 = vpack.c.b16 %v3127, %v3127
  %v3136 = vpack.c.b16 %v3128, %v3128
  %v3137 = vpack.c.b16 %v3129, %v3129
  %v3138 = vpack.c.b16 %v3130, %v3130
  %v3139 = vpack.c.b16 %v3131, %v3131
  %vm3148 = vcmask 11264
  %3149 = vst.msk [vmem:[%s4] sm:$0xf] %vm3148, %v3132
  %3150 = vst.msk [vmem:[%s4 + $0x4] sm:$0xf] %vm3148, %v3133
  %3151 = vst.msk [vmem:[%s4 + $0x8] sm:$0xf] %vm3148, %v3134
  %3152 = vst.msk [vmem:[%s4 + $0xc] sm:$0xf] %vm3148, %v3135
  %3153 = vst.msk [vmem:[%s4 + $0x10] sm:$0xf] %vm3148, %v3136
  %3154 = vst.msk [vmem:[%s4 + $0x14] sm:$0xf] %vm3148, %v3137
  %3155 = vst.msk [vmem:[%s4 + $0x18] sm:$0xf] %vm3148, %v3138
  %3156 = vst.msk [vmem:[%s4 + $0x1c] sm:$0xf] %vm3148, %v3139
  %v3157 = vmul.f32 %v329, %v3015
  %v3158 = vmul.f32 %v332, %v3020
  %v3159 = vmul.f32 %v337, %v3025
  %v3160 = vmul.f32 %v340, %v3030
  %v3161 = vmul.f32 %v345, %v3035
  %v3162 = vmul.f32 %v348, %v3040
  %v3163 = vmul.f32 %v353, %v3045
  %v3164 = vmul.f32 %v356, %v3050
  %v3165 = vadd.f32 %v3157, %v3063
  %v3166 = vadd.f32 %v3158, %v3068
  %v3167 = vadd.f32 %v3159, %v3073
  %v3168 = vadd.f32 %v3160, %v3078
  %v3169 = vadd.f32 %v3161, %v3083
  %v3170 = vadd.f32 %v3162, %v3088
  %v3171 = vadd.f32 %v3163, %v3093
  %v3172 = vadd.f32 %v3164, %v3098
  %v3173 = vmax.f32 %v3165, 0.0
  %v3174 = vmax.f32 %v3166, 0.0
  %v3175 = vmax.f32 %v3167, 0.0
  %v3176 = vmax.f32 %v3168, 0.0
  %v3177 = vmax.f32 %v3169, 0.0
  %v3178 = vmax.f32 %v3170, 0.0
  %v3179 = vmax.f32 %v3171, 0.0
  %v3180 = vmax.f32 %v3172, 0.0
  %v3181 = vpack.c.bf16 %v3174, %v3173
  %v3182 = vpack.c.bf16 %v3176, %v3175
  %v3183 = vpack.c.bf16 %v3178, %v3177
  %v3184 = vpack.c.bf16 %v3180, %v3179
  %v3189 = vunpack.c.l.b16 %v3181
  %v3190 = vunpack.c.h.b16 %v3181
  %v3191 = vunpack.c.l.b16 %v3182
  %v3192 = vunpack.c.h.b16 %v3182
  %v3193 = vunpack.c.l.b16 %v3183
  %v3194 = vunpack.c.h.b16 %v3183
  %v3195 = vunpack.c.l.b16 %v3184
  %v3196 = vunpack.c.h.b16 %v3184
  %v3197 = vpack.c.b16 %v3189, %v3189
  %v3198 = vpack.c.b16 %v3190, %v3190
  %v3199 = vpack.c.b16 %v3191, %v3191
  %v3200 = vpack.c.b16 %v3192, %v3192
  %v3201 = vpack.c.b16 %v3193, %v3193
  %v3202 = vpack.c.b16 %v3194, %v3194
  %v3203 = vpack.c.b16 %v3195, %v3195
  %v3204 = vpack.c.b16 %v3196, %v3196
  %s3213 = scalar_lea.vmem %s4, 32
  %3214 = vst.msk [vmem:[%s3213] sm:$0xf] %vm3148, %v3197
  %3215 = vst.msk [vmem:[%s3213 + $0x4] sm:$0xf] %vm3148, %v3198
  %3216 = vst.msk [vmem:[%s3213 + $0x8] sm:$0xf] %vm3148, %v3199
  %3217 = vst.msk [vmem:[%s3213 + $0xc] sm:$0xf] %vm3148, %v3200
  %3218 = vst.msk [vmem:[%s3213 + $0x10] sm:$0xf] %vm3148, %v3201
  %3219 = vst.msk [vmem:[%s3213 + $0x14] sm:$0xf] %vm3148, %v3202
  %3220 = vst.msk [vmem:[%s3213 + $0x18] sm:$0xf] %vm3148, %v3203
  %3221 = vst.msk [vmem:[%s3213 + $0x1c] sm:$0xf] %vm3148, %v3204
  %v3222 = vmul.f32 %v507, %v3015
  %v3223 = vmul.f32 %v510, %v3020
  %v3224 = vmul.f32 %v515, %v3025
  %v3225 = vmul.f32 %v518, %v3030
  %v3226 = vmul.f32 %v523, %v3035
  %v3227 = vmul.f32 %v526, %v3040
  %v3228 = vmul.f32 %v531, %v3045
  %v3229 = vmul.f32 %v534, %v3050
  %v3230 = vadd.f32 %v3222, %v3063
  %v3231 = vadd.f32 %v3223, %v3068
  %v3232 = vadd.f32 %v3224, %v3073
  %v3233 = vadd.f32 %v3225, %v3078
  %v3234 = vadd.f32 %v3226, %v3083
  %v3235 = vadd.f32 %v3227, %v3088
  %v3236 = vadd.f32 %v3228, %v3093
  %v3237 = vadd.f32 %v3229, %v3098
  %v3238 = vmax.f32 %v3230, 0.0
  %v3239 = vmax.f32 %v3231, 0.0
  %v3240 = vmax.f32 %v3232, 0.0
  %v3241 = vmax.f32 %v3233, 0.0
  %v3242 = vmax.f32 %v3234, 0.0
  %v3243 = vmax.f32 %v3235, 0.0
  %v3244 = vmax.f32 %v3236, 0.0
  %v3245 = vmax.f32 %v3237, 0.0
  %v3246 = vpack.c.bf16 %v3239, %v3238
  %v3247 = vpack.c.bf16 %v3241, %v3240
  %v3248 = vpack.c.bf16 %v3243, %v3242
  %v3249 = vpack.c.bf16 %v3245, %v3244
  %v3254 = vunpack.c.l.b16 %v3246
  %v3255 = vunpack.c.h.b16 %v3246
  %v3256 = vunpack.c.l.b16 %v3247
  %v3257 = vunpack.c.h.b16 %v3247
  %v3258 = vunpack.c.l.b16 %v3248
  %v3259 = vunpack.c.h.b16 %v3248
  %v3260 = vunpack.c.l.b16 %v3249
  %v3261 = vunpack.c.h.b16 %v3249
  %v3262 = vpack.c.b16 %v3254, %v3254
  %v3263 = vpack.c.b16 %v3255, %v3255
  %v3264 = vpack.c.b16 %v3256, %v3256
  %v3265 = vpack.c.b16 %v3257, %v3257
  %v3266 = vpack.c.b16 %v3258, %v3258
  %v3267 = vpack.c.b16 %v3259, %v3259
  %v3268 = vpack.c.b16 %v3260, %v3260
  %v3269 = vpack.c.b16 %v3261, %v3261
  %s3278 = scalar_lea.vmem %s4, 64
  %3279 = vst.msk [vmem:[%s3278] sm:$0xf] %vm3148, %v3262
  %3280 = vst.msk [vmem:[%s3278 + $0x4] sm:$0xf] %vm3148, %v3263
  %3281 = vst.msk [vmem:[%s3278 + $0x8] sm:$0xf] %vm3148, %v3264
  %3282 = vst.msk [vmem:[%s3278 + $0xc] sm:$0xf] %vm3148, %v3265
  %3283 = vst.msk [vmem:[%s3278 + $0x10] sm:$0xf] %vm3148, %v3266
  %3284 = vst.msk [vmem:[%s3278 + $0x14] sm:$0xf] %vm3148, %v3267
  %3285 = vst.msk [vmem:[%s3278 + $0x18] sm:$0xf] %vm3148, %v3268
  %3286 = vst.msk [vmem:[%s3278 + $0x1c] sm:$0xf] %vm3148, %v3269
  %v3287 = vmul.f32 %v685, %v3015
  %v3288 = vmul.f32 %v688, %v3020
  %v3289 = vmul.f32 %v693, %v3025
  %v3290 = vmul.f32 %v696, %v3030
  %v3291 = vmul.f32 %v701, %v3035
  %v3292 = vmul.f32 %v704, %v3040
  %v3293 = vmul.f32 %v709, %v3045
  %v3294 = vmul.f32 %v712, %v3050
  %v3295 = vadd.f32 %v3287, %v3063
  %v3296 = vadd.f32 %v3288, %v3068
  %v3297 = vadd.f32 %v3289, %v3073
  %v3298 = vadd.f32 %v3290, %v3078
  %v3299 = vadd.f32 %v3291, %v3083
  %v3300 = vadd.f32 %v3292, %v3088
  %v3301 = vadd.f32 %v3293, %v3093
  %v3302 = vadd.f32 %v3294, %v3098
  %v3303 = vmax.f32 %v3295, 0.0
  %v3304 = vmax.f32 %v3296, 0.0
  %v3305 = vmax.f32 %v3297, 0.0
  %v3306 = vmax.f32 %v3298, 0.0
  %v3307 = vmax.f32 %v3299, 0.0
  %v3308 = vmax.f32 %v3300, 0.0
  %v3309 = vmax.f32 %v3301, 0.0
  %v3310 = vmax.f32 %v3302, 0.0
  %v3311 = vpack.c.bf16 %v3304, %v3303
  %v3312 = vpack.c.bf16 %v3306, %v3305
  %v3313 = vpack.c.bf16 %v3308, %v3307
  %v3314 = vpack.c.bf16 %v3310, %v3309
  %v3319 = vunpack.c.l.b16 %v3311
  %v3320 = vunpack.c.h.b16 %v3311
  %v3321 = vunpack.c.l.b16 %v3312
  %v3322 = vunpack.c.h.b16 %v3312
  %v3323 = vunpack.c.l.b16 %v3313
  %v3324 = vunpack.c.h.b16 %v3313
  %v3325 = vunpack.c.l.b16 %v3314
  %v3326 = vunpack.c.h.b16 %v3314
  %v3327 = vpack.c.b16 %v3319, %v3319
  %v3328 = vpack.c.b16 %v3320, %v3320
  %v3329 = vpack.c.b16 %v3321, %v3321
  %v3330 = vpack.c.b16 %v3322, %v3322
  %v3331 = vpack.c.b16 %v3323, %v3323
  %v3332 = vpack.c.b16 %v3324, %v3324
  %v3333 = vpack.c.b16 %v3325, %v3325
  %v3334 = vpack.c.b16 %v3326, %v3326
  %s3343 = scalar_lea.vmem %s4, 96
  %3344 = vst.msk [vmem:[%s3343] sm:$0xf] %vm3148, %v3327
  %3345 = vst.msk [vmem:[%s3343 + $0x4] sm:$0xf] %vm3148, %v3328
  %3346 = vst.msk [vmem:[%s3343 + $0x8] sm:$0xf] %vm3148, %v3329
  %3347 = vst.msk [vmem:[%s3343 + $0xc] sm:$0xf] %vm3148, %v3330
  %3348 = vst.msk [vmem:[%s3343 + $0x10] sm:$0xf] %vm3148, %v3331
  %3349 = vst.msk [vmem:[%s3343 + $0x14] sm:$0xf] %vm3148, %v3332
  %3350 = vst.msk [vmem:[%s3343 + $0x18] sm:$0xf] %vm3148, %v3333
  %3351 = vst.msk [vmem:[%s3343 + $0x1c] sm:$0xf] %vm3148, %v3334
  %v3352 = vmul.f32 %v863, %v3015
  %v3353 = vmul.f32 %v866, %v3020
  %v3354 = vmul.f32 %v871, %v3025
  %v3355 = vmul.f32 %v874, %v3030
  %v3356 = vmul.f32 %v879, %v3035
  %v3357 = vmul.f32 %v882, %v3040
  %v3358 = vmul.f32 %v887, %v3045
  %v3359 = vmul.f32 %v890, %v3050
  %v3360 = vadd.f32 %v3352, %v3063
  %v3361 = vadd.f32 %v3353, %v3068
  %v3362 = vadd.f32 %v3354, %v3073
  %v3363 = vadd.f32 %v3355, %v3078
  %v3364 = vadd.f32 %v3356, %v3083
  %v3365 = vadd.f32 %v3357, %v3088
  %v3366 = vadd.f32 %v3358, %v3093
  %v3367 = vadd.f32 %v3359, %v3098
  %v3368 = vmax.f32 %v3360, 0.0
  %v3369 = vmax.f32 %v3361, 0.0
  %v3370 = vmax.f32 %v3362, 0.0
  %v3371 = vmax.f32 %v3363, 0.0
  %v3372 = vmax.f32 %v3364, 0.0
  %v3373 = vmax.f32 %v3365, 0.0
  %v3374 = vmax.f32 %v3366, 0.0
  %v3375 = vmax.f32 %v3367, 0.0
  %v3376 = vpack.c.bf16 %v3369, %v3368
  %v3377 = vpack.c.bf16 %v3371, %v3370
  %v3378 = vpack.c.bf16 %v3373, %v3372
  %v3379 = vpack.c.bf16 %v3375, %v3374
  %v3384 = vunpack.c.l.b16 %v3376
  %v3385 = vunpack.c.h.b16 %v3376
  %v3386 = vunpack.c.l.b16 %v3377
  %v3387 = vunpack.c.h.b16 %v3377
  %v3388 = vunpack.c.l.b16 %v3378
  %v3389 = vunpack.c.h.b16 %v3378
  %v3390 = vunpack.c.l.b16 %v3379
  %v3391 = vunpack.c.h.b16 %v3379
  %v3392 = vpack.c.b16 %v3384, %v3384
  %v3393 = vpack.c.b16 %v3385, %v3385
  %v3394 = vpack.c.b16 %v3386, %v3386
  %v3395 = vpack.c.b16 %v3387, %v3387
  %v3396 = vpack.c.b16 %v3388, %v3388
  %v3397 = vpack.c.b16 %v3389, %v3389
  %v3398 = vpack.c.b16 %v3390, %v3390
  %v3399 = vpack.c.b16 %v3391, %v3391
  %s3408 = scalar_lea.vmem %s4, 128
  %3409 = vst.msk [vmem:[%s3408] sm:$0xf] %vm3148, %v3392
  %3410 = vst.msk [vmem:[%s3408 + $0x4] sm:$0xf] %vm3148, %v3393
  %3411 = vst.msk [vmem:[%s3408 + $0x8] sm:$0xf] %vm3148, %v3394
  %3412 = vst.msk [vmem:[%s3408 + $0xc] sm:$0xf] %vm3148, %v3395
  %3413 = vst.msk [vmem:[%s3408 + $0x10] sm:$0xf] %vm3148, %v3396
  %3414 = vst.msk [vmem:[%s3408 + $0x14] sm:$0xf] %vm3148, %v3397
  %3415 = vst.msk [vmem:[%s3408 + $0x18] sm:$0xf] %vm3148, %v3398
  %3416 = vst.msk [vmem:[%s3408 + $0x1c] sm:$0xf] %vm3148, %v3399
  %v3417 = vmul.f32 %v1041, %v3015
  %v3418 = vmul.f32 %v1044, %v3020
  %v3419 = vmul.f32 %v1049, %v3025
  %v3420 = vmul.f32 %v1052, %v3030
  %v3421 = vmul.f32 %v1057, %v3035
  %v3422 = vmul.f32 %v1060, %v3040
  %v3423 = vmul.f32 %v1065, %v3045
  %v3424 = vmul.f32 %v1068, %v3050
  %v3425 = vadd.f32 %v3417, %v3063
  %v3426 = vadd.f32 %v3418, %v3068
  %v3427 = vadd.f32 %v3419, %v3073
  %v3428 = vadd.f32 %v3420, %v3078
  %v3429 = vadd.f32 %v3421, %v3083
  %v3430 = vadd.f32 %v3422, %v3088
  %v3431 = vadd.f32 %v3423, %v3093
  %v3432 = vadd.f32 %v3424, %v3098
  %v3433 = vmax.f32 %v3425, 0.0
  %v3434 = vmax.f32 %v3426, 0.0
  %v3435 = vmax.f32 %v3427, 0.0
  %v3436 = vmax.f32 %v3428, 0.0
  %v3437 = vmax.f32 %v3429, 0.0
  %v3438 = vmax.f32 %v3430, 0.0
  %v3439 = vmax.f32 %v3431, 0.0
  %v3440 = vmax.f32 %v3432, 0.0
  %v3441 = vpack.c.bf16 %v3434, %v3433
  %v3442 = vpack.c.bf16 %v3436, %v3435
  %v3443 = vpack.c.bf16 %v3438, %v3437
  %v3444 = vpack.c.bf16 %v3440, %v3439
  %v3449 = vunpack.c.l.b16 %v3441
  %v3450 = vunpack.c.h.b16 %v3441
  %v3451 = vunpack.c.l.b16 %v3442
  %v3452 = vunpack.c.h.b16 %v3442
  %v3453 = vunpack.c.l.b16 %v3443
  %v3454 = vunpack.c.h.b16 %v3443
  %v3455 = vunpack.c.l.b16 %v3444
  %v3456 = vunpack.c.h.b16 %v3444
  %v3457 = vpack.c.b16 %v3449, %v3449
  %v3458 = vpack.c.b16 %v3450, %v3450
  %v3459 = vpack.c.b16 %v3451, %v3451
  %v3460 = vpack.c.b16 %v3452, %v3452
  %v3461 = vpack.c.b16 %v3453, %v3453
  %v3462 = vpack.c.b16 %v3454, %v3454
  %v3463 = vpack.c.b16 %v3455, %v3455
  %v3464 = vpack.c.b16 %v3456, %v3456
  %s3473 = scalar_lea.vmem %s4, 160
  %3474 = vst.msk [vmem:[%s3473] sm:$0xf] %vm3148, %v3457
  %3475 = vst.msk [vmem:[%s3473 + $0x4] sm:$0xf] %vm3148, %v3458
  %3476 = vst.msk [vmem:[%s3473 + $0x8] sm:$0xf] %vm3148, %v3459
  %3477 = vst.msk [vmem:[%s3473 + $0xc] sm:$0xf] %vm3148, %v3460
  %3478 = vst.msk [vmem:[%s3473 + $0x10] sm:$0xf] %vm3148, %v3461
  %3479 = vst.msk [vmem:[%s3473 + $0x14] sm:$0xf] %vm3148, %v3462
  %3480 = vst.msk [vmem:[%s3473 + $0x18] sm:$0xf] %vm3148, %v3463
  %3481 = vst.msk [vmem:[%s3473 + $0x1c] sm:$0xf] %vm3148, %v3464
  %v3482 = vmul.f32 %v1219, %v3015
  %v3483 = vmul.f32 %v1222, %v3020
  %v3484 = vmul.f32 %v1227, %v3025
  %v3485 = vmul.f32 %v1230, %v3030
  %v3486 = vmul.f32 %v1235, %v3035
  %v3487 = vmul.f32 %v1238, %v3040
  %v3488 = vmul.f32 %v1243, %v3045
  %v3489 = vmul.f32 %v1246, %v3050
  %v3490 = vadd.f32 %v3482, %v3063
  %v3491 = vadd.f32 %v3483, %v3068
  %v3492 = vadd.f32 %v3484, %v3073
  %v3493 = vadd.f32 %v3485, %v3078
  %v3494 = vadd.f32 %v3486, %v3083
  %v3495 = vadd.f32 %v3487, %v3088
  %v3496 = vadd.f32 %v3488, %v3093
  %v3497 = vadd.f32 %v3489, %v3098
  %v3498 = vmax.f32 %v3490, 0.0
  %v3499 = vmax.f32 %v3491, 0.0
  %v3500 = vmax.f32 %v3492, 0.0
  %v3501 = vmax.f32 %v3493, 0.0
  %v3502 = vmax.f32 %v3494, 0.0
  %v3503 = vmax.f32 %v3495, 0.0
  %v3504 = vmax.f32 %v3496, 0.0
  %v3505 = vmax.f32 %v3497, 0.0
  %v3506 = vpack.c.bf16 %v3499, %v3498
  %v3507 = vpack.c.bf16 %v3501, %v3500
  %v3508 = vpack.c.bf16 %v3503, %v3502
  %v3509 = vpack.c.bf16 %v3505, %v3504
  %v3514 = vunpack.c.l.b16 %v3506
  %v3515 = vunpack.c.h.b16 %v3506
  %v3516 = vunpack.c.l.b16 %v3507
  %v3517 = vunpack.c.h.b16 %v3507
  %v3518 = vunpack.c.l.b16 %v3508
  %v3519 = vunpack.c.h.b16 %v3508
  %v3520 = vunpack.c.l.b16 %v3509
  %v3521 = vunpack.c.h.b16 %v3509
  %v3522 = vpack.c.b16 %v3514, %v3514
  %v3523 = vpack.c.b16 %v3515, %v3515
  %v3524 = vpack.c.b16 %v3516, %v3516
  %v3525 = vpack.c.b16 %v3517, %v3517
  %v3526 = vpack.c.b16 %v3518, %v3518
  %v3527 = vpack.c.b16 %v3519, %v3519
  %v3528 = vpack.c.b16 %v3520, %v3520
  %v3529 = vpack.c.b16 %v3521, %v3521
  %s3538 = scalar_lea.vmem %s4, 192
  %3539 = vst.msk [vmem:[%s3538] sm:$0xf] %vm3148, %v3522
  %3540 = vst.msk [vmem:[%s3538 + $0x4] sm:$0xf] %vm3148, %v3523
  %3541 = vst.msk [vmem:[%s3538 + $0x8] sm:$0xf] %vm3148, %v3524
  %3542 = vst.msk [vmem:[%s3538 + $0xc] sm:$0xf] %vm3148, %v3525
  %3543 = vst.msk [vmem:[%s3538 + $0x10] sm:$0xf] %vm3148, %v3526
  %3544 = vst.msk [vmem:[%s3538 + $0x14] sm:$0xf] %vm3148, %v3527
  %3545 = vst.msk [vmem:[%s3538 + $0x18] sm:$0xf] %vm3148, %v3528
  %3546 = vst.msk [vmem:[%s3538 + $0x1c] sm:$0xf] %vm3148, %v3529
  %v3547 = vmul.f32 %v1397, %v3015
  %v3548 = vmul.f32 %v1400, %v3020
  %v3549 = vmul.f32 %v1405, %v3025
  %v3550 = vmul.f32 %v1408, %v3030
  %v3551 = vmul.f32 %v1413, %v3035
  %v3552 = vmul.f32 %v1416, %v3040
  %v3553 = vmul.f32 %v1421, %v3045
  %v3554 = vmul.f32 %v1424, %v3050
  %v3555 = vadd.f32 %v3547, %v3063
  %v3556 = vadd.f32 %v3548, %v3068
  %v3557 = vadd.f32 %v3549, %v3073
  %v3558 = vadd.f32 %v3550, %v3078
  %v3559 = vadd.f32 %v3551, %v3083
  %v3560 = vadd.f32 %v3552, %v3088
  %v3561 = vadd.f32 %v3553, %v3093
  %v3562 = vadd.f32 %v3554, %v3098
  %v3563 = vmax.f32 %v3555, 0.0
  %v3564 = vmax.f32 %v3556, 0.0
  %v3565 = vmax.f32 %v3557, 0.0
  %v3566 = vmax.f32 %v3558, 0.0
  %v3567 = vmax.f32 %v3559, 0.0
  %v3568 = vmax.f32 %v3560, 0.0
  %v3569 = vmax.f32 %v3561, 0.0
  %v3570 = vmax.f32 %v3562, 0.0
  %v3571 = vpack.c.bf16 %v3564, %v3563
  %v3572 = vpack.c.bf16 %v3566, %v3565
  %v3573 = vpack.c.bf16 %v3568, %v3567
  %v3574 = vpack.c.bf16 %v3570, %v3569
  %v3579 = vunpack.c.l.b16 %v3571
  %v3580 = vunpack.c.h.b16 %v3571
  %v3581 = vunpack.c.l.b16 %v3572
  %v3582 = vunpack.c.h.b16 %v3572
  %v3583 = vunpack.c.l.b16 %v3573
  %v3584 = vunpack.c.h.b16 %v3573
  %v3585 = vunpack.c.l.b16 %v3574
  %v3586 = vunpack.c.h.b16 %v3574
  %v3587 = vpack.c.b16 %v3579, %v3579
  %v3588 = vpack.c.b16 %v3580, %v3580
  %v3589 = vpack.c.b16 %v3581, %v3581
  %v3590 = vpack.c.b16 %v3582, %v3582
  %v3591 = vpack.c.b16 %v3583, %v3583
  %v3592 = vpack.c.b16 %v3584, %v3584
  %v3593 = vpack.c.b16 %v3585, %v3585
  %v3594 = vpack.c.b16 %v3586, %v3586
  %s3603 = scalar_lea.vmem %s4, 224
  %3604 = vst.msk [vmem:[%s3603] sm:$0xf] %vm3148, %v3587
  %3605 = vst.msk [vmem:[%s3603 + $0x4] sm:$0xf] %vm3148, %v3588
  %3606 = vst.msk [vmem:[%s3603 + $0x8] sm:$0xf] %vm3148, %v3589
  %3607 = vst.msk [vmem:[%s3603 + $0xc] sm:$0xf] %vm3148, %v3590
  %3608 = vst.msk [vmem:[%s3603 + $0x10] sm:$0xf] %vm3148, %v3591
  %3609 = vst.msk [vmem:[%s3603 + $0x14] sm:$0xf] %vm3148, %v3592
  %3610 = vst.msk [vmem:[%s3603 + $0x18] sm:$0xf] %vm3148, %v3593
  %3611 = vst.msk [vmem:[%s3603 + $0x1c] sm:$0xf] %vm3148, %v3594
  %v3612 = vmul.f32 %v1575, %v3015
  %v3613 = vmul.f32 %v1578, %v3020
  %v3614 = vmul.f32 %v1583, %v3025
  %v3615 = vmul.f32 %v1586, %v3030
  %v3616 = vmul.f32 %v1591, %v3035
  %v3617 = vmul.f32 %v1594, %v3040
  %v3618 = vmul.f32 %v1599, %v3045
  %v3619 = vmul.f32 %v1602, %v3050
  %v3620 = vadd.f32 %v3612, %v3063
  %v3621 = vadd.f32 %v3613, %v3068
  %v3622 = vadd.f32 %v3614, %v3073
  %v3623 = vadd.f32 %v3615, %v3078
  %v3624 = vadd.f32 %v3616, %v3083
  %v3625 = vadd.f32 %v3617, %v3088
  %v3626 = vadd.f32 %v3618, %v3093
  %v3627 = vadd.f32 %v3619, %v3098
  %v3628 = vmax.f32 %v3620, 0.0
  %v3629 = vmax.f32 %v3621, 0.0
  %v3630 = vmax.f32 %v3622, 0.0
  %v3631 = vmax.f32 %v3623, 0.0
  %v3632 = vmax.f32 %v3624, 0.0
  %v3633 = vmax.f32 %v3625, 0.0
  %v3634 = vmax.f32 %v3626, 0.0
  %v3635 = vmax.f32 %v3627, 0.0
  %v3636 = vpack.c.bf16 %v3629, %v3628
  %v3637 = vpack.c.bf16 %v3631, %v3630
  %v3638 = vpack.c.bf16 %v3633, %v3632
  %v3639 = vpack.c.bf16 %v3635, %v3634
  %v3644 = vunpack.c.l.b16 %v3636
  %v3645 = vunpack.c.h.b16 %v3636
  %v3646 = vunpack.c.l.b16 %v3637
  %v3647 = vunpack.c.h.b16 %v3637
  %v3648 = vunpack.c.l.b16 %v3638
  %v3649 = vunpack.c.h.b16 %v3638
  %v3650 = vunpack.c.l.b16 %v3639
  %v3651 = vunpack.c.h.b16 %v3639
  %v3652 = vpack.c.b16 %v3644, %v3644
  %v3653 = vpack.c.b16 %v3645, %v3645
  %v3654 = vpack.c.b16 %v3646, %v3646
  %v3655 = vpack.c.b16 %v3647, %v3647
  %v3656 = vpack.c.b16 %v3648, %v3648
  %v3657 = vpack.c.b16 %v3649, %v3649
  %v3658 = vpack.c.b16 %v3650, %v3650
  %v3659 = vpack.c.b16 %v3651, %v3651
  %s3668 = scalar_lea.vmem %s4, 256
  %3669 = vst.msk [vmem:[%s3668] sm:$0xf] %vm3148, %v3652
  %3670 = vst.msk [vmem:[%s3668 + $0x4] sm:$0xf] %vm3148, %v3653
  %3671 = vst.msk [vmem:[%s3668 + $0x8] sm:$0xf] %vm3148, %v3654
  %3672 = vst.msk [vmem:[%s3668 + $0xc] sm:$0xf] %vm3148, %v3655
  %3673 = vst.msk [vmem:[%s3668 + $0x10] sm:$0xf] %vm3148, %v3656
  %3674 = vst.msk [vmem:[%s3668 + $0x14] sm:$0xf] %vm3148, %v3657
  %3675 = vst.msk [vmem:[%s3668 + $0x18] sm:$0xf] %vm3148, %v3658
  %3676 = vst.msk [vmem:[%s3668 + $0x1c] sm:$0xf] %vm3148, %v3659
  %v3677 = vmul.f32 %v1753, %v3015
  %v3678 = vmul.f32 %v1756, %v3020
  %v3679 = vmul.f32 %v1761, %v3025
  %v3680 = vmul.f32 %v1764, %v3030
  %v3681 = vmul.f32 %v1769, %v3035
  %v3682 = vmul.f32 %v1772, %v3040
  %v3683 = vmul.f32 %v1777, %v3045
  %v3684 = vmul.f32 %v1780, %v3050
  %v3685 = vadd.f32 %v3677, %v3063
  %v3686 = vadd.f32 %v3678, %v3068
  %v3687 = vadd.f32 %v3679, %v3073
  %v3688 = vadd.f32 %v3680, %v3078
  %v3689 = vadd.f32 %v3681, %v3083
  %v3690 = vadd.f32 %v3682, %v3088
  %v3691 = vadd.f32 %v3683, %v3093
  %v3692 = vadd.f32 %v3684, %v3098
  %v3693 = vmax.f32 %v3685, 0.0
  %v3694 = vmax.f32 %v3686, 0.0
  %v3695 = vmax.f32 %v3687, 0.0
  %v3696 = vmax.f32 %v3688, 0.0
  %v3697 = vmax.f32 %v3689, 0.0
  %v3698 = vmax.f32 %v3690, 0.0
  %v3699 = vmax.f32 %v3691, 0.0
  %v3700 = vmax.f32 %v3692, 0.0
  %v3701 = vpack.c.bf16 %v3694, %v3693
  %v3702 = vpack.c.bf16 %v3696, %v3695
  %v3703 = vpack.c.bf16 %v3698, %v3697
  %v3704 = vpack.c.bf16 %v3700, %v3699
  %v3709 = vunpack.c.l.b16 %v3701
  %v3710 = vunpack.c.h.b16 %v3701
  %v3711 = vunpack.c.l.b16 %v3702
  %v3712 = vunpack.c.h.b16 %v3702
  %v3713 = vunpack.c.l.b16 %v3703
  %v3714 = vunpack.c.h.b16 %v3703
  %v3715 = vunpack.c.l.b16 %v3704
  %v3716 = vunpack.c.h.b16 %v3704
  %v3717 = vpack.c.b16 %v3709, %v3709
  %v3718 = vpack.c.b16 %v3710, %v3710
  %v3719 = vpack.c.b16 %v3711, %v3711
  %v3720 = vpack.c.b16 %v3712, %v3712
  %v3721 = vpack.c.b16 %v3713, %v3713
  %v3722 = vpack.c.b16 %v3714, %v3714
  %v3723 = vpack.c.b16 %v3715, %v3715
  %v3724 = vpack.c.b16 %v3716, %v3716
  %s3733 = scalar_lea.vmem %s4, 288
  %3734 = vst.msk [vmem:[%s3733] sm:$0xf] %vm3148, %v3717
  %3735 = vst.msk [vmem:[%s3733 + $0x4] sm:$0xf] %vm3148, %v3718
  %3736 = vst.msk [vmem:[%s3733 + $0x8] sm:$0xf] %vm3148, %v3719
  %3737 = vst.msk [vmem:[%s3733 + $0xc] sm:$0xf] %vm3148, %v3720
  %3738 = vst.msk [vmem:[%s3733 + $0x10] sm:$0xf] %vm3148, %v3721
  %3739 = vst.msk [vmem:[%s3733 + $0x14] sm:$0xf] %vm3148, %v3722
  %3740 = vst.msk [vmem:[%s3733 + $0x18] sm:$0xf] %vm3148, %v3723
  %3741 = vst.msk [vmem:[%s3733 + $0x1c] sm:$0xf] %vm3148, %v3724
  %v3742 = vmul.f32 %v1931, %v3015
  %v3743 = vmul.f32 %v1934, %v3020
  %v3744 = vmul.f32 %v1939, %v3025
  %v3745 = vmul.f32 %v1942, %v3030
  %v3746 = vmul.f32 %v1947, %v3035
  %v3747 = vmul.f32 %v1950, %v3040
  %v3748 = vmul.f32 %v1955, %v3045
  %v3749 = vmul.f32 %v1958, %v3050
  %v3750 = vadd.f32 %v3742, %v3063
  %v3751 = vadd.f32 %v3743, %v3068
  %v3752 = vadd.f32 %v3744, %v3073
  %v3753 = vadd.f32 %v3745, %v3078
  %v3754 = vadd.f32 %v3746, %v3083
  %v3755 = vadd.f32 %v3747, %v3088
  %v3756 = vadd.f32 %v3748, %v3093
  %v3757 = vadd.f32 %v3749, %v3098
  %v3758 = vmax.f32 %v3750, 0.0
  %v3759 = vmax.f32 %v3751, 0.0
  %v3760 = vmax.f32 %v3752, 0.0
  %v3761 = vmax.f32 %v3753, 0.0
  %v3762 = vmax.f32 %v3754, 0.0
  %v3763 = vmax.f32 %v3755, 0.0
  %v3764 = vmax.f32 %v3756, 0.0
  %v3765 = vmax.f32 %v3757, 0.0
  %v3766 = vpack.c.bf16 %v3759, %v3758
  %v3767 = vpack.c.bf16 %v3761, %v3760
  %v3768 = vpack.c.bf16 %v3763, %v3762
  %v3769 = vpack.c.bf16 %v3765, %v3764
  %v3774 = vunpack.c.l.b16 %v3766
  %v3775 = vunpack.c.h.b16 %v3766
  %v3776 = vunpack.c.l.b16 %v3767
  %v3777 = vunpack.c.h.b16 %v3767
  %v3778 = vunpack.c.l.b16 %v3768
  %v3779 = vunpack.c.h.b16 %v3768
  %v3780 = vunpack.c.l.b16 %v3769
  %v3781 = vunpack.c.h.b16 %v3769
  %v3782 = vpack.c.b16 %v3774, %v3774
  %v3783 = vpack.c.b16 %v3775, %v3775
  %v3784 = vpack.c.b16 %v3776, %v3776
  %v3785 = vpack.c.b16 %v3777, %v3777
  %v3786 = vpack.c.b16 %v3778, %v3778
  %v3787 = vpack.c.b16 %v3779, %v3779
  %v3788 = vpack.c.b16 %v3780, %v3780
  %v3789 = vpack.c.b16 %v3781, %v3781
  %s3798 = scalar_lea.vmem %s4, 320
  %3799 = vst.msk [vmem:[%s3798] sm:$0xf] %vm3148, %v3782
  %3800 = vst.msk [vmem:[%s3798 + $0x4] sm:$0xf] %vm3148, %v3783
  %3801 = vst.msk [vmem:[%s3798 + $0x8] sm:$0xf] %vm3148, %v3784
  %3802 = vst.msk [vmem:[%s3798 + $0xc] sm:$0xf] %vm3148, %v3785
  %3803 = vst.msk [vmem:[%s3798 + $0x10] sm:$0xf] %vm3148, %v3786
  %3804 = vst.msk [vmem:[%s3798 + $0x14] sm:$0xf] %vm3148, %v3787
  %3805 = vst.msk [vmem:[%s3798 + $0x18] sm:$0xf] %vm3148, %v3788
  %3806 = vst.msk [vmem:[%s3798 + $0x1c] sm:$0xf] %vm3148, %v3789
  %v3807 = vmul.f32 %v2109, %v3015
  %v3808 = vmul.f32 %v2112, %v3020
  %v3809 = vmul.f32 %v2117, %v3025
  %v3810 = vmul.f32 %v2120, %v3030
  %v3811 = vmul.f32 %v2125, %v3035
  %v3812 = vmul.f32 %v2128, %v3040
  %v3813 = vmul.f32 %v2133, %v3045
  %v3814 = vmul.f32 %v2136, %v3050
  %v3815 = vadd.f32 %v3807, %v3063
  %v3816 = vadd.f32 %v3808, %v3068
  %v3817 = vadd.f32 %v3809, %v3073
  %v3818 = vadd.f32 %v3810, %v3078
  %v3819 = vadd.f32 %v3811, %v3083
  %v3820 = vadd.f32 %v3812, %v3088
  %v3821 = vadd.f32 %v3813, %v3093
  %v3822 = vadd.f32 %v3814, %v3098
  %v3823 = vmax.f32 %v3815, 0.0
  %v3824 = vmax.f32 %v3816, 0.0
  %v3825 = vmax.f32 %v3817, 0.0
  %v3826 = vmax.f32 %v3818, 0.0
  %v3827 = vmax.f32 %v3819, 0.0
  %v3828 = vmax.f32 %v3820, 0.0
  %v3829 = vmax.f32 %v3821, 0.0
  %v3830 = vmax.f32 %v3822, 0.0
  %v3831 = vpack.c.bf16 %v3824, %v3823
  %v3832 = vpack.c.bf16 %v3826, %v3825
  %v3833 = vpack.c.bf16 %v3828, %v3827
  %v3834 = vpack.c.bf16 %v3830, %v3829
  %v3839 = vunpack.c.l.b16 %v3831
  %v3840 = vunpack.c.h.b16 %v3831
  %v3841 = vunpack.c.l.b16 %v3832
  %v3842 = vunpack.c.h.b16 %v3832
  %v3843 = vunpack.c.l.b16 %v3833
  %v3844 = vunpack.c.h.b16 %v3833
  %v3845 = vunpack.c.l.b16 %v3834
  %v3846 = vunpack.c.h.b16 %v3834
  %v3847 = vpack.c.b16 %v3839, %v3839
  %v3848 = vpack.c.b16 %v3840, %v3840
  %v3849 = vpack.c.b16 %v3841, %v3841
  %v3850 = vpack.c.b16 %v3842, %v3842
  %v3851 = vpack.c.b16 %v3843, %v3843
  %v3852 = vpack.c.b16 %v3844, %v3844
  %v3853 = vpack.c.b16 %v3845, %v3845
  %v3854 = vpack.c.b16 %v3846, %v3846
  %s3863 = scalar_lea.vmem %s4, 352
  %3864 = vst.msk [vmem:[%s3863] sm:$0xf] %vm3148, %v3847
  %3865 = vst.msk [vmem:[%s3863 + $0x4] sm:$0xf] %vm3148, %v3848
  %3866 = vst.msk [vmem:[%s3863 + $0x8] sm:$0xf] %vm3148, %v3849
  %3867 = vst.msk [vmem:[%s3863 + $0xc] sm:$0xf] %vm3148, %v3850
  %3868 = vst.msk [vmem:[%s3863 + $0x10] sm:$0xf] %vm3148, %v3851
  %3869 = vst.msk [vmem:[%s3863 + $0x14] sm:$0xf] %vm3148, %v3852
  %3870 = vst.msk [vmem:[%s3863 + $0x18] sm:$0xf] %vm3148, %v3853
  %3871 = vst.msk [vmem:[%s3863 + $0x1c] sm:$0xf] %vm3148, %v3854
  %v3872 = vmul.f32 %v2287, %v3015
  %v3873 = vmul.f32 %v2290, %v3020
  %v3874 = vmul.f32 %v2295, %v3025
  %v3875 = vmul.f32 %v2298, %v3030
  %v3876 = vmul.f32 %v2303, %v3035
  %v3877 = vmul.f32 %v2306, %v3040
  %v3878 = vmul.f32 %v2311, %v3045
  %v3879 = vmul.f32 %v2314, %v3050
  %v3880 = vadd.f32 %v3872, %v3063
  %v3881 = vadd.f32 %v3873, %v3068
  %v3882 = vadd.f32 %v3874, %v3073
  %v3883 = vadd.f32 %v3875, %v3078
  %v3884 = vadd.f32 %v3876, %v3083
  %v3885 = vadd.f32 %v3877, %v3088
  %v3886 = vadd.f32 %v3878, %v3093
  %v3887 = vadd.f32 %v3879, %v3098
  %v3888 = vmax.f32 %v3880, 0.0
  %v3889 = vmax.f32 %v3881, 0.0
  %v3890 = vmax.f32 %v3882, 0.0
  %v3891 = vmax.f32 %v3883, 0.0
  %v3892 = vmax.f32 %v3884, 0.0
  %v3893 = vmax.f32 %v3885, 0.0
  %v3894 = vmax.f32 %v3886, 0.0
  %v3895 = vmax.f32 %v3887, 0.0
  %v3896 = vpack.c.bf16 %v3889, %v3888
  %v3897 = vpack.c.bf16 %v3891, %v3890
  %v3898 = vpack.c.bf16 %v3893, %v3892
  %v3899 = vpack.c.bf16 %v3895, %v3894
  %v3904 = vunpack.c.l.b16 %v3896
  %v3905 = vunpack.c.h.b16 %v3896
  %v3906 = vunpack.c.l.b16 %v3897
  %v3907 = vunpack.c.h.b16 %v3897
  %v3908 = vunpack.c.l.b16 %v3898
  %v3909 = vunpack.c.h.b16 %v3898
  %v3910 = vunpack.c.l.b16 %v3899
  %v3911 = vunpack.c.h.b16 %v3899
  %v3912 = vpack.c.b16 %v3904, %v3904
  %v3913 = vpack.c.b16 %v3905, %v3905
  %v3914 = vpack.c.b16 %v3906, %v3906
  %v3915 = vpack.c.b16 %v3907, %v3907
  %v3916 = vpack.c.b16 %v3908, %v3908
  %v3917 = vpack.c.b16 %v3909, %v3909
  %v3918 = vpack.c.b16 %v3910, %v3910
  %v3919 = vpack.c.b16 %v3911, %v3911
  %s3928 = scalar_lea.vmem %s4, 384
  %3929 = vst.msk [vmem:[%s3928] sm:$0xf] %vm3148, %v3912
  %3930 = vst.msk [vmem:[%s3928 + $0x4] sm:$0xf] %vm3148, %v3913
  %3931 = vst.msk [vmem:[%s3928 + $0x8] sm:$0xf] %vm3148, %v3914
  %3932 = vst.msk [vmem:[%s3928 + $0xc] sm:$0xf] %vm3148, %v3915
  %3933 = vst.msk [vmem:[%s3928 + $0x10] sm:$0xf] %vm3148, %v3916
  %3934 = vst.msk [vmem:[%s3928 + $0x14] sm:$0xf] %vm3148, %v3917
  %3935 = vst.msk [vmem:[%s3928 + $0x18] sm:$0xf] %vm3148, %v3918
  %3936 = vst.msk [vmem:[%s3928 + $0x1c] sm:$0xf] %vm3148, %v3919
  %v3937 = vmul.f32 %v2465, %v3015
  %v3938 = vmul.f32 %v2468, %v3020
  %v3939 = vmul.f32 %v2473, %v3025
  %v3940 = vmul.f32 %v2476, %v3030
  %v3941 = vmul.f32 %v2481, %v3035
  %v3942 = vmul.f32 %v2484, %v3040
  %v3943 = vmul.f32 %v2489, %v3045
  %v3944 = vmul.f32 %v2492, %v3050
  %v3945 = vadd.f32 %v3937, %v3063
  %v3946 = vadd.f32 %v3938, %v3068
  %v3947 = vadd.f32 %v3939, %v3073
  %v3948 = vadd.f32 %v3940, %v3078
  %v3949 = vadd.f32 %v3941, %v3083
  %v3950 = vadd.f32 %v3942, %v3088
  %v3951 = vadd.f32 %v3943, %v3093
  %v3952 = vadd.f32 %v3944, %v3098
  %v3953 = vmax.f32 %v3945, 0.0
  %v3954 = vmax.f32 %v3946, 0.0
  %v3955 = vmax.f32 %v3947, 0.0
  %v3956 = vmax.f32 %v3948, 0.0
  %v3957 = vmax.f32 %v3949, 0.0
  %v3958 = vmax.f32 %v3950, 0.0
  %v3959 = vmax.f32 %v3951, 0.0
  %v3960 = vmax.f32 %v3952, 0.0
  %v3961 = vpack.c.bf16 %v3954, %v3953
  %v3962 = vpack.c.bf16 %v3956, %v3955
  %v3963 = vpack.c.bf16 %v3958, %v3957
  %v3964 = vpack.c.bf16 %v3960, %v3959
  %v3969 = vunpack.c.l.b16 %v3961
  %v3970 = vunpack.c.h.b16 %v3961
  %v3971 = vunpack.c.l.b16 %v3962
  %v3972 = vunpack.c.h.b16 %v3962
  %v3973 = vunpack.c.l.b16 %v3963
  %v3974 = vunpack.c.h.b16 %v3963
  %v3975 = vunpack.c.l.b16 %v3964
  %v3976 = vunpack.c.h.b16 %v3964
  %v3977 = vpack.c.b16 %v3969, %v3969
  %v3978 = vpack.c.b16 %v3970, %v3970
  %v3979 = vpack.c.b16 %v3971, %v3971
  %v3980 = vpack.c.b16 %v3972, %v3972
  %v3981 = vpack.c.b16 %v3973, %v3973
  %v3982 = vpack.c.b16 %v3974, %v3974
  %v3983 = vpack.c.b16 %v3975, %v3975
  %v3984 = vpack.c.b16 %v3976, %v3976
  %s3993 = scalar_lea.vmem %s4, 416
  %3994 = vst.msk [vmem:[%s3993] sm:$0xf] %vm3148, %v3977
  %3995 = vst.msk [vmem:[%s3993 + $0x4] sm:$0xf] %vm3148, %v3978
  %3996 = vst.msk [vmem:[%s3993 + $0x8] sm:$0xf] %vm3148, %v3979
  %3997 = vst.msk [vmem:[%s3993 + $0xc] sm:$0xf] %vm3148, %v3980
  %3998 = vst.msk [vmem:[%s3993 + $0x10] sm:$0xf] %vm3148, %v3981
  %3999 = vst.msk [vmem:[%s3993 + $0x14] sm:$0xf] %vm3148, %v3982
  %4000 = vst.msk [vmem:[%s3993 + $0x18] sm:$0xf] %vm3148, %v3983
  %4001 = vst.msk [vmem:[%s3993 + $0x1c] sm:$0xf] %vm3148, %v3984
  %v4002 = vmul.f32 %v2643, %v3015
  %v4003 = vmul.f32 %v2646, %v3020
  %v4004 = vmul.f32 %v2651, %v3025
  %v4005 = vmul.f32 %v2654, %v3030
  %v4006 = vmul.f32 %v2659, %v3035
  %v4007 = vmul.f32 %v2662, %v3040
  %v4008 = vmul.f32 %v2667, %v3045
  %v4009 = vmul.f32 %v2670, %v3050
  %v4010 = vadd.f32 %v4002, %v3063
  %v4011 = vadd.f32 %v4003, %v3068
  %v4012 = vadd.f32 %v4004, %v3073
  %v4013 = vadd.f32 %v4005, %v3078
  %v4014 = vadd.f32 %v4006, %v3083
  %v4015 = vadd.f32 %v4007, %v3088
  %v4016 = vadd.f32 %v4008, %v3093
  %v4017 = vadd.f32 %v4009, %v3098
  %v4018 = vmax.f32 %v4010, 0.0
  %v4019 = vmax.f32 %v4011, 0.0
  %v4020 = vmax.f32 %v4012, 0.0
  %v4021 = vmax.f32 %v4013, 0.0
  %v4022 = vmax.f32 %v4014, 0.0
  %v4023 = vmax.f32 %v4015, 0.0
  %v4024 = vmax.f32 %v4016, 0.0
  %v4025 = vmax.f32 %v4017, 0.0
  %v4026 = vpack.c.bf16 %v4019, %v4018
  %v4027 = vpack.c.bf16 %v4021, %v4020
  %v4028 = vpack.c.bf16 %v4023, %v4022
  %v4029 = vpack.c.bf16 %v4025, %v4024
  %v4034 = vunpack.c.l.b16 %v4026
  %v4035 = vunpack.c.h.b16 %v4026
  %v4036 = vunpack.c.l.b16 %v4027
  %v4037 = vunpack.c.h.b16 %v4027
  %v4038 = vunpack.c.l.b16 %v4028
  %v4039 = vunpack.c.h.b16 %v4028
  %v4040 = vunpack.c.l.b16 %v4029
  %v4041 = vunpack.c.h.b16 %v4029
  %v4042 = vpack.c.b16 %v4034, %v4034
  %v4043 = vpack.c.b16 %v4035, %v4035
  %v4044 = vpack.c.b16 %v4036, %v4036
  %v4045 = vpack.c.b16 %v4037, %v4037
  %v4046 = vpack.c.b16 %v4038, %v4038
  %v4047 = vpack.c.b16 %v4039, %v4039
  %v4048 = vpack.c.b16 %v4040, %v4040
  %v4049 = vpack.c.b16 %v4041, %v4041
  %s4058 = scalar_lea.vmem %s4, 448
  %4059 = vst.msk [vmem:[%s4058] sm:$0xf] %vm3148, %v4042
  %4060 = vst.msk [vmem:[%s4058 + $0x4] sm:$0xf] %vm3148, %v4043
  %4061 = vst.msk [vmem:[%s4058 + $0x8] sm:$0xf] %vm3148, %v4044
  %4062 = vst.msk [vmem:[%s4058 + $0xc] sm:$0xf] %vm3148, %v4045
  %4063 = vst.msk [vmem:[%s4058 + $0x10] sm:$0xf] %vm3148, %v4046
  %4064 = vst.msk [vmem:[%s4058 + $0x14] sm:$0xf] %vm3148, %v4047
  %4065 = vst.msk [vmem:[%s4058 + $0x18] sm:$0xf] %vm3148, %v4048
  %4066 = vst.msk [vmem:[%s4058 + $0x1c] sm:$0xf] %vm3148, %v4049
  %v4067 = vmul.f32 %v2821, %v3015
  %v4068 = vmul.f32 %v2824, %v3020
  %v4069 = vmul.f32 %v2829, %v3025
  %v4070 = vmul.f32 %v2832, %v3030
  %v4071 = vmul.f32 %v2837, %v3035
  %v4072 = vmul.f32 %v2840, %v3040
  %v4073 = vmul.f32 %v2845, %v3045
  %v4074 = vmul.f32 %v2848, %v3050
  %v4075 = vadd.f32 %v4067, %v3063
  %v4076 = vadd.f32 %v4068, %v3068
  %v4077 = vadd.f32 %v4069, %v3073
  %v4078 = vadd.f32 %v4070, %v3078
  %v4079 = vadd.f32 %v4071, %v3083
  %v4080 = vadd.f32 %v4072, %v3088
  %v4081 = vadd.f32 %v4073, %v3093
  %v4082 = vadd.f32 %v4074, %v3098
  %v4083 = vmax.f32 %v4075, 0.0
  %v4084 = vmax.f32 %v4076, 0.0
  %v4085 = vmax.f32 %v4077, 0.0
  %v4086 = vmax.f32 %v4078, 0.0
  %v4087 = vmax.f32 %v4079, 0.0
  %v4088 = vmax.f32 %v4080, 0.0
  %v4089 = vmax.f32 %v4081, 0.0
  %v4090 = vmax.f32 %v4082, 0.0
  %v4091 = vpack.c.bf16 %v4084, %v4083
  %v4092 = vpack.c.bf16 %v4086, %v4085
  %v4093 = vpack.c.bf16 %v4088, %v4087
  %v4094 = vpack.c.bf16 %v4090, %v4089
  %v4099 = vunpack.c.l.b16 %v4091
  %v4100 = vunpack.c.h.b16 %v4091
  %v4101 = vunpack.c.l.b16 %v4092
  %v4102 = vunpack.c.h.b16 %v4092
  %v4103 = vunpack.c.l.b16 %v4093
  %v4104 = vunpack.c.h.b16 %v4093
  %v4105 = vunpack.c.l.b16 %v4094
  %v4106 = vunpack.c.h.b16 %v4094
  %v4107 = vpack.c.b16 %v4099, %v4099
  %v4108 = vpack.c.b16 %v4100, %v4100
  %v4109 = vpack.c.b16 %v4101, %v4101
  %v4110 = vpack.c.b16 %v4102, %v4102
  %v4111 = vpack.c.b16 %v4103, %v4103
  %v4112 = vpack.c.b16 %v4104, %v4104
  %v4113 = vpack.c.b16 %v4105, %v4105
  %v4114 = vpack.c.b16 %v4106, %v4106
  %s4123 = scalar_lea.vmem %s4, 480
  %4124 = vst.msk [vmem:[%s4123] sm:$0xf] %vm3148, %v4107
  %4125 = vst.msk [vmem:[%s4123 + $0x4] sm:$0xf] %vm3148, %v4108
  %4126 = vst.msk [vmem:[%s4123 + $0x8] sm:$0xf] %vm3148, %v4109
  %4127 = vst.msk [vmem:[%s4123 + $0xc] sm:$0xf] %vm3148, %v4110
  %4128 = vst.msk [vmem:[%s4123 + $0x10] sm:$0xf] %vm3148, %v4111
  %4129 = vst.msk [vmem:[%s4123 + $0x14] sm:$0xf] %vm3148, %v4112
  %4130 = vst.msk [vmem:[%s4123 + $0x18] sm:$0xf] %vm3148, %v4113
  %4131 = vst.msk [vmem:[%s4123 + $0x1c] sm:$0xf] %vm3148, %v4114
  // Predicated region
  $region18: #{generator_forward.5} parent=0 // pred_check
    _
  $region19: #{generator_forward.5} parent=0 // pred_check_branch
    %4133 = sbr.rel (0) target = $region21
  $region20: #{generator_forward.5} parent=0 // pred_region
    _
  $region21: #{generator_forward.5} parent=0 // pred_fallthru
    _
  // Predicated region
  $region22: #{generator_forward.5} parent=0 // pred_check
    _
  $region23: #{generator_forward.5} parent=0 // pred_check_branch
    %4135 = sbr.rel (0) target = $region25
  $region24: #{generator_forward.5} parent=0 // pred_region
    _
  $region25: #{generator_forward.5} parent=0 // pred_fallthru
    _

// kernel: generator_forward.8
$region0: #{generator_forward.8}
  #allocation0 [shape = 'u32[]', space=smem, size = 0x4, offset = 0x4, fixed_abs, tag = 'smem constant byte address 0x4 - core index']
  #allocation1 [shape = 'u32[144,128]{1,0:T(1,128)}', space=vmem, size = 0x12000, scoped, tag = 'internal scratch']
  %s0 = inlined_call_operand.vmem [shape: bf16[4,64,512], index: 0, kind: input, shape index: {}]
  %s1 = inlined_call_operand.vmem [shape: bf16[4,8,64], index: 1, kind: input, shape index: {}]
  %s2 = inlined_call_operand.vmem [shape: f32[8,1], index: 2, kind: input, shape index: {}]
  %s3 = inlined_call_operand.vmem [shape: f32[8,1], index: 3, kind: input, shape index: {}]
  %s4 = inlined_call_operand.vmem [shape: bf16[4,8,512], index: 4, kind: output, shape index: {}]
  %s5 = sld [smem:[#allocation0]]
  $region26: #{generator_forward.8} parent=0
    _
  %s7 = ssub.s32 1, %s5
  %s8 = scalar_select 0, %s7, %s5
  // Predicated region
  $region2: #{generator_forward.8} parent=0 // pred_check
    _
  $region3: #{generator_forward.8} parent=0 // pred_check_branch
    %10 = sbr.rel (0) target = $region5
  $region4: #{generator_forward.8} parent=0 // pred_region
    _
  $region5: #{generator_forward.8} parent=0 // pred_fallthru
    _
  // Predicated region
  $region6: #{generator_forward.8} parent=0 // pred_check
    _
  $region7: #{generator_forward.8} parent=0 // pred_check_branch
    %12 = sbr.rel (0) target = $region9
  $region8: #{generator_forward.8} parent=0 // pred_region
    _
  $region9: #{generator_forward.8} parent=0 // pred_fallthru
    _
  // Predicated region
  $region10: #{generator_forward.8} parent=0 // pred_check
    _
  $region11: #{generator_forward.8} parent=0 // pred_check_branch
    %14 = sbr.rel (0) target = $region13
  $region12: #{generator_forward.8} parent=0 // pred_region
    _
  $region13: #{generator_forward.8} parent=0 // pred_fallthru
    _
  // Predicated region
  $region14: #{generator_forward.8} parent=0 // pred_check
    _
  $region15: #{generator_forward.8} parent=0 // pred_check_branch
    %16 = sbr.rel (0) target = $region17
  $region16: #{generator_forward.8} parent=0 // pred_region
    _
  $region17: #{generator_forward.8} parent=0 // pred_fallthru
    _
  %v18 = vld [vmem:[%s1] sm:$0xf]
  %v19 = vld [vmem:[%s0] sm:$0xff]
  %v20 = vld [vmem:[%s0 + $0x8] sm:$0xff]
  %v21 = vld [vmem:[%s0 + $0x10] sm:$0xff]
  %v22 = vld [vmem:[%s0 + $0x18] sm:$0xff]
  %v23 = vld [vmem:[%s0 + $0x20] sm:$0xff]
  %v24 = vld [vmem:[%s0 + $0x28] sm:$0xff]
  %v25 = vld [vmem:[%s0 + $0x30] sm:$0xff]
  %v26 = vld [vmem:[%s0 + $0x38] sm:$0xff]
  %v27 = vld [vmem:[%s0 + $0x40] sm:$0xff]
  %v28 = vld [vmem:[%s0 + $0x48] sm:$0xff]
  %v29 = vld [vmem:[%s0 + $0x50] sm:$0xff]
  %v30 = vld [vmem:[%s0 + $0x58] sm:$0xff]
  %v31 = vld [vmem:[%s0 + $0x60] sm:$0xff]
  %v32 = vld [vmem:[%s0 + $0x68] sm:$0xff]
  %v33 = vld [vmem:[%s0 + $0x70] sm:$0xff]
  %v34 = vld [vmem:[%s0 + $0x78] sm:$0xff]
  %v51 = vunpack.c.l.b16 %v19
  %v52 = vunpack.c.h.b16 %v19
  %v53 = vunpack.c.l.b16 %v20
  %v54 = vunpack.c.h.b16 %v20
  %v55 = vunpack.c.l.b16 %v21
  %v56 = vunpack.c.h.b16 %v21
  %v57 = vunpack.c.l.b16 %v22
  %v58 = vunpack.c.h.b16 %v22
  %v59 = vunpack.c.l.b16 %v23
  %v60 = vunpack.c.h.b16 %v23
  %v61 = vunpack.c.l.b16 %v24
  %v62 = vunpack.c.h.b16 %v24
  %v63 = vunpack.c.l.b16 %v25
  %v64 = vunpack.c.h.b16 %v25
  %v65 = vunpack.c.l.b16 %v26
  %v66 = vunpack.c.h.b16 %v26
  %v67 = vunpack.c.l.b16 %v27
  %v68 = vunpack.c.h.b16 %v27
  %v69 = vunpack.c.l.b16 %v28
  %v70 = vunpack.c.h.b16 %v28
  %v71 = vunpack.c.l.b16 %v29
  %v72 = vunpack.c.h.b16 %v29
  %v73 = vunpack.c.l.b16 %v30
  %v74 = vunpack.c.h.b16 %v30
  %v75 = vunpack.c.l.b16 %v31
  %v76 = vunpack.c.h.b16 %v31
  %v77 = vunpack.c.l.b16 %v32
  %v78 = vunpack.c.h.b16 %v32
  %v79 = vunpack.c.l.b16 %v33
  %v80 = vunpack.c.h.b16 %v33
  %v81 = vunpack.c.l.b16 %v34
  %v82 = vunpack.c.h.b16 %v34
  %v83 = vpack.c.b16 %v55, %v51
  %v84 = vpack.c.b16 %v56, %v52
  %v85 = vpack.c.b16 %v57, %v53
  %v86 = vpack.c.b16 %v58, %v54
  %v87 = vpack.c.b16 %v63, %v59
  %v88 = vpack.c.b16 %v64, %v60
  %v89 = vpack.c.b16 %v65, %v61
  %v90 = vpack.c.b16 %v66, %v62
  %v91 = vpack.c.b16 %v71, %v67
  %v92 = vpack.c.b16 %v72, %v68
  %v93 = vpack.c.b16 %v73, %v69
  %v94 = vpack.c.b16 %v74, %v70
  %v95 = vpack.c.b16 %v79, %v75
  %v96 = vpack.c.b16 %v80, %v76
  %v97 = vpack.c.b16 %v81, %v77
  %v98 = vpack.c.b16 %v82, %v78
  %vm115 = vcmask 523264
  %v117 = vsel %vm115, %v18, 0
  %119 = vmatprep.subr.bf16.mxu0 %v84
  %120 = vmatpush1.bf16.msra.mxu0 %v83
  %121 = vmatprep.subr.bf16.mxu0 %v88
  %122 = vmatpush1.bf16.msra.mxu0 %v87
  %123 = vmatprep.subr.bf16.mxu0 %v92
  %124 = vmatpush1.bf16.msra.mxu0 %v91
  %125 = vmatprep.subr.bf16.mxu0 %v96
  %126 = vmatpush1.bf16.msra.mxu0 %v95
  %127 = vmatprep.subr.bf16.mxu0 0
  %128 = vmatpush1.bf16.msra.mxu0 0
  %129 = vmatprep.subr.bf16.mxu0 0
  %130 = vmatpush1.bf16.msra.mxu0 0
  %131 = vmatprep.subr.bf16.mxu0 0
  %132 = vmatpush1.bf16.msra.mxu0 0
  %133 = vmatprep.subr.bf16.mxu0 0
  %134 = vmatpush1.bf16.msra.mxu0 0
  %135 = vmatprep.subr.bf16.mxu0 0
  %136 = vmatpush1.bf16.msra.mxu0 0
  %137 = vmatprep.subr.bf16.mxu0 0
  %138 = vmatpush1.bf16.msra.mxu0 0
  %139 = vmatprep.subr.bf16.mxu0 0
  %140 = vmatpush1.bf16.msra.mxu0 0
  %141 = vmatprep.subr.bf16.mxu0 0
  %142 = vmatpush1.bf16.msra.mxu0 0
  %143 = vmatprep.subr.bf16.mxu0 0
  %144 = vmatpush1.bf16.msra.mxu0 0
  %145 = vmatprep.subr.bf16.mxu0 0
  %146 = vmatpush1.bf16.msra.mxu0 0
  %147 = vmatprep.subr.bf16.mxu0 0
  %148 = vmatpush1.bf16.msra.mxu0 0
  %149 = vmatprep.subr.bf16.mxu0 0
  %150 = vmatpush1.bf16.msra.mxu0 0
  %151 = vmatprep.mubr.bf16.mxu0 0
  %152 = vmatmul.mubr.bf16.gmra.mrb[0].mxu0 %v117
  %v153 = vpop.f32.mrb[0].mxu0
  %v154 = vadd.f32 0.0, %v153
  %v155 = vpop.f32.mrb[0].mxu0
  %v156 = vadd.f32 0.0, %v155
  %v157 = vpop.f32.mrb[0].mxu0
  %v158 = vpop.f32.mrb[0].mxu0
  %159 = vdwg.mxu0
  %160 = vmatprep.subr.bf16.mxu0 %v86
  %161 = vmatpush1.bf16.msra.mxu0 %v85
  %162 = vmatprep.subr.bf16.mxu0 %v90
  %163 = vmatpush1.bf16.msra.mxu0 %v89
  %164 = vmatprep.subr.bf16.mxu0 %v94
  %165 = vmatpush1.bf16.msra.mxu0 %v93
  %166 = vmatprep.subr.bf16.mxu0 %v98
  %167 = vmatpush1.bf16.msra.mxu0 %v97
  %168 = vmatprep.subr.bf16.mxu0 0
  %169 = vmatpush1.bf16.msra.mxu0 0
  %170 = vmatprep.subr.bf16.mxu0 0
  %171 = vmatpush1.bf16.msra.mxu0 0
  %172 = vmatprep.subr.bf16.mxu0 0
  %173 = vmatpush1.bf16.msra.mxu0 0
  %174 = vmatprep.subr.bf16.mxu0 0
  %175 = vmatpush1.bf16.msra.mxu0 0
  %176 = vmatprep.subr.bf16.mxu0 0
  %177 = vmatpush1.bf16.msra.mxu0 0
  %178 = vmatprep.subr.bf16.mxu0 0
  %179 = vmatpush1.bf16.msra.mxu0 0
  %180 = vmatprep.subr.bf16.mxu0 0
  %181 = vmatpush1.bf16.msra.mxu0 0
  %182 = vmatprep.subr.bf16.mxu0 0
  %183 = vmatpush1.bf16.msra.mxu0 0
  %184 = vmatprep.subr.bf16.mxu0 0
  %185 = vmatpush1.bf16.msra.mxu0 0
  %186 = vmatprep.subr.bf16.mxu0 0
  %187 = vmatpush1.bf16.msra.mxu0 0
  %188 = vmatprep.subr.bf16.mxu0 0
  %189 = vmatpush1.bf16.msra.mxu0 0
  %190 = vmatprep.subr.bf16.mxu0 0
  %191 = vmatpush1.bf16.msra.mxu0 0
  %192 = vmatprep.mubr.bf16.mxu0 0
  %193 = vmatmul.mubr.bf16.gmra.mrb[0].mxu0 %v117
  %v194 = vpop.f32.mrb[0].mxu0
  %v195 = vadd.f32 0.0, %v194
  %v196 = vpop.f32.mrb[0].mxu0
  %v197 = vadd.f32 0.0, %v196
  %v198 = vpop.f32.mrb[0].mxu0
  %v199 = vpop.f32.mrb[0].mxu0
  %200 = vdwg.mxu0
  %v201 = vadd.f32 %v154, %v156
  %v202 = vadd.f32 %v201, %v195
  %v203 = vadd.f32 %v202, %v197
  %204 = vadd.xlane.f32.xlu0 %v203
  %v205 = vpop.xlane.xlu0 %204
  %v206 = vadd.f32 %v205, 0.0
  %v207 = vmul.f32 %v154, %v154
  %v208 = vmul.f32 %v156, %v156
  %v209 = vmul.f32 %v195, %v195
  %v210 = vmul.f32 %v197, %v197
  %v211 = vadd.f32 %v207, %v208
  %v212 = vadd.f32 %v211, %v209
  %v213 = vadd.f32 %v212, %v210
  %214 = vadd.xlane.f32.xlu0 %v213
  %v215 = vpop.xlane.xlu0 %214
  %v216 = vadd.f32 %v215, 0.0
  %s217 = scalar_lea.vmem %s1, 4
  %v218 = vld [vmem:[%s217] sm:$0xf]
  %s219 = scalar_lea.vmem %s0, 128
  %v220 = vld [vmem:[%s219] sm:$0xff]
  %v221 = vld [vmem:[%s219 + $0x8] sm:$0xff]
  %v222 = vld [vmem:[%s219 + $0x10] sm:$0xff]
  %v223 = vld [vmem:[%s219 + $0x18] sm:$0xff]
  %v224 = vld [vmem:[%s219 + $0x20] sm:$0xff]
  %v225 = vld [vmem:[%s219 + $0x28] sm:$0xff]
  %v226 = vld [vmem:[%s219 + $0x30] sm:$0xff]
  %v227 = vld [vmem:[%s219 + $0x38] sm:$0xff]
  %v228 = vld [vmem:[%s219 + $0x40] sm:$0xff]
  %v229 = vld [vmem:[%s219 + $0x48] sm:$0xff]
  %v230 = vld [vmem:[%s219 + $0x50] sm:$0xff]
  %v231 = vld [vmem:[%s219 + $0x58] sm:$0xff]
  %v232 = vld [vmem:[%s219 + $0x60] sm:$0xff]
  %v233 = vld [vmem:[%s219 + $0x68] sm:$0xff]
  %v234 = vld [vmem:[%s219 + $0x70] sm:$0xff]
  %v235 = vld [vmem:[%s219 + $0x78] sm:$0xff]
  %v252 = vunpack.c.l.b16 %v220
  %v253 = vunpack.c.h.b16 %v220
  %v254 = vunpack.c.l.b16 %v221
  %v255 = vunpack.c.h.b16 %v221
  %v256 = vunpack.c.l.b16 %v222
  %v257 = vunpack.c.h.b16 %v222
  %v258 = vunpack.c.l.b16 %v223
  %v259 = vunpack.c.h.b16 %v223
  %v260 = vunpack.c.l.b16 %v224
  %v261 = vunpack.c.h.b16 %v224
  %v262 = vunpack.c.l.b16 %v225
  %v263 = vunpack.c.h.b16 %v225
  %v264 = vunpack.c.l.b16 %v226
  %v265 = vunpack.c.h.b16 %v226
  %v266 = vunpack.c.l.b16 %v227
  %v267 = vunpack.c.h.b16 %v227
  %v268 = vunpack.c.l.b16 %v228
  %v269 = vunpack.c.h.b16 %v228
  %v270 = vunpack.c.l.b16 %v229
  %v271 = vunpack.c.h.b16 %v229
  %v272 = vunpack.c.l.b16 %v230
  %v273 = vunpack.c.h.b16 %v230
  %v274 = vunpack.c.l.b16 %v231
  %v275 = vunpack.c.h.b16 %v231
  %v276 = vunpack.c.l.b16 %v232
  %v277 = vunpack.c.h.b16 %v232
  %v278 = vunpack.c.l.b16 %v233
  %v279 = vunpack.c.h.b16 %v233
  %v280 = vunpack.c.l.b16 %v234
  %v281 = vunpack.c.h.b16 %v234
  %v282 = vunpack.c.l.b16 %v235
  %v283 = vunpack.c.h.b16 %v235
  %v284 = vpack.c.b16 %v256, %v252
  %v285 = vpack.c.b16 %v257, %v253
  %v286 = vpack.c.b16 %v258, %v254
  %v287 = vpack.c.b16 %v259, %v255
  %v288 = vpack.c.b16 %v264, %v260
  %v289 = vpack.c.b16 %v265, %v261
  %v290 = vpack.c.b16 %v266, %v262
  %v291 = vpack.c.b16 %v267, %v263
  %v292 = vpack.c.b16 %v272, %v268
  %v293 = vpack.c.b16 %v273, %v269
  %v294 = vpack.c.b16 %v274, %v270
  %v295 = vpack.c.b16 %v275, %v271
  %v296 = vpack.c.b16 %v280, %v276
  %v297 = vpack.c.b16 %v281, %v277
  %v298 = vpack.c.b16 %v282, %v278
  %v299 = vpack.c.b16 %v283, %v279
  %v317 = vsel %vm115, %v218, 0
  %319 = vmatprep.subr.bf16.mxu0 %v285
  %320 = vmatpush1.bf16.msra.mxu0 %v284
  %321 = vmatprep.subr.bf16.mxu0 %v289
  %322 = vmatpush1.bf16.msra.mxu0 %v288
  %323 = vmatprep.subr.bf16.mxu0 %v293
  %324 = vmatpush1.bf16.msra.mxu0 %v292
  %325 = vmatprep.subr.bf16.mxu0 %v297
  %326 = vmatpush1.bf16.msra.mxu0 %v296
  %327 = vmatprep.subr.bf16.mxu0 0
  %328 = vmatpush1.bf16.msra.mxu0 0
  %329 = vmatprep.subr.bf16.mxu0 0
  %330 = vmatpush1.bf16.msra.mxu0 0
  %331 = vmatprep.subr.bf16.mxu0 0
  %332 = vmatpush1.bf16.msra.mxu0 0
  %333 = vmatprep.subr.bf16.mxu0 0
  %334 = vmatpush1.bf16.msra.mxu0 0
  %335 = vmatprep.subr.bf16.mxu0 0
  %336 = vmatpush1.bf16.msra.mxu0 0
  %337 = vmatprep.subr.bf16.mxu0 0
  %338 = vmatpush1.bf16.msra.mxu0 0
  %339 = vmatprep.subr.bf16.mxu0 0
  %340 = vmatpush1.bf16.msra.mxu0 0
  %341 = vmatprep.subr.bf16.mxu0 0
  %342 = vmatpush1.bf16.msra.mxu0 0
  %343 = vmatprep.subr.bf16.mxu0 0
  %344 = vmatpush1.bf16.msra.mxu0 0
  %345 = vmatprep.subr.bf16.mxu0 0
  %346 = vmatpush1.bf16.msra.mxu0 0
  %347 = vmatprep.subr.bf16.mxu0 0
  %348 = vmatpush1.bf16.msra.mxu0 0
  %349 = vmatprep.subr.bf16.mxu0 0
  %350 = vmatpush1.bf16.msra.mxu0 0
  %351 = vmatprep.mubr.bf16.mxu0 0
  %352 = vmatmul.mubr.bf16.gmra.mrb[0].mxu0 %v317
  %v353 = vpop.f32.mrb[0].mxu0
  %v354 = vadd.f32 0.0, %v353
  %v355 = vpop.f32.mrb[0].mxu0
  %v356 = vadd.f32 0.0, %v355
  %v357 = vpop.f32.mrb[0].mxu0
  %v358 = vpop.f32.mrb[0].mxu0
  %359 = vdwg.mxu0
  %360 = vmatprep.subr.bf16.mxu0 %v287
  %361 = vmatpush1.bf16.msra.mxu0 %v286
  %362 = vmatprep.subr.bf16.mxu0 %v291
  %363 = vmatpush1.bf16.msra.mxu0 %v290
  %364 = vmatprep.subr.bf16.mxu0 %v295
  %365 = vmatpush1.bf16.msra.mxu0 %v294
  %366 = vmatprep.subr.bf16.mxu0 %v299
  %367 = vmatpush1.bf16.msra.mxu0 %v298
  %368 = vmatprep.subr.bf16.mxu0 0
  %369 = vmatpush1.bf16.msra.mxu0 0
  %370 = vmatprep.subr.bf16.mxu0 0
  %371 = vmatpush1.bf16.msra.mxu0 0
  %372 = vmatprep.subr.bf16.mxu0 0
  %373 = vmatpush1.bf16.msra.mxu0 0
  %374 = vmatprep.subr.bf16.mxu0 0
  %375 = vmatpush1.bf16.msra.mxu0 0
  %376 = vmatprep.subr.bf16.mxu0 0
  %377 = vmatpush1.bf16.msra.mxu0 0
  %378 = vmatprep.subr.bf16.mxu0 0
  %379 = vmatpush1.bf16.msra.mxu0 0
  %380 = vmatprep.subr.bf16.mxu0 0
  %381 = vmatpush1.bf16.msra.mxu0 0
  %382 = vmatprep.subr.bf16.mxu0 0
  %383 = vmatpush1.bf16.msra.mxu0 0
  %384 = vmatprep.subr.bf16.mxu0 0
  %385 = vmatpush1.bf16.msra.mxu0 0
  %386 = vmatprep.subr.bf16.mxu0 0
  %387 = vmatpush1.bf16.msra.mxu0 0
  %388 = vmatprep.subr.bf16.mxu0 0
  %389 = vmatpush1.bf16.msra.mxu0 0
  %390 = vmatprep.subr.bf16.mxu0 0
  %391 = vmatpush1.bf16.msra.mxu0 0
  %392 = vmatprep.mubr.bf16.mxu0 0
  %393 = vmatmul.mubr.bf16.gmra.mrb[0].mxu0 %v317
  %v394 = vpop.f32.mrb[0].mxu0
  %v395 = vadd.f32 0.0, %v394
  %v396 = vpop.f32.mrb[0].mxu0
  %v397 = vadd.f32 0.0, %v396
  %v398 = vpop.f32.mrb[0].mxu0
  %v399 = vpop.f32.mrb[0].mxu0
  %400 = vdwg.mxu0
  %v401 = vadd.f32 %v354, %v356
  %v402 = vadd.f32 %v401, %v395
  %v403 = vadd.f32 %v402, %v397
  %404 = vadd.xlane.f32.xlu0 %v403
  %v405 = vpop.xlane.xlu0 %404
  %v406 = vadd.f32 %v206, %v405
  %v407 = vmul.f32 %v354, %v354
  %v408 = vmul.f32 %v356, %v356
  %v409 = vmul.f32 %v395, %v395
  %v410 = vmul.f32 %v397, %v397
  %v411 = vadd.f32 %v407, %v408
  %v412 = vadd.f32 %v411, %v409
  %v413 = vadd.f32 %v412, %v410
  %414 = vadd.xlane.f32.xlu0 %v413
  %v415 = vpop.xlane.xlu0 %414
  %v416 = vadd.f32 %v216, %v415
  %s417 = scalar_lea.vmem %s1, 8
  %v418 = vld [vmem:[%s417] sm:$0xf]
  %s419 = scalar_lea.vmem %s0, 256
  %v420 = vld [vmem:[%s419] sm:$0xff]
  %v421 = vld [vmem:[%s419 + $0x8] sm:$0xff]
  %v422 = vld [vmem:[%s419 + $0x10] sm:$0xff]
  %v423 = vld [vmem:[%s419 + $0x18] sm:$0xff]
  %v424 = vld [vmem:[%s419 + $0x20] sm:$0xff]
  %v425 = vld [vmem:[%s419 + $0x28] sm:$0xff]
  %v426 = vld [vmem:[%s419 + $0x30] sm:$0xff]
  %v427 = vld [vmem:[%s419 + $0x38] sm:$0xff]
  %v428 = vld [vmem:[%s419 + $0x40] sm:$0xff]
  %v429 = vld [vmem:[%s419 + $0x48] sm:$0xff]
  %v430 = vld [vmem:[%s419 + $0x50] sm:$0xff]
  %v431 = vld [vmem:[%s419 + $0x58] sm:$0xff]
  %v432 = vld [vmem:[%s419 + $0x60] sm:$0xff]
  %v433 = vld [vmem:[%s419 + $0x68] sm:$0xff]
  %v434 = vld [vmem:[%s419 + $0x70] sm:$0xff]
  %v435 = vld [vmem:[%s419 + $0x78] sm:$0xff]
  %v452 = vunpack.c.l.b16 %v420
  %v453 = vunpack.c.h.b16 %v420
  %v454 = vunpack.c.l.b16 %v421
  %v455 = vunpack.c.h.b16 %v421
  %v456 = vunpack.c.l.b16 %v422
  %v457 = vunpack.c.h.b16 %v422
  %v458 = vunpack.c.l.b16 %v423
  %v459 = vunpack.c.h.b16 %v423
  %v460 = vunpack.c.l.b16 %v424
  %v461 = vunpack.c.h.b16 %v424
  %v462 = vunpack.c.l.b16 %v425
  %v463 = vunpack.c.h.b16 %v425
  %v464 = vunpack.c.l.b16 %v426
  %v465 = vunpack.c.h.b16 %v426
  %v466 = vunpack.c.l.b16 %v427
  %v467 = vunpack.c.h.b16 %v427
  %v468 = vunpack.c.l.b16 %v428
  %v469 = vunpack.c.h.b16 %v428
  %v470 = vunpack.c.l.b16 %v429
  %v471 = vunpack.c.h.b16 %v429
  %v472 = vunpack.c.l.b16 %v430
  %v473 = vunpack.c.h.b16 %v430
  %v474 = vunpack.c.l.b16 %v431
  %v475 = vunpack.c.h.b16 %v431
  %v476 = vunpack.c.l.b16 %v432
  %v477 = vunpack.c.h.b16 %v432
  %v478 = vunpack.c.l.b16 %v433
  %v479 = vunpack.c.h.b16 %v433
  %v480 = vunpack.c.l.b16 %v434
  %v481 = vunpack.c.h.b16 %v434
  %v482 = vunpack.c.l.b16 %v435
  %v483 = vunpack.c.h.b16 %v435
  %v484 = vpack.c.b16 %v456, %v452
  %v485 = vpack.c.b16 %v457, %v453
  %v486 = vpack.c.b16 %v458, %v454
  %v487 = vpack.c.b16 %v459, %v455
  %v488 = vpack.c.b16 %v464, %v460
  %v489 = vpack.c.b16 %v465, %v461
  %v490 = vpack.c.b16 %v466, %v462
  %v491 = vpack.c.b16 %v467, %v463
  %v492 = vpack.c.b16 %v472, %v468
  %v493 = vpack.c.b16 %v473, %v469
  %v494 = vpack.c.b16 %v474, %v470
  %v495 = vpack.c.b16 %v475, %v471
  %v496 = vpack.c.b16 %v480, %v476
  %v497 = vpack.c.b16 %v481, %v477
  %v498 = vpack.c.b16 %v482, %v478
  %v499 = vpack.c.b16 %v483, %v479
  %v517 = vsel %vm115, %v418, 0
  %519 = vmatprep.subr.bf16.mxu0 %v485
  %520 = vmatpush1.bf16.msra.mxu0 %v484
  %521 = vmatprep.subr.bf16.mxu0 %v489
  %522 = vmatpush1.bf16.msra.mxu0 %v488
  %523 = vmatprep.subr.bf16.mxu0 %v493
  %524 = vmatpush1.bf16.msra.mxu0 %v492
  %525 = vmatprep.subr.bf16.mxu0 %v497
  %526 = vmatpush1.bf16.msra.mxu0 %v496
  %527 = vmatprep.subr.bf16.mxu0 0
  %528 = vmatpush1.bf16.msra.mxu0 0
  %529 = vmatprep.subr.bf16.mxu0 0
  %530 = vmatpush1.bf16.msra.mxu0 0
  %531 = vmatprep.subr.bf16.mxu0 0
  %532 = vmatpush1.bf16.msra.mxu0 0
  %533 = vmatprep.subr.bf16.mxu0 0
  %534 = vmatpush1.bf16.msra.mxu0 0
  %535 = vmatprep.subr.bf16.mxu0 0
  %536 = vmatpush1.bf16.msra.mxu0 0
  %537 = vmatprep.subr.bf16.mxu0 0
  %538 = vmatpush1.bf16.msra.mxu0 0
  %539 = vmatprep.subr.bf16.mxu0 0
  %540 = vmatpush1.bf16.msra.mxu0 0
  %541 = vmatprep.subr.bf16.mxu0 0
  %542 = vmatpush1.bf16.msra.mxu0 0
  %543 = vmatprep.subr.bf16.mxu0 0
  %544 = vmatpush1.bf16.msra.mxu0 0
  %545 = vmatprep.subr.bf16.mxu0 0
  %546 = vmatpush1.bf16.msra.mxu0 0
  %547 = vmatprep.subr.bf16.mxu0 0
  %548 = vmatpush1.bf16.msra.mxu0 0
  %549 = vmatprep.subr.bf16.mxu0 0
  %550 = vmatpush1.bf16.msra.mxu0 0
  %551 = vmatprep.mubr.bf16.mxu0 0
  %552 = vmatmul.mubr.bf16.gmra.mrb[0].mxu0 %v517
  %v553 = vpop.f32.mrb[0].mxu0
  %v554 = vadd.f32 0.0, %v553
  %v555 = vpop.f32.mrb[0].mxu0
  %v556 = vadd.f32 0.0, %v555
  %v557 = vpop.f32.mrb[0].mxu0
  %v558 = vpop.f32.mrb[0].mxu0
  %559 = vdwg.mxu0
  %560 = vmatprep.subr.bf16.mxu0 %v487
  %561 = vmatpush1.bf16.msra.mxu0 %v486
  %562 = vmatprep.subr.bf16.mxu0 %v491
  %563 = vmatpush1.bf16.msra.mxu0 %v490
  %564 = vmatprep.subr.bf16.mxu0 %v495
  %565 = vmatpush1.bf16.msra.mxu0 %v494
  %566 = vmatprep.subr.bf16.mxu0 %v499
  %567 = vmatpush1.bf16.msra.mxu0 %v498
  %568 = vmatprep.subr.bf16.mxu0 0
  %569 = vmatpush1.bf16.msra.mxu0 0
  %570 = vmatprep.subr.bf16.mxu0 0
  %571 = vmatpush1.bf16.msra.mxu0 0
  %572 = vmatprep.subr.bf16.mxu0 0
  %573 = vmatpush1.bf16.msra.mxu0 0
  %574 = vmatprep.subr.bf16.mxu0 0
  %575 = vmatpush1.bf16.msra.mxu0 0
  %576 = vmatprep.subr.bf16.mxu0 0
  %577 = vmatpush1.bf16.msra.mxu0 0
  %578 = vmatprep.subr.bf16.mxu0 0
  %579 = vmatpush1.bf16.msra.mxu0 0
  %580 = vmatprep.subr.bf16.mxu0 0
  %581 = vmatpush1.bf16.msra.mxu0 0
  %582 = vmatprep.subr.bf16.mxu0 0
  %583 = vmatpush1.bf16.msra.mxu0 0
  %584 = vmatprep.subr.bf16.mxu0 0
  %585 = vmatpush1.bf16.msra.mxu0 0
  %586 = vmatprep.subr.bf16.mxu0 0
  %587 = vmatpush1.bf16.msra.mxu0 0
  %588 = vmatprep.subr.bf16.mxu0 0
  %589 = vmatpush1.bf16.msra.mxu0 0
  %590 = vmatprep.subr.bf16.mxu0 0
  %591 = vmatpush1.bf16.msra.mxu0 0
  %592 = vmatprep.mubr.bf16.mxu0 0
  %593 = vmatmul.mubr.bf16.gmra.mrb[0].mxu0 %v517
  %v594 = vpop.f32.mrb[0].mxu0
  %v595 = vadd.f32 0.0, %v594
  %v596 = vpop.f32.mrb[0].mxu0
  %v597 = vadd.f32 0.0, %v596
  %v598 = vpop.f32.mrb[0].mxu0
  %v599 = vpop.f32.mrb[0].mxu0
  %600 = vdwg.mxu0
  %v601 = vadd.f32 %v554, %v556
  %v602 = vadd.f32 %v601, %v595
  %v603 = vadd.f32 %v602, %v597
  %604 = vadd.xlane.f32.xlu0 %v603
  %v605 = vpop.xlane.xlu0 %604
  %v606 = vadd.f32 %v406, %v605
  %v607 = vmul.f32 %v554, %v554
  %v608 = vmul.f32 %v556, %v556
  %v609 = vmul.f32 %v595, %v595
  %v610 = vmul.f32 %v597, %v597
  %v611 = vadd.f32 %v607, %v608
  %v612 = vadd.f32 %v611, %v609
  %v613 = vadd.f32 %v612, %v610
  %614 = vadd.xlane.f32.xlu0 %v613
  %v615 = vpop.xlane.xlu0 %614
  %v616 = vadd.f32 %v416, %v615
  %s617 = scalar_lea.vmem %s1, 12
  %v618 = vld [vmem:[%s617] sm:$0xf]
  %s619 = scalar_lea.vmem %s0, 384
  %v620 = vld [vmem:[%s619] sm:$0xff]
  %v621 = vld [vmem:[%s619 + $0x8] sm:$0xff]
  %v622 = vld [vmem:[%s619 + $0x10] sm:$0xff]
  %v623 = vld [vmem:[%s619 + $0x18] sm:$0xff]
  %v624 = vld [vmem:[%s619 + $0x20] sm:$0xff]
  %v625 = vld [vmem:[%s619 + $0x28] sm:$0xff]
  %v626 = vld [vmem:[%s619 + $0x30] sm:$0xff]
  %v627 = vld [vmem:[%s619 + $0x38] sm:$0xff]
  %v628 = vld [vmem:[%s619 + $0x40] sm:$0xff]
  %v629 = vld [vmem:[%s619 + $0x48] sm:$0xff]
  %v630 = vld [vmem:[%s619 + $0x50] sm:$0xff]
  %v631 = vld [vmem:[%s619 + $0x58] sm:$0xff]
  %v632 = vld [vmem:[%s619 + $0x60] sm:$0xff]
  %v633 = vld [vmem:[%s619 + $0x68] sm:$0xff]
  %v634 = vld [vmem:[%s619 + $0x70] sm:$0xff]
  %v635 = vld [vmem:[%s619 + $0x78] sm:$0xff]
  %v652 = vunpack.c.l.b16 %v620
  %v653 = vunpack.c.h.b16 %v620
  %v654 = vunpack.c.l.b16 %v621
  %v655 = vunpack.c.h.b16 %v621
  %v656 = vunpack.c.l.b16 %v622
  %v657 = vunpack.c.h.b16 %v622
  %v658 = vunpack.c.l.b16 %v623
  %v659 = vunpack.c.h.b16 %v623
  %v660 = vunpack.c.l.b16 %v624
  %v661 = vunpack.c.h.b16 %v624
  %v662 = vunpack.c.l.b16 %v625
  %v663 = vunpack.c.h.b16 %v625
  %v664 = vunpack.c.l.b16 %v626
  %v665 = vunpack.c.h.b16 %v626
  %v666 = vunpack.c.l.b16 %v627
  %v667 = vunpack.c.h.b16 %v627
  %v668 = vunpack.c.l.b16 %v628
  %v669 = vunpack.c.h.b16 %v628
  %v670 = vunpack.c.l.b16 %v629
  %v671 = vunpack.c.h.b16 %v629
  %v672 = vunpack.c.l.b16 %v630
  %v673 = vunpack.c.h.b16 %v630
  %v674 = vunpack.c.l.b16 %v631
  %v675 = vunpack.c.h.b16 %v631
  %v676 = vunpack.c.l.b16 %v632
  %v677 = vunpack.c.h.b16 %v632
  %v678 = vunpack.c.l.b16 %v633
  %v679 = vunpack.c.h.b16 %v633
  %v680 = vunpack.c.l.b16 %v634
  %v681 = vunpack.c.h.b16 %v634
  %v682 = vunpack.c.l.b16 %v635
  %v683 = vunpack.c.h.b16 %v635
  %v684 = vpack.c.b16 %v656, %v652
  %v685 = vpack.c.b16 %v657, %v653
  %v686 = vpack.c.b16 %v658, %v654
  %v687 = vpack.c.b16 %v659, %v655
  %v688 = vpack.c.b16 %v664, %v660
  %v689 = vpack.c.b16 %v665, %v661
  %v690 = vpack.c.b16 %v666, %v662
  %v691 = vpack.c.b16 %v667, %v663
  %v692 = vpack.c.b16 %v672, %v668
  %v693 = vpack.c.b16 %v673, %v669
  %v694 = vpack.c.b16 %v674, %v670
  %v695 = vpack.c.b16 %v675, %v671
  %v696 = vpack.c.b16 %v680, %v676
  %v697 = vpack.c.b16 %v681, %v677
  %v698 = vpack.c.b16 %v682, %v678
  %v699 = vpack.c.b16 %v683, %v679
  %v717 = vsel %vm115, %v618, 0
  %719 = vmatprep.subr.bf16.mxu0 %v685
  %720 = vmatpush1.bf16.msra.mxu0 %v684
  %721 = vmatprep.subr.bf16.mxu0 %v689
  %722 = vmatpush1.bf16.msra.mxu0 %v688
  %723 = vmatprep.subr.bf16.mxu0 %v693
  %724 = vmatpush1.bf16.msra.mxu0 %v692
  %725 = vmatprep.subr.bf16.mxu0 %v697
  %726 = vmatpush1.bf16.msra.mxu0 %v696
  %727 = vmatprep.subr.bf16.mxu0 0
  %728 = vmatpush1.bf16.msra.mxu0 0
  %729 = vmatprep.subr.bf16.mxu0 0
  %730 = vmatpush1.bf16.msra.mxu0 0
  %731 = vmatprep.subr.bf16.mxu0 0
  %732 = vmatpush1.bf16.msra.mxu0 0
  %733 = vmatprep.subr.bf16.mxu0 0
  %734 = vmatpush1.bf16.msra.mxu0 0
  %735 = vmatprep.subr.bf16.mxu0 0
  %736 = vmatpush1.bf16.msra.mxu0 0
  %737 = vmatprep.subr.bf16.mxu0 0
  %738 = vmatpush1.bf16.msra.mxu0 0
  %739 = vmatprep.subr.bf16.mxu0 0
  %740 = vmatpush1.bf16.msra.mxu0 0
  %741 = vmatprep.subr.bf16.mxu0 0
  %742 = vmatpush1.bf16.msra.mxu0 0
  %743 = vmatprep.subr.bf16.mxu0 0
  %744 = vmatpush1.bf16.msra.mxu0 0
  %745 = vmatprep.subr.bf16.mxu0 0
  %746 = vmatpush1.bf16.msra.mxu0 0
  %747 = vmatprep.subr.bf16.mxu0 0
  %748 = vmatpush1.bf16.msra.mxu0 0
  %749 = vmatprep.subr.bf16.mxu0 0
  %750 = vmatpush1.bf16.msra.mxu0 0
  %751 = vmatprep.mubr.bf16.mxu0 0
  %752 = vmatmul.mubr.bf16.gmra.mrb[0].mxu0 %v717
  %v753 = vpop.f32.mrb[0].mxu0
  %v754 = vadd.f32 0.0, %v753
  %v755 = vpop.f32.mrb[0].mxu0
  %v756 = vadd.f32 0.0, %v755
  %v757 = vpop.f32.mrb[0].mxu0
  %v758 = vpop.f32.mrb[0].mxu0
  %759 = vdwg.mxu0
  %760 = vmatprep.subr.bf16.mxu0 %v687
  %761 = vmatpush1.bf16.msra.mxu0 %v686
  %762 = vmatprep.subr.bf16.mxu0 %v691
  %763 = vmatpush1.bf16.msra.mxu0 %v690
  %764 = vmatprep.subr.bf16.mxu0 %v695
  %765 = vmatpush1.bf16.msra.mxu0 %v694
  %766 = vmatprep.subr.bf16.mxu0 %v699
  %767 = vmatpush1.bf16.msra.mxu0 %v698
  %768 = vmatprep.subr.bf16.mxu0 0
  %769 = vmatpush1.bf16.msra.mxu0 0
  %770 = vmatprep.subr.bf16.mxu0 0
  %771 = vmatpush1.bf16.msra.mxu0 0
  %772 = vmatprep.subr.bf16.mxu0 0
  %773 = vmatpush1.bf16.msra.mxu0 0
  %774 = vmatprep.subr.bf16.mxu0 0
  %775 = vmatpush1.bf16.msra.mxu0 0
  %776 = vmatprep.subr.bf16.mxu0 0
  %777 = vmatpush1.bf16.msra.mxu0 0
  %778 = vmatprep.subr.bf16.mxu0 0
  %779 = vmatpush1.bf16.msra.mxu0 0
  %780 = vmatprep.subr.bf16.mxu0 0
  %781 = vmatpush1.bf16.msra.mxu0 0
  %782 = vmatprep.subr.bf16.mxu0 0
  %783 = vmatpush1.bf16.msra.mxu0 0
  %784 = vmatprep.subr.bf16.mxu0 0
  %785 = vmatpush1.bf16.msra.mxu0 0
  %786 = vmatprep.subr.bf16.mxu0 0
  %787 = vmatpush1.bf16.msra.mxu0 0
  %788 = vmatprep.subr.bf16.mxu0 0
  %789 = vmatpush1.bf16.msra.mxu0 0
  %790 = vmatprep.subr.bf16.mxu0 0
  %791 = vmatpush1.bf16.msra.mxu0 0
  %792 = vmatprep.mubr.bf16.mxu0 0
  %793 = vmatmul.mubr.bf16.gmra.mrb[0].mxu0 %v717
  %v794 = vpop.f32.mrb[0].mxu0
  %v795 = vadd.f32 0.0, %v794
  %v796 = vpop.f32.mrb[0].mxu0
  %v797 = vadd.f32 0.0, %v796
  %v798 = vpop.f32.mrb[0].mxu0
  %v799 = vpop.f32.mrb[0].mxu0
  %800 = vdwg.mxu0
  %v801 = vadd.f32 %v754, %v756
  %v802 = vadd.f32 %v801, %v795
  %v803 = vadd.f32 %v802, %v797
  %804 = vadd.xlane.f32.xlu0 %v803
  %v805 = vpop.xlane.xlu0 %804
  %v806 = vadd.f32 %v606, %v805
  %v807 = vmul.f32 %v754, %v754
  %v808 = vmul.f32 %v756, %v756
  %v809 = vmul.f32 %v795, %v795
  %v810 = vmul.f32 %v797, %v797
  %v811 = vadd.f32 %v807, %v808
  %v812 = vadd.f32 %v811, %v809
  %v813 = vadd.f32 %v812, %v810
  %814 = vadd.xlane.f32.xlu0 %v813
  %v815 = vpop.xlane.xlu0 %814
  %v816 = vadd.f32 %v616, %v815
  %v817 = vrcp.pop 2048.0
  %v818 = vmul.f32 %v806, %v817
  %v819 = vmul.f32 %v816, %v817
  %v820 = vmul.f32 %v818, %v818
  %v821 = vsub.f32 %v819, %v820
  %v822 = vld [vmem:[%s2] sm:$0xff]
  %v823 = vadd.f32 %v821, 1e-05
  %v824 = vrsqrt.pop %v823
  %v825 = vmul.f32 %v822, %v824
  %v826 = vld [vmem:[%s3] sm:$0xff]
  %v827 = vmul.f32 %v818, %v825
  %v828 = vsub.f32 %v826, %v827
  %830 = vset.pattern.permute.xlu0 0
  %831 = vperm.xlu0 %830, %v825
  %v832 = vpop.permute.xlu0 %831
  %v834 = vmul.f32 %v154, %v832
  %v835 = vmul.f32 %v156, %v832
  %v836 = vmul.f32 %v195, %v832
  %v837 = vmul.f32 %v197, %v832
  %839 = vset.pattern.permute.xlu0 0
  %840 = vperm.xlu0 %839, %v828
  %v841 = vpop.permute.xlu0 %840
  %v843 = vadd.f32 %v834, %v841
  %v844 = vadd.f32 %v835, %v841
  %v845 = vadd.f32 %v836, %v841
  %v846 = vadd.f32 %v837, %v841
  %v847 = vmax.f32 %v843, 0.0
  %v848 = vmax.f32 %v844, 0.0
  %v849 = vmax.f32 %v845, 0.0
  %v850 = vmax.f32 %v846, 0.0
  %v851 = vpack.c.bf16 %v847, %v847
  %v852 = vpack.c.bf16 %v848, %v848
  %v853 = vpack.c.bf16 %v849, %v849
  %v854 = vpack.c.bf16 %v850, %v850
  %v859 = vunpack.c.l.b16 %v851
  %v860 = vunpack.c.l.b16 %v852
  %v861 = vunpack.c.l.b16 %v853
  %v862 = vunpack.c.l.b16 %v854
  %v863 = vpack.c.b16 %v860, %v859
  %v864 = vpack.c.b16 %v862, %v861
  %867 = vst [vmem:[%s4] sm:$0xff] %v863
  %868 = vst [vmem:[%s4 + $0x8] sm:$0xff] %v864
  %v869 = vmul.f32 %v354, %v832
  %v870 = vmul.f32 %v356, %v832
  %v871 = vmul.f32 %v395, %v832
  %v872 = vmul.f32 %v397, %v832
  %v873 = vadd.f32 %v869, %v841
  %v874 = vadd.f32 %v870, %v841
  %v875 = vadd.f32 %v871, %v841
  %v876 = vadd.f32 %v872, %v841
  %v877 = vmax.f32 %v873, 0.0
  %v878 = vmax.f32 %v874, 0.0
  %v879 = vmax.f32 %v875, 0.0
  %v880 = vmax.f32 %v876, 0.0
  %v881 = vpack.c.bf16 %v877, %v877
  %v882 = vpack.c.bf16 %v878, %v878
  %v883 = vpack.c.bf16 %v879, %v879
  %v884 = vpack.c.bf16 %v880, %v880
  %v889 = vunpack.c.l.b16 %v881
  %v890 = vunpack.c.l.b16 %v882
  %v891 = vunpack.c.l.b16 %v883
  %v892 = vunpack.c.l.b16 %v884
  %v893 = vpack.c.b16 %v890, %v889
  %v894 = vpack.c.b16 %v892, %v891
  %s897 = scalar_lea.vmem %s4, 16
  %898 = vst [vmem:[%s897] sm:$0xff] %v893
  %899 = vst [vmem:[%s897 + $0x8] sm:$0xff] %v894
  %v900 = vmul.f32 %v554, %v832
  %v901 = vmul.f32 %v556, %v832
  %v902 = vmul.f32 %v595, %v832
  %v903 = vmul.f32 %v597, %v832
  %v904 = vadd.f32 %v900, %v841
  %v905 = vadd.f32 %v901, %v841
  %v906 = vadd.f32 %v902, %v841
  %v907 = vadd.f32 %v903, %v841
  %v908 = vmax.f32 %v904, 0.0
  %v909 = vmax.f32 %v905, 0.0
  %v910 = vmax.f32 %v906, 0.0
  %v911 = vmax.f32 %v907, 0.0
  %v912 = vpack.c.bf16 %v908, %v908
  %v913 = vpack.c.bf16 %v909, %v909
  %v914 = vpack.c.bf16 %v910, %v910
  %v915 = vpack.c.bf16 %v911, %v911
  %v920 = vunpack.c.l.b16 %v912
  %v921 = vunpack.c.l.b16 %v913
  %v922 = vunpack.c.l.b16 %v914
  %v923 = vunpack.c.l.b16 %v915
  %v924 = vpack.c.b16 %v921, %v920
  %v925 = vpack.c.b16 %v923, %v922
  %s928 = scalar_lea.vmem %s4, 32
  %929 = vst [vmem:[%s928] sm:$0xff] %v924
  %930 = vst [vmem:[%s928 + $0x8] sm:$0xff] %v925
  %v931 = vmul.f32 %v754, %v832
  %v932 = vmul.f32 %v756, %v832
  %v933 = vmul.f32 %v795, %v832
  %v934 = vmul.f32 %v797, %v832
  %v935 = vadd.f32 %v931, %v841
  %v936 = vadd.f32 %v932, %v841
  %v937 = vadd.f32 %v933, %v841
  %v938 = vadd.f32 %v934, %v841
  %v939 = vmax.f32 %v935, 0.0
  %v940 = vmax.f32 %v936, 0.0
  %v941 = vmax.f32 %v937, 0.0
  %v942 = vmax.f32 %v938, 0.0
  %v943 = vpack.c.bf16 %v939, %v939
  %v944 = vpack.c.bf16 %v940, %v940
  %v945 = vpack.c.bf16 %v941, %v941
  %v946 = vpack.c.bf16 %v942, %v942
  %v951 = vunpack.c.l.b16 %v943
  %v952 = vunpack.c.l.b16 %v944
  %v953 = vunpack.c.l.b16 %v945
  %v954 = vunpack.c.l.b16 %v946
  %v955 = vpack.c.b16 %v952, %v951
  %v956 = vpack.c.b16 %v954, %v953
  %s959 = scalar_lea.vmem %s4, 48
  %960 = vst [vmem:[%s959] sm:$0xff] %v955
  %961 = vst [vmem:[%s959 + $0x8] sm:$0xff] %v956
  // Predicated region
  $region18: #{generator_forward.8} parent=0 // pred_check
    _
  $region19: #{generator_forward.8} parent=0 // pred_check_branch
    %963 = sbr.rel (0) target = $region21
  $region20: #{generator_forward.8} parent=0 // pred_region
    _
  $region21: #{generator_forward.8} parent=0 // pred_fallthru
    _
  // Predicated region
  $region22: #{generator_forward.8} parent=0 // pred_check
    _
  $region23: #{generator_forward.8} parent=0 // pred_check_branch
    %965 = sbr.rel (0) target = $region25
  $region24: #{generator_forward.8} parent=0 // pred_region
    _
  $region25: #{generator_forward.8} parent=0 // pred_fallthru
    _

// kernel: generator_forward.9
$region0: #{generator_forward.9}
  #allocation0 [shape = 'u32[]', space=smem, size = 0x4, offset = 0x4, fixed_abs, tag = 'smem constant byte address 0x4 - core index']
  #allocation1 [shape = 'u32[144,128]{1,0:T(1,128)}', space=vmem, size = 0x12000, scoped, tag = 'internal scratch']
  #allocation2 [shape = 'f32[1,1]{1,0:T(1,128)S(1)}', space=vmem, size = 0x200, scoped, tag = 'scoped memory for generator_forward.9']
  %s0 = inlined_call_operand.vmem [shape: bf16[4,32,2048], index: 0, kind: input, shape index: {}]
  %s1 = inlined_call_operand.vmem [shape: bf16[4,1,32], index: 1, kind: input, shape index: {}]
  %s2 = inlined_call_operand.<no memory space> [shape: f32[1,1], index: 2, kind: input, shape index: {}]
  %s3 = inlined_call_operand.vmem [shape: f32[4,1,2048], index: 3, kind: output, shape index: {}]
  %s4 = sld [smem:[#allocation0]]
  $region22: #{generator_forward.9} parent=0
    _
  %s6 = ssub.s32 1, %s4
  %s7 = scalar_select 0, %s6, %s4
  %v8 = vstv %s2
  %9 = vst [vmem:[#allocation2] sm:$0x1] %v8
  // Predicated region
  $region2: #{generator_forward.9} parent=0 // pred_check
    _
  $region3: #{generator_forward.9} parent=0 // pred_check_branch
    %11 = sbr.rel (0) target = $region5
  $region4: #{generator_forward.9} parent=0 // pred_region
    _
  $region5: #{generator_forward.9} parent=0 // pred_fallthru
    _
  // Predicated region
  $region6: #{generator_forward.9} parent=0 // pred_check
    _
  $region7: #{generator_forward.9} parent=0 // pred_check_branch
    %13 = sbr.rel (0) target = $region9
  $region8: #{generator_forward.9} parent=0 // pred_region
    _
  $region9: #{generator_forward.9} parent=0 // pred_fallthru
    _
  // Predicated region
  $region10: #{generator_forward.9} parent=0 // pred_check
    _
  $region11: #{generator_forward.9} parent=0 // pred_check_branch
    %15 = sbr.rel (0) target = $region13
  $region12: #{generator_forward.9} parent=0 // pred_region
    _
  $region13: #{generator_forward.9} parent=0 // pred_fallthru
    _
  %v17 = vld [vmem:[%s1] sm:$0x1]
  %v18 = vld [vmem:[%s0] sm:$0xff]
  %v19 = vld [vmem:[%s0 + $0x8] sm:$0xff]
  %v20 = vld [vmem:[%s0 + $0x10] sm:$0xff]
  %v21 = vld [vmem:[%s0 + $0x18] sm:$0xff]
  %v22 = vld [vmem:[%s0 + $0x20] sm:$0xff]
  %v23 = vld [vmem:[%s0 + $0x28] sm:$0xff]
  %v24 = vld [vmem:[%s0 + $0x30] sm:$0xff]
  %v25 = vld [vmem:[%s0 + $0x38] sm:$0xff]
  %v26 = vld [vmem:[%s0 + $0x40] sm:$0xff]
  %v27 = vld [vmem:[%s0 + $0x48] sm:$0xff]
  %v28 = vld [vmem:[%s0 + $0x50] sm:$0xff]
  %v29 = vld [vmem:[%s0 + $0x58] sm:$0xff]
  %v30 = vld [vmem:[%s0 + $0x60] sm:$0xff]
  %v31 = vld [vmem:[%s0 + $0x68] sm:$0xff]
  %v32 = vld [vmem:[%s0 + $0x70] sm:$0xff]
  %v33 = vld [vmem:[%s0 + $0x78] sm:$0xff]
  %v34 = vld [vmem:[%s0 + $0x80] sm:$0xff]
  %v35 = vld [vmem:[%s0 + $0x88] sm:$0xff]
  %v36 = vld [vmem:[%s0 + $0x90] sm:$0xff]
  %v37 = vld [vmem:[%s0 + $0x98] sm:$0xff]
  %v38 = vld [vmem:[%s0 + $0xa0] sm:$0xff]
  %v39 = vld [vmem:[%s0 + $0xa8] sm:$0xff]
  %v40 = vld [vmem:[%s0 + $0xb0] sm:$0xff]
  %v41 = vld [vmem:[%s0 + $0xb8] sm:$0xff]
  %v42 = vld [vmem:[%s0 + $0xc0] sm:$0xff]
  %v43 = vld [vmem:[%s0 + $0xc8] sm:$0xff]
  %v44 = vld [vmem:[%s0 + $0xd0] sm:$0xff]
  %v45 = vld [vmem:[%s0 + $0xd8] sm:$0xff]
  %v46 = vld [vmem:[%s0 + $0xe0] sm:$0xff]
  %v47 = vld [vmem:[%s0 + $0xe8] sm:$0xff]
  %v48 = vld [vmem:[%s0 + $0xf0] sm:$0xff]
  %v49 = vld [vmem:[%s0 + $0xf8] sm:$0xff]
  %v50 = vld [vmem:[#allocation2] sm:$0x1]
  %52 = vset.pattern.permute.xlu0 0
  %53 = vperm.xlu0 %52, %v50
  %v54 = vpop.permute.xlu0 %53
  %v56 = vlaneseq
  %v57 = vshrl.u32 %v56, 7
  %v58 = vsub.s32 0, %v57
  %v59 = vrot.slane %v54, %v58
  %v92 = vunpack.c.l.b16 %v18
  %v93 = vunpack.c.h.b16 %v18
  %v94 = vunpack.c.l.b16 %v19
  %v95 = vunpack.c.h.b16 %v19
  %v96 = vunpack.c.l.b16 %v20
  %v97 = vunpack.c.h.b16 %v20
  %v98 = vunpack.c.l.b16 %v21
  %v99 = vunpack.c.h.b16 %v21
  %v100 = vunpack.c.l.b16 %v22
  %v101 = vunpack.c.h.b16 %v22
  %v102 = vunpack.c.l.b16 %v23
  %v103 = vunpack.c.h.b16 %v23
  %v104 = vunpack.c.l.b16 %v24
  %v105 = vunpack.c.h.b16 %v24
  %v106 = vunpack.c.l.b16 %v25
  %v107 = vunpack.c.h.b16 %v25
  %v108 = vunpack.c.l.b16 %v26
  %v109 = vunpack.c.h.b16 %v26
  %v110 = vunpack.c.l.b16 %v27
  %v111 = vunpack.c.h.b16 %v27
  %v112 = vunpack.c.l.b16 %v28
  %v113 = vunpack.c.h.b16 %v28
  %v114 = vunpack.c.l.b16 %v29
  %v115 = vunpack.c.h.b16 %v29
  %v116 = vunpack.c.l.b16 %v30
  %v117 = vunpack.c.h.b16 %v30
  %v118 = vunpack.c.l.b16 %v31
  %v119 = vunpack.c.h.b16 %v31
  %v120 = vunpack.c.l.b16 %v32
  %v121 = vunpack.c.h.b16 %v32
  %v122 = vunpack.c.l.b16 %v33
  %v123 = vunpack.c.h.b16 %v33
  %v124 = vunpack.c.l.b16 %v34
  %v125 = vunpack.c.h.b16 %v34
  %v126 = vunpack.c.l.b16 %v35
  %v127 = vunpack.c.h.b16 %v35
  %v128 = vunpack.c.l.b16 %v36
  %v129 = vunpack.c.h.b16 %v36
  %v130 = vunpack.c.l.b16 %v37
  %v131 = vunpack.c.h.b16 %v37
  %v132 = vunpack.c.l.b16 %v38
  %v133 = vunpack.c.h.b16 %v38
  %v134 = vunpack.c.l.b16 %v39
  %v135 = vunpack.c.h.b16 %v39
  %v136 = vunpack.c.l.b16 %v40
  %v137 = vunpack.c.h.b16 %v40
  %v138 = vunpack.c.l.b16 %v41
  %v139 = vunpack.c.h.b16 %v41
  %v140 = vunpack.c.l.b16 %v42
  %v141 = vunpack.c.h.b16 %v42
  %v142 = vunpack.c.l.b16 %v43
  %v143 = vunpack.c.h.b16 %v43
  %v144 = vunpack.c.l.b16 %v44
  %v145 = vunpack.c.h.b16 %v44
  %v146 = vunpack.c.l.b16 %v45
  %v147 = vunpack.c.h.b16 %v45
  %v148 = vunpack.c.l.b16 %v46
  %v149 = vunpack.c.h.b16 %v46
  %v150 = vunpack.c.l.b16 %v47
  %v151 = vunpack.c.h.b16 %v47
  %v152 = vunpack.c.l.b16 %v48
  %v153 = vunpack.c.h.b16 %v48
  %v154 = vunpack.c.l.b16 %v49
  %v155 = vunpack.c.h.b16 %v49
  %v156 = vpack.c.b16 %v108, %v92
  %v157 = vpack.c.b16 %v109, %v93
  %v158 = vpack.c.b16 %v110, %v94
  %v159 = vpack.c.b16 %v111, %v95
  %v160 = vpack.c.b16 %v112, %v96
  %v161 = vpack.c.b16 %v113, %v97
  %v162 = vpack.c.b16 %v114, %v98
  %v163 = vpack.c.b16 %v115, %v99
  %v164 = vpack.c.b16 %v116, %v100
  %v165 = vpack.c.b16 %v117, %v101
  %v166 = vpack.c.b16 %v118, %v102
  %v167 = vpack.c.b16 %v119, %v103
  %v168 = vpack.c.b16 %v120, %v104
  %v169 = vpack.c.b16 %v121, %v105
  %v170 = vpack.c.b16 %v122, %v106
  %v171 = vpack.c.b16 %v123, %v107
  %v172 = vpack.c.b16 %v140, %v124
  %v173 = vpack.c.b16 %v141, %v125
  %v174 = vpack.c.b16 %v142, %v126
  %v175 = vpack.c.b16 %v143, %v127
  %v176 = vpack.c.b16 %v144, %v128
  %v177 = vpack.c.b16 %v145, %v129
  %v178 = vpack.c.b16 %v146, %v130
  %v179 = vpack.c.b16 %v147, %v131
  %v180 = vpack.c.b16 %v148, %v132
  %v181 = vpack.c.b16 %v149, %v133
  %v182 = vpack.c.b16 %v150, %v134
  %v183 = vpack.c.b16 %v151, %v135
  %v184 = vpack.c.b16 %v152, %v136
  %v185 = vpack.c.b16 %v153, %v137
  %v186 = vpack.c.b16 %v154, %v138
  %v187 = vpack.c.b16 %v155, %v139
  %vm220 = vcmask 261120
  %v222 = vsel %vm220, %v17, 0
  %224 = vmatprep.subr.bf16.mxu0 %v157
  %225 = vmatpush1.bf16.msra.mxu0 %v156
  %226 = vmatprep.subr.bf16.mxu0 %v173
  %227 = vmatpush1.bf16.msra.mxu0 %v172
  %228 = vmatprep.subr.bf16.mxu0 0
  %229 = vmatpush1.bf16.msra.mxu0 0
  %230 = vmatprep.subr.bf16.mxu0 0
  %231 = vmatpush1.bf16.msra.mxu0 0
  %232 = vmatprep.subr.bf16.mxu0 0
  %233 = vmatpush1.bf16.msra.mxu0 0
  %234 = vmatprep.subr.bf16.mxu0 0
  %235 = vmatpush1.bf16.msra.mxu0 0
  %236 = vmatprep.subr.bf16.mxu0 0
  %237 = vmatpush1.bf16.msra.mxu0 0
  %238 = vmatprep.subr.bf16.mxu0 0
  %239 = vmatpush1.bf16.msra.mxu0 0
  %240 = vmatprep.subr.bf16.mxu0 0
  %241 = vmatpush1.bf16.msra.mxu0 0
  %242 = vmatprep.subr.bf16.mxu0 0
  %243 = vmatpush1.bf16.msra.mxu0 0
  %244 = vmatprep.subr.bf16.mxu0 0
  %245 = vmatpush1.bf16.msra.mxu0 0
  %246 = vmatprep.subr.bf16.mxu0 0
  %247 = vmatpush1.bf16.msra.mxu0 0
  %248 = vmatprep.subr.bf16.mxu0 0
  %249 = vmatpush1.bf16.msra.mxu0 0
  %250 = vmatprep.subr.bf16.mxu0 0
  %251 = vmatpush1.bf16.msra.mxu0 0
  %252 = vmatprep.subr.bf16.mxu0 0
  %253 = vmatpush1.bf16.msra.mxu0 0
  %254 = vmatprep.subr.bf16.mxu0 0
  %255 = vmatpush1.bf16.msra.mxu0 0
  %256 = vmatprep.mubr.bf16.mxu0 0
  %257 = vmatmul.mubr.bf16.gmra.mrb[0].mxu0 %v222
  %v258 = vpop.f32.mrb[0].mxu0
  %v259 = vadd.f32 %v59, %v258
  %v260 = vpop.f32.mrb[0].mxu0
  %v261 = vadd.f32 %v59, %v260
  %v262 = vpop.f32.mrb[0].mxu0
  %v263 = vpop.f32.mrb[0].mxu0
  %264 = vdwg.mxu0
  %265 = vmatprep.subr.bf16.mxu0 %v159
  %266 = vmatpush1.bf16.msra.mxu0 %v158
  %267 = vmatprep.subr.bf16.mxu0 %v175
  %268 = vmatpush1.bf16.msra.mxu0 %v174
  %269 = vmatprep.subr.bf16.mxu0 0
  %270 = vmatpush1.bf16.msra.mxu0 0
  %271 = vmatprep.subr.bf16.mxu0 0
  %272 = vmatpush1.bf16.msra.mxu0 0
  %273 = vmatprep.subr.bf16.mxu0 0
  %274 = vmatpush1.bf16.msra.mxu0 0
  %275 = vmatprep.subr.bf16.mxu0 0
  %276 = vmatpush1.bf16.msra.mxu0 0
  %277 = vmatprep.subr.bf16.mxu0 0
  %278 = vmatpush1.bf16.msra.mxu0 0
  %279 = vmatprep.subr.bf16.mxu0 0
  %280 = vmatpush1.bf16.msra.mxu0 0
  %281 = vmatprep.subr.bf16.mxu0 0
  %282 = vmatpush1.bf16.msra.mxu0 0
  %283 = vmatprep.subr.bf16.mxu0 0
  %284 = vmatpush1.bf16.msra.mxu0 0
  %285 = vmatprep.subr.bf16.mxu0 0
  %286 = vmatpush1.bf16.msra.mxu0 0
  %287 = vmatprep.subr.bf16.mxu0 0
  %288 = vmatpush1.bf16.msra.mxu0 0
  %289 = vmatprep.subr.bf16.mxu0 0
  %290 = vmatpush1.bf16.msra.mxu0 0
  %291 = vmatprep.subr.bf16.mxu0 0
  %292 = vmatpush1.bf16.msra.mxu0 0
  %293 = vmatprep.subr.bf16.mxu0 0
  %294 = vmatpush1.bf16.msra.mxu0 0
  %295 = vmatprep.subr.bf16.mxu0 0
  %296 = vmatpush1.bf16.msra.mxu0 0
  %297 = vmatprep.mubr.bf16.mxu0 0
  %298 = vmatmul.mubr.bf16.gmra.mrb[0].mxu0 %v222
  %v299 = vpop.f32.mrb[0].mxu0
  %v300 = vadd.f32 %v59, %v299
  %v301 = vpop.f32.mrb[0].mxu0
  %v302 = vadd.f32 %v59, %v301
  %v303 = vpop.f32.mrb[0].mxu0
  %v304 = vpop.f32.mrb[0].mxu0
  %305 = vdwg.mxu0
  %306 = vmatprep.subr.bf16.mxu0 %v161
  %307 = vmatpush1.bf16.msra.mxu0 %v160
  %308 = vmatprep.subr.bf16.mxu0 %v177
  %309 = vmatpush1.bf16.msra.mxu0 %v176
  %310 = vmatprep.subr.bf16.mxu0 0
  %311 = vmatpush1.bf16.msra.mxu0 0
  %312 = vmatprep.subr.bf16.mxu0 0
  %313 = vmatpush1.bf16.msra.mxu0 0
  %314 = vmatprep.subr.bf16.mxu0 0
  %315 = vmatpush1.bf16.msra.mxu0 0
  %316 = vmatprep.subr.bf16.mxu0 0
  %317 = vmatpush1.bf16.msra.mxu0 0
  %318 = vmatprep.subr.bf16.mxu0 0
  %319 = vmatpush1.bf16.msra.mxu0 0
  %320 = vmatprep.subr.bf16.mxu0 0
  %321 = vmatpush1.bf16.msra.mxu0 0
  %322 = vmatprep.subr.bf16.mxu0 0
  %323 = vmatpush1.bf16.msra.mxu0 0
  %324 = vmatprep.subr.bf16.mxu0 0
  %325 = vmatpush1.bf16.msra.mxu0 0
  %326 = vmatprep.subr.bf16.mxu0 0
  %327 = vmatpush1.bf16.msra.mxu0 0
  %328 = vmatprep.subr.bf16.mxu0 0
  %329 = vmatpush1.bf16.msra.mxu0 0
  %330 = vmatprep.subr.bf16.mxu0 0
  %331 = vmatpush1.bf16.msra.mxu0 0
  %332 = vmatprep.subr.bf16.mxu0 0
  %333 = vmatpush1.bf16.msra.mxu0 0
  %334 = vmatprep.subr.bf16.mxu0 0
  %335 = vmatpush1.bf16.msra.mxu0 0
  %336 = vmatprep.subr.bf16.mxu0 0
  %337 = vmatpush1.bf16.msra.mxu0 0
  %338 = vmatprep.mubr.bf16.mxu0 0
  %339 = vmatmul.mubr.bf16.gmra.mrb[0].mxu0 %v222
  %v340 = vpop.f32.mrb[0].mxu0
  %v341 = vadd.f32 %v59, %v340
  %v342 = vpop.f32.mrb[0].mxu0
  %v343 = vadd.f32 %v59, %v342
  %v344 = vpop.f32.mrb[0].mxu0
  %v345 = vpop.f32.mrb[0].mxu0
  %346 = vdwg.mxu0
  %347 = vmatprep.subr.bf16.mxu0 %v163
  %348 = vmatpush1.bf16.msra.mxu0 %v162
  %349 = vmatprep.subr.bf16.mxu0 %v179
  %350 = vmatpush1.bf16.msra.mxu0 %v178
  %351 = vmatprep.subr.bf16.mxu0 0
  %352 = vmatpush1.bf16.msra.mxu0 0
  %353 = vmatprep.subr.bf16.mxu0 0
  %354 = vmatpush1.bf16.msra.mxu0 0
  %355 = vmatprep.subr.bf16.mxu0 0
  %356 = vmatpush1.bf16.msra.mxu0 0
  %357 = vmatprep.subr.bf16.mxu0 0
  %358 = vmatpush1.bf16.msra.mxu0 0
  %359 = vmatprep.subr.bf16.mxu0 0
  %360 = vmatpush1.bf16.msra.mxu0 0
  %361 = vmatprep.subr.bf16.mxu0 0
  %362 = vmatpush1.bf16.msra.mxu0 0
  %363 = vmatprep.subr.bf16.mxu0 0
  %364 = vmatpush1.bf16.msra.mxu0 0
  %365 = vmatprep.subr.bf16.mxu0 0
  %366 = vmatpush1.bf16.msra.mxu0 0
  %367 = vmatprep.subr.bf16.mxu0 0
  %368 = vmatpush1.bf16.msra.mxu0 0
  %369 = vmatprep.subr.bf16.mxu0 0
  %370 = vmatpush1.bf16.msra.mxu0 0
  %371 = vmatprep.subr.bf16.mxu0 0
  %372 = vmatpush1.bf16.msra.mxu0 0
  %373 = vmatprep.subr.bf16.mxu0 0
  %374 = vmatpush1.bf16.msra.mxu0 0
  %375 = vmatprep.subr.bf16.mxu0 0
  %376 = vmatpush1.bf16.msra.mxu0 0
  %377 = vmatprep.subr.bf16.mxu0 0
  %378 = vmatpush1.bf16.msra.mxu0 0
  %379 = vmatprep.mubr.bf16.mxu0 0
  %380 = vmatmul.mubr.bf16.gmra.mrb[0].mxu0 %v222
  %v381 = vpop.f32.mrb[0].mxu0
  %v382 = vadd.f32 %v59, %v381
  %v383 = vpop.f32.mrb[0].mxu0
  %v384 = vadd.f32 %v59, %v383
  %v385 = vpop.f32.mrb[0].mxu0
  %v386 = vpop.f32.mrb[0].mxu0
  %387 = vdwg.mxu0
  %388 = vmatprep.subr.bf16.mxu0 %v165
  %389 = vmatpush1.bf16.msra.mxu0 %v164
  %390 = vmatprep.subr.bf16.mxu0 %v181
  %391 = vmatpush1.bf16.msra.mxu0 %v180
  %392 = vmatprep.subr.bf16.mxu0 0
  %393 = vmatpush1.bf16.msra.mxu0 0
  %394 = vmatprep.subr.bf16.mxu0 0
  %395 = vmatpush1.bf16.msra.mxu0 0
  %396 = vmatprep.subr.bf16.mxu0 0
  %397 = vmatpush1.bf16.msra.mxu0 0
  %398 = vmatprep.subr.bf16.mxu0 0
  %399 = vmatpush1.bf16.msra.mxu0 0
  %400 = vmatprep.subr.bf16.mxu0 0
  %401 = vmatpush1.bf16.msra.mxu0 0
  %402 = vmatprep.subr.bf16.mxu0 0
  %403 = vmatpush1.bf16.msra.mxu0 0
  %404 = vmatprep.subr.bf16.mxu0 0
  %405 = vmatpush1.bf16.msra.mxu0 0
  %406 = vmatprep.subr.bf16.mxu0 0
  %407 = vmatpush1.bf16.msra.mxu0 0
  %408 = vmatprep.subr.bf16.mxu0 0
  %409 = vmatpush1.bf16.msra.mxu0 0
  %410 = vmatprep.subr.bf16.mxu0 0
  %411 = vmatpush1.bf16.msra.mxu0 0
  %412 = vmatprep.subr.bf16.mxu0 0
  %413 = vmatpush1.bf16.msra.mxu0 0
  %414 = vmatprep.subr.bf16.mxu0 0
  %415 = vmatpush1.bf16.msra.mxu0 0
  %416 = vmatprep.subr.bf16.mxu0 0
  %417 = vmatpush1.bf16.msra.mxu0 0
  %418 = vmatprep.subr.bf16.mxu0 0
  %419 = vmatpush1.bf16.msra.mxu0 0
  %420 = vmatprep.mubr.bf16.mxu0 0
  %421 = vmatmul.mubr.bf16.gmra.mrb[0].mxu0 %v222
  %v422 = vpop.f32.mrb[0].mxu0
  %v423 = vadd.f32 %v59, %v422
  %v424 = vpop.f32.mrb[0].mxu0
  %v425 = vadd.f32 %v59, %v424
  %v426 = vpop.f32.mrb[0].mxu0
  %v427 = vpop.f32.mrb[0].mxu0
  %428 = vdwg.mxu0
  %429 = vmatprep.subr.bf16.mxu0 %v167
  %430 = vmatpush1.bf16.msra.mxu0 %v166
  %431 = vmatprep.subr.bf16.mxu0 %v183
  %432 = vmatpush1.bf16.msra.mxu0 %v182
  %433 = vmatprep.subr.bf16.mxu0 0
  %434 = vmatpush1.bf16.msra.mxu0 0
  %435 = vmatprep.subr.bf16.mxu0 0
  %436 = vmatpush1.bf16.msra.mxu0 0
  %437 = vmatprep.subr.bf16.mxu0 0
  %438 = vmatpush1.bf16.msra.mxu0 0
  %439 = vmatprep.subr.bf16.mxu0 0
  %440 = vmatpush1.bf16.msra.mxu0 0
  %441 = vmatprep.subr.bf16.mxu0 0
  %442 = vmatpush1.bf16.msra.mxu0 0
  %443 = vmatprep.subr.bf16.mxu0 0
  %444 = vmatpush1.bf16.msra.mxu0 0
  %445 = vmatprep.subr.bf16.mxu0 0
  %446 = vmatpush1.bf16.msra.mxu0 0
  %447 = vmatprep.subr.bf16.mxu0 0
  %448 = vmatpush1.bf16.msra.mxu0 0
  %449 = vmatprep.subr.bf16.mxu0 0
  %450 = vmatpush1.bf16.msra.mxu0 0
  %451 = vmatprep.subr.bf16.mxu0 0
  %452 = vmatpush1.bf16.msra.mxu0 0
  %453 = vmatprep.subr.bf16.mxu0 0
  %454 = vmatpush1.bf16.msra.mxu0 0
  %455 = vmatprep.subr.bf16.mxu0 0
  %456 = vmatpush1.bf16.msra.mxu0 0
  %457 = vmatprep.subr.bf16.mxu0 0
  %458 = vmatpush1.bf16.msra.mxu0 0
  %459 = vmatprep.subr.bf16.mxu0 0
  %460 = vmatpush1.bf16.msra.mxu0 0
  %461 = vmatprep.mubr.bf16.mxu0 0
  %462 = vmatmul.mubr.bf16.gmra.mrb[0].mxu0 %v222
  %v463 = vpop.f32.mrb[0].mxu0
  %v464 = vadd.f32 %v59, %v463
  %v465 = vpop.f32.mrb[0].mxu0
  %v466 = vadd.f32 %v59, %v465
  %v467 = vpop.f32.mrb[0].mxu0
  %v468 = vpop.f32.mrb[0].mxu0
  %469 = vdwg.mxu0
  %470 = vmatprep.subr.bf16.mxu0 %v169
  %471 = vmatpush1.bf16.msra.mxu0 %v168
  %472 = vmatprep.subr.bf16.mxu0 %v185
  %473 = vmatpush1.bf16.msra.mxu0 %v184
  %474 = vmatprep.subr.bf16.mxu0 0
  %475 = vmatpush1.bf16.msra.mxu0 0
  %476 = vmatprep.subr.bf16.mxu0 0
  %477 = vmatpush1.bf16.msra.mxu0 0
  %478 = vmatprep.subr.bf16.mxu0 0
  %479 = vmatpush1.bf16.msra.mxu0 0
  %480 = vmatprep.subr.bf16.mxu0 0
  %481 = vmatpush1.bf16.msra.mxu0 0
  %482 = vmatprep.subr.bf16.mxu0 0
  %483 = vmatpush1.bf16.msra.mxu0 0
  %484 = vmatprep.subr.bf16.mxu0 0
  %485 = vmatpush1.bf16.msra.mxu0 0
  %486 = vmatprep.subr.bf16.mxu0 0
  %487 = vmatpush1.bf16.msra.mxu0 0
  %488 = vmatprep.subr.bf16.mxu0 0
  %489 = vmatpush1.bf16.msra.mxu0 0
  %490 = vmatprep.subr.bf16.mxu0 0
  %491 = vmatpush1.bf16.msra.mxu0 0
  %492 = vmatprep.subr.bf16.mxu0 0
  %493 = vmatpush1.bf16.msra.mxu0 0
  %494 = vmatprep.subr.bf16.mxu0 0
  %495 = vmatpush1.bf16.msra.mxu0 0
  %496 = vmatprep.subr.bf16.mxu0 0
  %497 = vmatpush1.bf16.msra.mxu0 0
  %498 = vmatprep.subr.bf16.mxu0 0
  %499 = vmatpush1.bf16.msra.mxu0 0
  %500 = vmatprep.subr.bf16.mxu0 0
  %501 = vmatpush1.bf16.msra.mxu0 0
  %502 = vmatprep.mubr.bf16.mxu0 0
  %503 = vmatmul.mubr.bf16.gmra.mrb[0].mxu0 %v222
  %v504 = vpop.f32.mrb[0].mxu0
  %v505 = vadd.f32 %v59, %v504
  %v506 = vpop.f32.mrb[0].mxu0
  %v507 = vadd.f32 %v59, %v506
  %v508 = vpop.f32.mrb[0].mxu0
  %v509 = vpop.f32.mrb[0].mxu0
  %510 = vdwg.mxu0
  %511 = vmatprep.subr.bf16.mxu0 %v171
  %512 = vmatpush1.bf16.msra.mxu0 %v170
  %513 = vmatprep.subr.bf16.mxu0 %v187
  %514 = vmatpush1.bf16.msra.mxu0 %v186
  %515 = vmatprep.subr.bf16.mxu0 0
  %516 = vmatpush1.bf16.msra.mxu0 0
  %517 = vmatprep.subr.bf16.mxu0 0
  %518 = vmatpush1.bf16.msra.mxu0 0
  %519 = vmatprep.subr.bf16.mxu0 0
  %520 = vmatpush1.bf16.msra.mxu0 0
  %521 = vmatprep.subr.bf16.mxu0 0
  %522 = vmatpush1.bf16.msra.mxu0 0
  %523 = vmatprep.subr.bf16.mxu0 0
  %524 = vmatpush1.bf16.msra.mxu0 0
  %525 = vmatprep.subr.bf16.mxu0 0
  %526 = vmatpush1.bf16.msra.mxu0 0
  %527 = vmatprep.subr.bf16.mxu0 0
  %528 = vmatpush1.bf16.msra.mxu0 0
  %529 = vmatprep.subr.bf16.mxu0 0
  %530 = vmatpush1.bf16.msra.mxu0 0
  %531 = vmatprep.subr.bf16.mxu0 0
  %532 = vmatpush1.bf16.msra.mxu0 0
  %533 = vmatprep.subr.bf16.mxu0 0
  %534 = vmatpush1.bf16.msra.mxu0 0
  %535 = vmatprep.subr.bf16.mxu0 0
  %536 = vmatpush1.bf16.msra.mxu0 0
  %537 = vmatprep.subr.bf16.mxu0 0
  %538 = vmatpush1.bf16.msra.mxu0 0
  %539 = vmatprep.subr.bf16.mxu0 0
  %540 = vmatpush1.bf16.msra.mxu0 0
  %541 = vmatprep.subr.bf16.mxu0 0
  %542 = vmatpush1.bf16.msra.mxu0 0
  %543 = vmatprep.mubr.bf16.mxu0 0
  %544 = vmatmul.mubr.bf16.gmra.mrb[0].mxu0 %v222
  %v545 = vpop.f32.mrb[0].mxu0
  %v546 = vadd.f32 %v59, %v545
  %v547 = vpop.f32.mrb[0].mxu0
  %v548 = vadd.f32 %v59, %v547
  %v549 = vpop.f32.mrb[0].mxu0
  %v550 = vpop.f32.mrb[0].mxu0
  %551 = vdwg.mxu0
  %v552 = vtanh.pop %v259
  %v553 = vtanh.pop %v261
  %v554 = vtanh.pop %v300
  %v555 = vtanh.pop %v302
  %v556 = vtanh.pop %v341
  %v557 = vtanh.pop %v343
  %v558 = vtanh.pop %v382
  %v559 = vtanh.pop %v384
  %v560 = vtanh.pop %v423
  %v561 = vtanh.pop %v425
  %v562 = vtanh.pop %v464
  %v563 = vtanh.pop %v466
  %v564 = vtanh.pop %v505
  %v565 = vtanh.pop %v507
  %v566 = vtanh.pop %v546
  %v567 = vtanh.pop %v548
  %v584 = vcombine.low %v552, %v553
  %v585 = vcombine.low %v554, %v555
  %v586 = vcombine.low %v556, %v557
  %v587 = vcombine.low %v558, %v559
  %v589 = vunpack.c.l.s4 1966171168
  %v590 = vunpack.c.0.s8 %v589
  %v591 = vlaneseq
  %v592 = vshrl.u32 %v591, 7
  %v593 = vsub.s32 %v590, %v592
  %v594 = vrot.slane %v584, %v593
  %v596 = vunpack.c.l.s4 1966171168
  %v597 = vunpack.c.0.s8 %v596
  %v598 = vlaneseq
  %v599 = vshrl.u32 %v598, 7
  %v600 = vsub.s32 %v597, %v599
  %v601 = vrot.slane %v585, %v600
  %v603 = vunpack.c.l.s4 1966171168
  %v604 = vunpack.c.0.s8 %v603
  %v605 = vlaneseq
  %v606 = vshrl.u32 %v605, 7
  %v607 = vsub.s32 %v604, %v606
  %v608 = vrot.slane %v586, %v607
  %v610 = vunpack.c.l.s4 1966171168
  %v611 = vunpack.c.0.s8 %v610
  %v612 = vlaneseq
  %v613 = vshrl.u32 %v612, 7
  %v614 = vsub.s32 %v611, %v613
  %v615 = vrot.slane %v587, %v614
  %v616 = vcombine.low %v594, %v601
  %v617 = vcombine.low %v608, %v615
  %v619 = vunpack.c.l.s4 1966171168
  %v620 = vunpack.c.0.s8 %v619
  %v621 = vlaneseq
  %v622 = vshrl.u32 %v621, 7
  %v623 = vsub.s32 %v620, %v622
  %v624 = vrot.slane %v616, %v623
  %v626 = vunpack.c.l.s4 1966171168
  %v627 = vunpack.c.0.s8 %v626
  %v628 = vlaneseq
  %v629 = vshrl.u32 %v628, 7
  %v630 = vsub.s32 %v627, %v629
  %v631 = vrot.slane %v617, %v630
  %v632 = vcombine.low %v624, %v631
  %v633 = vcombine.low %v560, %v561
  %v634 = vcombine.low %v562, %v563
  %v635 = vcombine.low %v564, %v565
  %v636 = vcombine.low %v566, %v567
  %v638 = vunpack.c.l.s4 1966171168
  %v639 = vunpack.c.0.s8 %v638
  %v640 = vlaneseq
  %v641 = vshrl.u32 %v640, 7
  %v642 = vsub.s32 %v639, %v641
  %v643 = vrot.slane %v633, %v642
  %v645 = vunpack.c.l.s4 1966171168
  %v646 = vunpack.c.0.s8 %v645
  %v647 = vlaneseq
  %v648 = vshrl.u32 %v647, 7
  %v649 = vsub.s32 %v646, %v648
  %v650 = vrot.slane %v634, %v649
  %v652 = vunpack.c.l.s4 1966171168
  %v653 = vunpack.c.0.s8 %v652
  %v654 = vlaneseq
  %v655 = vshrl.u32 %v654, 7
  %v656 = vsub.s32 %v653, %v655
  %v657 = vrot.slane %v635, %v656
  %v659 = vunpack.c.l.s4 1966171168
  %v660 = vunpack.c.0.s8 %v659
  %v661 = vlaneseq
  %v662 = vshrl.u32 %v661, 7
  %v663 = vsub.s32 %v660, %v662
  %v664 = vrot.slane %v636, %v663
  %v665 = vcombine.low %v643, %v650
  %v666 = vcombine.low %v657, %v664
  %v668 = vunpack.c.l.s4 1966171168
  %v669 = vunpack.c.0.s8 %v668
  %v670 = vlaneseq
  %v671 = vshrl.u32 %v670, 7
  %v672 = vsub.s32 %v669, %v671
  %v673 = vrot.slane %v665, %v672
  %v675 = vunpack.c.l.s4 1966171168
  %v676 = vunpack.c.0.s8 %v675
  %v677 = vlaneseq
  %v678 = vshrl.u32 %v677, 7
  %v679 = vsub.s32 %v676, %v678
  %v680 = vrot.slane %v666, %v679
  %v681 = vcombine.low %v673, %v680
  %684 = vst [vmem:[%s3] sm:$0xff] %v632
  %685 = vst [vmem:[%s3 + $0x8] sm:$0xff] %v681
  %s686 = scalar_lea.vmem %s1, 1
  %v687 = vld [vmem:[%s686] sm:$0x1]
  %s688 = scalar_lea.vmem %s0, 256
  %v689 = vld [vmem:[%s688] sm:$0xff]
  %v690 = vld [vmem:[%s688 + $0x8] sm:$0xff]
  %v691 = vld [vmem:[%s688 + $0x10] sm:$0xff]
  %v692 = vld [vmem:[%s688 + $0x18] sm:$0xff]
  %v693 = vld [vmem:[%s688 + $0x20] sm:$0xff]
  %v694 = vld [vmem:[%s688 + $0x28] sm:$0xff]
  %v695 = vld [vmem:[%s688 + $0x30] sm:$0xff]
  %v696 = vld [vmem:[%s688 + $0x38] sm:$0xff]
  %v697 = vld [vmem:[%s688 + $0x40] sm:$0xff]
  %v698 = vld [vmem:[%s688 + $0x48] sm:$0xff]
  %v699 = vld [vmem:[%s688 + $0x50] sm:$0xff]
  %v700 = vld [vmem:[%s688 + $0x58] sm:$0xff]
  %v701 = vld [vmem:[%s688 + $0x60] sm:$0xff]
  %v702 = vld [vmem:[%s688 + $0x68] sm:$0xff]
  %v703 = vld [vmem:[%s688 + $0x70] sm:$0xff]
  %v704 = vld [vmem:[%s688 + $0x78] sm:$0xff]
  %v705 = vld [vmem:[%s688 + $0x80] sm:$0xff]
  %v706 = vld [vmem:[%s688 + $0x88] sm:$0xff]
  %v707 = vld [vmem:[%s688 + $0x90] sm:$0xff]
  %v708 = vld [vmem:[%s688 + $0x98] sm:$0xff]
  %v709 = vld [vmem:[%s688 + $0xa0] sm:$0xff]
  %v710 = vld [vmem:[%s688 + $0xa8] sm:$0xff]
  %v711 = vld [vmem:[%s688 + $0xb0] sm:$0xff]
  %v712 = vld [vmem:[%s688 + $0xb8] sm:$0xff]
  %v713 = vld [vmem:[%s688 + $0xc0] sm:$0xff]
  %v714 = vld [vmem:[%s688 + $0xc8] sm:$0xff]
  %v715 = vld [vmem:[%s688 + $0xd0] sm:$0xff]
  %v716 = vld [vmem:[%s688 + $0xd8] sm:$0xff]
  %v717 = vld [vmem:[%s688 + $0xe0] sm:$0xff]
  %v718 = vld [vmem:[%s688 + $0xe8] sm:$0xff]
  %v719 = vld [vmem:[%s688 + $0xf0] sm:$0xff]
  %v720 = vld [vmem:[%s688 + $0xf8] sm:$0xff]
  %v721 = vld [vmem:[#allocation2] sm:$0x1]
  %723 = vset.pattern.permute.xlu0 0
  %724 = vperm.xlu0 %723, %v721
  %v725 = vpop.permute.xlu0 %724
  %v727 = vlaneseq
  %v728 = vshrl.u32 %v727, 7
  %v729 = vsub.s32 0, %v728
  %v730 = vrot.slane %v725, %v729
  %v763 = vunpack.c.l.b16 %v689
  %v764 = vunpack.c.h.b16 %v689
  %v765 = vunpack.c.l.b16 %v690
  %v766 = vunpack.c.h.b16 %v690
  %v767 = vunpack.c.l.b16 %v691
  %v768 = vunpack.c.h.b16 %v691
  %v769 = vunpack.c.l.b16 %v692
  %v770 = vunpack.c.h.b16 %v692
  %v771 = vunpack.c.l.b16 %v693
  %v772 = vunpack.c.h.b16 %v693
  %v773 = vunpack.c.l.b16 %v694
  %v774 = vunpack.c.h.b16 %v694
  %v775 = vunpack.c.l.b16 %v695
  %v776 = vunpack.c.h.b16 %v695
  %v777 = vunpack.c.l.b16 %v696
  %v778 = vunpack.c.h.b16 %v696
  %v779 = vunpack.c.l.b16 %v697
  %v780 = vunpack.c.h.b16 %v697
  %v781 = vunpack.c.l.b16 %v698
  %v782 = vunpack.c.h.b16 %v698
  %v783 = vunpack.c.l.b16 %v699
  %v784 = vunpack.c.h.b16 %v699
  %v785 = vunpack.c.l.b16 %v700
  %v786 = vunpack.c.h.b16 %v700
  %v787 = vunpack.c.l.b16 %v701
  %v788 = vunpack.c.h.b16 %v701
  %v789 = vunpack.c.l.b16 %v702
  %v790 = vunpack.c.h.b16 %v702
  %v791 = vunpack.c.l.b16 %v703
  %v792 = vunpack.c.h.b16 %v703
  %v793 = vunpack.c.l.b16 %v704
  %v794 = vunpack.c.h.b16 %v704
  %v795 = vunpack.c.l.b16 %v705
  %v796 = vunpack.c.h.b16 %v705
  %v797 = vunpack.c.l.b16 %v706
  %v798 = vunpack.c.h.b16 %v706
  %v799 = vunpack.c.l.b16 %v707
  %v800 = vunpack.c.h.b16 %v707
  %v801 = vunpack.c.l.b16 %v708
  %v802 = vunpack.c.h.b16 %v708
  %v803 = vunpack.c.l.b16 %v709
  %v804 = vunpack.c.h.b16 %v709
  %v805 = vunpack.c.l.b16 %v710
  %v806 = vunpack.c.h.b16 %v710
  %v807 = vunpack.c.l.b16 %v711
  %v808 = vunpack.c.h.b16 %v711
  %v809 = vunpack.c.l.b16 %v712
  %v810 = vunpack.c.h.b16 %v712
  %v811 = vunpack.c.l.b16 %v713
  %v812 = vunpack.c.h.b16 %v713
  %v813 = vunpack.c.l.b16 %v714
  %v814 = vunpack.c.h.b16 %v714
  %v815 = vunpack.c.l.b16 %v715
  %v816 = vunpack.c.h.b16 %v715
  %v817 = vunpack.c.l.b16 %v716
  %v818 = vunpack.c.h.b16 %v716
  %v819 = vunpack.c.l.b16 %v717
  %v820 = vunpack.c.h.b16 %v717
  %v821 = vunpack.c.l.b16 %v718
  %v822 = vunpack.c.h.b16 %v718
  %v823 = vunpack.c.l.b16 %v719
  %v824 = vunpack.c.h.b16 %v719
  %v825 = vunpack.c.l.b16 %v720
  %v826 = vunpack.c.h.b16 %v720
  %v827 = vpack.c.b16 %v779, %v763
  %v828 = vpack.c.b16 %v780, %v764
  %v829 = vpack.c.b16 %v781, %v765
  %v830 = vpack.c.b16 %v782, %v766
  %v831 = vpack.c.b16 %v783, %v767
  %v832 = vpack.c.b16 %v784, %v768
  %v833 = vpack.c.b16 %v785, %v769
  %v834 = vpack.c.b16 %v786, %v770
  %v835 = vpack.c.b16 %v787, %v771
  %v836 = vpack.c.b16 %v788, %v772
  %v837 = vpack.c.b16 %v789, %v773
  %v838 = vpack.c.b16 %v790, %v774
  %v839 = vpack.c.b16 %v791, %v775
  %v840 = vpack.c.b16 %v792, %v776
  %v841 = vpack.c.b16 %v793, %v777
  %v842 = vpack.c.b16 %v794, %v778
  %v843 = vpack.c.b16 %v811, %v795
  %v844 = vpack.c.b16 %v812, %v796
  %v845 = vpack.c.b16 %v813, %v797
  %v846 = vpack.c.b16 %v814, %v798
  %v847 = vpack.c.b16 %v815, %v799
  %v848 = vpack.c.b16 %v816, %v800
  %v849 = vpack.c.b16 %v817, %v801
  %v850 = vpack.c.b16 %v818, %v802
  %v851 = vpack.c.b16 %v819, %v803
  %v852 = vpack.c.b16 %v820, %v804
  %v853 = vpack.c.b16 %v821, %v805
  %v854 = vpack.c.b16 %v822, %v806
  %v855 = vpack.c.b16 %v823, %v807
  %v856 = vpack.c.b16 %v824, %v808
  %v857 = vpack.c.b16 %v825, %v809
  %v858 = vpack.c.b16 %v826, %v810
  %v892 = vsel %vm220, %v687, 0
  %894 = vmatprep.subr.bf16.mxu0 %v828
  %895 = vmatpush1.bf16.msra.mxu0 %v827
  %896 = vmatprep.subr.bf16.mxu0 %v844
  %897 = vmatpush1.bf16.msra.mxu0 %v843
  %898 = vmatprep.subr.bf16.mxu0 0
  %899 = vmatpush1.bf16.msra.mxu0 0
  %900 = vmatprep.subr.bf16.mxu0 0
  %901 = vmatpush1.bf16.msra.mxu0 0
  %902 = vmatprep.subr.bf16.mxu0 0
  %903 = vmatpush1.bf16.msra.mxu0 0
  %904 = vmatprep.subr.bf16.mxu0 0
  %905 = vmatpush1.bf16.msra.mxu0 0
  %906 = vmatprep.subr.bf16.mxu0 0
  %907 = vmatpush1.bf16.msra.mxu0 0
  %908 = vmatprep.subr.bf16.mxu0 0
  %909 = vmatpush1.bf16.msra.mxu0 0
  %910 = vmatprep.subr.bf16.mxu0 0
  %911 = vmatpush1.bf16.msra.mxu0 0
  %912 = vmatprep.subr.bf16.mxu0 0
  %913 = vmatpush1.bf16.msra.mxu0 0
  %914 = vmatprep.subr.bf16.mxu0 0
  %915 = vmatpush1.bf16.msra.mxu0 0
  %916 = vmatprep.subr.bf16.mxu0 0
  %917 = vmatpush1.bf16.msra.mxu0 0
  %918 = vmatprep.subr.bf16.mxu0 0
  %919 = vmatpush1.bf16.msra.mxu0 0
  %920 = vmatprep.subr.bf16.mxu0 0
  %921 = vmatpush1.bf16.msra.mxu0 0
  %922 = vmatprep.subr.bf16.mxu0 0
  %923 = vmatpush1.bf16.msra.mxu0 0
  %924 = vmatprep.subr.bf16.mxu0 0
  %925 = vmatpush1.bf16.msra.mxu0 0
  %926 = vmatprep.mubr.bf16.mxu0 0
  %927 = vmatmul.mubr.bf16.gmra.mrb[0].mxu0 %v892
  %v928 = vpop.f32.mrb[0].mxu0
  %v929 = vadd.f32 %v730, %v928
  %v930 = vpop.f32.mrb[0].mxu0
  %v931 = vadd.f32 %v730, %v930
  %v932 = vpop.f32.mrb[0].mxu0
  %v933 = vpop.f32.mrb[0].mxu0
  %934 = vdwg.mxu0
  %935 = vmatprep.subr.bf16.mxu0 %v830
  %936 = vmatpush1.bf16.msra.mxu0 %v829
  %937 = vmatprep.subr.bf16.mxu0 %v846
  %938 = vmatpush1.bf16.msra.mxu0 %v845
  %939 = vmatprep.subr.bf16.mxu0 0
  %940 = vmatpush1.bf16.msra.mxu0 0
  %941 = vmatprep.subr.bf16.mxu0 0
  %942 = vmatpush1.bf16.msra.mxu0 0
  %943 = vmatprep.subr.bf16.mxu0 0
  %944 = vmatpush1.bf16.msra.mxu0 0
  %945 = vmatprep.subr.bf16.mxu0 0
  %946 = vmatpush1.bf16.msra.mxu0 0
  %947 = vmatprep.subr.bf16.mxu0 0
  %948 = vmatpush1.bf16.msra.mxu0 0
  %949 = vmatprep.subr.bf16.mxu0 0
  %950 = vmatpush1.bf16.msra.mxu0 0
  %951 = vmatprep.subr.bf16.mxu0 0
  %952 = vmatpush1.bf16.msra.mxu0 0
  %953 = vmatprep.subr.bf16.mxu0 0
  %954 = vmatpush1.bf16.msra.mxu0 0
  %955 = vmatprep.subr.bf16.mxu0 0
  %956 = vmatpush1.bf16.msra.mxu0 0
  %957 = vmatprep.subr.bf16.mxu0 0
  %958 = vmatpush1.bf16.msra.mxu0 0
  %959 = vmatprep.subr.bf16.mxu0 0
  %960 = vmatpush1.bf16.msra.mxu0 0
  %961 = vmatprep.subr.bf16.mxu0 0
  %962 = vmatpush1.bf16.msra.mxu0 0
  %963 = vmatprep.subr.bf16.mxu0 0
  %964 = vmatpush1.bf16.msra.mxu0 0
  %965 = vmatprep.subr.bf16.mxu0 0
  %966 = vmatpush1.bf16.msra.mxu0 0
  %967 = vmatprep.mubr.bf16.mxu0 0
  %968 = vmatmul.mubr.bf16.gmra.mrb[0].mxu0 %v892
  %v969 = vpop.f32.mrb[0].mxu0
  %v970 = vadd.f32 %v730, %v969
  %v971 = vpop.f32.mrb[0].mxu0
  %v972 = vadd.f32 %v730, %v971
  %v973 = vpop.f32.mrb[0].mxu0
  %v974 = vpop.f32.mrb[0].mxu0
  %975 = vdwg.mxu0
  %976 = vmatprep.subr.bf16.mxu0 %v832
  %977 = vmatpush1.bf16.msra.mxu0 %v831
  %978 = vmatprep.subr.bf16.mxu0 %v848
  %979 = vmatpush1.bf16.msra.mxu0 %v847
  %980 = vmatprep.subr.bf16.mxu0 0
  %981 = vmatpush1.bf16.msra.mxu0 0
  %982 = vmatprep.subr.bf16.mxu0 0
  %983 = vmatpush1.bf16.msra.mxu0 0
  %984 = vmatprep.subr.bf16.mxu0 0
  %985 = vmatpush1.bf16.msra.mxu0 0
  %986 = vmatprep.subr.bf16.mxu0 0
  %987 = vmatpush1.bf16.msra.mxu0 0
  %988 = vmatprep.subr.bf16.mxu0 0
  %989 = vmatpush1.bf16.msra.mxu0 0
  %990 = vmatprep.subr.bf16.mxu0 0
  %991 = vmatpush1.bf16.msra.mxu0 0
  %992 = vmatprep.subr.bf16.mxu0 0
  %993 = vmatpush1.bf16.msra.mxu0 0
  %994 = vmatprep.subr.bf16.mxu0 0
  %995 = vmatpush1.bf16.msra.mxu0 0
  %996 = vmatprep.subr.bf16.mxu0 0
  %997 = vmatpush1.bf16.msra.mxu0 0
  %998 = vmatprep.subr.bf16.mxu0 0
  %999 = vmatpush1.bf16.msra.mxu0 0
  %1000 = vmatprep.subr.bf16.mxu0 0
  %1001 = vmatpush1.bf16.msra.mxu0 0
  %1002 = vmatprep.subr.bf16.mxu0 0
  %1003 = vmatpush1.bf16.msra.mxu0 0
  %1004 = vmatprep.subr.bf16.mxu0 0
  %1005 = vmatpush1.bf16.msra.mxu0 0
  %1006 = vmatprep.subr.bf16.mxu0 0
  %1007 = vmatpush1.bf16.msra.mxu0 0
  %1008 = vmatprep.mubr.bf16.mxu0 0
  %1009 = vmatmul.mubr.bf16.gmra.mrb[0].mxu0 %v892
  %v1010 = vpop.f32.mrb[0].mxu0
  %v1011 = vadd.f32 %v730, %v1010
  %v1012 = vpop.f32.mrb[0].mxu0
  %v1013 = vadd.f32 %v730, %v1012
  %v1014 = vpop.f32.mrb[0].mxu0
  %v1015 = vpop.f32.mrb[0].mxu0
  %1016 = vdwg.mxu0
  %1017 = vmatprep.subr.bf16.mxu0 %v834
  %1018 = vmatpush1.bf16.msra.mxu0 %v833
  %1019 = vmatprep.subr.bf16.mxu0 %v850
  %1020 = vmatpush1.bf16.msra.mxu0 %v849
  %1021 = vmatprep.subr.bf16.mxu0 0
  %1022 = vmatpush1.bf16.msra.mxu0 0
  %1023 = vmatprep.subr.bf16.mxu0 0
  %1024 = vmatpush1.bf16.msra.mxu0 0
  %1025 = vmatprep.subr.bf16.mxu0 0
  %1026 = vmatpush1.bf16.msra.mxu0 0
  %1027 = vmatprep.subr.bf16.mxu0 0
  %1028 = vmatpush1.bf16.msra.mxu0 0
  %1029 = vmatprep.subr.bf16.mxu0 0
  %1030 = vmatpush1.bf16.msra.mxu0 0
  %1031 = vmatprep.subr.bf16.mxu0 0
  %1032 = vmatpush1.bf16.msra.mxu0 0
  %1033 = vmatprep.subr.bf16.mxu0 0
  %1034 = vmatpush1.bf16.msra.mxu0 0
  %1035 = vmatprep.subr.bf16.mxu0 0
  %1036 = vmatpush1.bf16.msra.mxu0 0
  %1037 = vmatprep.subr.bf16.mxu0 0
  %1038 = vmatpush1.bf16.msra.mxu0 0
  %1039 = vmatprep.subr.bf16.mxu0 0
  %1040 = vmatpush1.bf16.msra.mxu0 0
  %1041 = vmatprep.subr.bf16.mxu0 0
  %1042 = vmatpush1.bf16.msra.mxu0 0
  %1043 = vmatprep.subr.bf16.mxu0 0
  %1044 = vmatpush1.bf16.msra.mxu0 0
  %1045 = vmatprep.subr.bf16.mxu0 0
  %1046 = vmatpush1.bf16.msra.mxu0 0
  %1047 = vmatprep.subr.bf16.mxu0 0
  %1048 = vmatpush1.bf16.msra.mxu0 0
  %1049 = vmatprep.mubr.bf16.mxu0 0
  %1050 = vmatmul.mubr.bf16.gmra.mrb[0].mxu0 %v892
  %v1051 = vpop.f32.mrb[0].mxu0
  %v1052 = vadd.f32 %v730, %v1051
  %v1053 = vpop.f32.mrb[0].mxu0
  %v1054 = vadd.f32 %v730, %v1053
  %v1055 = vpop.f32.mrb[0].mxu0
  %v1056 = vpop.f32.mrb[0].mxu0
  %1057 = vdwg.mxu0
  %1058 = vmatprep.subr.bf16.mxu0 %v836
  %1059 = vmatpush1.bf16.msra.mxu0 %v835
  %1060 = vmatprep.subr.bf16.mxu0 %v852
  %1061 = vmatpush1.bf16.msra.mxu0 %v851
  %1062 = vmatprep.subr.bf16.mxu0 0
  %1063 = vmatpush1.bf16.msra.mxu0 0
  %1064 = vmatprep.subr.bf16.mxu0 0
  %1065 = vmatpush1.bf16.msra.mxu0 0
  %1066 = vmatprep.subr.bf16.mxu0 0
  %1067 = vmatpush1.bf16.msra.mxu0 0
  %1068 = vmatprep.subr.bf16.mxu0 0
  %1069 = vmatpush1.bf16.msra.mxu0 0
  %1070 = vmatprep.subr.bf16.mxu0 0
  %1071 = vmatpush1.bf16.msra.mxu0 0
  %1072 = vmatprep.subr.bf16.mxu0 0
  %1073 = vmatpush1.bf16.msra.mxu0 0
  %1074 = vmatprep.subr.bf16.mxu0 0
  %1075 = vmatpush1.bf16.msra.mxu0 0
  %1076 = vmatprep.subr.bf16.mxu0 0
  %1077 = vmatpush1.bf16.msra.mxu0 0
  %1078 = vmatprep.subr.bf16.mxu0 0
  %1079 = vmatpush1.bf16.msra.mxu0 0
  %1080 = vmatprep.subr.bf16.mxu0 0
  %1081 = vmatpush1.bf16.msra.mxu0 0
  %1082 = vmatprep.subr.bf16.mxu0 0
  %1083 = vmatpush1.bf16.msra.mxu0 0
  %1084 = vmatprep.subr.bf16.mxu0 0
  %1085 = vmatpush1.bf16.msra.mxu0 0
  %1086 = vmatprep.subr.bf16.mxu0 0
  %1087 = vmatpush1.bf16.msra.mxu0 0
  %1088 = vmatprep.subr.bf16.mxu0 0
  %1089 = vmatpush1.bf16.msra.mxu0 0
  %1090 = vmatprep.mubr.bf16.mxu0 0
  %1091 = vmatmul.mubr.bf16.gmra.mrb[0].mxu0 %v892
  %v1092 = vpop.f32.mrb[0].mxu0
  %v1093 = vadd.f32 %v730, %v1092
  %v1094 = vpop.f32.mrb[0].mxu0
  %v1095 = vadd.f32 %v730, %v1094
  %v1096 = vpop.f32.mrb[0].mxu0
  %v1097 = vpop.f32.mrb[0].mxu0
  %1098 = vdwg.mxu0
  %1099 = vmatprep.subr.bf16.mxu0 %v838
  %1100 = vmatpush1.bf16.msra.mxu0 %v837
  %1101 = vmatprep.subr.bf16.mxu0 %v854
  %1102 = vmatpush1.bf16.msra.mxu0 %v853
  %1103 = vmatprep.subr.bf16.mxu0 0
  %1104 = vmatpush1.bf16.msra.mxu0 0
  %1105 = vmatprep.subr.bf16.mxu0 0
  %1106 = vmatpush1.bf16.msra.mxu0 0
  %1107 = vmatprep.subr.bf16.mxu0 0
  %1108 = vmatpush1.bf16.msra.mxu0 0
  %1109 = vmatprep.subr.bf16.mxu0 0
  %1110 = vmatpush1.bf16.msra.mxu0 0
  %1111 = vmatprep.subr.bf16.mxu0 0
  %1112 = vmatpush1.bf16.msra.mxu0 0
  %1113 = vmatprep.subr.bf16.mxu0 0
  %1114 = vmatpush1.bf16.msra.mxu0 0
  %1115 = vmatprep.subr.bf16.mxu0 0
  %1116 = vmatpush1.bf16.msra.mxu0 0
  %1117 = vmatprep.subr.bf16.mxu0 0
  %1118 = vmatpush1.bf16.msra.mxu0 0
  %1119 = vmatprep.subr.bf16.mxu0 0
  %1120 = vmatpush1.bf16.msra.mxu0 0
  %1121 = vmatprep.subr.bf16.mxu0 0
  %1122 = vmatpush1.bf16.msra.mxu0 0
  %1123 = vmatprep.subr.bf16.mxu0 0
  %1124 = vmatpush1.bf16.msra.mxu0 0
  %1125 = vmatprep.subr.bf16.mxu0 0
  %1126 = vmatpush1.bf16.msra.mxu0 0
  %1127 = vmatprep.subr.bf16.mxu0 0
  %1128 = vmatpush1.bf16.msra.mxu0 0
  %1129 = vmatprep.subr.bf16.mxu0 0
  %1130 = vmatpush1.bf16.msra.mxu0 0
  %1131 = vmatprep.mubr.bf16.mxu0 0
  %1132 = vmatmul.mubr.bf16.gmra.mrb[0].mxu0 %v892
  %v1133 = vpop.f32.mrb[0].mxu0
  %v1134 = vadd.f32 %v730, %v1133
  %v1135 = vpop.f32.mrb[0].mxu0
  %v1136 = vadd.f32 %v730, %v1135
  %v1137 = vpop.f32.mrb[0].mxu0
  %v1138 = vpop.f32.mrb[0].mxu0
  %1139 = vdwg.mxu0
  %1140 = vmatprep.subr.bf16.mxu0 %v840
  %1141 = vmatpush1.bf16.msra.mxu0 %v839
  %1142 = vmatprep.subr.bf16.mxu0 %v856
  %1143 = vmatpush1.bf16.msra.mxu0 %v855
  %1144 = vmatprep.subr.bf16.mxu0 0
  %1145 = vmatpush1.bf16.msra.mxu0 0
  %1146 = vmatprep.subr.bf16.mxu0 0
  %1147 = vmatpush1.bf16.msra.mxu0 0
  %1148 = vmatprep.subr.bf16.mxu0 0
  %1149 = vmatpush1.bf16.msra.mxu0 0
  %1150 = vmatprep.subr.bf16.mxu0 0
  %1151 = vmatpush1.bf16.msra.mxu0 0
  %1152 = vmatprep.subr.bf16.mxu0 0
  %1153 = vmatpush1.bf16.msra.mxu0 0
  %1154 = vmatprep.subr.bf16.mxu0 0
  %1155 = vmatpush1.bf16.msra.mxu0 0
  %1156 = vmatprep.subr.bf16.mxu0 0
  %1157 = vmatpush1.bf16.msra.mxu0 0
  %1158 = vmatprep.subr.bf16.mxu0 0
  %1159 = vmatpush1.bf16.msra.mxu0 0
  %1160 = vmatprep.subr.bf16.mxu0 0
  %1161 = vmatpush1.bf16.msra.mxu0 0
  %1162 = vmatprep.subr.bf16.mxu0 0
  %1163 = vmatpush1.bf16.msra.mxu0 0
  %1164 = vmatprep.subr.bf16.mxu0 0
  %1165 = vmatpush1.bf16.msra.mxu0 0
  %1166 = vmatprep.subr.bf16.mxu0 0
  %1167 = vmatpush1.bf16.msra.mxu0 0
  %1168 = vmatprep.subr.bf16.mxu0 0
  %1169 = vmatpush1.bf16.msra.mxu0 0
  %1170 = vmatprep.subr.bf16.mxu0 0
  %1171 = vmatpush1.bf16.msra.mxu0 0
  %1172 = vmatprep.mubr.bf16.mxu0 0
  %1173 = vmatmul.mubr.bf16.gmra.mrb[0].mxu0 %v892
  %v1174 = vpop.f32.mrb[0].mxu0
  %v1175 = vadd.f32 %v730, %v1174
  %v1176 = vpop.f32.mrb[0].mxu0
  %v1177 = vadd.f32 %v730, %v1176
  %v1178 = vpop.f32.mrb[0].mxu0
  %v1179 = vpop.f32.mrb[0].mxu0
  %1180 = vdwg.mxu0
  %1181 = vmatprep.subr.bf16.mxu0 %v842
  %1182 = vmatpush1.bf16.msra.mxu0 %v841
  %1183 = vmatprep.subr.bf16.mxu0 %v858
  %1184 = vmatpush1.bf16.msra.mxu0 %v857
  %1185 = vmatprep.subr.bf16.mxu0 0
  %1186 = vmatpush1.bf16.msra.mxu0 0
  %1187 = vmatprep.subr.bf16.mxu0 0
  %1188 = vmatpush1.bf16.msra.mxu0 0
  %1189 = vmatprep.subr.bf16.mxu0 0
  %1190 = vmatpush1.bf16.msra.mxu0 0
  %1191 = vmatprep.subr.bf16.mxu0 0
  %1192 = vmatpush1.bf16.msra.mxu0 0
  %1193 = vmatprep.subr.bf16.mxu0 0
  %1194 = vmatpush1.bf16.msra.mxu0 0
  %1195 = vmatprep.subr.bf16.mxu0 0
  %1196 = vmatpush1.bf16.msra.mxu0 0
  %1197 = vmatprep.subr.bf16.mxu0 0
  %1198 = vmatpush1.bf16.msra.mxu0 0
  %1199 = vmatprep.subr.bf16.mxu0 0
  %1200 = vmatpush1.bf16.msra.mxu0 0
  %1201 = vmatprep.subr.bf16.mxu0 0
  %1202 = vmatpush1.bf16.msra.mxu0 0
  %1203 = vmatprep.subr.bf16.mxu0 0
  %1204 = vmatpush1.bf16.msra.mxu0 0
  %1205 = vmatprep.subr.bf16.mxu0 0
  %1206 = vmatpush1.bf16.msra.mxu0 0
  %1207 = vmatprep.subr.bf16.mxu0 0
  %1208 = vmatpush1.bf16.msra.mxu0 0
  %1209 = vmatprep.subr.bf16.mxu0 0
  %1210 = vmatpush1.bf16.msra.mxu0 0
  %1211 = vmatprep.subr.bf16.mxu0 0
  %1212 = vmatpush1.bf16.msra.mxu0 0
  %1213 = vmatprep.mubr.bf16.mxu0 0
  %1214 = vmatmul.mubr.bf16.gmra.mrb[0].mxu0 %v892
  %v1215 = vpop.f32.mrb[0].mxu0
  %v1216 = vadd.f32 %v730, %v1215
  %v1217 = vpop.f32.mrb[0].mxu0
  %v1218 = vadd.f32 %v730, %v1217
  %v1219 = vpop.f32.mrb[0].mxu0
  %v1220 = vpop.f32.mrb[0].mxu0
  %1221 = vdwg.mxu0
  %v1222 = vtanh.pop %v929
  %v1223 = vtanh.pop %v931
  %v1224 = vtanh.pop %v970
  %v1225 = vtanh.pop %v972
  %v1226 = vtanh.pop %v1011
  %v1227 = vtanh.pop %v1013
  %v1228 = vtanh.pop %v1052
  %v1229 = vtanh.pop %v1054
  %v1230 = vtanh.pop %v1093
  %v1231 = vtanh.pop %v1095
  %v1232 = vtanh.pop %v1134
  %v1233 = vtanh.pop %v1136
  %v1234 = vtanh.pop %v1175
  %v1235 = vtanh.pop %v1177
  %v1236 = vtanh.pop %v1216
  %v1237 = vtanh.pop %v1218
  %v1254 = vcombine.low %v1222, %v1223
  %v1255 = vcombine.low %v1224, %v1225
  %v1256 = vcombine.low %v1226, %v1227
  %v1257 = vcombine.low %v1228, %v1229
  %v1259 = vunpack.c.l.s4 1966171168
  %v1260 = vunpack.c.0.s8 %v1259
  %v1261 = vlaneseq
  %v1262 = vshrl.u32 %v1261, 7
  %v1263 = vsub.s32 %v1260, %v1262
  %v1264 = vrot.slane %v1254, %v1263
  %v1266 = vunpack.c.l.s4 1966171168
  %v1267 = vunpack.c.0.s8 %v1266
  %v1268 = vlaneseq
  %v1269 = vshrl.u32 %v1268, 7
  %v1270 = vsub.s32 %v1267, %v1269
  %v1271 = vrot.slane %v1255, %v1270
  %v1273 = vunpack.c.l.s4 1966171168
  %v1274 = vunpack.c.0.s8 %v1273
  %v1275 = vlaneseq
  %v1276 = vshrl.u32 %v1275, 7
  %v1277 = vsub.s32 %v1274, %v1276
  %v1278 = vrot.slane %v1256, %v1277
  %v1280 = vunpack.c.l.s4 1966171168
  %v1281 = vunpack.c.0.s8 %v1280
  %v1282 = vlaneseq
  %v1283 = vshrl.u32 %v1282, 7
  %v1284 = vsub.s32 %v1281, %v1283
  %v1285 = vrot.slane %v1257, %v1284
  %v1286 = vcombine.low %v1264, %v1271
  %v1287 = vcombine.low %v1278, %v1285
  %v1289 = vunpack.c.l.s4 1966171168
  %v1290 = vunpack.c.0.s8 %v1289
  %v1291 = vlaneseq
  %v1292 = vshrl.u32 %v1291, 7
  %v1293 = vsub.s32 %v1290, %v1292
  %v1294 = vrot.slane %v1286, %v1293
  %v1296 = vunpack.c.l.s4 1966171168
  %v1297 = vunpack.c.0.s8 %v1296
  %v1298 = vlaneseq
  %v1299 = vshrl.u32 %v1298, 7
  %v1300 = vsub.s32 %v1297, %v1299
  %v1301 = vrot.slane %v1287, %v1300
  %v1302 = vcombine.low %v1294, %v1301
  %v1303 = vcombine.low %v1230, %v1231
  %v1304 = vcombine.low %v1232, %v1233
  %v1305 = vcombine.low %v1234, %v1235
  %v1306 = vcombine.low %v1236, %v1237
  %v1308 = vunpack.c.l.s4 1966171168
  %v1309 = vunpack.c.0.s8 %v1308
  %v1310 = vlaneseq
  %v1311 = vshrl.u32 %v1310, 7
  %v1312 = vsub.s32 %v1309, %v1311
  %v1313 = vrot.slane %v1303, %v1312
  %v1315 = vunpack.c.l.s4 1966171168
  %v1316 = vunpack.c.0.s8 %v1315
  %v1317 = vlaneseq
  %v1318 = vshrl.u32 %v1317, 7
  %v1319 = vsub.s32 %v1316, %v1318
  %v1320 = vrot.slane %v1304, %v1319
  %v1322 = vunpack.c.l.s4 1966171168
  %v1323 = vunpack.c.0.s8 %v1322
  %v1324 = vlaneseq
  %v1325 = vshrl.u32 %v1324, 7
  %v1326 = vsub.s32 %v1323, %v1325
  %v1327 = vrot.slane %v1305, %v1326
  %v1329 = vunpack.c.l.s4 1966171168
  %v1330 = vunpack.c.0.s8 %v1329
  %v1331 = vlaneseq
  %v1332 = vshrl.u32 %v1331, 7
  %v1333 = vsub.s32 %v1330, %v1332
  %v1334 = vrot.slane %v1306, %v1333
  %v1335 = vcombine.low %v1313, %v1320
  %v1336 = vcombine.low %v1327, %v1334
  %v1338 = vunpack.c.l.s4 1966171168
  %v1339 = vunpack.c.0.s8 %v1338
  %v1340 = vlaneseq
  %v1341 = vshrl.u32 %v1340, 7
  %v1342 = vsub.s32 %v1339, %v1341
  %v1343 = vrot.slane %v1335, %v1342
  %v1345 = vunpack.c.l.s4 1966171168
  %v1346 = vunpack.c.0.s8 %v1345
  %v1347 = vlaneseq
  %v1348 = vshrl.u32 %v1347, 7
  %v1349 = vsub.s32 %v1346, %v1348
  %v1350 = vrot.slane %v1336, %v1349
  %v1351 = vcombine.low %v1343, %v1350
  %s1354 = scalar_lea.vmem %s3, 16
  %1355 = vst [vmem:[%s1354] sm:$0xff] %v1302
  %1356 = vst [vmem:[%s1354 + $0x8] sm:$0xff] %v1351
  %s1357 = scalar_lea.vmem %s1, 2
  %v1358 = vld [vmem:[%s1357] sm:$0x1]
  %s1359 = scalar_lea.vmem %s0, 512
  %v1360 = vld [vmem:[%s1359] sm:$0xff]
  %v1361 = vld [vmem:[%s1359 + $0x8] sm:$0xff]
  %v1362 = vld [vmem:[%s1359 + $0x10] sm:$0xff]
  %v1363 = vld [vmem:[%s1359 + $0x18] sm:$0xff]
  %v1364 = vld [vmem:[%s1359 + $0x20] sm:$0xff]
  %v1365 = vld [vmem:[%s1359 + $0x28] sm:$0xff]
  %v1366 = vld [vmem:[%s1359 + $0x30] sm:$0xff]
  %v1367 = vld [vmem:[%s1359 + $0x38] sm:$0xff]
  %v1368 = vld [vmem:[%s1359 + $0x40] sm:$0xff]
  %v1369 = vld [vmem:[%s1359 + $0x48] sm:$0xff]
  %v1370 = vld [vmem:[%s1359 + $0x50] sm:$0xff]
  %v1371 = vld [vmem:[%s1359 + $0x58] sm:$0xff]
  %v1372 = vld [vmem:[%s1359 + $0x60] sm:$0xff]
  %v1373 = vld [vmem:[%s1359 + $0x68] sm:$0xff]
  %v1374 = vld [vmem:[%s1359 + $0x70] sm:$0xff]
  %v1375 = vld [vmem:[%s1359 + $0x78] sm:$0xff]
  %v1376 = vld [vmem:[%s1359 + $0x80] sm:$0xff]
  %v1377 = vld [vmem:[%s1359 + $0x88] sm:$0xff]
  %v1378 = vld [vmem:[%s1359 + $0x90] sm:$0xff]
  %v1379 = vld [vmem:[%s1359 + $0x98] sm:$0xff]
  %v1380 = vld [vmem:[%s1359 + $0xa0] sm:$0xff]
  %v1381 = vld [vmem:[%s1359 + $0xa8] sm:$0xff]
  %v1382 = vld [vmem:[%s1359 + $0xb0] sm:$0xff]
  %v1383 = vld [vmem:[%s1359 + $0xb8] sm:$0xff]
  %v1384 = vld [vmem:[%s1359 + $0xc0] sm:$0xff]
  %v1385 = vld [vmem:[%s1359 + $0xc8] sm:$0xff]
  %v1386 = vld [vmem:[%s1359 + $0xd0] sm:$0xff]
  %v1387 = vld [vmem:[%s1359 + $0xd8] sm:$0xff]
  %v1388 = vld [vmem:[%s1359 + $0xe0] sm:$0xff]
  %v1389 = vld [vmem:[%s1359 + $0xe8] sm:$0xff]
  %v1390 = vld [vmem:[%s1359 + $0xf0] sm:$0xff]
  %v1391 = vld [vmem:[%s1359 + $0xf8] sm:$0xff]
  %v1392 = vld [vmem:[#allocation2] sm:$0x1]
  %1394 = vset.pattern.permute.xlu0 0
  %1395 = vperm.xlu0 %1394, %v1392
  %v1396 = vpop.permute.xlu0 %1395
  %v1398 = vlaneseq
  %v1399 = vshrl.u32 %v1398, 7
  %v1400 = vsub.s32 0, %v1399
  %v1401 = vrot.slane %v1396, %v1400
  %v1434 = vunpack.c.l.b16 %v1360
  %v1435 = vunpack.c.h.b16 %v1360
  %v1436 = vunpack.c.l.b16 %v1361
  %v1437 = vunpack.c.h.b16 %v1361
  %v1438 = vunpack.c.l.b16 %v1362
  %v1439 = vunpack.c.h.b16 %v1362
  %v1440 = vunpack.c.l.b16 %v1363
  %v1441 = vunpack.c.h.b16 %v1363
  %v1442 = vunpack.c.l.b16 %v1364
  %v1443 = vunpack.c.h.b16 %v1364
  %v1444 = vunpack.c.l.b16 %v1365
  %v1445 = vunpack.c.h.b16 %v1365
  %v1446 = vunpack.c.l.b16 %v1366
  %v1447 = vunpack.c.h.b16 %v1366
  %v1448 = vunpack.c.l.b16 %v1367
  %v1449 = vunpack.c.h.b16 %v1367
  %v1450 = vunpack.c.l.b16 %v1368
  %v1451 = vunpack.c.h.b16 %v1368
  %v1452 = vunpack.c.l.b16 %v1369
  %v1453 = vunpack.c.h.b16 %v1369
  %v1454 = vunpack.c.l.b16 %v1370
  %v1455 = vunpack.c.h.b16 %v1370
  %v1456 = vunpack.c.l.b16 %v1371
  %v1457 = vunpack.c.h.b16 %v1371
  %v1458 = vunpack.c.l.b16 %v1372
  %v1459 = vunpack.c.h.b16 %v1372
  %v1460 = vunpack.c.l.b16 %v1373
  %v1461 = vunpack.c.h.b16 %v1373
  %v1462 = vunpack.c.l.b16 %v1374
  %v1463 = vunpack.c.h.b16 %v1374
  %v1464 = vunpack.c.l.b16 %v1375
  %v1465 = vunpack.c.h.b16 %v1375
  %v1466 = vunpack.c.l.b16 %v1376
  %v1467 = vunpack.c.h.b16 %v1376
  %v1468 = vunpack.c.l.b16 %v1377
  %v1469 = vunpack.c.h.b16 %v1377
  %v1470 = vunpack.c.l.b16 %v1378
  %v1471 = vunpack.c.h.b16 %v1378
  %v1472 = vunpack.c.l.b16 %v1379
  %v1473 = vunpack.c.h.b16 %v1379
  %v1474 = vunpack.c.l.b16 %v1380
  %v1475 = vunpack.c.h.b16 %v1380
  %v1476 = vunpack.c.l.b16 %v1381
  %v1477 = vunpack.c.h.b16 %v1381
  %v1478 = vunpack.c.l.b16 %v1382
  %v1479 = vunpack.c.h.b16 %v1382
  %v1480 = vunpack.c.l.b16 %v1383
  %v1481 = vunpack.c.h.b16 %v1383
  %v1482 = vunpack.c.l.b16 %v1384
  %v1483 = vunpack.c.h.b16 %v1384
  %v1484 = vunpack.c.l.b16 %v1385
  %v1485 = vunpack.c.h.b16 %v1385
  %v1486 = vunpack.c.l.b16 %v1386
  %v1487 = vunpack.c.h.b16 %v1386
  %v1488 = vunpack.c.l.b16 %v1387
  %v1489 = vunpack.c.h.b16 %v1387
  %v1490 = vunpack.c.l.b16 %v1388
  %v1491 = vunpack.c.h.b16 %v1388
  %v1492 = vunpack.c.l.b16 %v1389
  %v1493 = vunpack.c.h.b16 %v1389
  %v1494 = vunpack.c.l.b16 %v1390
  %v1495 = vunpack.c.h.b16 %v1390
  %v1496 = vunpack.c.l.b16 %v1391
  %v1497 = vunpack.c.h.b16 %v1391
  %v1498 = vpack.c.b16 %v1450, %v1434
  %v1499 = vpack.c.b16 %v1451, %v1435
  %v1500 = vpack.c.b16 %v1452, %v1436
  %v1501 = vpack.c.b16 %v1453, %v1437
  %v1502 = vpack.c.b16 %v1454, %v1438
  %v1503 = vpack.c.b16 %v1455, %v1439
  %v1504 = vpack.c.b16 %v1456, %v1440
  %v1505 = vpack.c.b16 %v1457, %v1441
  %v1506 = vpack.c.b16 %v1458, %v1442
  %v1507 = vpack.c.b16 %v1459, %v1443
  %v1508 = vpack.c.b16 %v1460, %v1444
  %v1509 = vpack.c.b16 %v1461, %v1445
  %v1510 = vpack.c.b16 %v1462, %v1446
  %v1511 = vpack.c.b16 %v1463, %v1447
  %v1512 = vpack.c.b16 %v1464, %v1448
  %v1513 = vpack.c.b16 %v1465, %v1449
  %v1514 = vpack.c.b16 %v1482, %v1466
  %v1515 = vpack.c.b16 %v1483, %v1467
  %v1516 = vpack.c.b16 %v1484, %v1468
  %v1517 = vpack.c.b16 %v1485, %v1469
  %v1518 = vpack.c.b16 %v1486, %v1470
  %v1519 = vpack.c.b16 %v1487, %v1471
  %v1520 = vpack.c.b16 %v1488, %v1472
  %v1521 = vpack.c.b16 %v1489, %v1473
  %v1522 = vpack.c.b16 %v1490, %v1474
  %v1523 = vpack.c.b16 %v1491, %v1475
  %v1524 = vpack.c.b16 %v1492, %v1476
  %v1525 = vpack.c.b16 %v1493, %v1477
  %v1526 = vpack.c.b16 %v1494, %v1478
  %v1527 = vpack.c.b16 %v1495, %v1479
  %v1528 = vpack.c.b16 %v1496, %v1480
  %v1529 = vpack.c.b16 %v1497, %v1481
  %v1563 = vsel %vm220, %v1358, 0
  %1565 = vmatprep.subr.bf16.mxu0 %v1499
  %1566 = vmatpush1.bf16.msra.mxu0 %v1498
  %1567 = vmatprep.subr.bf16.mxu0 %v1515
  %1568 = vmatpush1.bf16.msra.mxu0 %v1514
  %1569 = vmatprep.subr.bf16.mxu0 0
  %1570 = vmatpush1.bf16.msra.mxu0 0
  %1571 = vmatprep.subr.bf16.mxu0 0
  %1572 = vmatpush1.bf16.msra.mxu0 0
  %1573 = vmatprep.subr.bf16.mxu0 0
  %1574 = vmatpush1.bf16.msra.mxu0 0
  %1575 = vmatprep.subr.bf16.mxu0 0
  %1576 = vmatpush1.bf16.msra.mxu0 0
  %1577 = vmatprep.subr.bf16.mxu0 0
  %1578 = vmatpush1.bf16.msra.mxu0 0
  %1579 = vmatprep.subr.bf16.mxu0 0
  %1580 = vmatpush1.bf16.msra.mxu0 0
  %1581 = vmatprep.subr.bf16.mxu0 0
  %1582 = vmatpush1.bf16.msra.mxu0 0
  %1583 = vmatprep.subr.bf16.mxu0 0
  %1584 = vmatpush1.bf16.msra.mxu0 0
  %1585 = vmatprep.subr.bf16.mxu0 0
  %1586 = vmatpush1.bf16.msra.mxu0 0
  %1587 = vmatprep.subr.bf16.mxu0 0
  %1588 = vmatpush1.bf16.msra.mxu0 0
  %1589 = vmatprep.subr.bf16.mxu0 0
  %1590 = vmatpush1.bf16.msra.mxu0 0
  %1591 = vmatprep.subr.bf16.mxu0 0
  %1592 = vmatpush1.bf16.msra.mxu0 0
  %1593 = vmatprep.subr.bf16.mxu0 0
  %1594 = vmatpush1.bf16.msra.mxu0 0
  %1595 = vmatprep.subr.bf16.mxu0 0
  %1596 = vmatpush1.bf16.msra.mxu0 0
  %1597 = vmatprep.mubr.bf16.mxu0 0
  %1598 = vmatmul.mubr.bf16.gmra.mrb[0].mxu0 %v1563
  %v1599 = vpop.f32.mrb[0].mxu0
  %v1600 = vadd.f32 %v1401, %v1599
  %v1601 = vpop.f32.mrb[0].mxu0
  %v1602 = vadd.f32 %v1401, %v1601
  %v1603 = vpop.f32.mrb[0].mxu0
  %v1604 = vpop.f32.mrb[0].mxu0
  %1605 = vdwg.mxu0
  %1606 = vmatprep.subr.bf16.mxu0 %v1501
  %1607 = vmatpush1.bf16.msra.mxu0 %v1500
  %1608 = vmatprep.subr.bf16.mxu0 %v1517
  %1609 = vmatpush1.bf16.msra.mxu0 %v1516
  %1610 = vmatprep.subr.bf16.mxu0 0
  %1611 = vmatpush1.bf16.msra.mxu0 0
  %1612 = vmatprep.subr.bf16.mxu0 0
  %1613 = vmatpush1.bf16.msra.mxu0 0
  %1614 = vmatprep.subr.bf16.mxu0 0
  %1615 = vmatpush1.bf16.msra.mxu0 0
  %1616 = vmatprep.subr.bf16.mxu0 0
  %1617 = vmatpush1.bf16.msra.mxu0 0
  %1618 = vmatprep.subr.bf16.mxu0 0
  %1619 = vmatpush1.bf16.msra.mxu0 0
  %1620 = vmatprep.subr.bf16.mxu0 0
  %1621 = vmatpush1.bf16.msra.mxu0 0
  %1622 = vmatprep.subr.bf16.mxu0 0
  %1623 = vmatpush1.bf16.msra.mxu0 0
  %1624 = vmatprep.subr.bf16.mxu0 0
  %1625 = vmatpush1.bf16.msra.mxu0 0
  %1626 = vmatprep.subr.bf16.mxu0 0
  %1627 = vmatpush1.bf16.msra.mxu0 0
  %1628 = vmatprep.subr.bf16.mxu0 0
  %1629 = vmatpush1.bf16.msra.mxu0 0
  %1630 = vmatprep.subr.bf16.mxu0 0
  %1631 = vmatpush1.bf16.msra.mxu0 0
  %1632 = vmatprep.subr.bf16.mxu0 0
  %1633 = vmatpush1.bf16.msra.mxu0 0
  %1634 = vmatprep.subr.bf16.mxu0 0
  %1635 = vmatpush1.bf16.msra.mxu0 0
  %1636 = vmatprep.subr.bf16.mxu0 0
  %1637 = vmatpush1.bf16.msra.mxu0 0
  %1638 = vmatprep.mubr.bf16.mxu0 0
  %1639 = vmatmul.mubr.bf16.gmra.mrb[0].mxu0 %v1563
  %v1640 = vpop.f32.mrb[0].mxu0
  %v1641 = vadd.f32 %v1401, %v1640
  %v1642 = vpop.f32.mrb[0].mxu0
  %v1643 = vadd.f32 %v1401, %v1642
  %v1644 = vpop.f32.mrb[0].mxu0
  %v1645 = vpop.f32.mrb[0].mxu0
  %1646 = vdwg.mxu0
  %1647 = vmatprep.subr.bf16.mxu0 %v1503
  %1648 = vmatpush1.bf16.msra.mxu0 %v1502
  %1649 = vmatprep.subr.bf16.mxu0 %v1519
  %1650 = vmatpush1.bf16.msra.mxu0 %v1518
  %1651 = vmatprep.subr.bf16.mxu0 0
  %1652 = vmatpush1.bf16.msra.mxu0 0
  %1653 = vmatprep.subr.bf16.mxu0 0
  %1654 = vmatpush1.bf16.msra.mxu0 0
  %1655 = vmatprep.subr.bf16.mxu0 0
  %1656 = vmatpush1.bf16.msra.mxu0 0
  %1657 = vmatprep.subr.bf16.mxu0 0
  %1658 = vmatpush1.bf16.msra.mxu0 0
  %1659 = vmatprep.subr.bf16.mxu0 0
  %1660 = vmatpush1.bf16.msra.mxu0 0
  %1661 = vmatprep.subr.bf16.mxu0 0
  %1662 = vmatpush1.bf16.msra.mxu0 0
  %1663 = vmatprep.subr.bf16.mxu0 0
  %1664 = vmatpush1.bf16.msra.mxu0 0
  %1665 = vmatprep.subr.bf16.mxu0 0
  %1666 = vmatpush1.bf16.msra.mxu0 0
  %1667 = vmatprep.subr.bf16.mxu0 0
  %1668 = vmatpush1.bf16.msra.mxu0 0
  %1669 = vmatprep.subr.bf16.mxu0 0
  %1670 = vmatpush1.bf16.msra.mxu0 0
  %1671 = vmatprep.subr.bf16.mxu0 0
  %1672 = vmatpush1.bf16.msra.mxu0 0
  %1673 = vmatprep.subr.bf16.mxu0 0
  %1674 = vmatpush1.bf16.msra.mxu0 0
  %1675 = vmatprep.subr.bf16.mxu0 0
  %1676 = vmatpush1.bf16.msra.mxu0 0
  %1677 = vmatprep.subr.bf16.mxu0 0
  %1678 = vmatpush1.bf16.msra.mxu0 0
  %1679 = vmatprep.mubr.bf16.mxu0 0
  %1680 = vmatmul.mubr.bf16.gmra.mrb[0].mxu0 %v1563
  %v1681 = vpop.f32.mrb[0].mxu0
  %v1682 = vadd.f32 %v1401, %v1681
  %v1683 = vpop.f32.mrb[0].mxu0
  %v1684 = vadd.f32 %v1401, %v1683
  %v1685 = vpop.f32.mrb[0].mxu0
  %v1686 = vpop.f32.mrb[0].mxu0
  %1687 = vdwg.mxu0
  %1688 = vmatprep.subr.bf16.mxu0 %v1505
  %1689 = vmatpush1.bf16.msra.mxu0 %v1504
  %1690 = vmatprep.subr.bf16.mxu0 %v1521
  %1691 = vmatpush1.bf16.msra.mxu0 %v1520
  %1692 = vmatprep.subr.bf16.mxu0 0
  %1693 = vmatpush1.bf16.msra.mxu0 0
  %1694 = vmatprep.subr.bf16.mxu0 0
  %1695 = vmatpush1.bf16.msra.mxu0 0
  %1696 = vmatprep.subr.bf16.mxu0 0
  %1697 = vmatpush1.bf16.msra.mxu0 0
  %1698 = vmatprep.subr.bf16.mxu0 0
  %1699 = vmatpush1.bf16.msra.mxu0 0
  %1700 = vmatprep.subr.bf16.mxu0 0
  %1701 = vmatpush1.bf16.msra.mxu0 0
  %1702 = vmatprep.subr.bf16.mxu0 0
  %1703 = vmatpush1.bf16.msra.mxu0 0
  %1704 = vmatprep.subr.bf16.mxu0 0
  %1705 = vmatpush1.bf16.msra.mxu0 0
  %1706 = vmatprep.subr.bf16.mxu0 0
  %1707 = vmatpush1.bf16.msra.mxu0 0
  %1708 = vmatprep.subr.bf16.mxu0 0
  %1709 = vmatpush1.bf16.msra.mxu0 0
  %1710 = vmatprep.subr.bf16.mxu0 0
  %1711 = vmatpush1.bf16.msra.mxu0 0
  %1712 = vmatprep.subr.bf16.mxu0 0
  %1713 = vmatpush1.bf16.msra.mxu0 0
  %1714 = vmatprep.subr.bf16.mxu0 0
  %1715 = vmatpush1.bf16.msra.mxu0 0
  %1716 = vmatprep.subr.bf16.mxu0 0
  %1717 = vmatpush1.bf16.msra.mxu0 0
  %1718 = vmatprep.subr.bf16.mxu0 0
  %1719 = vmatpush1.bf16.msra.mxu0 0
  %1720 = vmatprep.mubr.bf16.mxu0 0
  %1721 = vmatmul.mubr.bf16.gmra.mrb[0].mxu0 %v1563
  %v1722 = vpop.f32.mrb[0].mxu0
  %v1723 = vadd.f32 %v1401, %v1722
  %v1724 = vpop.f32.mrb[0].mxu0
  %v1725 = vadd.f32 %v1401, %v1724
  %v1726 = vpop.f32.mrb[0].mxu0
  %v1727 = vpop.f32.mrb[0].mxu0
  %1728 = vdwg.mxu0
  %1729 = vmatprep.subr.bf16.mxu0 %v1507
  %1730 = vmatpush1.bf16.msra.mxu0 %v1506
  %1731 = vmatprep.subr.bf16.mxu0 %v1523
  %1732 = vmatpush1.bf16.msra.mxu0 %v1522
  %1733 = vmatprep.subr.bf16.mxu0 0
  %1734 = vmatpush1.bf16.msra.mxu0 0
  %1735 = vmatprep.subr.bf16.mxu0 0
  %1736 = vmatpush1.bf16.msra.mxu0 0
  %1737 = vmatprep.subr.bf16.mxu0 0
  %1738 = vmatpush1.bf16.msra.mxu0 0
  %1739 = vmatprep.subr.bf16.mxu0 0
  %1740 = vmatpush1.bf16.msra.mxu0 0
  %1741 = vmatprep.subr.bf16.mxu0 0
  %1742 = vmatpush1.bf16.msra.mxu0 0
  %1743 = vmatprep.subr.bf16.mxu0 0
  %1744 = vmatpush1.bf16.msra.mxu0 0
  %1745 = vmatprep.subr.bf16.mxu0 0
  %1746 = vmatpush1.bf16.msra.mxu0 0
  %1747 = vmatprep.subr.bf16.mxu0 0
  %1748 = vmatpush1.bf16.msra.mxu0 0
  %1749 = vmatprep.subr.bf16.mxu0 0
  %1750 = vmatpush1.bf16.msra.mxu0 0
  %1751 = vmatprep.subr.bf16.mxu0 0
  %1752 = vmatpush1.bf16.msra.mxu0 0
  %1753 = vmatprep.subr.bf16.mxu0 0
  %1754 = vmatpush1.bf16.msra.mxu0 0
  %1755 = vmatprep.subr.bf16.mxu0 0
  %1756 = vmatpush1.bf16.msra.mxu0 0
  %1757 = vmatprep.subr.bf16.mxu0 0
  %1758 = vmatpush1.bf16.msra.mxu0 0
  %1759 = vmatprep.subr.bf16.mxu0 0
  %1760 = vmatpush1.bf16.msra.mxu0 0
  %1761 = vmatprep.mubr.bf16.mxu0 0
  %1762 = vmatmul.mubr.bf16.gmra.mrb[0].mxu0 %v1563
  %v1763 = vpop.f32.mrb[0].mxu0
  %v1764 = vadd.f32 %v1401, %v1763
  %v1765 = vpop.f32.mrb[0].mxu0
  %v1766 = vadd.f32 %v1401, %v1765
  %v1767 = vpop.f32.mrb[0].mxu0
  %v1768 = vpop.f32.mrb[0].mxu0
  %1769 = vdwg.mxu0
  %1770 = vmatprep.subr.bf16.mxu0 %v1509
  %1771 = vmatpush1.bf16.msra.mxu0 %v1508
  %1772 = vmatprep.subr.bf16.mxu0 %v1525
  %1773 = vmatpush1.bf16.msra.mxu0 %v1524
  %1774 = vmatprep.subr.bf16.mxu0 0
  %1775 = vmatpush1.bf16.msra.mxu0 0
  %1776 = vmatprep.subr.bf16.mxu0 0
  %1777 = vmatpush1.bf16.msra.mxu0 0
  %1778 = vmatprep.subr.bf16.mxu0 0
  %1779 = vmatpush1.bf16.msra.mxu0 0
  %1780 = vmatprep.subr.bf16.mxu0 0
  %1781 = vmatpush1.bf16.msra.mxu0 0
  %1782 = vmatprep.subr.bf16.mxu0 0
  %1783 = vmatpush1.bf16.msra.mxu0 0
  %1784 = vmatprep.subr.bf16.mxu0 0
  %1785 = vmatpush1.bf16.msra.mxu0 0
  %1786 = vmatprep.subr.bf16.mxu0 0
  %1787 = vmatpush1.bf16.msra.mxu0 0
  %1788 = vmatprep.subr.bf16.mxu0 0
  %1789 = vmatpush1.bf16.msra.mxu0 0
  %1790 = vmatprep.subr.bf16.mxu0 0
  %1791 = vmatpush1.bf16.msra.mxu0 0
  %1792 = vmatprep.subr.bf16.mxu0 0
  %1793 = vmatpush1.bf16.msra.mxu0 0
  %1794 = vmatprep.subr.bf16.mxu0 0
  %1795 = vmatpush1.bf16.msra.mxu0 0
  %1796 = vmatprep.subr.bf16.mxu0 0
  %1797 = vmatpush1.bf16.msra.mxu0 0
  %1798 = vmatprep.subr.bf16.mxu0 0
  %1799 = vmatpush1.bf16.msra.mxu0 0
  %1800 = vmatprep.subr.bf16.mxu0 0
  %1801 = vmatpush1.bf16.msra.mxu0 0
  %1802 = vmatprep.mubr.bf16.mxu0 0
  %1803 = vmatmul.mubr.bf16.gmra.mrb[0].mxu0 %v1563
  %v1804 = vpop.f32.mrb[0].mxu0
  %v1805 = vadd.f32 %v1401, %v1804
  %v1806 = vpop.f32.mrb[0].mxu0
  %v1807 = vadd.f32 %v1401, %v1806
  %v1808 = vpop.f32.mrb[0].mxu0
  %v1809 = vpop.f32.mrb[0].mxu0
  %1810 = vdwg.mxu0
  %1811 = vmatprep.subr.bf16.mxu0 %v1511
  %1812 = vmatpush1.bf16.msra.mxu0 %v1510
  %1813 = vmatprep.subr.bf16.mxu0 %v1527
  %1814 = vmatpush1.bf16.msra.mxu0 %v1526
  %1815 = vmatprep.subr.bf16.mxu0 0
  %1816 = vmatpush1.bf16.msra.mxu0 0
  %1817 = vmatprep.subr.bf16.mxu0 0
  %1818 = vmatpush1.bf16.msra.mxu0 0
  %1819 = vmatprep.subr.bf16.mxu0 0
  %1820 = vmatpush1.bf16.msra.mxu0 0
  %1821 = vmatprep.subr.bf16.mxu0 0
  %1822 = vmatpush1.bf16.msra.mxu0 0
  %1823 = vmatprep.subr.bf16.mxu0 0
  %1824 = vmatpush1.bf16.msra.mxu0 0
  %1825 = vmatprep.subr.bf16.mxu0 0
  %1826 = vmatpush1.bf16.msra.mxu0 0
  %1827 = vmatprep.subr.bf16.mxu0 0
  %1828 = vmatpush1.bf16.msra.mxu0 0
  %1829 = vmatprep.subr.bf16.mxu0 0
  %1830 = vmatpush1.bf16.msra.mxu0 0
  %1831 = vmatprep.subr.bf16.mxu0 0
  %1832 = vmatpush1.bf16.msra.mxu0 0
  %1833 = vmatprep.subr.bf16.mxu0 0
  %1834 = vmatpush1.bf16.msra.mxu0 0
  %1835 = vmatprep.subr.bf16.mxu0 0
  %1836 = vmatpush1.bf16.msra.mxu0 0
  %1837 = vmatprep.subr.bf16.mxu0 0
  %1838 = vmatpush1.bf16.msra.mxu0 0
  %1839 = vmatprep.subr.bf16.mxu0 0
  %1840 = vmatpush1.bf16.msra.mxu0 0
  %1841 = vmatprep.subr.bf16.mxu0 0
  %1842 = vmatpush1.bf16.msra.mxu0 0
  %1843 = vmatprep.mubr.bf16.mxu0 0
  %1844 = vmatmul.mubr.bf16.gmra.mrb[0].mxu0 %v1563
  %v1845 = vpop.f32.mrb[0].mxu0
  %v1846 = vadd.f32 %v1401, %v1845
  %v1847 = vpop.f32.mrb[0].mxu0
  %v1848 = vadd.f32 %v1401, %v1847
  %v1849 = vpop.f32.mrb[0].mxu0
  %v1850 = vpop.f32.mrb[0].mxu0
  %1851 = vdwg.mxu0
  %1852 = vmatprep.subr.bf16.mxu0 %v1513
  %1853 = vmatpush1.bf16.msra.mxu0 %v1512
  %1854 = vmatprep.subr.bf16.mxu0 %v1529
  %1855 = vmatpush1.bf16.msra.mxu0 %v1528
  %1856 = vmatprep.subr.bf16.mxu0 0
  %1857 = vmatpush1.bf16.msra.mxu0 0
  %1858 = vmatprep.subr.bf16.mxu0 0
  %1859 = vmatpush1.bf16.msra.mxu0 0
  %1860 = vmatprep.subr.bf16.mxu0 0
  %1861 = vmatpush1.bf16.msra.mxu0 0
  %1862 = vmatprep.subr.bf16.mxu0 0
  %1863 = vmatpush1.bf16.msra.mxu0 0
  %1864 = vmatprep.subr.bf16.mxu0 0
  %1865 = vmatpush1.bf16.msra.mxu0 0
  %1866 = vmatprep.subr.bf16.mxu0 0
  %1867 = vmatpush1.bf16.msra.mxu0 0
  %1868 = vmatprep.subr.bf16.mxu0 0
  %1869 = vmatpush1.bf16.msra.mxu0 0
  %1870 = vmatprep.subr.bf16.mxu0 0
  %1871 = vmatpush1.bf16.msra.mxu0 0
  %1872 = vmatprep.subr.bf16.mxu0 0
  %1873 = vmatpush1.bf16.msra.mxu0 0
  %1874 = vmatprep.subr.bf16.mxu0 0
  %1875 = vmatpush1.bf16.msra.mxu0 0
  %1876 = vmatprep.subr.bf16.mxu0 0
  %1877 = vmatpush1.bf16.msra.mxu0 0
  %1878 = vmatprep.subr.bf16.mxu0 0
  %1879 = vmatpush1.bf16.msra.mxu0 0
  %1880 = vmatprep.subr.bf16.mxu0 0
  %1881 = vmatpush1.bf16.msra.mxu0 0
  %1882 = vmatprep.subr.bf16.mxu0 0
  %1883 = vmatpush1.bf16.msra.mxu0 0
  %1884 = vmatprep.mubr.bf16.mxu0 0
  %1885 = vmatmul.mubr.bf16.gmra.mrb[0].mxu0 %v1563
  %v1886 = vpop.f32.mrb[0].mxu0
  %v1887 = vadd.f32 %v1401, %v1886
  %v1888 = vpop.f32.mrb[0].mxu0
  %v1889 = vadd.f32 %v1401, %v1888
  %v1890 = vpop.f32.mrb[0].mxu0
  %v1891 = vpop.f32.mrb[0].mxu0
  %1892 = vdwg.mxu0
  %v1893 = vtanh.pop %v1600
  %v1894 = vtanh.pop %v1602
  %v1895 = vtanh.pop %v1641
  %v1896 = vtanh.pop %v1643
  %v1897 = vtanh.pop %v1682
  %v1898 = vtanh.pop %v1684
  %v1899 = vtanh.pop %v1723
  %v1900 = vtanh.pop %v1725
  %v1901 = vtanh.pop %v1764
  %v1902 = vtanh.pop %v1766
  %v1903 = vtanh.pop %v1805
  %v1904 = vtanh.pop %v1807
  %v1905 = vtanh.pop %v1846
  %v1906 = vtanh.pop %v1848
  %v1907 = vtanh.pop %v1887
  %v1908 = vtanh.pop %v1889
  %v1925 = vcombine.low %v1893, %v1894
  %v1926 = vcombine.low %v1895, %v1896
  %v1927 = vcombine.low %v1897, %v1898
  %v1928 = vcombine.low %v1899, %v1900
  %v1930 = vunpack.c.l.s4 1966171168
  %v1931 = vunpack.c.0.s8 %v1930
  %v1932 = vlaneseq
  %v1933 = vshrl.u32 %v1932, 7
  %v1934 = vsub.s32 %v1931, %v1933
  %v1935 = vrot.slane %v1925, %v1934
  %v1937 = vunpack.c.l.s4 1966171168
  %v1938 = vunpack.c.0.s8 %v1937
  %v1939 = vlaneseq
  %v1940 = vshrl.u32 %v1939, 7
  %v1941 = vsub.s32 %v1938, %v1940
  %v1942 = vrot.slane %v1926, %v1941
  %v1944 = vunpack.c.l.s4 1966171168
  %v1945 = vunpack.c.0.s8 %v1944
  %v1946 = vlaneseq
  %v1947 = vshrl.u32 %v1946, 7
  %v1948 = vsub.s32 %v1945, %v1947
  %v1949 = vrot.slane %v1927, %v1948
  %v1951 = vunpack.c.l.s4 1966171168
  %v1952 = vunpack.c.0.s8 %v1951
  %v1953 = vlaneseq
  %v1954 = vshrl.u32 %v1953, 7
  %v1955 = vsub.s32 %v1952, %v1954
  %v1956 = vrot.slane %v1928, %v1955
  %v1957 = vcombine.low %v1935, %v1942
  %v1958 = vcombine.low %v1949, %v1956
  %v1960 = vunpack.c.l.s4 1966171168
  %v1961 = vunpack.c.0.s8 %v1960
  %v1962 = vlaneseq
  %v1963 = vshrl.u32 %v1962, 7
  %v1964 = vsub.s32 %v1961, %v1963
  %v1965 = vrot.slane %v1957, %v1964
  %v1967 = vunpack.c.l.s4 1966171168
  %v1968 = vunpack.c.0.s8 %v1967
  %v1969 = vlaneseq
  %v1970 = vshrl.u32 %v1969, 7
  %v1971 = vsub.s32 %v1968, %v1970
  %v1972 = vrot.slane %v1958, %v1971
  %v1973 = vcombine.low %v1965, %v1972
  %v1974 = vcombine.low %v1901, %v1902
  %v1975 = vcombine.low %v1903, %v1904
  %v1976 = vcombine.low %v1905, %v1906
  %v1977 = vcombine.low %v1907, %v1908
  %v1979 = vunpack.c.l.s4 1966171168
  %v1980 = vunpack.c.0.s8 %v1979
  %v1981 = vlaneseq
  %v1982 = vshrl.u32 %v1981, 7
  %v1983 = vsub.s32 %v1980, %v1982
  %v1984 = vrot.slane %v1974, %v1983
  %v1986 = vunpack.c.l.s4 1966171168
  %v1987 = vunpack.c.0.s8 %v1986
  %v1988 = vlaneseq
  %v1989 = vshrl.u32 %v1988, 7
  %v1990 = vsub.s32 %v1987, %v1989
  %v1991 = vrot.slane %v1975, %v1990
  %v1993 = vunpack.c.l.s4 1966171168
  %v1994 = vunpack.c.0.s8 %v1993
  %v1995 = vlaneseq
  %v1996 = vshrl.u32 %v1995, 7
  %v1997 = vsub.s32 %v1994, %v1996
  %v1998 = vrot.slane %v1976, %v1997
  %v2000 = vunpack.c.l.s4 1966171168
  %v2001 = vunpack.c.0.s8 %v2000
  %v2002 = vlaneseq
  %v2003 = vshrl.u32 %v2002, 7
  %v2004 = vsub.s32 %v2001, %v2003
  %v2005 = vrot.slane %v1977, %v2004
  %v2006 = vcombine.low %v1984, %v1991
  %v2007 = vcombine.low %v1998, %v2005
  %v2009 = vunpack.c.l.s4 1966171168
  %v2010 = vunpack.c.0.s8 %v2009
  %v2011 = vlaneseq
  %v2012 = vshrl.u32 %v2011, 7
  %v2013 = vsub.s32 %v2010, %v2012
  %v2014 = vrot.slane %v2006, %v2013
  %v2016 = vunpack.c.l.s4 1966171168
  %v2017 = vunpack.c.0.s8 %v2016
  %v2018 = vlaneseq
  %v2019 = vshrl.u32 %v2018, 7
  %v2020 = vsub.s32 %v2017, %v2019
  %v2021 = vrot.slane %v2007, %v2020
  %v2022 = vcombine.low %v2014, %v2021
  %s2025 = scalar_lea.vmem %s3, 32
  %2026 = vst [vmem:[%s2025] sm:$0xff] %v1973
  %2027 = vst [vmem:[%s2025 + $0x8] sm:$0xff] %v2022
  %s2028 = scalar_lea.vmem %s1, 3
  %v2029 = vld [vmem:[%s2028] sm:$0x1]
  %s2030 = scalar_lea.vmem %s0, 768
  %v2031 = vld [vmem:[%s2030] sm:$0xff]
  %v2032 = vld [vmem:[%s2030 + $0x8] sm:$0xff]
  %v2033 = vld [vmem:[%s2030 + $0x10] sm:$0xff]
  %v2034 = vld [vmem:[%s2030 + $0x18] sm:$0xff]
  %v2035 = vld [vmem:[%s2030 + $0x20] sm:$0xff]
  %v2036 = vld [vmem:[%s2030 + $0x28] sm:$0xff]
  %v2037 = vld [vmem:[%s2030 + $0x30] sm:$0xff]
  %v2038 = vld [vmem:[%s2030 + $0x38] sm:$0xff]
  %v2039 = vld [vmem:[%s2030 + $0x40] sm:$0xff]
  %v2040 = vld [vmem:[%s2030 + $0x48] sm:$0xff]
  %v2041 = vld [vmem:[%s2030 + $0x50] sm:$0xff]
  %v2042 = vld [vmem:[%s2030 + $0x58] sm:$0xff]
  %v2043 = vld [vmem:[%s2030 + $0x60] sm:$0xff]
  %v2044 = vld [vmem:[%s2030 + $0x68] sm:$0xff]
  %v2045 = vld [vmem:[%s2030 + $0x70] sm:$0xff]
  %v2046 = vld [vmem:[%s2030 + $0x78] sm:$0xff]
  %v2047 = vld [vmem:[%s2030 + $0x80] sm:$0xff]
  %v2048 = vld [vmem:[%s2030 + $0x88] sm:$0xff]
  %v2049 = vld [vmem:[%s2030 + $0x90] sm:$0xff]
  %v2050 = vld [vmem:[%s2030 + $0x98] sm:$0xff]
  %v2051 = vld [vmem:[%s2030 + $0xa0] sm:$0xff]
  %v2052 = vld [vmem:[%s2030 + $0xa8] sm:$0xff]
  %v2053 = vld [vmem:[%s2030 + $0xb0] sm:$0xff]
  %v2054 = vld [vmem:[%s2030 + $0xb8] sm:$0xff]
  %v2055 = vld [vmem:[%s2030 + $0xc0] sm:$0xff]
  %v2056 = vld [vmem:[%s2030 + $0xc8] sm:$0xff]
  %v2057 = vld [vmem:[%s2030 + $0xd0] sm:$0xff]
  %v2058 = vld [vmem:[%s2030 + $0xd8] sm:$0xff]
  %v2059 = vld [vmem:[%s2030 + $0xe0] sm:$0xff]
  %v2060 = vld [vmem:[%s2030 + $0xe8] sm:$0xff]
  %v2061 = vld [vmem:[%s2030 + $0xf0] sm:$0xff]
  %v2062 = vld [vmem:[%s2030 + $0xf8] sm:$0xff]
  %v2063 = vld [vmem:[#allocation2] sm:$0x1]
  %2065 = vset.pattern.permute.xlu0 0
  %2066 = vperm.xlu0 %2065, %v2063
  %v2067 = vpop.permute.xlu0 %2066
  %v2069 = vlaneseq
  %v2070 = vshrl.u32 %v2069, 7
  %v2071 = vsub.s32 0, %v2070
  %v2072 = vrot.slane %v2067, %v2071
  %v2105 = vunpack.c.l.b16 %v2031
  %v2106 = vunpack.c.h.b16 %v2031
  %v2107 = vunpack.c.l.b16 %v2032
  %v2108 = vunpack.c.h.b16 %v2032
  %v2109 = vunpack.c.l.b16 %v2033
  %v2110 = vunpack.c.h.b16 %v2033
  %v2111 = vunpack.c.l.b16 %v2034
  %v2112 = vunpack.c.h.b16 %v2034
  %v2113 = vunpack.c.l.b16 %v2035
  %v2114 = vunpack.c.h.b16 %v2035
  %v2115 = vunpack.c.l.b16 %v2036
  %v2116 = vunpack.c.h.b16 %v2036
  %v2117 = vunpack.c.l.b16 %v2037
  %v2118 = vunpack.c.h.b16 %v2037
  %v2119 = vunpack.c.l.b16 %v2038
  %v2120 = vunpack.c.h.b16 %v2038
  %v2121 = vunpack.c.l.b16 %v2039
  %v2122 = vunpack.c.h.b16 %v2039
  %v2123 = vunpack.c.l.b16 %v2040
  %v2124 = vunpack.c.h.b16 %v2040
  %v2125 = vunpack.c.l.b16 %v2041
  %v2126 = vunpack.c.h.b16 %v2041
  %v2127 = vunpack.c.l.b16 %v2042
  %v2128 = vunpack.c.h.b16 %v2042
  %v2129 = vunpack.c.l.b16 %v2043
  %v2130 = vunpack.c.h.b16 %v2043
  %v2131 = vunpack.c.l.b16 %v2044
  %v2132 = vunpack.c.h.b16 %v2044
  %v2133 = vunpack.c.l.b16 %v2045
  %v2134 = vunpack.c.h.b16 %v2045
  %v2135 = vunpack.c.l.b16 %v2046
  %v2136 = vunpack.c.h.b16 %v2046
  %v2137 = vunpack.c.l.b16 %v2047
  %v2138 = vunpack.c.h.b16 %v2047
  %v2139 = vunpack.c.l.b16 %v2048
  %v2140 = vunpack.c.h.b16 %v2048
  %v2141 = vunpack.c.l.b16 %v2049
  %v2142 = vunpack.c.h.b16 %v2049
  %v2143 = vunpack.c.l.b16 %v2050
  %v2144 = vunpack.c.h.b16 %v2050
  %v2145 = vunpack.c.l.b16 %v2051
  %v2146 = vunpack.c.h.b16 %v2051
  %v2147 = vunpack.c.l.b16 %v2052
  %v2148 = vunpack.c.h.b16 %v2052
  %v2149 = vunpack.c.l.b16 %v2053
  %v2150 = vunpack.c.h.b16 %v2053
  %v2151 = vunpack.c.l.b16 %v2054
  %v2152 = vunpack.c.h.b16 %v2054
  %v2153 = vunpack.c.l.b16 %v2055
  %v2154 = vunpack.c.h.b16 %v2055
  %v2155 = vunpack.c.l.b16 %v2056
  %v2156 = vunpack.c.h.b16 %v2056
  %v2157 = vunpack.c.l.b16 %v2057
  %v2158 = vunpack.c.h.b16 %v2057
  %v2159 = vunpack.c.l.b16 %v2058
  %v2160 = vunpack.c.h.b16 %v2058
  %v2161 = vunpack.c.l.b16 %v2059
  %v2162 = vunpack.c.h.b16 %v2059
  %v2163 = vunpack.c.l.b16 %v2060
  %v2164 = vunpack.c.h.b16 %v2060
  %v2165 = vunpack.c.l.b16 %v2061
  %v2166 = vunpack.c.h.b16 %v2061
  %v2167 = vunpack.c.l.b16 %v2062
  %v2168 = vunpack.c.h.b16 %v2062
  %v2169 = vpack.c.b16 %v2121, %v2105
  %v2170 = vpack.c.b16 %v2122, %v2106
  %v2171 = vpack.c.b16 %v2123, %v2107
  %v2172 = vpack.c.b16 %v2124, %v2108
  %v2173 = vpack.c.b16 %v2125, %v2109
  %v2174 = vpack.c.b16 %v2126, %v2110
  %v2175 = vpack.c.b16 %v2127, %v2111
  %v2176 = vpack.c.b16 %v2128, %v2112
  %v2177 = vpack.c.b16 %v2129, %v2113
  %v2178 = vpack.c.b16 %v2130, %v2114
  %v2179 = vpack.c.b16 %v2131, %v2115
  %v2180 = vpack.c.b16 %v2132, %v2116
  %v2181 = vpack.c.b16 %v2133, %v2117
  %v2182 = vpack.c.b16 %v2134, %v2118
  %v2183 = vpack.c.b16 %v2135, %v2119
  %v2184 = vpack.c.b16 %v2136, %v2120
  %v2185 = vpack.c.b16 %v2153, %v2137
  %v2186 = vpack.c.b16 %v2154, %v2138
  %v2187 = vpack.c.b16 %v2155, %v2139
  %v2188 = vpack.c.b16 %v2156, %v2140
  %v2189 = vpack.c.b16 %v2157, %v2141
  %v2190 = vpack.c.b16 %v2158, %v2142
  %v2191 = vpack.c.b16 %v2159, %v2143
  %v2192 = vpack.c.b16 %v2160, %v2144
  %v2193 = vpack.c.b16 %v2161, %v2145
  %v2194 = vpack.c.b16 %v2162, %v2146
  %v2195 = vpack.c.b16 %v2163, %v2147
  %v2196 = vpack.c.b16 %v2164, %v2148
  %v2197 = vpack.c.b16 %v2165, %v2149
  %v2198 = vpack.c.b16 %v2166, %v2150
  %v2199 = vpack.c.b16 %v2167, %v2151
  %v2200 = vpack.c.b16 %v2168, %v2152
  %v2234 = vsel %vm220, %v2029, 0
  %2236 = vmatprep.subr.bf16.mxu0 %v2170
  %2237 = vmatpush1.bf16.msra.mxu0 %v2169
  %2238 = vmatprep.subr.bf16.mxu0 %v2186
  %2239 = vmatpush1.bf16.msra.mxu0 %v2185
  %2240 = vmatprep.subr.bf16.mxu0 0
  %2241 = vmatpush1.bf16.msra.mxu0 0
  %2242 = vmatprep.subr.bf16.mxu0 0
  %2243 = vmatpush1.bf16.msra.mxu0 0
  %2244 = vmatprep.subr.bf16.mxu0 0
  %2245 = vmatpush1.bf16.msra.mxu0 0
  %2246 = vmatprep.subr.bf16.mxu0 0
  %2247 = vmatpush1.bf16.msra.mxu0 0
  %2248 = vmatprep.subr.bf16.mxu0 0
  %2249 = vmatpush1.bf16.msra.mxu0 0
  %2250 = vmatprep.subr.bf16.mxu0 0
  %2251 = vmatpush1.bf16.msra.mxu0 0
  %2252 = vmatprep.subr.bf16.mxu0 0
  %2253 = vmatpush1.bf16.msra.mxu0 0
  %2254 = vmatprep.subr.bf16.mxu0 0
  %2255 = vmatpush1.bf16.msra.mxu0 0
  %2256 = vmatprep.subr.bf16.mxu0 0
  %2257 = vmatpush1.bf16.msra.mxu0 0
  %2258 = vmatprep.subr.bf16.mxu0 0
  %2259 = vmatpush1.bf16.msra.mxu0 0
  %2260 = vmatprep.subr.bf16.mxu0 0
  %2261 = vmatpush1.bf16.msra.mxu0 0
  %2262 = vmatprep.subr.bf16.mxu0 0
  %2263 = vmatpush1.bf16.msra.mxu0 0
  %2264 = vmatprep.subr.bf16.mxu0 0
  %2265 = vmatpush1.bf16.msra.mxu0 0
  %2266 = vmatprep.subr.bf16.mxu0 0
  %2267 = vmatpush1.bf16.msra.mxu0 0
  %2268 = vmatprep.mubr.bf16.mxu0 0
  %2269 = vmatmul.mubr.bf16.gmra.mrb[0].mxu0 %v2234
  %v2270 = vpop.f32.mrb[0].mxu0
  %v2271 = vadd.f32 %v2072, %v2270
  %v2272 = vpop.f32.mrb[0].mxu0
  %v2273 = vadd.f32 %v2072, %v2272
  %v2274 = vpop.f32.mrb[0].mxu0
  %v2275 = vpop.f32.mrb[0].mxu0
  %2276 = vdwg.mxu0
  %2277 = vmatprep.subr.bf16.mxu0 %v2172
  %2278 = vmatpush1.bf16.msra.mxu0 %v2171
  %2279 = vmatprep.subr.bf16.mxu0 %v2188
  %2280 = vmatpush1.bf16.msra.mxu0 %v2187
  %2281 = vmatprep.subr.bf16.mxu0 0
  %2282 = vmatpush1.bf16.msra.mxu0 0
  %2283 = vmatprep.subr.bf16.mxu0 0
  %2284 = vmatpush1.bf16.msra.mxu0 0
  %2285 = vmatprep.subr.bf16.mxu0 0
  %2286 = vmatpush1.bf16.msra.mxu0 0
  %2287 = vmatprep.subr.bf16.mxu0 0
  %2288 = vmatpush1.bf16.msra.mxu0 0
  %2289 = vmatprep.subr.bf16.mxu0 0
  %2290 = vmatpush1.bf16.msra.mxu0 0
  %2291 = vmatprep.subr.bf16.mxu0 0
  %2292 = vmatpush1.bf16.msra.mxu0 0
  %2293 = vmatprep.subr.bf16.mxu0 0
  %2294 = vmatpush1.bf16.msra.mxu0 0
  %2295 = vmatprep.subr.bf16.mxu0 0
  %2296 = vmatpush1.bf16.msra.mxu0 0
  %2297 = vmatprep.subr.bf16.mxu0 0
  %2298 = vmatpush1.bf16.msra.mxu0 0
  %2299 = vmatprep.subr.bf16.mxu0 0
  %2300 = vmatpush1.bf16.msra.mxu0 0
  %2301 = vmatprep.subr.bf16.mxu0 0
  %2302 = vmatpush1.bf16.msra.mxu0 0
  %2303 = vmatprep.subr.bf16.mxu0 0
  %2304 = vmatpush1.bf16.msra.mxu0 0
  %2305 = vmatprep.subr.bf16.mxu0 0
  %2306 = vmatpush1.bf16.msra.mxu0 0
  %2307 = vmatprep.subr.bf16.mxu0 0
  %2308 = vmatpush1.bf16.msra.mxu0 0
  %2309 = vmatprep.mubr.bf16.mxu0 0
  %2310 = vmatmul.mubr.bf16.gmra.mrb[0].mxu0 %v2234
  %v2311 = vpop.f32.mrb[0].mxu0
  %v2312 = vadd.f32 %v2072, %v2311
  %v2313 = vpop.f32.mrb[0].mxu0
  %v2314 = vadd.f32 %v2072, %v2313
  %v2315 = vpop.f32.mrb[0].mxu0
  %v2316 = vpop.f32.mrb[0].mxu0
  %2317 = vdwg.mxu0
  %2318 = vmatprep.subr.bf16.mxu0 %v2174
  %2319 = vmatpush1.bf16.msra.mxu0 %v2173
  %2320 = vmatprep.subr.bf16.mxu0 %v2190
  %2321 = vmatpush1.bf16.msra.mxu0 %v2189
  %2322 = vmatprep.subr.bf16.mxu0 0
  %2323 = vmatpush1.bf16.msra.mxu0 0
  %2324 = vmatprep.subr.bf16.mxu0 0
  %2325 = vmatpush1.bf16.msra.mxu0 0
  %2326 = vmatprep.subr.bf16.mxu0 0
  %2327 = vmatpush1.bf16.msra.mxu0 0
  %2328 = vmatprep.subr.bf16.mxu0 0
  %2329 = vmatpush1.bf16.msra.mxu0 0
  %2330 = vmatprep.subr.bf16.mxu0 0
  %2331 = vmatpush1.bf16.msra.mxu0 0
  %2332 = vmatprep.subr.bf16.mxu0 0
  %2333 = vmatpush1.bf16.msra.mxu0 0
  %2334 = vmatprep.subr.bf16.mxu0 0
  %2335 = vmatpush1.bf16.msra.mxu0 0
  %2336 = vmatprep.subr.bf16.mxu0 0
  %2337 = vmatpush1.bf16.msra.mxu0 0
  %2338 = vmatprep.subr.bf16.mxu0 0
  %2339 = vmatpush1.bf16.msra.mxu0 0
  %2340 = vmatprep.subr.bf16.mxu0 0
  %2341 = vmatpush1.bf16.msra.mxu0 0
  %2342 = vmatprep.subr.bf16.mxu0 0
  %2343 = vmatpush1.bf16.msra.mxu0 0
  %2344 = vmatprep.subr.bf16.mxu0 0
  %2345 = vmatpush1.bf16.msra.mxu0 0
  %2346 = vmatprep.subr.bf16.mxu0 0
  %2347 = vmatpush1.bf16.msra.mxu0 0
  %2348 = vmatprep.subr.bf16.mxu0 0
  %2349 = vmatpush1.bf16.msra.mxu0 0
  %2350 = vmatprep.mubr.bf16.mxu0 0
  %2351 = vmatmul.mubr.bf16.gmra.mrb[0].mxu0 %v2234
  %v2352 = vpop.f32.mrb[0].mxu0
  %v2353 = vadd.f32 %v2072, %v2352
  %v2354 = vpop.f32.mrb[0].mxu0
  %v2355 = vadd.f32 %v2072, %v2354
  %v2356 = vpop.f32.mrb[0].mxu0
  %v2357 = vpop.f32.mrb[0].mxu0
  %2358 = vdwg.mxu0
  %2359 = vmatprep.subr.bf16.mxu0 %v2176
  %2360 = vmatpush1.bf16.msra.mxu0 %v2175
  %2361 = vmatprep.subr.bf16.mxu0 %v2192
  %2362 = vmatpush1.bf16.msra.mxu0 %v2191
  %2363 = vmatprep.subr.bf16.mxu0 0
  %2364 = vmatpush1.bf16.msra.mxu0 0
  %2365 = vmatprep.subr.bf16.mxu0 0
  %2366 = vmatpush1.bf16.msra.mxu0 0
  %2367 = vmatprep.subr.bf16.mxu0 0
  %2368 = vmatpush1.bf16.msra.mxu0 0
  %2369 = vmatprep.subr.bf16.mxu0 0
  %2370 = vmatpush1.bf16.msra.mxu0 0
  %2371 = vmatprep.subr.bf16.mxu0 0
  %2372 = vmatpush1.bf16.msra.mxu0 0
  %2373 = vmatprep.subr.bf16.mxu0 0
  %2374 = vmatpush1.bf16.msra.mxu0 0
  %2375 = vmatprep.subr.bf16.mxu0 0
  %2376 = vmatpush1.bf16.msra.mxu0 0
  %2377 = vmatprep.subr.bf16.mxu0 0
  %2378 = vmatpush1.bf16.msra.mxu0 0
  %2379 = vmatprep.subr.bf16.mxu0 0
  %2380 = vmatpush1.bf16.msra.mxu0 0
  %2381 = vmatprep.subr.bf16.mxu0 0
  %2382 = vmatpush1.bf16.msra.mxu0 0
  %2383 = vmatprep.subr.bf16.mxu0 0
  %2384 = vmatpush1.bf16.msra.mxu0 0
  %2385 = vmatprep.subr.bf16.mxu0 0
  %2386 = vmatpush1.bf16.msra.mxu0 0
  %2387 = vmatprep.subr.bf16.mxu0 0
  %2388 = vmatpush1.bf16.msra.mxu0 0
  %2389 = vmatprep.subr.bf16.mxu0 0
  %2390 = vmatpush1.bf16.msra.mxu0 0
  %2391 = vmatprep.mubr.bf16.mxu0 0
  %2392 = vmatmul.mubr.bf16.gmra.mrb[0].mxu0 %v2234
  %v2393 = vpop.f32.mrb[0].mxu0
  %v2394 = vadd.f32 %v2072, %v2393
  %v2395 = vpop.f32.mrb[0].mxu0
  %v2396 = vadd.f32 %v2072, %v2395
  %v2397 = vpop.f32.mrb[0].mxu0
  %v2398 = vpop.f32.mrb[0].mxu0
  %2399 = vdwg.mxu0
  %2400 = vmatprep.subr.bf16.mxu0 %v2178
  %2401 = vmatpush1.bf16.msra.mxu0 %v2177
  %2402 = vmatprep.subr.bf16.mxu0 %v2194
  %2403 = vmatpush1.bf16.msra.mxu0 %v2193
  %2404 = vmatprep.subr.bf16.mxu0 0
  %2405 = vmatpush1.bf16.msra.mxu0 0
  %2406 = vmatprep.subr.bf16.mxu0 0
  %2407 = vmatpush1.bf16.msra.mxu0 0
  %2408 = vmatprep.subr.bf16.mxu0 0
  %2409 = vmatpush1.bf16.msra.mxu0 0
  %2410 = vmatprep.subr.bf16.mxu0 0
  %2411 = vmatpush1.bf16.msra.mxu0 0
  %2412 = vmatprep.subr.bf16.mxu0 0
  %2413 = vmatpush1.bf16.msra.mxu0 0
  %2414 = vmatprep.subr.bf16.mxu0 0
  %2415 = vmatpush1.bf16.msra.mxu0 0
  %2416 = vmatprep.subr.bf16.mxu0 0
  %2417 = vmatpush1.bf16.msra.mxu0 0
  %2418 = vmatprep.subr.bf16.mxu0 0
  %2419 = vmatpush1.bf16.msra.mxu0 0
  %2420 = vmatprep.subr.bf16.mxu0 0
  %2421 = vmatpush1.bf16.msra.mxu0 0
  %2422 = vmatprep.subr.bf16.mxu0 0
  %2423 = vmatpush1.bf16.msra.mxu0 0
  %2424 = vmatprep.subr.bf16.mxu0 0
  %2425 = vmatpush1.bf16.msra.mxu0 0
  %2426 = vmatprep.subr.bf16.mxu0 0
  %2427 = vmatpush1.bf16.msra.mxu0 0
  %2428 = vmatprep.subr.bf16.mxu0 0
  %2429 = vmatpush1.bf16.msra.mxu0 0
  %2430 = vmatprep.subr.bf16.mxu0 0
  %2431 = vmatpush1.bf16.msra.mxu0 0
  %2432 = vmatprep.mubr.bf16.mxu0 0
  %2433 = vmatmul.mubr.bf16.gmra.mrb[0].mxu0 %v2234
  %v2434 = vpop.f32.mrb[0].mxu0
  %v2435 = vadd.f32 %v2072, %v2434
  %v2436 = vpop.f32.mrb[0].mxu0
  %v2437 = vadd.f32 %v2072, %v2436
  %v2438 = vpop.f32.mrb[0].mxu0
  %v2439 = vpop.f32.mrb[0].mxu0
  %2440 = vdwg.mxu0
  %2441 = vmatprep.subr.bf16.mxu0 %v2180
  %2442 = vmatpush1.bf16.msra.mxu0 %v2179
  %2443 = vmatprep.subr.bf16.mxu0 %v2196
  %2444 = vmatpush1.bf16.msra.mxu0 %v2195
  %2445 = vmatprep.subr.bf16.mxu0 0
  %2446 = vmatpush1.bf16.msra.mxu0 0
  %2447 = vmatprep.subr.bf16.mxu0 0
  %2448 = vmatpush1.bf16.msra.mxu0 0
  %2449 = vmatprep.subr.bf16.mxu0 0
  %2450 = vmatpush1.bf16.msra.mxu0 0
  %2451 = vmatprep.subr.bf16.mxu0 0
  %2452 = vmatpush1.bf16.msra.mxu0 0
  %2453 = vmatprep.subr.bf16.mxu0 0
  %2454 = vmatpush1.bf16.msra.mxu0 0
  %2455 = vmatprep.subr.bf16.mxu0 0
  %2456 = vmatpush1.bf16.msra.mxu0 0
  %2457 = vmatprep.subr.bf16.mxu0 0
  %2458 = vmatpush1.bf16.msra.mxu0 0
  %2459 = vmatprep.subr.bf16.mxu0 0
  %2460 = vmatpush1.bf16.msra.mxu0 0
  %2461 = vmatprep.subr.bf16.mxu0 0
  %2462 = vmatpush1.bf16.msra.mxu0 0
  %2463 = vmatprep.subr.bf16.mxu0 0
  %2464 = vmatpush1.bf16.msra.mxu0 0
  %2465 = vmatprep.subr.bf16.mxu0 0
  %2466 = vmatpush1.bf16.msra.mxu0 0
  %2467 = vmatprep.subr.bf16.mxu0 0
  %2468 = vmatpush1.bf16.msra.mxu0 0
  %2469 = vmatprep.subr.bf16.mxu0 0
  %2470 = vmatpush1.bf16.msra.mxu0 0
  %2471 = vmatprep.subr.bf16.mxu0 0
  %2472 = vmatpush1.bf16.msra.mxu0 0
  %2473 = vmatprep.mubr.bf16.mxu0 0
  %2474 = vmatmul.mubr.bf16.gmra.mrb[0].mxu0 %v2234
  %v2475 = vpop.f32.mrb[0].mxu0
  %v2476 = vadd.f32 %v2072, %v2475
  %v2477 = vpop.f32.mrb[0].mxu0
  %v2478 = vadd.f32 %v2072, %v2477
  %v2479 = vpop.f32.mrb[0].mxu0
  %v2480 = vpop.f32.mrb[0].mxu0
  %2481 = vdwg.mxu0
  %2482 = vmatprep.subr.bf16.mxu0 %v2182
  %2483 = vmatpush1.bf16.msra.mxu0 %v2181
  %2484 = vmatprep.subr.bf16.mxu0 %v2198
  %2485 = vmatpush1.bf16.msra.mxu0 %v2197
  %2486 = vmatprep.subr.bf16.mxu0 0
  %2487 = vmatpush1.bf16.msra.mxu0 0
  %2488 = vmatprep.subr.bf16.mxu0 0
  %2489 = vmatpush1.bf16.msra.mxu0 0
  %2490 = vmatprep.subr.bf16.mxu0 0
  %2491 = vmatpush1.bf16.msra.mxu0 0
  %2492 = vmatprep.subr.bf16.mxu0 0
  %2493 = vmatpush1.bf16.msra.mxu0 0
  %2494 = vmatprep.subr.bf16.mxu0 0
  %2495 = vmatpush1.bf16.msra.mxu0 0
  %2496 = vmatprep.subr.bf16.mxu0 0
  %2497 = vmatpush1.bf16.msra.mxu0 0
  %2498 = vmatprep.subr.bf16.mxu0 0
  %2499 = vmatpush1.bf16.msra.mxu0 0
  %2500 = vmatprep.subr.bf16.mxu0 0
  %2501 = vmatpush1.bf16.msra.mxu0 0
  %2502 = vmatprep.subr.bf16.mxu0 0
  %2503 = vmatpush1.bf16.msra.mxu0 0
  %2504 = vmatprep.subr.bf16.mxu0 0
  %2505 = vmatpush1.bf16.msra.mxu0 0
  %2506 = vmatprep.subr.bf16.mxu0 0
  %2507 = vmatpush1.bf16.msra.mxu0 0
  %2508 = vmatprep.subr.bf16.mxu0 0
  %2509 = vmatpush1.bf16.msra.mxu0 0
  %2510 = vmatprep.subr.bf16.mxu0 0
  %2511 = vmatpush1.bf16.msra.mxu0 0
  %2512 = vmatprep.subr.bf16.mxu0 0
  %2513 = vmatpush1.bf16.msra.mxu0 0
  %2514 = vmatprep.mubr.bf16.mxu0 0
  %2515 = vmatmul.mubr.bf16.gmra.mrb[0].mxu0 %v2234
  %v2516 = vpop.f32.mrb[0].mxu0
  %v2517 = vadd.f32 %v2072, %v2516
  %v2518 = vpop.f32.mrb[0].mxu0
  %v2519 = vadd.f32 %v2072, %v2518
  %v2520 = vpop.f32.mrb[0].mxu0
  %v2521 = vpop.f32.mrb[0].mxu0
  %2522 = vdwg.mxu0
  %2523 = vmatprep.subr.bf16.mxu0 %v2184
  %2524 = vmatpush1.bf16.msra.mxu0 %v2183
  %2525 = vmatprep.subr.bf16.mxu0 %v2200
  %2526 = vmatpush1.bf16.msra.mxu0 %v2199
  %2527 = vmatprep.subr.bf16.mxu0 0
  %2528 = vmatpush1.bf16.msra.mxu0 0
  %2529 = vmatprep.subr.bf16.mxu0 0
  %2530 = vmatpush1.bf16.msra.mxu0 0
  %2531 = vmatprep.subr.bf16.mxu0 0
  %2532 = vmatpush1.bf16.msra.mxu0 0
  %2533 = vmatprep.subr.bf16.mxu0 0
  %2534 = vmatpush1.bf16.msra.mxu0 0
  %2535 = vmatprep.subr.bf16.mxu0 0
  %2536 = vmatpush1.bf16.msra.mxu0 0
  %2537 = vmatprep.subr.bf16.mxu0 0
  %2538 = vmatpush1.bf16.msra.mxu0 0
  %2539 = vmatprep.subr.bf16.mxu0 0
  %2540 = vmatpush1.bf16.msra.mxu0 0
  %2541 = vmatprep.subr.bf16.mxu0 0
  %2542 = vmatpush1.bf16.msra.mxu0 0
  %2543 = vmatprep.subr.bf16.mxu0 0
  %2544 = vmatpush1.bf16.msra.mxu0 0
  %2545 = vmatprep.subr.bf16.mxu0 0
  %2546 = vmatpush1.bf16.msra.mxu0 0
  %2547 = vmatprep.subr.bf16.mxu0 0
  %2548 = vmatpush1.bf16.msra.mxu0 0
  %2549 = vmatprep.subr.bf16.mxu0 0
  %2550 = vmatpush1.bf16.msra.mxu0 0
  %2551 = vmatprep.subr.bf16.mxu0 0
  %2552 = vmatpush1.bf16.msra.mxu0 0
  %2553 = vmatprep.subr.bf16.mxu0 0
  %2554 = vmatpush1.bf16.msra.mxu0 0
  %2555 = vmatprep.mubr.bf16.mxu0 0
  %2556 = vmatmul.mubr.bf16.gmra.mrb[0].mxu0 %v2234
  %v2557 = vpop.f32.mrb[0].mxu0
  %v2558 = vadd.f32 %v2072, %v2557
  %v2559 = vpop.f32.mrb[0].mxu0
  %v2560 = vadd.f32 %v2072, %v2559
  %v2561 = vpop.f32.mrb[0].mxu0
  %v2562 = vpop.f32.mrb[0].mxu0
  %2563 = vdwg.mxu0
  %v2564 = vtanh.pop %v2271
  %v2565 = vtanh.pop %v2273
  %v2566 = vtanh.pop %v2312
  %v2567 = vtanh.pop %v2314
  %v2568 = vtanh.pop %v2353
  %v2569 = vtanh.pop %v2355
  %v2570 = vtanh.pop %v2394
  %v2571 = vtanh.pop %v2396
  %v2572 = vtanh.pop %v2435
  %v2573 = vtanh.pop %v2437
  %v2574 = vtanh.pop %v2476
  %v2575 = vtanh.pop %v2478
  %v2576 = vtanh.pop %v2517
  %v2577 = vtanh.pop %v2519
  %v2578 = vtanh.pop %v2558
  %v2579 = vtanh.pop %v2560
  %v2596 = vcombine.low %v2564, %v2565
  %v2597 = vcombine.low %v2566, %v2567
  %v2598 = vcombine.low %v2568, %v2569
  %v2599 = vcombine.low %v2570, %v2571
  %v2601 = vunpack.c.l.s4 1966171168
  %v2602 = vunpack.c.0.s8 %v2601
  %v2603 = vlaneseq
  %v2604 = vshrl.u32 %v2603, 7
  %v2605 = vsub.s32 %v2602, %v2604
  %v2606 = vrot.slane %v2596, %v2605
  %v2608 = vunpack.c.l.s4 1966171168
  %v2609 = vunpack.c.0.s8 %v2608
  %v2610 = vlaneseq
  %v2611 = vshrl.u32 %v2610, 7
  %v2612 = vsub.s32 %v2609, %v2611
  %v2613 = vrot.slane %v2597, %v2612
  %v2615 = vunpack.c.l.s4 1966171168
  %v2616 = vunpack.c.0.s8 %v2615
  %v2617 = vlaneseq
  %v2618 = vshrl.u32 %v2617, 7
  %v2619 = vsub.s32 %v2616, %v2618
  %v2620 = vrot.slane %v2598, %v2619
  %v2622 = vunpack.c.l.s4 1966171168
  %v2623 = vunpack.c.0.s8 %v2622
  %v2624 = vlaneseq
  %v2625 = vshrl.u32 %v2624, 7
  %v2626 = vsub.s32 %v2623, %v2625
  %v2627 = vrot.slane %v2599, %v2626
  %v2628 = vcombine.low %v2606, %v2613
  %v2629 = vcombine.low %v2620, %v2627
  %v2631 = vunpack.c.l.s4 1966171168
  %v2632 = vunpack.c.0.s8 %v2631
  %v2633 = vlaneseq
  %v2634 = vshrl.u32 %v2633, 7
  %v2635 = vsub.s32 %v2632, %v2634
  %v2636 = vrot.slane %v2628, %v2635
  %v2638 = vunpack.c.l.s4 1966171168
  %v2639 = vunpack.c.0.s8 %v2638
  %v2640 = vlaneseq
  %v2641 = vshrl.u32 %v2640, 7
  %v2642 = vsub.s32 %v2639, %v2641
  %v2643 = vrot.slane %v2629, %v2642
  %v2644 = vcombine.low %v2636, %v2643
  %v2645 = vcombine.low %v2572, %v2573
  %v2646 = vcombine.low %v2574, %v2575
  %v2647 = vcombine.low %v2576, %v2577
  %v2648 = vcombine.low %v2578, %v2579
  %v2650 = vunpack.c.l.s4 1966171168
  %v2651 = vunpack.c.0.s8 %v2650
  %v2652 = vlaneseq
  %v2653 = vshrl.u32 %v2652, 7
  %v2654 = vsub.s32 %v2651, %v2653
  %v2655 = vrot.slane %v2645, %v2654
  %v2657 = vunpack.c.l.s4 1966171168
  %v2658 = vunpack.c.0.s8 %v2657
  %v2659 = vlaneseq
  %v2660 = vshrl.u32 %v2659, 7
  %v2661 = vsub.s32 %v2658, %v2660
  %v2662 = vrot.slane %v2646, %v2661
  %v2664 = vunpack.c.l.s4 1966171168
  %v2665 = vunpack.c.0.s8 %v2664
  %v2666 = vlaneseq
  %v2667 = vshrl.u32 %v2666, 7
  %v2668 = vsub.s32 %v2665, %v2667
  %v2669 = vrot.slane %v2647, %v2668
  %v2671 = vunpack.c.l.s4 1966171168
  %v2672 = vunpack.c.0.s8 %v2671
  %v2673 = vlaneseq
  %v2674 = vshrl.u32 %v2673, 7
  %v2675 = vsub.s32 %v2672, %v2674
  %v2676 = vrot.slane %v2648, %v2675
  %v2677 = vcombine.low %v2655, %v2662
  %v2678 = vcombine.low %v2669, %v2676
  %v2680 = vunpack.c.l.s4 1966171168
  %v2681 = vunpack.c.0.s8 %v2680
  %v2682 = vlaneseq
  %v2683 = vshrl.u32 %v2682, 7
  %v2684 = vsub.s32 %v2681, %v2683
  %v2685 = vrot.slane %v2677, %v2684
  %v2687 = vunpack.c.l.s4 1966171168
  %v2688 = vunpack.c.0.s8 %v2687
  %v2689 = vlaneseq
  %v2690 = vshrl.u32 %v2689, 7
  %v2691 = vsub.s32 %v2688, %v2690
  %v2692 = vrot.slane %v2678, %v2691
  %v2693 = vcombine.low %v2685, %v2692
  %s2696 = scalar_lea.vmem %s3, 48
  %2697 = vst [vmem:[%s2696] sm:$0xff] %v2644
  %2698 = vst [vmem:[%s2696 + $0x8] sm:$0xff] %v2693
  // Predicated region
  $region14: #{generator_forward.9} parent=0 // pred_check
    _
  $region15: #{generator_forward.9} parent=0 // pred_check_branch
    %2700 = sbr.rel (0) target = $region17
  $region16: #{generator_forward.9} parent=0 // pred_region
    _
  $region17: #{generator_forward.9} parent=0 // pred_fallthru
    _
  // Predicated region
  $region18: #{generator_forward.9} parent=0 // pred_check
    _
  $region19: #{generator_forward.9} parent=0 // pred_check_branch
    %2702 = sbr.rel (0) target = $region21
  $region20: #{generator_forward.9} parent=0 // pred_region
    _
  $region21: #{generator_forward.9} parent=0 // pred_fallthru
    _

</llo_original>
